<compile_context>
chip_gen: v6e
topology: v6e:2x2x1
jax: 0.10.0
libtpu: 0.0.40
codegen_flags: <defaults>
</compile_context>

<pallas_src>
import functools

import jax
import jax.numpy as jnp
import numpy as np
from jax import lax
from jax.experimental import pallas as pl
from jax.experimental.pallas import tpu as pltpu

BN_EPS = 1e-5
VMEM_LIMIT = 32 * 1024 * 1024   # explicit scoped-VMEM budget: > v5e's 16 MiB default,
                                # leaves headroom inside v7x's 64 MiB physical VMEM.


# ----------------------------------------------------------------------------
# Kernel 1/2: (previous-BN affine) -> 3x3 SAME conv -> +bias -> ReLU -> stats.
# ----------------------------------------------------------------------------
def _affine_conv3x3_relu_kernel(x_ref, aff_ref, w_ref, b_ref, y_ref, st_ref, xp_ref):
    """x_ref  : (1, H, W, Ci)      un-normalized input block (prev stage / raw input)
       aff_ref: (2, Ci)    f32     rows = [scale, shift] of the previous BatchNorm
       w_ref  : (3, 3, Ci, Co)     conv taps (HWIO), MXU dtype
       b_ref  : (1, Co)    f32     conv bias
       y_ref  : (1, H, W, Co)      un-normalized relu(conv) output block
       st_ref : (1, 2, Co) f32     per-block [sum, sum_sq] over the H*W pixels
       xp_ref : VMEM (H+2, W+2, Ci) f32 zero-halo padded scratch
    """
    _, H, W, Ci = x_ref.shape
    Co = w_ref.shape[3]
    P = H * W

    # Zero only the 1-pixel halo; the interior is fully overwritten below.  Done
    # every grid step so the kernel is independent of grid order / core split.
    zrow = jnp.zeros((1, W + 2, Ci), xp_ref.dtype)
    zcol = jnp.zeros((H + 2, 1, Ci), xp_ref.dtype)
    xp_ref[0:1, :, :] = zrow
    xp_ref[H + 1:H + 2, :, :] = zrow
    xp_ref[:, 0:1, :] = zcol
    xp_ref[:, W + 1:W + 2, :] = zcol

    # Previous BatchNorm applied as a per-channel affine in f32 (identity for the
    # first conv).  The zero halo lives in the *normalized* domain, matching
    # Conv2d(padding=1) applied after the BatchNorm.
    xin = x_ref[0].reshape(P, Ci).astype(jnp.float32)
    xin = xin * aff_ref[0:1, :] + aff_ref[1:2, :]
    xp_ref[1:H + 1, 1:W + 1, :] = xin.reshape(H, W, Ci)

    # 3x3 conv as 9 accumulating MXU matmuls (no im2col slab, no lane concat).
    acc = jnp.zeros((P, Co), jnp.float32)
    for ky in range(3):
        for kx in range(3):
            tap = xp_ref[ky:ky + H, kx:kx + W, :].reshape(P, Ci)
            acc += jnp.dot(tap.astype(w_ref.dtype), w_ref[ky, kx],
                           preferred_element_type=jnp.float32)
    y = jnp.maximum(acc + b_ref[...], 0.0)                       # f32 (P, Co)

    # Single-pass partial statistics for the (global, two-pass) BatchNorm.
    st_ref[0] = jnp.concatenate(
        [jnp.sum(y, axis=0, keepdims=True),
         jnp.sum(y * y, axis=0, keepdims=True)], axis=0)

    # One whole-block store (lane-dense once Co >= 128).
    y_ref[0] = y.reshape(H, W, Co).astype(y_ref.dtype)


# ----------------------------------------------------------------------------
# Kernel 3: BN2 affine -> ConvTranspose2d(k=2, s=2) as one matmul -> ReLU -> stats.
# ----------------------------------------------------------------------------
def _affine_deconv2x2_relu_kernel(y_ref, aff_ref, wt_ref, bt_ref, z_ref, st_ref):
    """y_ref  : (1, Pt, C)          un-normalized conv2 output rows (Pt pixels)
       aff_ref: (2, C)      f32     BN2 [scale, shift]
       wt_ref : (C, 4*half)         deconv weights, columns grouped as (ky, kx, c)
       bt_ref : (1, 4*half) f32     deconv bias tiled over the 4 taps
       z_ref  : (1, Pt, 4*half)     un-normalized relu(deconv) output
       st_ref : (1, 1, 2, 4*half)   per-block [sum, sum_sq]
    """
    y = y_ref[0].astype(jnp.float32) * aff_ref[0:1, :] + aff_ref[1:2, :]
    z = jnp.dot(y.astype(wt_ref.dtype), wt_ref[...],
                preferred_element_type=jnp.float32)
    z = jnp.maximum(z + bt_ref[...], 0.0)
    st_ref[0, 0] = jnp.concatenate(
        [jnp.sum(z, axis=0, keepdims=True),
         jnp.sum(z * z, axis=0, keepdims=True)], axis=0)
    z_ref[0] = z.astype(z_ref.dtype)


# ----------------------------------------------------------------------------
# Host/XLA-side glue: turn [sum, sum_sq] into the BN scale/shift affine.
# ----------------------------------------------------------------------------
def _bn_affine_from_stats(stats_sum, count, gamma, beta):
    mean = stats_sum[0] / count
    var = stats_sum[1] / count - mean * mean       # biased (training-mode) variance
    scale = gamma * lax.rsqrt(var + BN_EPS)
    shift = beta - mean * scale
    return jnp.stack([scale, shift], axis=0)       # (2, C) f32


# ----------------------------------------------------------------------------
# UpLayer forward (NCHW in / NCHW out, like the PyTorch module).
# ----------------------------------------------------------------------------
def up_layer_forward(x_nchw, params, matmul_dtype=jnp.bfloat16):
    N, Cin, H, W = x_nchw.shape
    Cout = params["w1"].shape[-1]
    half = params["wt3"].shape[1]
    P = H * W
    row_tile = 8 if H % 8 == 0 else H              # no-halo row tiling (deconv stage)
    n_tiles = H // row_tile
    Pt = row_tile * W

    x = jnp.transpose(x_nchw, (0, 2, 3, 1)).astype(jnp.float32)      # NHWC

    # ---- tiny host/XLA packing of weights & coalesced per-channel parameters ----
    w1 = params["w1"].astype(matmul_dtype)                           # (3,3,Cin,Cout)
    w2 = params["w2"].astype(matmul_dtype)                           # (3,3,Cout,Cout)
    wt = jnp.transpose(params["wt3"], (0, 2, 3, 1)).reshape(Cout, 4 * half)
    wt = wt.astype(matmul_dtype)                                     # cols = (ky,kx,c)
    b1 = params["b1"].reshape(1, Cout).astype(jnp.float32)
    b2 = params["b2"].reshape(1, Cout).astype(jnp.float32)
    b3t = jnp.tile(params["b3"].reshape(1, half), (1, 4)).astype(jnp.float32)
    aff_id = jnp.concatenate([jnp.ones((1, Cin), jnp.float32),
                              jnp.zeros((1, Cin), jnp.float32)], axis=0)

    conv_cparams = pltpu.CompilerParams(dimension_semantics=("parallel",),
                                        vmem_limit_bytes=VMEM_LIMIT)

    def conv_stage(x_in, aff, w, b, ci, co):
        return pl.pallas_call(
            _affine_conv3x3_relu_kernel,
            grid=(N,),
            in_specs=[
                pl.BlockSpec((1, H, W, ci), lambda n: (n, 0, 0, 0)),
                pl.BlockSpec((2, ci), lambda n: (0, 0)),
                pl.BlockSpec((3, 3, ci, co), lambda n: (0, 0, 0, 0)),
                pl.BlockSpec((1, co), lambda n: (0, 0)),
            ],
            out_specs=[
                pl.BlockSpec((1, H, W, co), lambda n: (n, 0, 0, 0)),
                pl.BlockSpec((1, 2, co), lambda n: (n, 0, 0)),
            ],
            out_shape=[
                jax.ShapeDtypeStruct((N, H, W, co), matmul_dtype),
                jax.ShapeDtypeStruct((N, 2, co), jnp.float32),
            ],
            scratch_shapes=[pltpu.VMEM((H + 2, W + 2, ci), jnp.float32)],
            compiler_params=conv_cparams,
        )(x_in, aff, w, b)

    # ---- stage 1: conv1 + ReLU (identity affine; BN1 statistics accumulated) ----
    y1, st1 = conv_stage(x, aff_id, w1, b1, Cin, Cout)
    aff1 = _bn_affine_from_stats(jnp.sum(st1, axis=0), N * P,
                                 params["g1"], params["be1"])

    # ---- stage 2: BN1 (fused into the read) + conv2 + ReLU ----
    y2, st2 = conv_stage(y1, aff1, w2, b2, Cout, Cout)
    aff2 = _bn_affine_from_stats(jnp.sum(st2, axis=0), N * P,
                                 params["g2"], params["be2"])

    # ---- stage 3: BN2 + ConvTranspose2d(k=2, s=2) + ReLU, row-tiled grid ----
    z, st3 = pl.pallas_call(
        _affine_deconv2x2_relu_kernel,
        grid=(N, n_tiles),
        in_specs=[
            pl.BlockSpec((1, Pt, Cout), lambda n, t: (n, t, 0)),
            pl.BlockSpec((2, Cout), lambda n, t: (0, 0)),
            pl.BlockSpec((Cout, 4 * half), lambda n, t: (0, 0)),
            pl.BlockSpec((1, 4 * half), lambda n, t: (0, 0)),
        ],
        out_specs=[
            pl.BlockSpec((1, Pt, 4 * half), lambda n, t: (n, t, 0)),
            pl.BlockSpec((1, 1, 2, 4 * half), lambda n, t: (n, t, 0, 0)),
        ],
        out_shape=[
            jax.ShapeDtypeStruct((N, P, 4 * half), matmul_dtype),
            jax.ShapeDtypeStruct((N, n_tiles, 2, 4 * half), jnp.float32),
        ],
        compiler_params=pltpu.CompilerParams(
            dimension_semantics=("parallel", "parallel"),
            vmem_limit_bytes=VMEM_LIMIT),
    )(y2.reshape(N, P, Cout), aff2, wt, b3t)

    # ---- BN3 statistics: pooled over batch, spatial tiles and the 4 (ky,kx) taps
    #      (each upsampled pixel appears in exactly one tap group). ----
    s3 = jnp.sum(st3, axis=(0, 1)).reshape(2, 4, half).sum(axis=1)    # (2, half)
    aff3 = _bn_affine_from_stats(s3, 4 * N * P, params["g3"], params["be3"])
    aff3t = jnp.tile(aff3, (1, 4))                                    # (2, 4*half)

    # ---- BN3 affine folded into the single output-layout pass:
    #      tap-grouped (P, (ky,kx,c)) -> NCHW with the 2x2 spatial interleave ----
    out = z.astype(jnp.float32) * aff3t[0] + aff3t[1]                 # (N, P, 4*half)
    out = out.reshape(N, H, W, 2, 2, half)                            # [n,i,j,ky,kx,c]
    out = jnp.transpose(out, (0, 5, 1, 3, 2, 4))                      # [n,c,i,ky,j,kx]
    return out.reshape(N, half, 2 * H, 2 * W)                         # NCHW


# ----------------------------------------------------------------------------
# Pure-JAX f32 reference for the numerical check.
# ----------------------------------------------------------------------------
def _ref_forward(x_nchw, params):
    x = jnp.transpose(x_nchw, (0, 2, 3, 1)).astype(jnp.float32)

    def conv(x, w, b):
        y = lax.conv_general_dilated(
            x, w, (1, 1), "SAME",
            dimension_numbers=("NHWC", "HWIO", "NHWC"),
            precision=lax.Precision.HIGHEST)
        return jax.nn.relu(y + b.reshape(1, 1, 1, -1))

    def bn(x, g, be):
        m = jnp.mean(x, axis=(0, 1, 2), keepdims=True)
        v = jnp.mean((x - m) ** 2, axis=(0, 1, 2), keepdims=True)
        return (x - m) / jnp.sqrt(v + BN_EPS) * g.reshape(1, 1, 1, -1) \
               + be.reshape(1, 1, 1, -1)

    x = bn(conv(x, params["w1"], params["b1"]), params["g1"], params["be1"])
    x = bn(conv(x, params["w2"], params["b2"]), params["g2"], params["be2"])

    wt = params["wt3"]                                               # (Cin, half, 2, 2)
    N, H, W, _ = x.shape
    half = wt.shape[1]
    t = jnp.einsum("nhwi,ioyx->nhwyxo", x, wt,
                   precision=lax.Precision.HIGHEST)                  # (N,H,W,2,2,half)
    t = jnp.transpose(t, (0, 1, 3, 2, 4, 5)).reshape(N, 2 * H, 2 * W, half)
    t = jax.nn.relu(t + params["b3"].reshape(1, 1, 1, -1))
    t = bn(t, params["g3"], params["be3"])
    return jnp.transpose(t, (0, 3, 1, 2))


def make_params(key, in_units, out_units):
    ks = jax.random.split(key, 13)
    half = out_units // 2
    p = {
        # conv weights generated directly in HWIO (== PyTorch OIHW transposed)
        "w1": 0.2 * jax.random.normal(ks[0], (3, 3, in_units, out_units), jnp.float32),
        "b1": 0.1 * jax.random.normal(ks[1], (out_units,), jnp.float32),
        "g1": 1.0 + 0.1 * jax.random.normal(ks[2], (out_units,), jnp.float32),
        "be1": 0.1 * jax.random.normal(ks[3], (out_units,), jnp.float32),
        "w2": 0.2 * jax.random.normal(ks[4], (3, 3, out_units, out_units), jnp.float32),
        "b2": 0.1 * jax.random.normal(ks[5], (out_units,), jnp.float32),
        "g2": 1.0 + 0.1 * jax.random.normal(ks[6], (out_units,), jnp.float32),
        "be2": 0.1 * jax.random.normal(ks[7], (out_units,), jnp.float32),
        # ConvTranspose2d weight in PyTorch layout (Cin, Cout, kH, kW)
        "wt3": 0.2 * jax.random.normal(ks[8], (out_units, half, 2, 2), jnp.float32),
        "b3": 0.1 * jax.random.normal(ks[9], (half,), jnp.float32),
        "g3": 1.0 + 0.1 * jax.random.normal(ks[10], (half,), jnp.float32),
        "be3": 0.1 * jax.random.normal(ks[11], (half,), jnp.float32),
    }
    return p, ks[12]


if __name__ == "__main__":
    in_units, out_units = 4, 8
    N, H, W = 2, 16, 16

    params, kx = make_params(jax.random.PRNGKey(0), in_units, out_units)
    x = jax.random.normal(kx, (N, in_units, H, W), jnp.float32)      # NCHW input

    ref = jax.block_until_ready(_ref_forward(x, params))

    # f32 MXU path: tight check against the pure-JAX reference.
    fwd_f32 = jax.jit(functools.partial(up_layer_forward, matmul_dtype=jnp.float32))
    out_f32 = jax.block_until_ready(fwd_f32(x, params))
    assert out_f32.shape == (N, out_units // 2, 2 * H, 2 * W), out_f32.shape
    np.testing.assert_allclose(np.asarray(out_f32), np.asarray(ref),
                               rtol=2e-3, atol=2e-3)

    # bf16 MXU path (production configuration: half the VMEM, ~2x MXU throughput).
    # Loosened tolerance per review: matmul inputs are rounded to bf16, the f32
    # reference is not.
    fwd_bf16 = jax.jit(functools.partial(up_layer_forward, matmul_dtype=jnp.bfloat16))
    out_bf16 = jax.block_until_ready(fwd_bf16(x, params))
    assert out_bf16.shape == (N, out_units // 2, 2 * H, 2 * W), out_bf16.shape
    np.testing.assert_allclose(np.asarray(out_bf16), np.asarray(ref),
                               rtol=1.5e-1, atol=1.5e-1)

    print("KERNEL_OK")
</pallas_src>

<mosaic_0001>
module attributes {stable_mosaic.version = 11 : i64} {
  func.func @_affine_deconv2x2_relu_kernel(%arg0: i32, %arg1: i32, %arg2: memref<1x128x8xf32, #tpu.memory_space<vmem>>, %arg3: memref<2x8xf32, #tpu.memory_space<vmem>>, %arg4: memref<8x16xf32, #tpu.memory_space<vmem>>, %arg5: memref<1x16xf32, #tpu.memory_space<vmem>>, %arg6: memref<1x128x16xf32, #tpu.memory_space<vmem>>, %arg7: memref<1x1x2x16xf32, #tpu.memory_space<vmem>>) attributes {dimension_semantics = [#tpu.dimension_semantics<parallel>, #tpu.dimension_semantics<parallel>], iteration_bounds = array<i64: 2, 2>, scalar_prefetch = 0 : i64, scratch_operands = 0 : i64, tpu.core_type = #tpu.core_type<tc>, window_params = [{transform_indices = @transform_0, window_bounds = array<i64: 1, 128, 8>}, {pipeline_mode = #tpu.pipeline_mode<synchronous>, transform_indices = @transform_1, window_bounds = array<i64: 2, 8>}, {pipeline_mode = #tpu.pipeline_mode<synchronous>, transform_indices = @transform_2, window_bounds = array<i64: 8, 16>}, {pipeline_mode = #tpu.pipeline_mode<synchronous>, transform_indices = @transform_3, window_bounds = array<i64: 1, 16>}, {transform_indices = @transform_4, window_bounds = array<i64: 1, 128, 16>}, {transform_indices = @transform_5, window_bounds = array<i64: 1, 1, 2, 16>}]} {
    %c0 = arith.constant 0 : index
    %c0_0 = arith.constant 0 : index
    %c0_1 = arith.constant 0 : index
    %0 = vector.load %arg2[%c0, %c0_0, %c0_1] : memref<1x128x8xf32, #tpu.memory_space<vmem>>, vector<1x128x8xf32>
    %1 = vector.shape_cast %0 : vector<1x128x8xf32> to vector<128x8xf32>
    %c0_2 = arith.constant 0 : index
    %c0_3 = arith.constant 0 : index
    %2 = vector.load %arg3[%c0_2, %c0_3] : memref<2x8xf32, #tpu.memory_space<vmem>>, vector<1x8xf32>
    %3 = vector.broadcast %2 : vector<1x8xf32> to vector<128x8xf32>
    %4 = arith.mulf %1, %3 : vector<128x8xf32>
    %c1 = arith.constant 1 : index
    %c0_4 = arith.constant 0 : index
    %5 = vector.load %arg3[%c1, %c0_4] : memref<2x8xf32, #tpu.memory_space<vmem>>, vector<1x8xf32>
    %6 = vector.broadcast %5 : vector<1x8xf32> to vector<128x8xf32>
    %7 = arith.addf %4, %6 : vector<128x8xf32>
    %c0_5 = arith.constant 0 : index
    %c0_6 = arith.constant 0 : index
    %8 = vector.load %arg4[%c0_5, %c0_6] : memref<8x16xf32, #tpu.memory_space<vmem>>, vector<8x16xf32>
    %cst = arith.constant dense<0.000000e+00> : vector<128x16xf32>
    %9 = tpu.matmul %7, %8, %cst {dimension_numbers = #tpu.dot_dimension_numbers<[1], [0], [0], [1], [0, 0, 1, 1], [], []>} : vector<128x8xf32>, vector<8x16xf32>, vector<128x16xf32> -> vector<128x16xf32>
    %c0_7 = arith.constant 0 : index
    %c0_8 = arith.constant 0 : index
    %10 = vector.load %arg5[%c0_7, %c0_8] : memref<1x16xf32, #tpu.memory_space<vmem>>, vector<1x16xf32>
    %11 = vector.broadcast %10 : vector<1x16xf32> to vector<128x16xf32>
    %12 = arith.addf %9, %11 : vector<128x16xf32>
    %cst_9 = arith.constant 0.000000e+00 : f32
    %13 = vector.broadcast %cst_9 : f32 to vector<128x16xf32>
    %14 = arith.maximumf %12, %13 : vector<128x16xf32>
    %cst_10 = arith.constant dense<0.000000e+00> : vector<16xf32>
    %15 = vector.multi_reduction <add>, %14, %cst_10 [0] : vector<128x16xf32> to vector<16xf32>
    %16 = vector.shape_cast %15 : vector<16xf32> to vector<1x16xf32>
    %17 = arith.mulf %14, %14 : vector<128x16xf32>
    %cst_11 = arith.constant dense<0.000000e+00> : vector<16xf32>
    %18 = vector.multi_reduction <add>, %17, %cst_11 [0] : vector<128x16xf32> to vector<16xf32>
    %19 = vector.shape_cast %18 : vector<16xf32> to vector<1x16xf32>
    %20 = tpu.concatenate %16, %19 in 0 : vector<1x16xf32>, vector<1x16xf32> -> vector<2x16xf32>
    %c0_12 = arith.constant 0 : index
    %c0_13 = arith.constant 0 : index
    %c0_14 = arith.constant 0 : index
    %c0_15 = arith.constant 0 : index
    %21 = vector.load %arg7[%c0_12, %c0_13, %c0_14, %c0_15] : memref<1x1x2x16xf32, #tpu.memory_space<vmem>>, vector<1x1x2x16xf32>
    %22 = vector.shape_cast %21 : vector<1x1x2x16xf32> to vector<2x16xf32>
    %23 = vector.shape_cast %20 : vector<2x16xf32> to vector<1x1x2x16xf32>
    tpu.vector_store %arg7[%c0_12, %c0_13, %c0_14, %c0_15], %23 {strides = array<i32>} : memref<1x1x2x16xf32, #tpu.memory_space<vmem>>, vector<1x1x2x16xf32>,
    %c0_16 = arith.constant 0 : index
    %c0_17 = arith.constant 0 : index
    %c0_18 = arith.constant 0 : index
    %24 = vector.load %arg6[%c0_16, %c0_17, %c0_18] : memref<1x128x16xf32, #tpu.memory_space<vmem>>, vector<1x128x16xf32>
    %25 = vector.shape_cast %24 : vector<1x128x16xf32> to vector<128x16xf32>
    %26 = vector.shape_cast %14 : vector<128x16xf32> to vector<1x128x16xf32>
    tpu.vector_store %arg6[%c0_16, %c0_17, %c0_18], %26 {strides = array<i32>} : memref<1x128x16xf32, #tpu.memory_space<vmem>>, vector<1x128x16xf32>,
    return
  }
  func.func @transform_0(%arg0: i32, %arg1: i32) -> (i32, i32, i32) {
    %c0_i32 = arith.constant 0 : i32
    %c0_i32_0 = arith.constant 0 : i32
    return %arg0, %arg1, %c0_i32 : i32, i32, i32
  }
  func.func @transform_1(%arg0: i32, %arg1: i32) -> (i32, i32) {
    %c0_i32 = arith.constant 0 : i32
    %c0_i32_0 = arith.constant 0 : i32
    %c0_i32_1 = arith.constant 0 : i32
    return %c0_i32, %c0_i32_0 : i32, i32
  }
  func.func @transform_2(%arg0: i32, %arg1: i32) -> (i32, i32) {
    %c0_i32 = arith.constant 0 : i32
    %c0_i32_0 = arith.constant 0 : i32
    %c0_i32_1 = arith.constant 0 : i32
    return %c0_i32, %c0_i32_0 : i32, i32
  }
  func.func @transform_3(%arg0: i32, %arg1: i32) -> (i32, i32) {
    %c0_i32 = arith.constant 0 : i32
    %c0_i32_0 = arith.constant 0 : i32
    %c0_i32_1 = arith.constant 0 : i32
    return %c0_i32, %c0_i32_0 : i32, i32
  }
  func.func @transform_4(%arg0: i32, %arg1: i32) -> (i32, i32, i32) {
    %c0_i32 = arith.constant 0 : i32
    %c0_i32_0 = arith.constant 0 : i32
    return %arg0, %arg1, %c0_i32 : i32, i32, i32
  }
  func.func @transform_5(%arg0: i32, %arg1: i32) -> (i32, i32, i32, i32) {
    %c0_i32 = arith.constant 0 : i32
    %c0_i32_0 = arith.constant 0 : i32
    %c0_i32_1 = arith.constant 0 : i32
    return %arg0, %arg1, %c0_i32, %c0_i32_0 : i32, i32, i32, i32
  }
}

module attributes {stable_mosaic.version = 11 : i64} {
  func.func @_affine_conv3x3_relu_kernel(%arg0: i32, %arg1: memref<1x16x16x8xf32, #tpu.memory_space<vmem>>, %arg2: memref<2x8xf32, #tpu.memory_space<vmem>>, %arg3: memref<3x3x8x8xf32, #tpu.memory_space<vmem>>, %arg4: memref<1x8xf32, #tpu.memory_space<vmem>>, %arg5: memref<1x16x16x8xf32, #tpu.memory_space<vmem>>, %arg6: memref<1x2x8xf32, #tpu.memory_space<vmem>>, %arg7: memref<18x18x8xf32, #tpu.memory_space<vmem>>) attributes {dimension_semantics = [#tpu.dimension_semantics<parallel>], iteration_bounds = array<i64: 2>, scalar_prefetch = 0 : i64, scratch_operands = 1 : i64, tpu.core_type = #tpu.core_type<tc>, window_params = [{transform_indices = @transform_0, window_bounds = array<i64: 1, 16, 16, 8>}, {pipeline_mode = #tpu.pipeline_mode<synchronous>, transform_indices = @transform_1, window_bounds = array<i64: 2, 8>}, {pipeline_mode = #tpu.pipeline_mode<synchronous>, transform_indices = @transform_2, window_bounds = array<i64: 3, 3, 8, 8>}, {pipeline_mode = #tpu.pipeline_mode<synchronous>, transform_indices = @transform_3, window_bounds = array<i64: 1, 8>}, {transform_indices = @transform_4, window_bounds = array<i64: 1, 16, 16, 8>}, {transform_indices = @transform_5, window_bounds = array<i64: 1, 2, 8>}]} {
    %cst = arith.constant 0.000000e+00 : f32
    %0 = vector.broadcast %cst : f32 to vector<1x18x8xf32>
    %cst_0 = arith.constant 0.000000e+00 : f32
    %1 = vector.broadcast %cst_0 : f32 to vector<18x1x8xf32>
    %c0 = arith.constant 0 : index
    %c0_1 = arith.constant 0 : index
    %c0_2 = arith.constant 0 : index
    %2 = vector.load %arg7[%c0, %c0_1, %c0_2] : memref<18x18x8xf32, #tpu.memory_space<vmem>>, vector<1x18x8xf32>
    tpu.vector_store %arg7[%c0, %c0_1, %c0_2], %0 {strides = array<i32>} : memref<18x18x8xf32, #tpu.memory_space<vmem>>, vector<1x18x8xf32>,
    %c17 = arith.constant 17 : index
    %c0_3 = arith.constant 0 : index
    %c0_4 = arith.constant 0 : index
    %3 = vector.load %arg7[%c17, %c0_3, %c0_4] : memref<18x18x8xf32, #tpu.memory_space<vmem>>, vector<1x18x8xf32>
    tpu.vector_store %arg7[%c17, %c0_3, %c0_4], %0 {strides = array<i32>} : memref<18x18x8xf32, #tpu.memory_space<vmem>>, vector<1x18x8xf32>,
    %c0_5 = arith.constant 0 : index
    %c0_6 = arith.constant 0 : index
    %c0_7 = arith.constant 0 : index
    %4 = vector.load %arg7[%c0_5, %c0_6, %c0_7] : memref<18x18x8xf32, #tpu.memory_space<vmem>>, vector<18x1x8xf32>
    tpu.vector_store %arg7[%c0_5, %c0_6, %c0_7], %1 {strides = array<i32>} : memref<18x18x8xf32, #tpu.memory_space<vmem>>, vector<18x1x8xf32>,
    %c0_8 = arith.constant 0 : index
    %c17_9 = arith.constant 17 : index
    %c0_10 = arith.constant 0 : index
    %5 = vector.load %arg7[%c0_8, %c17_9, %c0_10] : memref<18x18x8xf32, #tpu.memory_space<vmem>>, vector<18x1x8xf32>
    tpu.vector_store %arg7[%c0_8, %c17_9, %c0_10], %1 {strides = array<i32>} : memref<18x18x8xf32, #tpu.memory_space<vmem>>, vector<18x1x8xf32>,
    %c0_11 = arith.constant 0 : index
    %c0_12 = arith.constant 0 : index
    %c0_13 = arith.constant 0 : index
    %c0_14 = arith.constant 0 : index
    %6 = vector.load %arg1[%c0_11, %c0_12, %c0_13, %c0_14] : memref<1x16x16x8xf32, #tpu.memory_space<vmem>>, vector<1x16x16x8xf32>
    %7 = vector.shape_cast %6 : vector<1x16x16x8xf32> to vector<16x16x8xf32>
    %8 = vector.shape_cast %7 : vector<16x16x8xf32> to vector<256x8xf32>
    %c0_15 = arith.constant 0 : index
    %c0_16 = arith.constant 0 : index
    %9 = vector.load %arg2[%c0_15, %c0_16] : memref<2x8xf32, #tpu.memory_space<vmem>>, vector<1x8xf32>
    %10 = vector.broadcast %9 : vector<1x8xf32> to vector<256x8xf32>
    %11 = arith.mulf %8, %10 : vector<256x8xf32>
    %c1 = arith.constant 1 : index
    %c0_17 = arith.constant 0 : index
    %12 = vector.load %arg2[%c1, %c0_17] : memref<2x8xf32, #tpu.memory_space<vmem>>, vector<1x8xf32>
    %13 = vector.broadcast %12 : vector<1x8xf32> to vector<256x8xf32>
    %14 = arith.addf %11, %13 : vector<256x8xf32>
    %15 = vector.shape_cast %14 : vector<256x8xf32> to vector<16x16x8xf32>
    %c1_18 = arith.constant 1 : index
    %c1_19 = arith.constant 1 : index
    %c0_20 = arith.constant 0 : index
    %16 = vector.load %arg7[%c1_18, %c1_19, %c0_20] : memref<18x18x8xf32, #tpu.memory_space<vmem>>, vector<16x16x8xf32>
    tpu.vector_store %arg7[%c1_18, %c1_19, %c0_20], %15 {strides = array<i32>} : memref<18x18x8xf32, #tpu.memory_space<vmem>>, vector<16x16x8xf32>,
    %cst_21 = arith.constant 0.000000e+00 : f32
    %17 = vector.broadcast %cst_21 : f32 to vector<256x8xf32>
    %c0_22 = arith.constant 0 : index
    %c0_23 = arith.constant 0 : index
    %c0_24 = arith.constant 0 : index
    %18 = vector.load %arg7[%c0_22, %c0_23, %c0_24] : memref<18x18x8xf32, #tpu.memory_space<vmem>>, vector<16x16x8xf32>
    %19 = vector.shape_cast %18 : vector<16x16x8xf32> to vector<256x8xf32>
    %c0_25 = arith.constant 0 : index
    %c0_26 = arith.constant 0 : index
    %c0_27 = arith.constant 0 : index
    %c0_28 = arith.constant 0 : index
    %20 = vector.load %arg3[%c0_25, %c0_26, %c0_27, %c0_28] : memref<3x3x8x8xf32, #tpu.memory_space<vmem>>, vector<1x1x8x8xf32>
    %21 = vector.shape_cast %20 : vector<1x1x8x8xf32> to vector<8x8xf32>
    %cst_29 = arith.constant dense<0.000000e+00> : vector<256x8xf32>
    %22 = tpu.matmul %19, %21, %cst_29 {dimension_numbers = #tpu.dot_dimension_numbers<[1], [0], [0], [1], [0, 0, 1, 1], [], []>} : vector<256x8xf32>, vector<8x8xf32>, vector<256x8xf32> -> vector<256x8xf32>
    %23 = arith.addf %17, %22 : vector<256x8xf32>
    %c0_30 = arith.constant 0 : index
    %c1_31 = arith.constant 1 : index
    %c0_32 = arith.constant 0 : index
    %24 = vector.load %arg7[%c0_30, %c1_31, %c0_32] : memref<18x18x8xf32, #tpu.memory_space<vmem>>, vector<16x16x8xf32>
    %25 = vector.shape_cast %24 : vector<16x16x8xf32> to vector<256x8xf32>
    %c0_33 = arith.constant 0 : index
    %c1_34 = arith.constant 1 : index
    %c0_35 = arith.constant 0 : index
    %c0_36 = arith.constant 0 : index
    %26 = vector.load %arg3[%c0_33, %c1_34, %c0_35, %c0_36] : memref<3x3x8x8xf32, #tpu.memory_space<vmem>>, vector<1x1x8x8xf32>
    %27 = vector.shape_cast %26 : vector<1x1x8x8xf32> to vector<8x8xf32>
    %cst_37 = arith.constant dense<0.000000e+00> : vector<256x8xf32>
    %28 = tpu.matmul %25, %27, %cst_37 {dimension_numbers = #tpu.dot_dimension_numbers<[1], [0], [0], [1], [0, 0, 1, 1], [], []>} : vector<256x8xf32>, vector<8x8xf32>, vector<256x8xf32> -> vector<256x8xf32>
    %29 = arith.addf %23, %28 : vector<256x8xf32>
    %c0_38 = arith.constant 0 : index
    %c2 = arith.constant 2 : index
    %c0_39 = arith.constant 0 : index
    %30 = vector.load %arg7[%c0_38, %c2, %c0_39] : memref<18x18x8xf32, #tpu.memory_space<vmem>>, vector<16x16x8xf32>
    %31 = vector.shape_cast %30 : vector<16x16x8xf32> to vector<256x8xf32>
    %c0_40 = arith.constant 0 : index
    %c2_41 = arith.constant 2 : index
    %c0_42 = arith.constant 0 : index
    %c0_43 = arith.constant 0 : index
    %32 = vector.load %arg3[%c0_40, %c2_41, %c0_42, %c0_43] : memref<3x3x8x8xf32, #tpu.memory_space<vmem>>, vector<1x1x8x8xf32>
    %33 = vector.shape_cast %32 : vector<1x1x8x8xf32> to vector<8x8xf32>
    %cst_44 = arith.constant dense<0.000000e+00> : vector<256x8xf32>
    %34 = tpu.matmul %31, %33, %cst_44 {dimension_numbers = #tpu.dot_dimension_numbers<[1], [0], [0], [1], [0, 0, 1, 1], [], []>} : vector<256x8xf32>, vector<8x8xf32>, vector<256x8xf32> -> vector<256x8xf32>
    %35 = arith.addf %29, %34 : vector<256x8xf32>
    %c1_45 = arith.constant 1 : index
    %c0_46 = arith.constant 0 : index
    %c0_47 = arith.constant 0 : index
    %36 = vector.load %arg7[%c1_45, %c0_46, %c0_47] : memref<18x18x8xf32, #tpu.memory_space<vmem>>, vector<16x16x8xf32>
    %37 = vector.shape_cast %36 : vector<16x16x8xf32> to vector<256x8xf32>
    %c1_48 = arith.constant 1 : index
    %c0_49 = arith.constant 0 : index
    %c0_50 = arith.constant 0 : index
    %c0_51 = arith.constant 0 : index
    %38 = vector.load %arg3[%c1_48, %c0_49, %c0_50, %c0_51] : memref<3x3x8x8xf32, #tpu.memory_space<vmem>>, vector<1x1x8x8xf32>
    %39 = vector.shape_cast %38 : vector<1x1x8x8xf32> to vector<8x8xf32>
    %cst_52 = arith.constant dense<0.000000e+00> : vector<256x8xf32>
    %40 = tpu.matmul %37, %39, %cst_52 {dimension_numbers = #tpu.dot_dimension_numbers<[1], [0], [0], [1], [0, 0, 1, 1], [], []>} : vector<256x8xf32>, vector<8x8xf32>, vector<256x8xf32> -> vector<256x8xf32>
    %41 = arith.addf %35, %40 : vector<256x8xf32>
    %c1_53 = arith.constant 1 : index
    %c1_54 = arith.constant 1 : index
    %c0_55 = arith.constant 0 : index
    %42 = vector.load %arg7[%c1_53, %c1_54, %c0_55] : memref<18x18x8xf32, #tpu.memory_space<vmem>>, vector<16x16x8xf32>
    %43 = vector.shape_cast %42 : vector<16x16x8xf32> to vector<256x8xf32>
    %c1_56 = arith.constant 1 : index
    %c1_57 = arith.constant 1 : index
    %c0_58 = arith.constant 0 : index
    %c0_59 = arith.constant 0 : index
    %44 = vector.load %arg3[%c1_56, %c1_57, %c0_58, %c0_59] : memref<3x3x8x8xf32, #tpu.memory_space<vmem>>, vector<1x1x8x8xf32>
    %45 = vector.shape_cast %44 : vector<1x1x8x8xf32> to vector<8x8xf32>
    %cst_60 = arith.constant dense<0.000000e+00> : vector<256x8xf32>
    %46 = tpu.matmul %43, %45, %cst_60 {dimension_numbers = #tpu.dot_dimension_numbers<[1], [0], [0], [1], [0, 0, 1, 1], [], []>} : vector<256x8xf32>, vector<8x8xf32>, vector<256x8xf32> -> vector<256x8xf32>
    %47 = arith.addf %41, %46 : vector<256x8xf32>
    %c1_61 = arith.constant 1 : index
    %c2_62 = arith.constant 2 : index
    %c0_63 = arith.constant 0 : index
    %48 = vector.load %arg7[%c1_61, %c2_62, %c0_63] : memref<18x18x8xf32, #tpu.memory_space<vmem>>, vector<16x16x8xf32>
    %49 = vector.shape_cast %48 : vector<16x16x8xf32> to vector<256x8xf32>
    %c1_64 = arith.constant 1 : index
    %c2_65 = arith.constant 2 : index
    %c0_66 = arith.constant 0 : index
    %c0_67 = arith.constant 0 : index
    %50 = vector.load %arg3[%c1_64, %c2_65, %c0_66, %c0_67] : memref<3x3x8x8xf32, #tpu.memory_space<vmem>>, vector<1x1x8x8xf32>
    %51 = vector.shape_cast %50 : vector<1x1x8x8xf32> to vector<8x8xf32>
    %cst_68 = arith.constant dense<0.000000e+00> : vector<256x8xf32>
    %52 = tpu.matmul %49, %51, %cst_68 {dimension_numbers = #tpu.dot_dimension_numbers<[1], [0], [0], [1], [0, 0, 1, 1], [], []>} : vector<256x8xf32>, vector<8x8xf32>, vector<256x8xf32> -> vector<256x8xf32>
    %53 = arith.addf %47, %52 : vector<256x8xf32>
    %c2_69 = arith.constant 2 : index
    %c0_70 = arith.constant 0 : index
    %c0_71 = arith.constant 0 : index
    %54 = vector.load %arg7[%c2_69, %c0_70, %c0_71] : memref<18x18x8xf32, #tpu.memory_space<vmem>>, vector<16x16x8xf32>
    %55 = vector.shape_cast %54 : vector<16x16x8xf32> to vector<256x8xf32>
    %c2_72 = arith.constant 2 : index
    %c0_73 = arith.constant 0 : index
    %c0_74 = arith.constant 0 : index
    %c0_75 = arith.constant 0 : index
    %56 = vector.load %arg3[%c2_72, %c0_73, %c0_74, %c0_75] : memref<3x3x8x8xf32, #tpu.memory_space<vmem>>, vector<1x1x8x8xf32>
    %57 = vector.shape_cast %56 : vector<1x1x8x8xf32> to vector<8x8xf32>
    %cst_76 = arith.constant dense<0.000000e+00> : vector<256x8xf32>
    %58 = tpu.matmul %55, %57, %cst_76 {dimension_numbers = #tpu.dot_dimension_numbers<[1], [0], [0], [1], [0, 0, 1, 1], [], []>} : vector<256x8xf32>, vector<8x8xf32>, vector<256x8xf32> -> vector<256x8xf32>
    %59 = arith.addf %53, %58 : vector<256x8xf32>
    %c2_77 = arith.constant 2 : index
    %c1_78 = arith.constant 1 : index
    %c0_79 = arith.constant 0 : index
    %60 = vector.load %arg7[%c2_77, %c1_78, %c0_79] : memref<18x18x8xf32, #tpu.memory_space<vmem>>, vector<16x16x8xf32>
    %61 = vector.shape_cast %60 : vector<16x16x8xf32> to vector<256x8xf32>
    %c2_80 = arith.constant 2 : index
    %c1_81 = arith.constant 1 : index
    %c0_82 = arith.constant 0 : index
    %c0_83 = arith.constant 0 : index
    %62 = vector.load %arg3[%c2_80, %c1_81, %c0_82, %c0_83] : memref<3x3x8x8xf32, #tpu.memory_space<vmem>>, vector<1x1x8x8xf32>
    %63 = vector.shape_cast %62 : vector<1x1x8x8xf32> to vector<8x8xf32>
    %cst_84 = arith.constant dense<0.000000e+00> : vector<256x8xf32>
    %64 = tpu.matmul %61, %63, %cst_84 {dimension_numbers = #tpu.dot_dimension_numbers<[1], [0], [0], [1], [0, 0, 1, 1], [], []>} : vector<256x8xf32>, vector<8x8xf32>, vector<256x8xf32> -> vector<256x8xf32>
    %65 = arith.addf %59, %64 : vector<256x8xf32>
    %c2_85 = arith.constant 2 : index
    %c2_86 = arith.constant 2 : index
    %c0_87 = arith.constant 0 : index
    %66 = vector.load %arg7[%c2_85, %c2_86, %c0_87] : memref<18x18x8xf32, #tpu.memory_space<vmem>>, vector<16x16x8xf32>
    %67 = vector.shape_cast %66 : vector<16x16x8xf32> to vector<256x8xf32>
    %c2_88 = arith.constant 2 : index
    %c2_89 = arith.constant 2 : index
    %c0_90 = arith.constant 0 : index
    %c0_91 = arith.constant 0 : index
    %68 = vector.load %arg3[%c2_88, %c2_89, %c0_90, %c0_91] : memref<3x3x8x8xf32, #tpu.memory_space<vmem>>, vector<1x1x8x8xf32>
    %69 = vector.shape_cast %68 : vector<1x1x8x8xf32> to vector<8x8xf32>
    %cst_92 = arith.constant dense<0.000000e+00> : vector<256x8xf32>
    %70 = tpu.matmul %67, %69, %cst_92 {dimension_numbers = #tpu.dot_dimension_numbers<[1], [0], [0], [1], [0, 0, 1, 1], [], []>} : vector<256x8xf32>, vector<8x8xf32>, vector<256x8xf32> -> vector<256x8xf32>
    %71 = arith.addf %65, %70 : vector<256x8xf32>
    %c0_93 = arith.constant 0 : index
    %c0_94 = arith.constant 0 : index
    %72 = vector.load %arg4[%c0_93, %c0_94] : memref<1x8xf32, #tpu.memory_space<vmem>>, vector<1x8xf32>
    %73 = vector.broadcast %72 : vector<1x8xf32> to vector<256x8xf32>
    %74 = arith.addf %71, %73 : vector<256x8xf32>
    %cst_95 = arith.constant 0.000000e+00 : f32
    %75 = vector.broadcast %cst_95 : f32 to vector<256x8xf32>
    %76 = arith.maximumf %74, %75 : vector<256x8xf32>
    %cst_96 = arith.constant dense<0.000000e+00> : vector<8xf32>
    %77 = vector.multi_reduction <add>, %76, %cst_96 [0] : vector<256x8xf32> to vector<8xf32>
    %78 = vector.shape_cast %77 : vector<8xf32> to vector<1x8xf32>
    %79 = arith.mulf %76, %76 : vector<256x8xf32>
    %cst_97 = arith.constant dense<0.000000e+00> : vector<8xf32>
    %80 = vector.multi_reduction <add>, %79, %cst_97 [0] : vector<256x8xf32> to vector<8xf32>
    %81 = vector.shape_cast %80 : vector<8xf32> to vector<1x8xf32>
    %82 = tpu.concatenate %78, %81 in 0 : vector<1x8xf32>, vector<1x8xf32> -> vector<2x8xf32>
    %c0_98 = arith.constant 0 : index
    %c0_99 = arith.constant 0 : index
    %c0_100 = arith.constant 0 : index
    %83 = vector.load %arg6[%c0_98, %c0_99, %c0_100] : memref<1x2x8xf32, #tpu.memory_space<vmem>>, vector<1x2x8xf32>
    %84 = vector.shape_cast %83 : vector<1x2x8xf32> to vector<2x8xf32>
    %85 = vector.shape_cast %82 : vector<2x8xf32> to vector<1x2x8xf32>
    tpu.vector_store %arg6[%c0_98, %c0_99, %c0_100], %85 {strides = array<i32>} : memref<1x2x8xf32, #tpu.memory_space<vmem>>, vector<1x2x8xf32>,
    %86 = vector.shape_cast %76 : vector<256x8xf32> to vector<16x16x8xf32>
    %c0_101 = arith.constant 0 : index
    %c0_102 = arith.constant 0 : index
    %c0_103 = arith.constant 0 : index
    %c0_104 = arith.constant 0 : index
    %87 = vector.load %arg5[%c0_101, %c0_102, %c0_103, %c0_104] : memref<1x16x16x8xf32, #tpu.memory_space<vmem>>, vector<1x16x16x8xf32>
    %88 = vector.shape_cast %87 : vector<1x16x16x8xf32> to vector<16x16x8xf32>
    %89 = vector.shape_cast %86 : vector<16x16x8xf32> to vector<1x16x16x8xf32>
    tpu.vector_store %arg5[%c0_101, %c0_102, %c0_103, %c0_104], %89 {strides = array<i32>} : memref<1x16x16x8xf32, #tpu.memory_space<vmem>>, vector<1x16x16x8xf32>,
    return
  }
  func.func @transform_0(%arg0: i32) -> (i32, i32, i32, i32) {
    %c0_i32 = arith.constant 0 : i32
    %c0_i32_0 = arith.constant 0 : i32
    %c0_i32_1 = arith.constant 0 : i32
    %c0_i32_2 = arith.constant 0 : i32
    return %arg0, %c0_i32, %c0_i32_0, %c0_i32_1 : i32, i32, i32, i32
  }
  func.func @transform_1(%arg0: i32) -> (i32, i32) {
    %c0_i32 = arith.constant 0 : i32
    %c0_i32_0 = arith.constant 0 : i32
    %c0_i32_1 = arith.constant 0 : i32
    return %c0_i32, %c0_i32_0 : i32, i32
  }
  func.func @transform_2(%arg0: i32) -> (i32, i32, i32, i32) {
    %c0_i32 = arith.constant 0 : i32
    %c0_i32_0 = arith.constant 0 : i32
    %c0_i32_1 = arith.constant 0 : i32
    %c0_i32_2 = arith.constant 0 : i32
    %c0_i32_3 = arith.constant 0 : i32
    return %c0_i32, %c0_i32_0, %c0_i32_1, %c0_i32_2 : i32, i32, i32, i32
  }
  func.func @transform_3(%arg0: i32) -> (i32, i32) {
    %c0_i32 = arith.constant 0 : i32
    %c0_i32_0 = arith.constant 0 : i32
    %c0_i32_1 = arith.constant 0 : i32
    return %c0_i32, %c0_i32_0 : i32, i32
  }
  func.func @transform_4(%arg0: i32) -> (i32, i32, i32, i32) {
    %c0_i32 = arith.constant 0 : i32
    %c0_i32_0 = arith.constant 0 : i32
    %c0_i32_1 = arith.constant 0 : i32
    %c0_i32_2 = arith.constant 0 : i32
    return %arg0, %c0_i32, %c0_i32_0, %c0_i32_1 : i32, i32, i32, i32
  }
  func.func @transform_5(%arg0: i32) -> (i32, i32, i32) {
    %c0_i32 = arith.constant 0 : i32
    %c0_i32_0 = arith.constant 0 : i32
    %c0_i32_1 = arith.constant 0 : i32
    return %arg0, %c0_i32, %c0_i32_0 : i32, i32, i32
  }
}

module attributes {stable_mosaic.version = 11 : i64} {
  func.func @_affine_conv3x3_relu_kernel(%arg0: i32, %arg1: memref<1x16x16x4xf32, #tpu.memory_space<vmem>>, %arg2: memref<2x4xf32, #tpu.memory_space<vmem>>, %arg3: memref<3x3x4x8xf32, #tpu.memory_space<vmem>>, %arg4: memref<1x8xf32, #tpu.memory_space<vmem>>, %arg5: memref<1x16x16x8xf32, #tpu.memory_space<vmem>>, %arg6: memref<1x2x8xf32, #tpu.memory_space<vmem>>, %arg7: memref<18x18x4xf32, #tpu.memory_space<vmem>>) attributes {dimension_semantics = [#tpu.dimension_semantics<parallel>], iteration_bounds = array<i64: 2>, scalar_prefetch = 0 : i64, scratch_operands = 1 : i64, tpu.core_type = #tpu.core_type<tc>, window_params = [{transform_indices = @transform_0, window_bounds = array<i64: 1, 16, 16, 4>}, {pipeline_mode = #tpu.pipeline_mode<synchronous>, transform_indices = @transform_1, window_bounds = array<i64: 2, 4>}, {pipeline_mode = #tpu.pipeline_mode<synchronous>, transform_indices = @transform_2, window_bounds = array<i64: 3, 3, 4, 8>}, {pipeline_mode = #tpu.pipeline_mode<synchronous>, transform_indices = @transform_3, window_bounds = array<i64: 1, 8>}, {transform_indices = @transform_4, window_bounds = array<i64: 1, 16, 16, 8>}, {transform_indices = @transform_5, window_bounds = array<i64: 1, 2, 8>}]} {
    %cst = arith.constant 0.000000e+00 : f32
    %0 = vector.broadcast %cst : f32 to vector<1x18x4xf32>
    %cst_0 = arith.constant 0.000000e+00 : f32
    %1 = vector.broadcast %cst_0 : f32 to vector<18x1x4xf32>
    %c0 = arith.constant 0 : index
    %c0_1 = arith.constant 0 : index
    %c0_2 = arith.constant 0 : index
    %2 = vector.load %arg7[%c0, %c0_1, %c0_2] : memref<18x18x4xf32, #tpu.memory_space<vmem>>, vector<1x18x4xf32>
    tpu.vector_store %arg7[%c0, %c0_1, %c0_2], %0 {strides = array<i32>} : memref<18x18x4xf32, #tpu.memory_space<vmem>>, vector<1x18x4xf32>,
    %c17 = arith.constant 17 : index
    %c0_3 = arith.constant 0 : index
    %c0_4 = arith.constant 0 : index
    %3 = vector.load %arg7[%c17, %c0_3, %c0_4] : memref<18x18x4xf32, #tpu.memory_space<vmem>>, vector<1x18x4xf32>
    tpu.vector_store %arg7[%c17, %c0_3, %c0_4], %0 {strides = array<i32>} : memref<18x18x4xf32, #tpu.memory_space<vmem>>, vector<1x18x4xf32>,
    %c0_5 = arith.constant 0 : index
    %c0_6 = arith.constant 0 : index
    %c0_7 = arith.constant 0 : index
    %4 = vector.load %arg7[%c0_5, %c0_6, %c0_7] : memref<18x18x4xf32, #tpu.memory_space<vmem>>, vector<18x1x4xf32>
    tpu.vector_store %arg7[%c0_5, %c0_6, %c0_7], %1 {strides = array<i32>} : memref<18x18x4xf32, #tpu.memory_space<vmem>>, vector<18x1x4xf32>,
    %c0_8 = arith.constant 0 : index
    %c17_9 = arith.constant 17 : index
    %c0_10 = arith.constant 0 : index
    %5 = vector.load %arg7[%c0_8, %c17_9, %c0_10] : memref<18x18x4xf32, #tpu.memory_space<vmem>>, vector<18x1x4xf32>
    tpu.vector_store %arg7[%c0_8, %c17_9, %c0_10], %1 {strides = array<i32>} : memref<18x18x4xf32, #tpu.memory_space<vmem>>, vector<18x1x4xf32>,
    %c0_11 = arith.constant 0 : index
    %c0_12 = arith.constant 0 : index
    %c0_13 = arith.constant 0 : index
    %c0_14 = arith.constant 0 : index
    %6 = vector.load %arg1[%c0_11, %c0_12, %c0_13, %c0_14] : memref<1x16x16x4xf32, #tpu.memory_space<vmem>>, vector<1x16x16x4xf32>
    %7 = vector.shape_cast %6 : vector<1x16x16x4xf32> to vector<16x16x4xf32>
    %8 = vector.shape_cast %7 : vector<16x16x4xf32> to vector<256x4xf32>
    %c0_15 = arith.constant 0 : index
    %c0_16 = arith.constant 0 : index
    %9 = vector.load %arg2[%c0_15, %c0_16] : memref<2x4xf32, #tpu.memory_space<vmem>>, vector<1x4xf32>
    %10 = vector.broadcast %9 : vector<1x4xf32> to vector<256x4xf32>
    %11 = arith.mulf %8, %10 : vector<256x4xf32>
    %c1 = arith.constant 1 : index
    %c0_17 = arith.constant 0 : index
    %12 = vector.load %arg2[%c1, %c0_17] : memref<2x4xf32, #tpu.memory_space<vmem>>, vector<1x4xf32>
    %13 = vector.broadcast %12 : vector<1x4xf32> to vector<256x4xf32>
    %14 = arith.addf %11, %13 : vector<256x4xf32>
    %15 = vector.shape_cast %14 : vector<256x4xf32> to vector<16x16x4xf32>
    %c1_18 = arith.constant 1 : index
    %c1_19 = arith.constant 1 : index
    %c0_20 = arith.constant 0 : index
    %16 = vector.load %arg7[%c1_18, %c1_19, %c0_20] : memref<18x18x4xf32, #tpu.memory_space<vmem>>, vector<16x16x4xf32>
    tpu.vector_store %arg7[%c1_18, %c1_19, %c0_20], %15 {strides = array<i32>} : memref<18x18x4xf32, #tpu.memory_space<vmem>>, vector<16x16x4xf32>,
    %cst_21 = arith.constant 0.000000e+00 : f32
    %17 = vector.broadcast %cst_21 : f32 to vector<256x8xf32>
    %c0_22 = arith.constant 0 : index
    %c0_23 = arith.constant 0 : index
    %c0_24 = arith.constant 0 : index
    %18 = vector.load %arg7[%c0_22, %c0_23, %c0_24] : memref<18x18x4xf32, #tpu.memory_space<vmem>>, vector<16x16x4xf32>
    %19 = vector.shape_cast %18 : vector<16x16x4xf32> to vector<256x4xf32>
    %c0_25 = arith.constant 0 : index
    %c0_26 = arith.constant 0 : index
    %c0_27 = arith.constant 0 : index
    %c0_28 = arith.constant 0 : index
    %20 = vector.load %arg3[%c0_25, %c0_26, %c0_27, %c0_28] : memref<3x3x4x8xf32, #tpu.memory_space<vmem>>, vector<1x1x4x8xf32>
    %21 = vector.shape_cast %20 : vector<1x1x4x8xf32> to vector<4x8xf32>
    %cst_29 = arith.constant dense<0.000000e+00> : vector<256x8xf32>
    %22 = tpu.matmul %19, %21, %cst_29 {dimension_numbers = #tpu.dot_dimension_numbers<[1], [0], [0], [1], [0, 0, 1, 1], [], []>} : vector<256x4xf32>, vector<4x8xf32>, vector<256x8xf32> -> vector<256x8xf32>
    %23 = arith.addf %17, %22 : vector<256x8xf32>
    %c0_30 = arith.constant 0 : index
    %c1_31 = arith.constant 1 : index
    %c0_32 = arith.constant 0 : index
    %24 = vector.load %arg7[%c0_30, %c1_31, %c0_32] : memref<18x18x4xf32, #tpu.memory_space<vmem>>, vector<16x16x4xf32>
    %25 = vector.shape_cast %24 : vector<16x16x4xf32> to vector<256x4xf32>
    %c0_33 = arith.constant 0 : index
    %c1_34 = arith.constant 1 : index
    %c0_35 = arith.constant 0 : index
    %c0_36 = arith.constant 0 : index
    %26 = vector.load %arg3[%c0_33, %c1_34, %c0_35, %c0_36] : memref<3x3x4x8xf32, #tpu.memory_space<vmem>>, vector<1x1x4x8xf32>
    %27 = vector.shape_cast %26 : vector<1x1x4x8xf32> to vector<4x8xf32>
    %cst_37 = arith.constant dense<0.000000e+00> : vector<256x8xf32>
    %28 = tpu.matmul %25, %27, %cst_37 {dimension_numbers = #tpu.dot_dimension_numbers<[1], [0], [0], [1], [0, 0, 1, 1], [], []>} : vector<256x4xf32>, vector<4x8xf32>, vector<256x8xf32> -> vector<256x8xf32>
    %29 = arith.addf %23, %28 : vector<256x8xf32>
    %c0_38 = arith.constant 0 : index
    %c2 = arith.constant 2 : index
    %c0_39 = arith.constant 0 : index
    %30 = vector.load %arg7[%c0_38, %c2, %c0_39] : memref<18x18x4xf32, #tpu.memory_space<vmem>>, vector<16x16x4xf32>
    %31 = vector.shape_cast %30 : vector<16x16x4xf32> to vector<256x4xf32>
    %c0_40 = arith.constant 0 : index
    %c2_41 = arith.constant 2 : index
    %c0_42 = arith.constant 0 : index
    %c0_43 = arith.constant 0 : index
    %32 = vector.load %arg3[%c0_40, %c2_41, %c0_42, %c0_43] : memref<3x3x4x8xf32, #tpu.memory_space<vmem>>, vector<1x1x4x8xf32>
    %33 = vector.shape_cast %32 : vector<1x1x4x8xf32> to vector<4x8xf32>
    %cst_44 = arith.constant dense<0.000000e+00> : vector<256x8xf32>
    %34 = tpu.matmul %31, %33, %cst_44 {dimension_numbers = #tpu.dot_dimension_numbers<[1], [0], [0], [1], [0, 0, 1, 1], [], []>} : vector<256x4xf32>, vector<4x8xf32>, vector<256x8xf32> -> vector<256x8xf32>
    %35 = arith.addf %29, %34 : vector<256x8xf32>
    %c1_45 = arith.constant 1 : index
    %c0_46 = arith.constant 0 : index
    %c0_47 = arith.constant 0 : index
    %36 = vector.load %arg7[%c1_45, %c0_46, %c0_47] : memref<18x18x4xf32, #tpu.memory_space<vmem>>, vector<16x16x4xf32>
    %37 = vector.shape_cast %36 : vector<16x16x4xf32> to vector<256x4xf32>
    %c1_48 = arith.constant 1 : index
    %c0_49 = arith.constant 0 : index
    %c0_50 = arith.constant 0 : index
    %c0_51 = arith.constant 0 : index
    %38 = vector.load %arg3[%c1_48, %c0_49, %c0_50, %c0_51] : memref<3x3x4x8xf32, #tpu.memory_space<vmem>>, vector<1x1x4x8xf32>
    %39 = vector.shape_cast %38 : vector<1x1x4x8xf32> to vector<4x8xf32>
    %cst_52 = arith.constant dense<0.000000e+00> : vector<256x8xf32>
    %40 = tpu.matmul %37, %39, %cst_52 {dimension_numbers = #tpu.dot_dimension_numbers<[1], [0], [0], [1], [0, 0, 1, 1], [], []>} : vector<256x4xf32>, vector<4x8xf32>, vector<256x8xf32> -> vector<256x8xf32>
    %41 = arith.addf %35, %40 : vector<256x8xf32>
    %c1_53 = arith.constant 1 : index
    %c1_54 = arith.constant 1 : index
    %c0_55 = arith.constant 0 : index
    %42 = vector.load %arg7[%c1_53, %c1_54, %c0_55] : memref<18x18x4xf32, #tpu.memory_space<vmem>>, vector<16x16x4xf32>
    %43 = vector.shape_cast %42 : vector<16x16x4xf32> to vector<256x4xf32>
    %c1_56 = arith.constant 1 : index
    %c1_57 = arith.constant 1 : index
    %c0_58 = arith.constant 0 : index
    %c0_59 = arith.constant 0 : index
    %44 = vector.load %arg3[%c1_56, %c1_57, %c0_58, %c0_59] : memref<3x3x4x8xf32, #tpu.memory_space<vmem>>, vector<1x1x4x8xf32>
    %45 = vector.shape_cast %44 : vector<1x1x4x8xf32> to vector<4x8xf32>
    %cst_60 = arith.constant dense<0.000000e+00> : vector<256x8xf32>
    %46 = tpu.matmul %43, %45, %cst_60 {dimension_numbers = #tpu.dot_dimension_numbers<[1], [0], [0], [1], [0, 0, 1, 1], [], []>} : vector<256x4xf32>, vector<4x8xf32>, vector<256x8xf32> -> vector<256x8xf32>
    %47 = arith.addf %41, %46 : vector<256x8xf32>
    %c1_61 = arith.constant 1 : index
    %c2_62 = arith.constant 2 : index
    %c0_63 = arith.constant 0 : index
    %48 = vector.load %arg7[%c1_61, %c2_62, %c0_63] : memref<18x18x4xf32, #tpu.memory_space<vmem>>, vector<16x16x4xf32>
    %49 = vector.shape_cast %48 : vector<16x16x4xf32> to vector<256x4xf32>
    %c1_64 = arith.constant 1 : index
    %c2_65 = arith.constant 2 : index
    %c0_66 = arith.constant 0 : index
    %c0_67 = arith.constant 0 : index
    %50 = vector.load %arg3[%c1_64, %c2_65, %c0_66, %c0_67] : memref<3x3x4x8xf32, #tpu.memory_space<vmem>>, vector<1x1x4x8xf32>
    %51 = vector.shape_cast %50 : vector<1x1x4x8xf32> to vector<4x8xf32>
    %cst_68 = arith.constant dense<0.000000e+00> : vector<256x8xf32>
    %52 = tpu.matmul %49, %51, %cst_68 {dimension_numbers = #tpu.dot_dimension_numbers<[1], [0], [0], [1], [0, 0, 1, 1], [], []>} : vector<256x4xf32>, vector<4x8xf32>, vector<256x8xf32> -> vector<256x8xf32>
    %53 = arith.addf %47, %52 : vector<256x8xf32>
    %c2_69 = arith.constant 2 : index
    %c0_70 = arith.constant 0 : index
    %c0_71 = arith.constant 0 : index
    %54 = vector.load %arg7[%c2_69, %c0_70, %c0_71] : memref<18x18x4xf32, #tpu.memory_space<vmem>>, vector<16x16x4xf32>
    %55 = vector.shape_cast %54 : vector<16x16x4xf32> to vector<256x4xf32>
    %c2_72 = arith.constant 2 : index
    %c0_73 = arith.constant 0 : index
    %c0_74 = arith.constant 0 : index
    %c0_75 = arith.constant 0 : index
    %56 = vector.load %arg3[%c2_72, %c0_73, %c0_74, %c0_75] : memref<3x3x4x8xf32, #tpu.memory_space<vmem>>, vector<1x1x4x8xf32>
    %57 = vector.shape_cast %56 : vector<1x1x4x8xf32> to vector<4x8xf32>
    %cst_76 = arith.constant dense<0.000000e+00> : vector<256x8xf32>
    %58 = tpu.matmul %55, %57, %cst_76 {dimension_numbers = #tpu.dot_dimension_numbers<[1], [0], [0], [1], [0, 0, 1, 1], [], []>} : vector<256x4xf32>, vector<4x8xf32>, vector<256x8xf32> -> vector<256x8xf32>
    %59 = arith.addf %53, %58 : vector<256x8xf32>
    %c2_77 = arith.constant 2 : index
    %c1_78 = arith.constant 1 : index
    %c0_79 = arith.constant 0 : index
    %60 = vector.load %arg7[%c2_77, %c1_78, %c0_79] : memref<18x18x4xf32, #tpu.memory_space<vmem>>, vector<16x16x4xf32>
    %61 = vector.shape_cast %60 : vector<16x16x4xf32> to vector<256x4xf32>
    %c2_80 = arith.constant 2 : index
    %c1_81 = arith.constant 1 : index
    %c0_82 = arith.constant 0 : index
    %c0_83 = arith.constant 0 : index
    %62 = vector.load %arg3[%c2_80, %c1_81, %c0_82, %c0_83] : memref<3x3x4x8xf32, #tpu.memory_space<vmem>>, vector<1x1x4x8xf32>
    %63 = vector.shape_cast %62 : vector<1x1x4x8xf32> to vector<4x8xf32>
    %cst_84 = arith.constant dense<0.000000e+00> : vector<256x8xf32>
    %64 = tpu.matmul %61, %63, %cst_84 {dimension_numbers = #tpu.dot_dimension_numbers<[1], [0], [0], [1], [0, 0, 1, 1], [], []>} : vector<256x4xf32>, vector<4x8xf32>, vector<256x8xf32> -> vector<256x8xf32>
    %65 = arith.addf %59, %64 : vector<256x8xf32>
    %c2_85 = arith.constant 2 : index
    %c2_86 = arith.constant 2 : index
    %c0_87 = arith.constant 0 : index
    %66 = vector.load %arg7[%c2_85, %c2_86, %c0_87] : memref<18x18x4xf32, #tpu.memory_space<vmem>>, vector<16x16x4xf32>
    %67 = vector.shape_cast %66 : vector<16x16x4xf32> to vector<256x4xf32>
    %c2_88 = arith.constant 2 : index
    %c2_89 = arith.constant 2 : index
    %c0_90 = arith.constant 0 : index
    %c0_91 = arith.constant 0 : index
    %68 = vector.load %arg3[%c2_88, %c2_89, %c0_90, %c0_91] : memref<3x3x4x8xf32, #tpu.memory_space<vmem>>, vector<1x1x4x8xf32>
    %69 = vector.shape_cast %68 : vector<1x1x4x8xf32> to vector<4x8xf32>
    %cst_92 = arith.constant dense<0.000000e+00> : vector<256x8xf32>
    %70 = tpu.matmul %67, %69, %cst_92 {dimension_numbers = #tpu.dot_dimension_numbers<[1], [0], [0], [1], [0, 0, 1, 1], [], []>} : vector<256x4xf32>, vector<4x8xf32>, vector<256x8xf32> -> vector<256x8xf32>
    %71 = arith.addf %65, %70 : vector<256x8xf32>
    %c0_93 = arith.constant 0 : index
    %c0_94 = arith.constant 0 : index
    %72 = vector.load %arg4[%c0_93, %c0_94] : memref<1x8xf32, #tpu.memory_space<vmem>>, vector<1x8xf32>
    %73 = vector.broadcast %72 : vector<1x8xf32> to vector<256x8xf32>
    %74 = arith.addf %71, %73 : vector<256x8xf32>
    %cst_95 = arith.constant 0.000000e+00 : f32
    %75 = vector.broadcast %cst_95 : f32 to vector<256x8xf32>
    %76 = arith.maximumf %74, %75 : vector<256x8xf32>
    %cst_96 = arith.constant dense<0.000000e+00> : vector<8xf32>
    %77 = vector.multi_reduction <add>, %76, %cst_96 [0] : vector<256x8xf32> to vector<8xf32>
    %78 = vector.shape_cast %77 : vector<8xf32> to vector<1x8xf32>
    %79 = arith.mulf %76, %76 : vector<256x8xf32>
    %cst_97 = arith.constant dense<0.000000e+00> : vector<8xf32>
    %80 = vector.multi_reduction <add>, %79, %cst_97 [0] : vector<256x8xf32> to vector<8xf32>
    %81 = vector.shape_cast %80 : vector<8xf32> to vector<1x8xf32>
    %82 = tpu.concatenate %78, %81 in 0 : vector<1x8xf32>, vector<1x8xf32> -> vector<2x8xf32>
    %c0_98 = arith.constant 0 : index
    %c0_99 = arith.constant 0 : index
    %c0_100 = arith.constant 0 : index
    %83 = vector.load %arg6[%c0_98, %c0_99, %c0_100] : memref<1x2x8xf32, #tpu.memory_space<vmem>>, vector<1x2x8xf32>
    %84 = vector.shape_cast %83 : vector<1x2x8xf32> to vector<2x8xf32>
    %85 = vector.shape_cast %82 : vector<2x8xf32> to vector<1x2x8xf32>
    tpu.vector_store %arg6[%c0_98, %c0_99, %c0_100], %85 {strides = array<i32>} : memref<1x2x8xf32, #tpu.memory_space<vmem>>, vector<1x2x8xf32>,
    %86 = vector.shape_cast %76 : vector<256x8xf32> to vector<16x16x8xf32>
    %c0_101 = arith.constant 0 : index
    %c0_102 = arith.constant 0 : index
    %c0_103 = arith.constant 0 : index
    %c0_104 = arith.constant 0 : index
    %87 = vector.load %arg5[%c0_101, %c0_102, %c0_103, %c0_104] : memref<1x16x16x8xf32, #tpu.memory_space<vmem>>, vector<1x16x16x8xf32>
    %88 = vector.shape_cast %87 : vector<1x16x16x8xf32> to vector<16x16x8xf32>
    %89 = vector.shape_cast %86 : vector<16x16x8xf32> to vector<1x16x16x8xf32>
    tpu.vector_store %arg5[%c0_101, %c0_102, %c0_103, %c0_104], %89 {strides = array<i32>} : memref<1x16x16x8xf32, #tpu.memory_space<vmem>>, vector<1x16x16x8xf32>,
    return
  }
  func.func @transform_0(%arg0: i32) -> (i32, i32, i32, i32) {
    %c0_i32 = arith.constant 0 : i32
    %c0_i32_0 = arith.constant 0 : i32
    %c0_i32_1 = arith.constant 0 : i32
    %c0_i32_2 = arith.constant 0 : i32
    return %arg0, %c0_i32, %c0_i32_0, %c0_i32_1 : i32, i32, i32, i32
  }
  func.func @transform_1(%arg0: i32) -> (i32, i32) {
    %c0_i32 = arith.constant 0 : i32
    %c0_i32_0 = arith.constant 0 : i32
    %c0_i32_1 = arith.constant 0 : i32
    return %c0_i32, %c0_i32_0 : i32, i32
  }
  func.func @transform_2(%arg0: i32) -> (i32, i32, i32, i32) {
    %c0_i32 = arith.constant 0 : i32
    %c0_i32_0 = arith.constant 0 : i32
    %c0_i32_1 = arith.constant 0 : i32
    %c0_i32_2 = arith.constant 0 : i32
    %c0_i32_3 = arith.constant 0 : i32
    return %c0_i32, %c0_i32_0, %c0_i32_1, %c0_i32_2 : i32, i32, i32, i32
  }
  func.func @transform_3(%arg0: i32) -> (i32, i32) {
    %c0_i32 = arith.constant 0 : i32
    %c0_i32_0 = arith.constant 0 : i32
    %c0_i32_1 = arith.constant 0 : i32
    return %c0_i32, %c0_i32_0 : i32, i32
  }
  func.func @transform_4(%arg0: i32) -> (i32, i32, i32, i32) {
    %c0_i32 = arith.constant 0 : i32
    %c0_i32_0 = arith.constant 0 : i32
    %c0_i32_1 = arith.constant 0 : i32
    %c0_i32_2 = arith.constant 0 : i32
    return %arg0, %c0_i32, %c0_i32_0, %c0_i32_1 : i32, i32, i32, i32
  }
  func.func @transform_5(%arg0: i32) -> (i32, i32, i32) {
    %c0_i32 = arith.constant 0 : i32
    %c0_i32_0 = arith.constant 0 : i32
    %c0_i32_1 = arith.constant 0 : i32
    return %arg0, %c0_i32, %c0_i32_0 : i32, i32, i32
  }
}

</mosaic_0001>

<llo_original>
// kernel: mul.23
$region0: #{mul.23}
  %s0 = inlined_call_operand.vmem [shape: f32[4,4], index: 0, kind: input, shape index: {}]
  %s1 = inlined_call_operand.vmem [shape: f32[16], index: 1, kind: output, shape index: {}]
  $region1: #{mul.23} parent=0
    #allocation0 [shape = 'u8[4096]{0}', space=vmem, size = 0x1000, scoped, tag = 'scoped mem for output reshape']
    #allocation1 [shape = 'u8[4096]{0}', space=vmem, size = 0x1000, scoped, tag = 'scoped mem for input reshape']
    %s3 = sshll.u32 1, 4
    %s4 = ssub.s32 %s3, 1
    %v5 = vld [vmem:[%s0] sm:%s4]
    %6 = vst [vmem:[#allocation1] sm:%s4] %v5
    %v7 = vld [vmem:[#allocation1] sm:$0x1]
    %vm8 = vcmask 31744
    %9 = vst.msk [vmem:[#allocation0] sm:$0x1] %vm8, %v7
    %s10 = scalar_lea.vmem [#allocation1], 3
    %v11 = vld [vmem:[%s10] sm:$0x1]
    %12 = vrot.lane.b32.xlu0 %v11, 12
    %v13 = vpop.permute.xlu0 %12
    %vm14 = vcmask 130144
    %15 = vst.msk [vmem:[#allocation0] sm:$0x1] %vm14, %v13
    %s16 = scalar_lea.vmem [#allocation1], 2
    %v17 = vld [vmem:[%s16] sm:$0x1]
    %18 = vrot.lane.b32.xlu0 %v17, 8
    %v19 = vpop.permute.xlu0 %18
    %vm20 = vcmask 97344
    %21 = vst.msk [vmem:[#allocation0] sm:$0x1] %vm20, %v19
    %s22 = scalar_lea.vmem [#allocation1], 1
    %v23 = vld [vmem:[%s22] sm:$0x1]
    %24 = vrot.lane.b32.xlu0 %v23, 4
    %v25 = vpop.permute.xlu0 %24
    %vm26 = vcmask 64544
    %27 = vst.msk [vmem:[#allocation0] sm:$0x1] %vm26, %v25
    %s29 = sshll.u32 1, 1
    %s30 = ssub.s32 %s29, 1
    %v32 = vld [vmem:[#allocation0] sm:%s30]
    %s33 = sshll.u32 1, 1
    %s34 = ssub.s32 %s33, 1
    %35 = vst [vmem:[%s1] sm:%s34] %v32

// kernel: tile.17
$region0: #{tile.17}
  %s0 = inlined_call_operand.vmem [shape: f32[2,4,4], index: 0, kind: input, shape index: {}]
  %s1 = inlined_call_operand.vmem [shape: f32[2,16], index: 1, kind: output, shape index: {}]
  $region1: #{tile.17} parent=0
    #allocation0 [shape = 'u8[4096]{0}', space=vmem, size = 0x1000, scoped, tag = 'scoped mem for output reshape']
    #allocation1 [shape = 'u8[8192]{0}', space=vmem, size = 0x2000, scoped, tag = 'scoped mem for input reshape']
    %s3 = sshll.u32 1, 4
    %s4 = ssub.s32 %s3, 1
    %s5 = scalar_lea.vmem %s0, 4
    %v6 = vld [vmem:[%s5] sm:%s4]
    %s7 = scalar_lea.vmem [#allocation1], 8
    %8 = vst [vmem:[%s7] sm:%s4] %v6
    %v9 = vld [vmem:[%s0] sm:%s4]
    %10 = vst [vmem:[#allocation1] sm:%s4] %v9
    %s11 = smov 3
    %v12 = vld [vmem:[#allocation1] ss:$8 sm:%s11]
    %vm13 = vcmask 31744
    %14 = vst.msk [vmem:[#allocation0] sm:$0x3] %vm13, %v12
    %s15 = scalar_lea.vmem [#allocation1], 3
    %s16 = smov 3
    %v17 = vld [vmem:[%s15] ss:$8 sm:%s16]
    %18 = vrot.lane.b32.xlu0 %v17, 12
    %v19 = vpop.permute.xlu0 %18
    %vm20 = vcmask 130144
    %21 = vst.msk [vmem:[#allocation0] sm:$0x3] %vm20, %v19
    %s22 = scalar_lea.vmem [#allocation1], 2
    %s23 = smov 3
    %v24 = vld [vmem:[%s22] ss:$8 sm:%s23]
    %25 = vrot.lane.b32.xlu0 %v24, 8
    %v26 = vpop.permute.xlu0 %25
    %vm27 = vcmask 97344
    %28 = vst.msk [vmem:[#allocation0] sm:$0x3] %vm27, %v26
    %s29 = scalar_lea.vmem [#allocation1], 1
    %s30 = smov 3
    %v31 = vld [vmem:[%s29] ss:$8 sm:%s30]
    %32 = vrot.lane.b32.xlu0 %v31, 4
    %v33 = vpop.permute.xlu0 %32
    %vm34 = vcmask 64544
    %35 = vst.msk [vmem:[#allocation0] sm:$0x3] %vm34, %v33
    %s37 = sshll.u32 1, 2
    %s38 = ssub.s32 %s37, 1
    %v40 = vld [vmem:[#allocation0] sm:%s38]
    %s41 = sshll.u32 1, 2
    %s42 = ssub.s32 %s41, 1
    %43 = vst [vmem:[%s1] sm:%s42] %v40

// kernel: up_layer_forward.5
$region0: #{up_layer_forward.5}
  #allocation0 [shape = 'u32[]', space=smem, size = 0x4, offset = 0x4, fixed_abs, tag = 'smem constant byte address 0x4 - core index']
  #allocation1 [shape = 'u32[144,128]{1,0:T(1,128)}', space=vmem, size = 0x12000, scoped, tag = 'internal scratch']
  %s0 = inlined_call_operand.vmem [shape: f32[2,256,8], index: 0, kind: input, shape index: {}]
  %s1 = inlined_call_operand.vmem [shape: f32[2,8], index: 1, kind: input, shape index: {}]
  %s2 = inlined_call_operand.vmem [shape: f32[8,16], index: 2, kind: input, shape index: {}]
  %s3 = inlined_call_operand.vmem [shape: f32[1,16], index: 3, kind: input, shape index: {}]
  %s4 = inlined_call_operand.vmem [shape: f32[2,256,16], index: 4, kind: output, shape index: {0}]
  %s5 = inlined_call_operand.vmem [shape: f32[2,2,2,16], index: 5, kind: output, shape index: {1}]
  %6 = xla_tuple %s4, %s5
  %s7 = sld [smem:[#allocation0]]
  $region57: #{up_layer_forward.5} parent=0
    _
  %s9 = ssub.s32 1, %s7
  %s10 = scalar_select 0, %s9, %s7
  loop: start=0, step=1, limit=6
  $region2: #{up_layer_forward.5} parent=0 // loop_pre_header
    _
  $region3: #{up_layer_forward.5} parent=0 // loop_header
    %s12 = sphi 0, %s16
    %p13 = scmp.ge.s32.totalorder %s12, 6
    %s19 = sphi 0, %s31
    %s20 = sphi 0, %s27
    %s21 = sphi 0, %s19
    %s22 = sphi 0, %s20
    %s23 = sphi 0, %s21
    %s24 = sphi 0, %s22
    %s36 = sphi 0, %s38
    %s39 = sphi 0, %s36
    %s40 = sphi 0, %s39
    %s56 = sphi 0, %s40
    %s60 = sphi 0, %s60
    %s62 = sphi 0, %s60
    %s63 = sphi 0, %s62
    %s77 = sphi 0, %s63
    %s81 = sphi 0, %s81
    %s83 = sphi 0, %s81
    %s84 = sphi 0, %s83
    %s98 = sphi 0, %s84
    %s102 = sphi 0, %s102
    %s104 = sphi 0, %s102
    %s105 = sphi 0, %s104
    %s119 = sphi 0, %s105
    %s127 = sphi 0, %s129
    %s130 = sphi 0, %s127
    %s131 = sphi 0, %s130
    %s147 = sphi 0, %s131
    %s155 = sphi 0, %s157
    %s158 = sphi 0, %s155
    %s159 = sphi 0, %s158
    %s175 = sphi 0, %s159
  $region4: #{up_layer_forward.5} parent=0 // loop_header_branch
    %15 = sbr.rel (%p13) target = $region8
  $region5: #{up_layer_forward.5} parent=0 // loop_body
    %s17 = ssub.s32 %s12, 1
    %s18 = ssub.s32 %s12, 2
    %s25 = sadd.s32 1, %s20
    %p26 = scmp.ge.s32.totalorder %s25, 2
    %s27 = scalar_select %p26, 0, %s25
    %s28 = sadd.s32 1, %s19
    %s29 = scalar_select %p26, %s28, %s19
    %p30 = scmp.ge.s32.totalorder %s29, 2
    %s31 = scalar_select %p30, 0, %s29
    %s32 = ssub.s32 %s19, %s31
    %s33 = ssub.s32 %s20, %s27
    %s34 = sor.u32 %s32, %s33
    %p35 = scmp.eq.s32.totalorder %s34, 0
    %s37 = sadd.s32 %s36, 1
    %s38 = scalar_select %p35, %s36, %s37
    %p41 = pneg %p35
    %p42 = scmp.eq.s32.totalorder %s12, 3
    %p43 = por %p41, %p42
    %p44 = scmp.ne.s32.totalorder %s36, %s39
    %p45 = scmp.eq.s32.totalorder %s12, 0
    %p46 = por %p44, %p45
    %p47 = scmp.ne.s32.totalorder %s36, %s39
    %p48 = scmp.eq.s32.totalorder %s17, 3
    %p49 = por %p47, %p48
    %p50 = scmp.ne.s32.totalorder %s39, %s40
    %p51 = scmp.eq.s32.totalorder %s17, 0
    %p52 = por %p50, %p51
    %p53 = scmp.ne.s32.totalorder %s39, %s40
    %p54 = scmp.eq.s32.totalorder %s18, 3
    %p55 = por %p53, %p54
    %p57 = scmp.ne.s32.totalorder %s40, %s56
    %p58 = scmp.eq.s32.totalorder %s18, 0
    %p59 = por %p57, %p58
    %s61 = sadd.s32 %s60, 1
    %p64 = scmp.eq.s32.totalorder %s12, 3
    %p65 = scmp.ne.s32.totalorder %s60, %s62
    %p66 = scmp.eq.s32.totalorder %s12, 0
    %p67 = por %p65, %p66
    %p68 = scmp.ne.s32.totalorder %s60, %s62
    %p69 = scmp.eq.s32.totalorder %s17, 3
    %p70 = por %p68, %p69
    %p71 = scmp.ne.s32.totalorder %s62, %s63
    %p72 = scmp.eq.s32.totalorder %s17, 0
    %p73 = por %p71, %p72
    %p74 = scmp.ne.s32.totalorder %s62, %s63
    %p75 = scmp.eq.s32.totalorder %s18, 3
    %p76 = por %p74, %p75
    %p78 = scmp.ne.s32.totalorder %s63, %s77
    %p79 = scmp.eq.s32.totalorder %s18, 0
    %p80 = por %p78, %p79
    %s82 = sadd.s32 %s81, 1
    %p85 = scmp.eq.s32.totalorder %s12, 3
    %p86 = scmp.ne.s32.totalorder %s81, %s83
    %p87 = scmp.eq.s32.totalorder %s12, 0
    %p88 = por %p86, %p87
    %p89 = scmp.ne.s32.totalorder %s81, %s83
    %p90 = scmp.eq.s32.totalorder %s17, 3
    %p91 = por %p89, %p90
    %p92 = scmp.ne.s32.totalorder %s83, %s84
    %p93 = scmp.eq.s32.totalorder %s17, 0
    %p94 = por %p92, %p93
    %p95 = scmp.ne.s32.totalorder %s83, %s84
    %p96 = scmp.eq.s32.totalorder %s18, 3
    %p97 = por %p95, %p96
    %p99 = scmp.ne.s32.totalorder %s84, %s98
    %p100 = scmp.eq.s32.totalorder %s18, 0
    %p101 = por %p99, %p100
    %s103 = sadd.s32 %s102, 1
    %p106 = scmp.eq.s32.totalorder %s12, 3
    %p107 = scmp.ne.s32.totalorder %s102, %s104
    %p108 = scmp.eq.s32.totalorder %s12, 0
    %p109 = por %p107, %p108
    %p110 = scmp.ne.s32.totalorder %s102, %s104
    %p111 = scmp.eq.s32.totalorder %s17, 3
    %p112 = por %p110, %p111
    %p113 = scmp.ne.s32.totalorder %s104, %s105
    %p114 = scmp.eq.s32.totalorder %s17, 0
    %p115 = por %p113, %p114
    %p116 = scmp.ne.s32.totalorder %s104, %s105
    %p117 = scmp.eq.s32.totalorder %s18, 3
    %p118 = por %p116, %p117
    %p120 = scmp.ne.s32.totalorder %s105, %s119
    %p121 = scmp.eq.s32.totalorder %s18, 0
    %p122 = por %p120, %p121
    %s123 = ssub.s32 %s19, %s31
    %s124 = ssub.s32 %s20, %s27
    %s125 = sor.u32 %s123, %s124
    %p126 = scmp.eq.s32.totalorder %s125, 0
    %s128 = sadd.s32 %s127, 1
    %s129 = scalar_select %p126, %s127, %s128
    %p132 = pneg %p126
    %p133 = scmp.eq.s32.totalorder %s12, 3
    %p134 = por %p132, %p133
    %p135 = scmp.ne.s32.totalorder %s127, %s130
    %p136 = scmp.eq.s32.totalorder %s12, 0
    %p137 = por %p135, %p136
    %p138 = scmp.ne.s32.totalorder %s127, %s130
    %p139 = scmp.eq.s32.totalorder %s17, 3
    %p140 = por %p138, %p139
    %p141 = scmp.ne.s32.totalorder %s130, %s131
    %p142 = scmp.eq.s32.totalorder %s17, 0
    %p143 = por %p141, %p142
    %p144 = scmp.ne.s32.totalorder %s130, %s131
    %p145 = scmp.eq.s32.totalorder %s18, 3
    %p146 = por %p144, %p145
    %p148 = scmp.ne.s32.totalorder %s131, %s147
    %p149 = scmp.eq.s32.totalorder %s18, 0
    %p150 = por %p148, %p149
    %s151 = ssub.s32 %s19, %s31
    %s152 = ssub.s32 %s20, %s27
    %s153 = sor.u32 %s151, %s152
    %p154 = scmp.eq.s32.totalorder %s153, 0
    %s156 = sadd.s32 %s155, 1
    %s157 = scalar_select %p154, %s155, %s156
    %p160 = pneg %p154
    %p161 = scmp.eq.s32.totalorder %s12, 3
    %p162 = por %p160, %p161
    %p163 = scmp.ne.s32.totalorder %s155, %s158
    %p164 = scmp.eq.s32.totalorder %s12, 0
    %p165 = por %p163, %p164
    %p166 = scmp.ne.s32.totalorder %s155, %s158
    %p167 = scmp.eq.s32.totalorder %s17, 3
    %p168 = por %p166, %p167
    %p169 = scmp.ne.s32.totalorder %s158, %s159
    %p170 = scmp.eq.s32.totalorder %s17, 0
    %p171 = por %p169, %p170
    %p172 = scmp.ne.s32.totalorder %s158, %s159
    %p173 = scmp.eq.s32.totalorder %s18, 3
    %p174 = por %p172, %p173
    %p176 = scmp.ne.s32.totalorder %s159, %s175
    %p177 = scmp.eq.s32.totalorder %s18, 0
    %p178 = por %p176, %p177
    %p179 = scmp.le.s32.totalorder 1, %s12
    %p180 = scmp.lt.s32.totalorder %s12, 5
    %p181 = pnand %p179, %p180
    %p182 = pneg %p181
    // Predicated region
    $region9: #{up_layer_forward.5} parent=5 // pred_check
      _
    $region10: #{up_layer_forward.5} parent=5 // pred_check_branch
      %184 = sbr.rel (%p181) target = $region12
    $region11: #{up_layer_forward.5} parent=5 // pred_region
      %s185 = ssub.s32 %s12, 1
      // Predicated region
      $region13: #{up_layer_forward.5} parent=11 // pred_check
        %p186 = pneg %p73
      $region14: #{up_layer_forward.5} parent=11 // pred_check_branch
        %188 = sbr.rel (%p186) target = $region16
      $region15: #{up_layer_forward.5} parent=11 // pred_region
        _
      $region16: #{up_layer_forward.5} parent=11 // pred_fallthru
        _
      // Predicated region
      $region17: #{up_layer_forward.5} parent=11 // pred_check
        %p189 = pneg %p94
      $region18: #{up_layer_forward.5} parent=11 // pred_check_branch
        %191 = sbr.rel (%p189) target = $region20
      $region19: #{up_layer_forward.5} parent=11 // pred_region
        _
      $region20: #{up_layer_forward.5} parent=11 // pred_fallthru
        _
      // Predicated region
      $region21: #{up_layer_forward.5} parent=11 // pred_check
        %p192 = pneg %p115
      $region22: #{up_layer_forward.5} parent=11 // pred_check_branch
        %194 = sbr.rel (%p192) target = $region24
      $region23: #{up_layer_forward.5} parent=11 // pred_region
        _
      $region24: #{up_layer_forward.5} parent=11 // pred_fallthru
        _
    $region12: #{up_layer_forward.5} parent=5 // pred_fallthru
      _
    %p195 = scmp.lt.s32.totalorder %s12, 4
    // Predicated region
    $region25: #{up_layer_forward.5} parent=5 // pred_check
      %p196 = pneg %p195
    $region26: #{up_layer_forward.5} parent=5 // pred_check_branch
      %198 = sbr.rel (%p196) target = $region28
    $region27: #{up_layer_forward.5} parent=5 // pred_region
      // Predicated region
      $region29: #{up_layer_forward.5} parent=27 // pred_check
        %p199 = pneg %p46
      $region30: #{up_layer_forward.5} parent=27 // pred_check_branch
        %201 = sbr.rel (%p199) target = $region32
      $region31: #{up_layer_forward.5} parent=27 // pred_region
        %s202 = smul.u32 16, %s20
        %p203 = scmp.lt.s32.totalorder %s19, 1
        %s204 = scalar_select %p203, %s19, 1
        %p205 = scmp.lt.s32.totalorder %s202, 31
        %s206 = scalar_select %p205, %s202, 31
        %s207 = smul.addr %s204, 32
        %s208 = sadd.s32 %s206, %s207
        %s209 = smul.addr %s208, 8
        %s210 = scalar_lea.vmem %s0, %s209
        %s211 = smul.u32 16, %s20
      $region32: #{up_layer_forward.5} parent=27 // pred_fallthru
        _
    $region28: #{up_layer_forward.5} parent=5 // pred_fallthru
      _
    %p212 = scmp.le.s32.totalorder 1, %s12
    %p213 = scmp.lt.s32.totalorder %s12, 5
    %p214 = pnand %p212, %p213
    %p215 = pneg %p214
    // Predicated region
    $region33: #{up_layer_forward.5} parent=5 // pred_check
      _
    $region34: #{up_layer_forward.5} parent=5 // pred_check_branch
      %217 = sbr.rel (%p214) target = $region36
    $region35: #{up_layer_forward.5} parent=5 // pred_region
      %s218 = ssub.s32 %s12, 1
      %s219 = smul.u32 16, %s22
      %p220 = scmp.lt.s32.totalorder %s21, 1
      %s221 = scalar_select %p220, %s21, 1
      %p222 = scmp.lt.s32.totalorder %s219, 31
      %s223 = scalar_select %p222, %s219, 31
      %s224 = smul.addr %s221, 32
      %s225 = sadd.s32 %s223, %s224
      %s226 = smul.addr %s225, 8
      %s227 = scalar_lea.vmem %s0, %s226
      %p228 = pneg %p52
      %p229 = pneg %p49
      %p230 = pneg %p73
      %p231 = pneg %p70
      %p232 = pneg %p94
      %p233 = pneg %p91
      %p234 = pneg %p115
      %p235 = pneg %p112
      %p236 = pneg %p143
      %p237 = pneg %p140
      %s238 = smul.u32 16, %s22
      %p239 = scmp.lt.s32.totalorder %s21, 1
      %s240 = scalar_select %p239, %s21, 1
      %p241 = scmp.lt.s32.totalorder %s238, 31
      %s242 = scalar_select %p241, %s238, 31
      %s243 = smul.addr %s240, 32
      %s244 = sadd.s32 %s242, %s243
      %s245 = smul.addr %s244, 8
      %s246 = scalar_lea.vmem %s4, %s245
      %p247 = pneg %p171
      %p248 = pneg %p168
      %p249 = scmp.lt.s32.totalorder %s21, 1
      %s250 = scalar_select %p249, %s21, 1
      %p251 = scmp.lt.s32.totalorder %s22, 1
      %s252 = scalar_select %p251, %s22, 1
      %s253 = smul.addr %s250, 2
      %s254 = sadd.s32 %s252, %s253
      %s255 = smul.addr %s254, 2
      %s256 = scalar_lea.vmem %s5, %s255
      %s257 = smul.u32 16, %s22
      %p258 = scmp.lt.s32.totalorder %s21, 1
      %s259 = scalar_select %p258, %s21, 1
      %p260 = scmp.lt.s32.totalorder %s257, 31
      %s261 = scalar_select %p260, %s257, 31
      %s262 = smul.addr %s259, 32
      %s263 = sadd.s32 %s261, %s262
      %s264 = smul.addr %s263, 8
      %s265 = scalar_lea.vmem %s0, %s264
      %s266 = smul.u32 16, %s22
      %s267 = smul.u32 16, %s22
      %p268 = scmp.lt.s32.totalorder %s21, 1
      %s269 = scalar_select %p268, %s21, 1
      %p270 = scmp.lt.s32.totalorder %s267, 31
      %s271 = scalar_select %p270, %s267, 31
      %s272 = smul.addr %s269, 32
      %s273 = sadd.s32 %s271, %s272
      %s274 = smul.addr %s273, 8
      %s275 = scalar_lea.vmem %s4, %s274
      %s276 = smul.u32 16, %s22
      %p277 = scmp.lt.s32.totalorder %s21, 1
      %s278 = scalar_select %p277, %s21, 1
      %p279 = scmp.lt.s32.totalorder %s22, 1
      %s280 = scalar_select %p279, %s22, 1
      %s281 = smul.addr %s278, 2
      %s282 = sadd.s32 %s280, %s281
      %s283 = smul.addr %s282, 2
      %s284 = scalar_lea.vmem %s5, %s283
      %v285 = vld [vmem:[%s265] sm:$0xff]
      %v286 = vld [vmem:[%s265 + $0x8] sm:$0xff]
      %v287 = vld [vmem:[%s265 + $0x10] sm:$0xff]
      %v288 = vld [vmem:[%s265 + $0x18] sm:$0xff]
      %v289 = vld [vmem:[%s265 + $0x20] sm:$0xff]
      %v290 = vld [vmem:[%s265 + $0x28] sm:$0xff]
      %v291 = vld [vmem:[%s265 + $0x30] sm:$0xff]
      %v292 = vld [vmem:[%s265 + $0x38] sm:$0xff]
      %v293 = vld [vmem:[%s265 + $0x40] sm:$0xff]
      %v294 = vld [vmem:[%s265 + $0x48] sm:$0xff]
      %v295 = vld [vmem:[%s265 + $0x50] sm:$0xff]
      %v296 = vld [vmem:[%s265 + $0x58] sm:$0xff]
      %v297 = vld [vmem:[%s265 + $0x60] sm:$0xff]
      %v298 = vld [vmem:[%s265 + $0x68] sm:$0xff]
      %v299 = vld [vmem:[%s265 + $0x70] sm:$0xff]
      %v300 = vld [vmem:[%s265 + $0x78] sm:$0xff]
      %v301 = vld [vmem:[%s1] sm:$0x1]
      %v302 = vlaneseq
      %v303 = vshrl.u32 %v302, 7
      %v304 = vsub.s32 0, %v303
      %v305 = vrot.slane %v301, %v304
      %v306 = vmul.f32 %v285, %v305
      %v307 = vmul.f32 %v286, %v305
      %v308 = vmul.f32 %v287, %v305
      %v309 = vmul.f32 %v288, %v305
      %v310 = vmul.f32 %v289, %v305
      %v311 = vmul.f32 %v290, %v305
      %v312 = vmul.f32 %v291, %v305
      %v313 = vmul.f32 %v292, %v305
      %v314 = vmul.f32 %v293, %v305
      %v315 = vmul.f32 %v294, %v305
      %v316 = vmul.f32 %v295, %v305
      %v317 = vmul.f32 %v296, %v305
      %v318 = vmul.f32 %v297, %v305
      %v319 = vmul.f32 %v298, %v305
      %v320 = vmul.f32 %v299, %v305
      %v321 = vmul.f32 %v300, %v305
      %v322 = vld [vmem:[%s1 + $0x1] sm:$0x1]
      %v323 = vlaneseq
      %v324 = vshrl.u32 %v323, 7
      %v325 = vsub.s32 0, %v324
      %v326 = vrot.slane %v322, %v325
      %v327 = vadd.f32 %v306, %v326
      %v328 = vadd.f32 %v307, %v326
      %v329 = vadd.f32 %v308, %v326
      %v330 = vadd.f32 %v309, %v326
      %v331 = vadd.f32 %v310, %v326
      %v332 = vadd.f32 %v311, %v326
      %v333 = vadd.f32 %v312, %v326
      %v334 = vadd.f32 %v313, %v326
      %v335 = vadd.f32 %v314, %v326
      %v336 = vadd.f32 %v315, %v326
      %v337 = vadd.f32 %v316, %v326
      %v338 = vadd.f32 %v317, %v326
      %v339 = vadd.f32 %v318, %v326
      %v340 = vadd.f32 %v319, %v326
      %v341 = vadd.f32 %v320, %v326
      %v342 = vadd.f32 %v321, %v326
      %v343 = vld [vmem:[%s2] sm:$0xff]
      %v344 = vld [vmem:[%s3] sm:$0x1]
      %v346 = vlaneseq
      %v347 = vshrl.u32 %v346, 7
      %v348 = vsub.s32 0, %v347
      %v349 = vrot.slane %v344, %v348
      %vm351 = vcmask 64512
      %v353 = vsel %vm351, %v327, 0
      %v356 = vsel %vm351, %v328, 0
      %v359 = vsel %vm351, %v329, 0
      %v362 = vsel %vm351, %v330, 0
      %v365 = vsel %vm351, %v331, 0
      %v368 = vsel %vm351, %v332, 0
      %v371 = vsel %vm351, %v333, 0
      %v374 = vsel %vm351, %v334, 0
      %v377 = vsel %vm351, %v335, 0
      %v380 = vsel %vm351, %v336, 0
      %v383 = vsel %vm351, %v337, 0
      %v386 = vsel %vm351, %v338, 0
      %v389 = vsel %vm351, %v339, 0
      %v392 = vsel %vm351, %v340, 0
      %v395 = vsel %vm351, %v341, 0
      %v398 = vsel %vm351, %v342, 0
      %400 = vmatprep.subr.mxu0 0.0
      %401 = vmatpush1.msra.mxu0 0.0
      %402 = vmatprep.subr.mxu0 0.0
      %403 = vmatpush1.msra.mxu0 0.0
      %404 = vmatprep.subr.mxu0 0.0
      %405 = vmatpush1.msra.mxu0 0.0
      %406 = vmatprep.subr.mxu0 0.0
      %407 = vmatpush1.msra.mxu0 0.0
      %408 = vmatprep.subr.mxu0 0.0
      %409 = vmatpush1.msra.mxu0 0.0
      %410 = vmatprep.subr.mxu0 0.0
      %411 = vmatpush1.msra.mxu0 0.0
      %412 = vmatprep.subr.mxu0 0.0
      %413 = vmatpush1.msra.mxu0 0.0
      %414 = vmatprep.subr.mxu0 0.0
      %415 = vmatpush1.msra.mxu0 0.0
      %416 = vmatprep.subr.mxu0 0.0
      %417 = vmatpush1.msra.mxu0 0.0
      %418 = vmatprep.subr.mxu0 0.0
      %419 = vmatpush1.msra.mxu0 0.0
      %420 = vmatprep.subr.mxu0 0.0
      %421 = vmatpush1.msra.mxu0 0.0
      %422 = vmatprep.subr.mxu0 0.0
      %423 = vmatpush1.msra.mxu0 0.0
      %424 = vmatprep.subr.mxu0 0.0
      %425 = vmatpush1.msra.mxu0 0.0
      %426 = vmatprep.subr.mxu0 0.0
      %427 = vmatpush1.msra.mxu0 0.0
      %428 = vmatprep.subr.mxu0 0.0
      %429 = vmatpush1.msra.mxu0 0.0
      %430 = vmatprep.subr.mxu0 0.0
      %431 = vmatpush1.msra.mxu0 %v343
      %432 = vmatprep.subr.mxu0 0.0
      %433 = vmatpush2.msra.mxu0 0.0
      %434 = vmatprep.subr.mxu0 0.0
      %435 = vmatpush2.msra.mxu0 0.0
      %436 = vmatprep.subr.mxu0 0.0
      %437 = vmatpush2.msra.mxu0 0.0
      %438 = vmatprep.subr.mxu0 0.0
      %439 = vmatpush2.msra.mxu0 0.0
      %440 = vmatprep.subr.mxu0 0.0
      %441 = vmatpush2.msra.mxu0 0.0
      %442 = vmatprep.subr.mxu0 0.0
      %443 = vmatpush2.msra.mxu0 0.0
      %444 = vmatprep.subr.mxu0 0.0
      %445 = vmatpush2.msra.mxu0 0.0
      %446 = vmatprep.subr.mxu0 0.0
      %447 = vmatpush2.msra.mxu0 0.0
      %448 = vmatprep.subr.mxu0 0.0
      %449 = vmatpush2.msra.mxu0 0.0
      %450 = vmatprep.subr.mxu0 0.0
      %451 = vmatpush2.msra.mxu0 0.0
      %452 = vmatprep.subr.mxu0 0.0
      %453 = vmatpush2.msra.mxu0 0.0
      %454 = vmatprep.subr.mxu0 0.0
      %455 = vmatpush2.msra.mxu0 0.0
      %456 = vmatprep.subr.mxu0 0.0
      %457 = vmatpush2.msra.mxu0 0.0
      %458 = vmatprep.subr.mxu0 0.0
      %459 = vmatpush2.msra.mxu0 0.0
      %460 = vmatprep.subr.mxu0 0.0
      %461 = vmatpush2.msra.mxu0 0.0
      %462 = vmatprep.subr.mxu0 0.0
      %463 = vmatpush2.msra.mxu0 0.0
      %464 = vmatprep.mubr.f32.mxu0 0.0
      %465 = vmatmul.mubr.f32.gmra.mxu0 %v353
      %v466 = vpop.f32.mrf.mxu0
      %v467 = vadd.f32 %v349, %v466
      %v468 = vpop.f32.mrf.mxu0
      %469 = vmatprep.mubr.f32.mxu0 0.0
      %470 = vmatmul.mubr.f32.gmra.mxu0 %v356
      %v471 = vpop.f32.mrf.mxu0
      %v472 = vadd.f32 %v349, %v471
      %v473 = vpop.f32.mrf.mxu0
      %474 = vmatprep.mubr.f32.mxu0 0.0
      %475 = vmatmul.mubr.f32.gmra.mxu0 %v359
      %v476 = vpop.f32.mrf.mxu0
      %v477 = vadd.f32 %v349, %v476
      %v478 = vpop.f32.mrf.mxu0
      %479 = vmatprep.mubr.f32.mxu0 0.0
      %480 = vmatmul.mubr.f32.gmra.mxu0 %v362
      %v481 = vpop.f32.mrf.mxu0
      %v482 = vadd.f32 %v349, %v481
      %v483 = vpop.f32.mrf.mxu0
      %484 = vmatprep.mubr.f32.mxu0 0.0
      %485 = vmatmul.mubr.f32.gmra.mxu0 %v365
      %v486 = vpop.f32.mrf.mxu0
      %v487 = vadd.f32 %v349, %v486
      %v488 = vpop.f32.mrf.mxu0
      %489 = vmatprep.mubr.f32.mxu0 0.0
      %490 = vmatmul.mubr.f32.gmra.mxu0 %v368
      %v491 = vpop.f32.mrf.mxu0
      %v492 = vadd.f32 %v349, %v491
      %v493 = vpop.f32.mrf.mxu0
      %494 = vmatprep.mubr.f32.mxu0 0.0
      %495 = vmatmul.mubr.f32.gmra.mxu0 %v371
      %v496 = vpop.f32.mrf.mxu0
      %v497 = vadd.f32 %v349, %v496
      %v498 = vpop.f32.mrf.mxu0
      %499 = vmatprep.mubr.f32.mxu0 0.0
      %500 = vmatmul.mubr.f32.gmra.mxu0 %v374
      %v501 = vpop.f32.mrf.mxu0
      %v502 = vadd.f32 %v349, %v501
      %v503 = vpop.f32.mrf.mxu0
      %504 = vmatprep.mubr.f32.mxu0 0.0
      %505 = vmatmul.mubr.f32.gmra.mxu0 %v377
      %v506 = vpop.f32.mrf.mxu0
      %v507 = vadd.f32 %v349, %v506
      %v508 = vpop.f32.mrf.mxu0
      %509 = vmatprep.mubr.f32.mxu0 0.0
      %510 = vmatmul.mubr.f32.gmra.mxu0 %v380
      %v511 = vpop.f32.mrf.mxu0
      %v512 = vadd.f32 %v349, %v511
      %v513 = vpop.f32.mrf.mxu0
      %514 = vmatprep.mubr.f32.mxu0 0.0
      %515 = vmatmul.mubr.f32.gmra.mxu0 %v383
      %v516 = vpop.f32.mrf.mxu0
      %v517 = vadd.f32 %v349, %v516
      %v518 = vpop.f32.mrf.mxu0
      %519 = vmatprep.mubr.f32.mxu0 0.0
      %520 = vmatmul.mubr.f32.gmra.mxu0 %v386
      %v521 = vpop.f32.mrf.mxu0
      %v522 = vadd.f32 %v349, %v521
      %v523 = vpop.f32.mrf.mxu0
      %524 = vmatprep.mubr.f32.mxu0 0.0
      %525 = vmatmul.mubr.f32.gmra.mxu0 %v389
      %v526 = vpop.f32.mrf.mxu0
      %v527 = vadd.f32 %v349, %v526
      %v528 = vpop.f32.mrf.mxu0
      %529 = vmatprep.mubr.f32.mxu0 0.0
      %530 = vmatmul.mubr.f32.gmra.mxu0 %v392
      %v531 = vpop.f32.mrf.mxu0
      %v532 = vadd.f32 %v349, %v531
      %v533 = vpop.f32.mrf.mxu0
      %534 = vmatprep.mubr.f32.mxu0 0.0
      %535 = vmatmul.mubr.f32.gmra.mxu0 %v395
      %v536 = vpop.f32.mrf.mxu0
      %v537 = vadd.f32 %v349, %v536
      %v538 = vpop.f32.mrf.mxu0
      %539 = vmatprep.mubr.f32.mxu0 0.0
      %540 = vmatmul.mubr.f32.gmra.mxu0 %v398
      %v541 = vpop.f32.mrf.mxu0
      %v542 = vadd.f32 %v349, %v541
      %v543 = vpop.f32.mrf.mxu0
      %544 = vdwg.mxu0
      %v545 = vmax.f32 %v467, 0.0
      %v546 = vmax.f32 %v472, 0.0
      %v547 = vmax.f32 %v477, 0.0
      %v548 = vmax.f32 %v482, 0.0
      %v549 = vmax.f32 %v487, 0.0
      %v550 = vmax.f32 %v492, 0.0
      %v551 = vmax.f32 %v497, 0.0
      %v552 = vmax.f32 %v502, 0.0
      %v553 = vmax.f32 %v507, 0.0
      %v554 = vmax.f32 %v512, 0.0
      %v555 = vmax.f32 %v517, 0.0
      %v556 = vmax.f32 %v522, 0.0
      %v557 = vmax.f32 %v527, 0.0
      %v558 = vmax.f32 %v532, 0.0
      %v559 = vmax.f32 %v537, 0.0
      %v560 = vmax.f32 %v542, 0.0
      %vm561 = vcmask 130048
      %v562 = vsel %vm561, %v545, 0.0
      %v563 = vsel %vm561, %v546, 0.0
      %v564 = vadd.f32 %v562, %v563
      %v565 = vsel %vm561, %v547, 0.0
      %v566 = vadd.f32 %v564, %v565
      %v567 = vsel %vm561, %v548, 0.0
      %v568 = vadd.f32 %v566, %v567
      %v569 = vsel %vm561, %v549, 0.0
      %v570 = vadd.f32 %v568, %v569
      %v571 = vsel %vm561, %v550, 0.0
      %v572 = vadd.f32 %v570, %v571
      %v573 = vsel %vm561, %v551, 0.0
      %v574 = vadd.f32 %v572, %v573
      %v575 = vsel %vm561, %v552, 0.0
      %v576 = vadd.f32 %v574, %v575
      %v577 = vsel %vm561, %v553, 0.0
      %v578 = vadd.f32 %v576, %v577
      %v579 = vsel %vm561, %v554, 0.0
      %v580 = vadd.f32 %v578, %v579
      %v581 = vsel %vm561, %v555, 0.0
      %v582 = vadd.f32 %v580, %v581
      %v583 = vsel %vm561, %v556, 0.0
      %v584 = vadd.f32 %v582, %v583
      %v585 = vsel %vm561, %v557, 0.0
      %v586 = vadd.f32 %v584, %v585
      %v587 = vsel %vm561, %v558, 0.0
      %v588 = vadd.f32 %v586, %v587
      %v589 = vsel %vm561, %v559, 0.0
      %v590 = vadd.f32 %v588, %v589
      %v591 = vsel %vm561, %v560, 0.0
      %v592 = vadd.f32 %v590, %v591
      %v593 = vrot.slane %v592, 4
      %v594 = vadd.f32 %v592, %v593
      %v595 = vrot.slane %v594, 2
      %v596 = vadd.f32 %v594, %v595
      %v597 = vrot.slane %v596, 1
      %v598 = vadd.f32 %v596, %v597
      %v599 = vmul.f32 %v545, %v545
      %v600 = vmul.f32 %v546, %v546
      %v601 = vmul.f32 %v547, %v547
      %v602 = vmul.f32 %v548, %v548
      %v603 = vmul.f32 %v549, %v549
      %v604 = vmul.f32 %v550, %v550
      %v605 = vmul.f32 %v551, %v551
      %v606 = vmul.f32 %v552, %v552
      %v607 = vmul.f32 %v553, %v553
      %v608 = vmul.f32 %v554, %v554
      %v609 = vmul.f32 %v555, %v555
      %v610 = vmul.f32 %v556, %v556
      %v611 = vmul.f32 %v557, %v557
      %v612 = vmul.f32 %v558, %v558
      %v613 = vmul.f32 %v559, %v559
      %v614 = vmul.f32 %v560, %v560
      %v615 = vsel %vm561, %v599, 0.0
      %v616 = vsel %vm561, %v600, 0.0
      %v617 = vadd.f32 %v615, %v616
      %v618 = vsel %vm561, %v601, 0.0
      %v619 = vadd.f32 %v617, %v618
      %v620 = vsel %vm561, %v602, 0.0
      %v621 = vadd.f32 %v619, %v620
      %v622 = vsel %vm561, %v603, 0.0
      %v623 = vadd.f32 %v621, %v622
      %v624 = vsel %vm561, %v604, 0.0
      %v625 = vadd.f32 %v623, %v624
      %v626 = vsel %vm561, %v605, 0.0
      %v627 = vadd.f32 %v625, %v626
      %v628 = vsel %vm561, %v606, 0.0
      %v629 = vadd.f32 %v627, %v628
      %v630 = vsel %vm561, %v607, 0.0
      %v631 = vadd.f32 %v629, %v630
      %v632 = vsel %vm561, %v608, 0.0
      %v633 = vadd.f32 %v631, %v632
      %v634 = vsel %vm561, %v609, 0.0
      %v635 = vadd.f32 %v633, %v634
      %v636 = vsel %vm561, %v610, 0.0
      %v637 = vadd.f32 %v635, %v636
      %v638 = vsel %vm561, %v611, 0.0
      %v639 = vadd.f32 %v637, %v638
      %v640 = vsel %vm561, %v612, 0.0
      %v641 = vadd.f32 %v639, %v640
      %v642 = vsel %vm561, %v613, 0.0
      %v643 = vadd.f32 %v641, %v642
      %v644 = vsel %vm561, %v614, 0.0
      %v645 = vadd.f32 %v643, %v644
      %v646 = vrot.slane %v645, 4
      %v647 = vadd.f32 %v645, %v646
      %v648 = vrot.slane %v647, 2
      %v649 = vadd.f32 %v647, %v648
      %v650 = vrot.slane %v649, 1
      %v651 = vadd.f32 %v649, %v650
      %vm652 = vcmask 1040384
      %v653 = vsel %vm652, %v598, %v651
      %vm654 = vcmask 123904
      %655 = vst.msk [vmem:[%s284] sm:$0x3] %vm654, %v653
      %656 = vst.msk [vmem:[%s275] sm:$0xff] %vm561, %v545
      %657 = vst.msk [vmem:[%s275 + $0x8] sm:$0xff] %vm561, %v546
      %658 = vst.msk [vmem:[%s275 + $0x10] sm:$0xff] %vm561, %v547
      %659 = vst.msk [vmem:[%s275 + $0x18] sm:$0xff] %vm561, %v548
      %660 = vst.msk [vmem:[%s275 + $0x20] sm:$0xff] %vm561, %v549
      %661 = vst.msk [vmem:[%s275 + $0x28] sm:$0xff] %vm561, %v550
      %662 = vst.msk [vmem:[%s275 + $0x30] sm:$0xff] %vm561, %v551
      %663 = vst.msk [vmem:[%s275 + $0x38] sm:$0xff] %vm561, %v552
      %664 = vst.msk [vmem:[%s275 + $0x40] sm:$0xff] %vm561, %v553
      %665 = vst.msk [vmem:[%s275 + $0x48] sm:$0xff] %vm561, %v554
      %666 = vst.msk [vmem:[%s275 + $0x50] sm:$0xff] %vm561, %v555
      %667 = vst.msk [vmem:[%s275 + $0x58] sm:$0xff] %vm561, %v556
      %668 = vst.msk [vmem:[%s275 + $0x60] sm:$0xff] %vm561, %v557
      %669 = vst.msk [vmem:[%s275 + $0x68] sm:$0xff] %vm561, %v558
      %670 = vst.msk [vmem:[%s275 + $0x70] sm:$0xff] %vm561, %v559
      %671 = vst.msk [vmem:[%s275 + $0x78] sm:$0xff] %vm561, %v560
      %s672 = smul.u32 16, %s22
      %p673 = scmp.lt.s32.totalorder %s21, 1
      %s674 = scalar_select %p673, %s21, 1
      %p675 = scmp.lt.s32.totalorder %s672, 31
      %s676 = scalar_select %p675, %s672, 31
      %s677 = smul.addr %s674, 32
      %s678 = sadd.s32 %s676, %s677
      %s679 = smul.addr %s678, 8
      %s680 = scalar_lea.vmem %s4, %s679
      %p681 = scmp.lt.s32.totalorder %s21, 1
      %s682 = scalar_select %p681, %s21, 1
      %p683 = scmp.lt.s32.totalorder %s22, 1
      %s684 = scalar_select %p683, %s22, 1
      %s685 = smul.addr %s682, 2
      %s686 = sadd.s32 %s684, %s685
      %s687 = smul.addr %s686, 2
      %s688 = scalar_lea.vmem %s5, %s687
      // Predicated region
      $region37: #{up_layer_forward.5} parent=35 // pred_check
        %p689 = pneg %p140
      $region38: #{up_layer_forward.5} parent=35 // pred_check_branch
        %691 = sbr.rel (%p689) target = $region40
      $region39: #{up_layer_forward.5} parent=35 // pred_region
        %s692 = smul.u32 16, %s22
      $region40: #{up_layer_forward.5} parent=35 // pred_fallthru
        _
      // Predicated region
      $region41: #{up_layer_forward.5} parent=35 // pred_check
        %p693 = pneg %p168
      $region42: #{up_layer_forward.5} parent=35 // pred_check_branch
        %695 = sbr.rel (%p693) target = $region44
      $region43: #{up_layer_forward.5} parent=35 // pred_region
        _
      $region44: #{up_layer_forward.5} parent=35 // pred_fallthru
        _
    $region36: #{up_layer_forward.5} parent=5 // pred_fallthru
      _
    %p696 = scmp.le.s32.totalorder 2, %s12
    // Predicated region
    $region45: #{up_layer_forward.5} parent=5 // pred_check
      %p697 = pneg %p696
    $region46: #{up_layer_forward.5} parent=5 // pred_check_branch
      %699 = sbr.rel (%p697) target = $region48
    $region47: #{up_layer_forward.5} parent=5 // pred_region
      %s700 = ssub.s32 %s12, 2
      // Predicated region
      $region49: #{up_layer_forward.5} parent=47 // pred_check
        %p701 = pneg %p146
      $region50: #{up_layer_forward.5} parent=47 // pred_check_branch
        %703 = sbr.rel (%p701) target = $region52
      $region51: #{up_layer_forward.5} parent=47 // pred_region
        %s704 = smul.u32 16, %s24
        %p705 = scmp.lt.s32.totalorder %s23, 1
        %s706 = scalar_select %p705, %s23, 1
        %p707 = scmp.lt.s32.totalorder %s704, 31
        %s708 = scalar_select %p707, %s704, 31
        %s709 = smul.addr %s706, 32
        %s710 = sadd.s32 %s708, %s709
        %s711 = smul.addr %s710, 8
        %s712 = scalar_lea.vmem %s4, %s711
      $region52: #{up_layer_forward.5} parent=47 // pred_fallthru
        _
      // Predicated region
      $region53: #{up_layer_forward.5} parent=47 // pred_check
        %p713 = pneg %p174
      $region54: #{up_layer_forward.5} parent=47 // pred_check_branch
        %715 = sbr.rel (%p713) target = $region56
      $region55: #{up_layer_forward.5} parent=47 // pred_region
        %p716 = scmp.lt.s32.totalorder %s23, 1
        %s717 = scalar_select %p716, %s23, 1
        %p718 = scmp.lt.s32.totalorder %s24, 1
        %s719 = scalar_select %p718, %s24, 1
        %s720 = smul.addr %s717, 2
        %s721 = sadd.s32 %s719, %s720
        %s722 = smul.addr %s721, 2
        %s723 = scalar_lea.vmem %s5, %s722
      $region56: #{up_layer_forward.5} parent=47 // pred_fallthru
        _
    $region48: #{up_layer_forward.5} parent=5 // pred_fallthru
      _
  $region6: #{up_layer_forward.5} parent=0 // loop_footer
    %s16 = sadd.s32 1, %s12
  $region7: #{up_layer_forward.5} parent=0 // loop_footer_branch
    %11 = sbr.rel target = $region3
  $region8: #{up_layer_forward.5} parent=0 // loop_exit
    _

// kernel: up_layer_forward.4
$region0: #{up_layer_forward.4}
  #allocation0 [shape = 'u32[]', space=smem, size = 0x4, offset = 0x4, fixed_abs, tag = 'smem constant byte address 0x4 - core index']
  #allocation1 [shape = 'u32[144,128]{1,0:T(1,128)}', space=vmem, size = 0x12000, scoped, tag = 'internal scratch']
  #allocation2 [shape = 'f32[18,18,8]{2,1,0:T(8,128)}', space=vmem, size = 0x36000, scoped, tag = 'scratch operand']
  %s0 = inlined_call_operand.vmem [shape: f32[2,16,16,8], index: 0, kind: input, shape index: {}]
  %s1 = inlined_call_operand.vmem [shape: f32[2,8], index: 1, kind: input, shape index: {}]
  %s2 = inlined_call_operand.vmem [shape: f32[3,3,8,8], index: 2, kind: input, shape index: {}]
  %s3 = inlined_call_operand.vmem [shape: f32[1,8], index: 3, kind: input, shape index: {}]
  %s4 = inlined_call_operand.vmem [shape: f32[2,16,16,8], index: 4, kind: output, shape index: {0}]
  %s5 = inlined_call_operand.vmem [shape: f32[2,2,8], index: 5, kind: output, shape index: {1}]
  %6 = xla_tuple %s4, %s5
  %s7 = sld [smem:[#allocation0]]
  $region57: #{up_layer_forward.4} parent=0
    _
  %s9 = ssub.s32 1, %s7
  %s10 = scalar_select 0, %s9, %s7
  loop: start=0, step=1, limit=4
  $region2: #{up_layer_forward.4} parent=0 // loop_pre_header
    _
  $region3: #{up_layer_forward.4} parent=0 // loop_header
    %s12 = sphi 0, %s16
    %p13 = scmp.ge.s32.totalorder %s12, 4
    %s22 = sphi 0, %s24
    %s25 = sphi 0, %s22
    %s26 = sphi 0, %s25
    %s42 = sphi 0, %s26
    %s46 = sphi 0, %s46
    %s48 = sphi 0, %s46
    %s49 = sphi 0, %s48
    %s63 = sphi 0, %s49
    %s67 = sphi 0, %s67
    %s69 = sphi 0, %s67
    %s70 = sphi 0, %s69
    %s84 = sphi 0, %s70
    %s88 = sphi 0, %s88
    %s90 = sphi 0, %s88
    %s91 = sphi 0, %s90
    %s105 = sphi 0, %s91
    %s111 = sphi 0, %s113
    %s114 = sphi 0, %s111
    %s115 = sphi 0, %s114
    %s131 = sphi 0, %s115
    %s137 = sphi 0, %s139
    %s140 = sphi 0, %s137
    %s141 = sphi 0, %s140
    %s157 = sphi 0, %s141
  $region4: #{up_layer_forward.4} parent=0 // loop_header_branch
    %15 = sbr.rel (%p13) target = $region8
  $region5: #{up_layer_forward.4} parent=0 // loop_body
    %s17 = ssub.s32 %s12, 1
    %s18 = ssub.s32 %s12, 2
    %s19 = sadd.s32 %s12, 1
    %s20 = ssub.s32 %s12, %s19
    %p21 = scmp.eq.s32.totalorder %s20, 0
    %s23 = sadd.s32 %s22, 1
    %s24 = scalar_select %p21, %s22, %s23
    %p27 = pneg %p21
    %p28 = scmp.eq.s32.totalorder %s12, 1
    %p29 = por %p27, %p28
    %p30 = scmp.ne.s32.totalorder %s22, %s25
    %p31 = scmp.eq.s32.totalorder %s12, 0
    %p32 = por %p30, %p31
    %p33 = scmp.ne.s32.totalorder %s22, %s25
    %p34 = scmp.eq.s32.totalorder %s17, 1
    %p35 = por %p33, %p34
    %p36 = scmp.ne.s32.totalorder %s25, %s26
    %p37 = scmp.eq.s32.totalorder %s17, 0
    %p38 = por %p36, %p37
    %p39 = scmp.ne.s32.totalorder %s25, %s26
    %p40 = scmp.eq.s32.totalorder %s18, 1
    %p41 = por %p39, %p40
    %p43 = scmp.ne.s32.totalorder %s26, %s42
    %p44 = scmp.eq.s32.totalorder %s18, 0
    %p45 = por %p43, %p44
    %s47 = sadd.s32 %s46, 1
    %p50 = scmp.eq.s32.totalorder %s12, 1
    %p51 = scmp.ne.s32.totalorder %s46, %s48
    %p52 = scmp.eq.s32.totalorder %s12, 0
    %p53 = por %p51, %p52
    %p54 = scmp.ne.s32.totalorder %s46, %s48
    %p55 = scmp.eq.s32.totalorder %s17, 1
    %p56 = por %p54, %p55
    %p57 = scmp.ne.s32.totalorder %s48, %s49
    %p58 = scmp.eq.s32.totalorder %s17, 0
    %p59 = por %p57, %p58
    %p60 = scmp.ne.s32.totalorder %s48, %s49
    %p61 = scmp.eq.s32.totalorder %s18, 1
    %p62 = por %p60, %p61
    %p64 = scmp.ne.s32.totalorder %s49, %s63
    %p65 = scmp.eq.s32.totalorder %s18, 0
    %p66 = por %p64, %p65
    %s68 = sadd.s32 %s67, 1
    %p71 = scmp.eq.s32.totalorder %s12, 1
    %p72 = scmp.ne.s32.totalorder %s67, %s69
    %p73 = scmp.eq.s32.totalorder %s12, 0
    %p74 = por %p72, %p73
    %p75 = scmp.ne.s32.totalorder %s67, %s69
    %p76 = scmp.eq.s32.totalorder %s17, 1
    %p77 = por %p75, %p76
    %p78 = scmp.ne.s32.totalorder %s69, %s70
    %p79 = scmp.eq.s32.totalorder %s17, 0
    %p80 = por %p78, %p79
    %p81 = scmp.ne.s32.totalorder %s69, %s70
    %p82 = scmp.eq.s32.totalorder %s18, 1
    %p83 = por %p81, %p82
    %p85 = scmp.ne.s32.totalorder %s70, %s84
    %p86 = scmp.eq.s32.totalorder %s18, 0
    %p87 = por %p85, %p86
    %s89 = sadd.s32 %s88, 1
    %p92 = scmp.eq.s32.totalorder %s12, 1
    %p93 = scmp.ne.s32.totalorder %s88, %s90
    %p94 = scmp.eq.s32.totalorder %s12, 0
    %p95 = por %p93, %p94
    %p96 = scmp.ne.s32.totalorder %s88, %s90
    %p97 = scmp.eq.s32.totalorder %s17, 1
    %p98 = por %p96, %p97
    %p99 = scmp.ne.s32.totalorder %s90, %s91
    %p100 = scmp.eq.s32.totalorder %s17, 0
    %p101 = por %p99, %p100
    %p102 = scmp.ne.s32.totalorder %s90, %s91
    %p103 = scmp.eq.s32.totalorder %s18, 1
    %p104 = por %p102, %p103
    %p106 = scmp.ne.s32.totalorder %s91, %s105
    %p107 = scmp.eq.s32.totalorder %s18, 0
    %p108 = por %p106, %p107
    %s109 = ssub.s32 %s12, %s19
    %p110 = scmp.eq.s32.totalorder %s109, 0
    %s112 = sadd.s32 %s111, 1
    %s113 = scalar_select %p110, %s111, %s112
    %p116 = pneg %p110
    %p117 = scmp.eq.s32.totalorder %s12, 1
    %p118 = por %p116, %p117
    %p119 = scmp.ne.s32.totalorder %s111, %s114
    %p120 = scmp.eq.s32.totalorder %s12, 0
    %p121 = por %p119, %p120
    %p122 = scmp.ne.s32.totalorder %s111, %s114
    %p123 = scmp.eq.s32.totalorder %s17, 1
    %p124 = por %p122, %p123
    %p125 = scmp.ne.s32.totalorder %s114, %s115
    %p126 = scmp.eq.s32.totalorder %s17, 0
    %p127 = por %p125, %p126
    %p128 = scmp.ne.s32.totalorder %s114, %s115
    %p129 = scmp.eq.s32.totalorder %s18, 1
    %p130 = por %p128, %p129
    %p132 = scmp.ne.s32.totalorder %s115, %s131
    %p133 = scmp.eq.s32.totalorder %s18, 0
    %p134 = por %p132, %p133
    %s135 = ssub.s32 %s12, %s19
    %p136 = scmp.eq.s32.totalorder %s135, 0
    %s138 = sadd.s32 %s137, 1
    %s139 = scalar_select %p136, %s137, %s138
    %p142 = pneg %p136
    %p143 = scmp.eq.s32.totalorder %s12, 1
    %p144 = por %p142, %p143
    %p145 = scmp.ne.s32.totalorder %s137, %s140
    %p146 = scmp.eq.s32.totalorder %s12, 0
    %p147 = por %p145, %p146
    %p148 = scmp.ne.s32.totalorder %s137, %s140
    %p149 = scmp.eq.s32.totalorder %s17, 1
    %p150 = por %p148, %p149
    %p151 = scmp.ne.s32.totalorder %s140, %s141
    %p152 = scmp.eq.s32.totalorder %s17, 0
    %p153 = por %p151, %p152
    %p154 = scmp.ne.s32.totalorder %s140, %s141
    %p155 = scmp.eq.s32.totalorder %s18, 1
    %p156 = por %p154, %p155
    %p158 = scmp.ne.s32.totalorder %s141, %s157
    %p159 = scmp.eq.s32.totalorder %s18, 0
    %p160 = por %p158, %p159
    %p161 = scmp.le.s32.totalorder 1, %s12
    %p162 = scmp.lt.s32.totalorder %s12, 3
    %p163 = pnand %p161, %p162
    %p164 = pneg %p163
    // Predicated region
    $region9: #{up_layer_forward.4} parent=5 // pred_check
      _
    $region10: #{up_layer_forward.4} parent=5 // pred_check_branch
      %166 = sbr.rel (%p163) target = $region12
    $region11: #{up_layer_forward.4} parent=5 // pred_region
      %s167 = ssub.s32 %s12, 1
      // Predicated region
      $region13: #{up_layer_forward.4} parent=11 // pred_check
        %p168 = pneg %p59
      $region14: #{up_layer_forward.4} parent=11 // pred_check_branch
        %170 = sbr.rel (%p168) target = $region16
      $region15: #{up_layer_forward.4} parent=11 // pred_region
        _
      $region16: #{up_layer_forward.4} parent=11 // pred_fallthru
        _
      // Predicated region
      $region17: #{up_layer_forward.4} parent=11 // pred_check
        %p171 = pneg %p80
      $region18: #{up_layer_forward.4} parent=11 // pred_check_branch
        %173 = sbr.rel (%p171) target = $region20
      $region19: #{up_layer_forward.4} parent=11 // pred_region
        _
      $region20: #{up_layer_forward.4} parent=11 // pred_fallthru
        _
      // Predicated region
      $region21: #{up_layer_forward.4} parent=11 // pred_check
        %p174 = pneg %p101
      $region22: #{up_layer_forward.4} parent=11 // pred_check_branch
        %176 = sbr.rel (%p174) target = $region24
      $region23: #{up_layer_forward.4} parent=11 // pred_region
        _
      $region24: #{up_layer_forward.4} parent=11 // pred_fallthru
        _
    $region12: #{up_layer_forward.4} parent=5 // pred_fallthru
      _
    %p177 = scmp.lt.s32.totalorder %s12, 2
    // Predicated region
    $region25: #{up_layer_forward.4} parent=5 // pred_check
      %p178 = pneg %p177
    $region26: #{up_layer_forward.4} parent=5 // pred_check_branch
      %180 = sbr.rel (%p178) target = $region28
    $region27: #{up_layer_forward.4} parent=5 // pred_region
      // Predicated region
      $region29: #{up_layer_forward.4} parent=27 // pred_check
        %p181 = pneg %p32
      $region30: #{up_layer_forward.4} parent=27 // pred_check_branch
        %183 = sbr.rel (%p181) target = $region32
      $region31: #{up_layer_forward.4} parent=27 // pred_region
        %p184 = scmp.lt.s32.totalorder %s12, 1
        %s185 = scalar_select %p184, %s12, 1
        %s186 = smul.addr %s185, 32
        %s187 = smul.addr %s186, 8
        %s188 = scalar_lea.vmem %s0, %s187
      $region32: #{up_layer_forward.4} parent=27 // pred_fallthru
        _
    $region28: #{up_layer_forward.4} parent=5 // pred_fallthru
      _
    %p189 = scmp.le.s32.totalorder 1, %s12
    %p190 = scmp.lt.s32.totalorder %s12, 3
    %p191 = pnand %p189, %p190
    %p192 = pneg %p191
    // Predicated region
    $region33: #{up_layer_forward.4} parent=5 // pred_check
      _
    $region34: #{up_layer_forward.4} parent=5 // pred_check_branch
      %194 = sbr.rel (%p191) target = $region36
    $region35: #{up_layer_forward.4} parent=5 // pred_region
      %s195 = ssub.s32 %s12, 1
      %p196 = scmp.lt.s32.totalorder %s17, 1
      %s197 = scalar_select %p196, %s17, 1
      %s198 = smul.addr %s197, 32
      %s199 = smul.addr %s198, 8
      %s200 = scalar_lea.vmem %s0, %s199
      %p201 = pneg %p38
      %p202 = pneg %p35
      %p203 = pneg %p59
      %p204 = pneg %p56
      %p205 = pneg %p80
      %p206 = pneg %p77
      %p207 = pneg %p101
      %p208 = pneg %p98
      %p209 = pneg %p127
      %p210 = pneg %p124
      %p211 = scmp.lt.s32.totalorder %s17, 1
      %s212 = scalar_select %p211, %s17, 1
      %s213 = smul.addr %s212, 32
      %s214 = smul.addr %s213, 8
      %s215 = scalar_lea.vmem %s4, %s214
      %p216 = pneg %p153
      %p217 = pneg %p150
      %p218 = scmp.lt.s32.totalorder %s17, 1
      %s219 = scalar_select %p218, %s17, 1
      %s220 = smul.addr %s219, 2
      %s221 = scalar_lea.vmem %s5, %s220
      %p222 = scmp.lt.s32.totalorder %s17, 1
      %s223 = scalar_select %p222, %s17, 1
      %s224 = smul.addr %s223, 32
      %s225 = smul.addr %s224, 8
      %s226 = scalar_lea.vmem %s0, %s225
      %p227 = scmp.lt.s32.totalorder %s17, 1
      %s228 = scalar_select %p227, %s17, 1
      %s229 = smul.addr %s228, 32
      %s230 = smul.addr %s229, 8
      %s231 = scalar_lea.vmem %s4, %s230
      %p232 = scmp.lt.s32.totalorder %s17, 1
      %s233 = scalar_select %p232, %s17, 1
      %s234 = smul.addr %s233, 2
      %s235 = scalar_lea.vmem %s5, %s234
      %vm236 = vcmask 64512
      %237 = vst.msk [vmem:[#allocation2] sm:$0xff] %vm236, 0.0
      %238 = vst.msk [vmem:[#allocation2 + $0x8] sm:$0xff] %vm236, 0.0
      %vm239 = vcmask 58368
      %240 = vst.msk [vmem:[#allocation2 + $0x10] sm:$0x3] %vm239, 0.0
      %s241 = scalar_lea.vmem [#allocation2], 408
      %242 = vst.msk [vmem:[%s241] sm:$0xff] %vm236, 0.0
      %243 = vst.msk [vmem:[%s241 + $0x8] sm:$0xff] %vm236, 0.0
      %244 = vst.msk [vmem:[%s241 + $0x10] sm:$0x3] %vm239, 0.0
      %vm245 = vcmask 57344
      %246 = vst.msk [vmem:[#allocation2] sm:$0x1] %vm245, 0.0
      %247 = vst.msk [vmem:[#allocation2 + $0x18] sm:$0x1] %vm245, 0.0
      %248 = vst.msk [vmem:[#allocation2 + $0x30] sm:$0x1] %vm245, 0.0
      %249 = vst.msk [vmem:[#allocation2 + $0x48] sm:$0x1] %vm245, 0.0
      %250 = vst.msk [vmem:[#allocation2 + $0x60] sm:$0x1] %vm245, 0.0
      %251 = vst.msk [vmem:[#allocation2 + $0x78] sm:$0x1] %vm245, 0.0
      %252 = vst.msk [vmem:[#allocation2 + $0x90] sm:$0x1] %vm245, 0.0
      %253 = vst.msk [vmem:[#allocation2 + $0xa8] sm:$0x1] %vm245, 0.0
      %254 = vst.msk [vmem:[#allocation2 + $0xc0] sm:$0x1] %vm245, 0.0
      %255 = vst.msk [vmem:[#allocation2 + $0xd8] sm:$0x1] %vm245, 0.0
      %256 = vst.msk [vmem:[#allocation2 + $0xf0] sm:$0x1] %vm245, 0.0
      %257 = vst.msk [vmem:[#allocation2 + $0x108] sm:$0x1] %vm245, 0.0
      %258 = vst.msk [vmem:[#allocation2 + $0x120] sm:$0x1] %vm245, 0.0
      %259 = vst.msk [vmem:[#allocation2 + $0x138] sm:$0x1] %vm245, 0.0
      %260 = vst.msk [vmem:[#allocation2 + $0x150] sm:$0x1] %vm245, 0.0
      %261 = vst.msk [vmem:[#allocation2 + $0x168] sm:$0x1] %vm245, 0.0
      %262 = vst.msk [vmem:[#allocation2 + $0x180] sm:$0x1] %vm245, 0.0
      %263 = vst.msk [vmem:[#allocation2 + $0x198] sm:$0x1] %vm245, 0.0
      %264 = vst.msk [vmem:[#allocation2 + $0x11] sm:$0x1] %vm245, 0.0
      %265 = vst.msk [vmem:[#allocation2 + $0x29] sm:$0x1] %vm245, 0.0
      %266 = vst.msk [vmem:[#allocation2 + $0x41] sm:$0x1] %vm245, 0.0
      %267 = vst.msk [vmem:[#allocation2 + $0x59] sm:$0x1] %vm245, 0.0
      %268 = vst.msk [vmem:[#allocation2 + $0x71] sm:$0x1] %vm245, 0.0
      %269 = vst.msk [vmem:[#allocation2 + $0x89] sm:$0x1] %vm245, 0.0
      %270 = vst.msk [vmem:[#allocation2 + $0xa1] sm:$0x1] %vm245, 0.0
      %271 = vst.msk [vmem:[#allocation2 + $0xb9] sm:$0x1] %vm245, 0.0
      %272 = vst.msk [vmem:[#allocation2 + $0xd1] sm:$0x1] %vm245, 0.0
      %273 = vst.msk [vmem:[#allocation2 + $0xe9] sm:$0x1] %vm245, 0.0
      %274 = vst.msk [vmem:[#allocation2 + $0x101] sm:$0x1] %vm245, 0.0
      %275 = vst.msk [vmem:[#allocation2 + $0x119] sm:$0x1] %vm245, 0.0
      %276 = vst.msk [vmem:[#allocation2 + $0x131] sm:$0x1] %vm245, 0.0
      %277 = vst.msk [vmem:[#allocation2 + $0x149] sm:$0x1] %vm245, 0.0
      %278 = vst.msk [vmem:[#allocation2 + $0x161] sm:$0x1] %vm245, 0.0
      %279 = vst.msk [vmem:[#allocation2 + $0x179] sm:$0x1] %vm245, 0.0
      %280 = vst.msk [vmem:[#allocation2 + $0x191] sm:$0x1] %vm245, 0.0
      %281 = vst.msk [vmem:[#allocation2 + $0x1a9] sm:$0x1] %vm245, 0.0
      %v282 = vld [vmem:[%s226] sm:$0xff]
      %v283 = vld [vmem:[%s226 + $0x8] sm:$0xff]
      %v284 = vld [vmem:[%s226 + $0x10] sm:$0xff]
      %v285 = vld [vmem:[%s226 + $0x18] sm:$0xff]
      %v286 = vld [vmem:[%s226 + $0x20] sm:$0xff]
      %v287 = vld [vmem:[%s226 + $0x28] sm:$0xff]
      %v288 = vld [vmem:[%s226 + $0x30] sm:$0xff]
      %v289 = vld [vmem:[%s226 + $0x38] sm:$0xff]
      %v290 = vld [vmem:[%s226 + $0x40] sm:$0xff]
      %v291 = vld [vmem:[%s226 + $0x48] sm:$0xff]
      %v292 = vld [vmem:[%s226 + $0x50] sm:$0xff]
      %v293 = vld [vmem:[%s226 + $0x58] sm:$0xff]
      %v294 = vld [vmem:[%s226 + $0x60] sm:$0xff]
      %v295 = vld [vmem:[%s226 + $0x68] sm:$0xff]
      %v296 = vld [vmem:[%s226 + $0x70] sm:$0xff]
      %v297 = vld [vmem:[%s226 + $0x78] sm:$0xff]
      %v298 = vld [vmem:[%s226 + $0x80] sm:$0xff]
      %v299 = vld [vmem:[%s226 + $0x88] sm:$0xff]
      %v300 = vld [vmem:[%s226 + $0x90] sm:$0xff]
      %v301 = vld [vmem:[%s226 + $0x98] sm:$0xff]
      %v302 = vld [vmem:[%s226 + $0xa0] sm:$0xff]
      %v303 = vld [vmem:[%s226 + $0xa8] sm:$0xff]
      %v304 = vld [vmem:[%s226 + $0xb0] sm:$0xff]
      %v305 = vld [vmem:[%s226 + $0xb8] sm:$0xff]
      %v306 = vld [vmem:[%s226 + $0xc0] sm:$0xff]
      %v307 = vld [vmem:[%s226 + $0xc8] sm:$0xff]
      %v308 = vld [vmem:[%s226 + $0xd0] sm:$0xff]
      %v309 = vld [vmem:[%s226 + $0xd8] sm:$0xff]
      %v310 = vld [vmem:[%s226 + $0xe0] sm:$0xff]
      %v311 = vld [vmem:[%s226 + $0xe8] sm:$0xff]
      %v312 = vld [vmem:[%s226 + $0xf0] sm:$0xff]
      %v313 = vld [vmem:[%s226 + $0xf8] sm:$0xff]
      %v314 = vld [vmem:[%s1] sm:$0x1]
      %v315 = vlaneseq
      %v316 = vshrl.u32 %v315, 7
      %v317 = vsub.s32 0, %v316
      %v318 = vrot.slane %v314, %v317
      %v319 = vmul.f32 %v282, %v318
      %v320 = vmul.f32 %v283, %v318
      %v321 = vmul.f32 %v284, %v318
      %v322 = vmul.f32 %v285, %v318
      %v323 = vmul.f32 %v286, %v318
      %v324 = vmul.f32 %v287, %v318
      %v325 = vmul.f32 %v288, %v318
      %v326 = vmul.f32 %v289, %v318
      %v327 = vmul.f32 %v290, %v318
      %v328 = vmul.f32 %v291, %v318
      %v329 = vmul.f32 %v292, %v318
      %v330 = vmul.f32 %v293, %v318
      %v331 = vmul.f32 %v294, %v318
      %v332 = vmul.f32 %v295, %v318
      %v333 = vmul.f32 %v296, %v318
      %v334 = vmul.f32 %v297, %v318
      %v335 = vmul.f32 %v298, %v318
      %v336 = vmul.f32 %v299, %v318
      %v337 = vmul.f32 %v300, %v318
      %v338 = vmul.f32 %v301, %v318
      %v339 = vmul.f32 %v302, %v318
      %v340 = vmul.f32 %v303, %v318
      %v341 = vmul.f32 %v304, %v318
      %v342 = vmul.f32 %v305, %v318
      %v343 = vmul.f32 %v306, %v318
      %v344 = vmul.f32 %v307, %v318
      %v345 = vmul.f32 %v308, %v318
      %v346 = vmul.f32 %v309, %v318
      %v347 = vmul.f32 %v310, %v318
      %v348 = vmul.f32 %v311, %v318
      %v349 = vmul.f32 %v312, %v318
      %v350 = vmul.f32 %v313, %v318
      %v351 = vld [vmem:[%s1 + $0x1] sm:$0x1]
      %v352 = vlaneseq
      %v353 = vshrl.u32 %v352, 7
      %v354 = vsub.s32 0, %v353
      %v355 = vrot.slane %v351, %v354
      %v356 = vadd.f32 %v319, %v355
      %v357 = vadd.f32 %v320, %v355
      %v358 = vadd.f32 %v321, %v355
      %v359 = vadd.f32 %v322, %v355
      %v360 = vadd.f32 %v323, %v355
      %v361 = vadd.f32 %v324, %v355
      %v362 = vadd.f32 %v325, %v355
      %v363 = vadd.f32 %v326, %v355
      %v364 = vadd.f32 %v327, %v355
      %v365 = vadd.f32 %v328, %v355
      %v366 = vadd.f32 %v329, %v355
      %v367 = vadd.f32 %v330, %v355
      %v368 = vadd.f32 %v331, %v355
      %v369 = vadd.f32 %v332, %v355
      %v370 = vadd.f32 %v333, %v355
      %v371 = vadd.f32 %v334, %v355
      %v372 = vadd.f32 %v335, %v355
      %v373 = vadd.f32 %v336, %v355
      %v374 = vadd.f32 %v337, %v355
      %v375 = vadd.f32 %v338, %v355
      %v376 = vadd.f32 %v339, %v355
      %v377 = vadd.f32 %v340, %v355
      %v378 = vadd.f32 %v341, %v355
      %v379 = vadd.f32 %v342, %v355
      %v380 = vadd.f32 %v343, %v355
      %v381 = vadd.f32 %v344, %v355
      %v382 = vadd.f32 %v345, %v355
      %v383 = vadd.f32 %v346, %v355
      %v384 = vadd.f32 %v347, %v355
      %v385 = vadd.f32 %v348, %v355
      %v386 = vadd.f32 %v349, %v355
      %v387 = vadd.f32 %v350, %v355
      %s388 = scalar_lea.vmem [#allocation2], 24
      %389 = vst.msk [vmem:[%s388 + $0x1] sm:$0xff] %vm236, %v356
      %390 = vst.msk [vmem:[%s388 + $0x9] sm:$0xff] %vm236, %v357
      %391 = vst.msk [vmem:[%s388 + $0x19] sm:$0xff] %vm236, %v358
      %392 = vst.msk [vmem:[%s388 + $0x21] sm:$0xff] %vm236, %v359
      %393 = vst.msk [vmem:[%s388 + $0x31] sm:$0xff] %vm236, %v360
      %394 = vst.msk [vmem:[%s388 + $0x39] sm:$0xff] %vm236, %v361
      %395 = vst.msk [vmem:[%s388 + $0x49] sm:$0xff] %vm236, %v362
      %396 = vst.msk [vmem:[%s388 + $0x51] sm:$0xff] %vm236, %v363
      %397 = vst.msk [vmem:[%s388 + $0x61] sm:$0xff] %vm236, %v364
      %398 = vst.msk [vmem:[%s388 + $0x69] sm:$0xff] %vm236, %v365
      %399 = vst.msk [vmem:[%s388 + $0x79] sm:$0xff] %vm236, %v366
      %400 = vst.msk [vmem:[%s388 + $0x81] sm:$0xff] %vm236, %v367
      %401 = vst.msk [vmem:[%s388 + $0x91] sm:$0xff] %vm236, %v368
      %402 = vst.msk [vmem:[%s388 + $0x99] sm:$0xff] %vm236, %v369
      %403 = vst.msk [vmem:[%s388 + $0xa9] sm:$0xff] %vm236, %v370
      %404 = vst.msk [vmem:[%s388 + $0xb1] sm:$0xff] %vm236, %v371
      %405 = vst.msk [vmem:[%s388 + $0xc1] sm:$0xff] %vm236, %v372
      %406 = vst.msk [vmem:[%s388 + $0xc9] sm:$0xff] %vm236, %v373
      %407 = vst.msk [vmem:[%s388 + $0xd9] sm:$0xff] %vm236, %v374
      %408 = vst.msk [vmem:[%s388 + $0xe1] sm:$0xff] %vm236, %v375
      %409 = vst.msk [vmem:[%s388 + $0xf1] sm:$0xff] %vm236, %v376
      %410 = vst.msk [vmem:[%s388 + $0xf9] sm:$0xff] %vm236, %v377
      %411 = vst.msk [vmem:[%s388 + $0x109] sm:$0xff] %vm236, %v378
      %412 = vst.msk [vmem:[%s388 + $0x111] sm:$0xff] %vm236, %v379
      %413 = vst.msk [vmem:[%s388 + $0x121] sm:$0xff] %vm236, %v380
      %414 = vst.msk [vmem:[%s388 + $0x129] sm:$0xff] %vm236, %v381
      %415 = vst.msk [vmem:[%s388 + $0x139] sm:$0xff] %vm236, %v382
      %416 = vst.msk [vmem:[%s388 + $0x141] sm:$0xff] %vm236, %v383
      %417 = vst.msk [vmem:[%s388 + $0x151] sm:$0xff] %vm236, %v384
      %418 = vst.msk [vmem:[%s388 + $0x159] sm:$0xff] %vm236, %v385
      %419 = vst.msk [vmem:[%s388 + $0x169] sm:$0xff] %vm236, %v386
      %420 = vst.msk [vmem:[%s388 + $0x171] sm:$0xff] %vm236, %v387
      %v421 = vld [vmem:[#allocation2] sm:$0xff]
      %v422 = vld [vmem:[#allocation2 + $0x8] sm:$0xff]
      %v423 = vld [vmem:[#allocation2 + $0x18] sm:$0xff]
      %v424 = vld [vmem:[#allocation2 + $0x20] sm:$0xff]
      %v425 = vld [vmem:[#allocation2 + $0x30] sm:$0xff]
      %v426 = vld [vmem:[#allocation2 + $0x38] sm:$0xff]
      %v427 = vld [vmem:[#allocation2 + $0x48] sm:$0xff]
      %v428 = vld [vmem:[#allocation2 + $0x50] sm:$0xff]
      %v429 = vld [vmem:[#allocation2 + $0x60] sm:$0xff]
      %v430 = vld [vmem:[#allocation2 + $0x68] sm:$0xff]
      %v431 = vld [vmem:[#allocation2 + $0x78] sm:$0xff]
      %v432 = vld [vmem:[#allocation2 + $0x80] sm:$0xff]
      %v433 = vld [vmem:[#allocation2 + $0x90] sm:$0xff]
      %v434 = vld [vmem:[#allocation2 + $0x98] sm:$0xff]
      %v435 = vld [vmem:[#allocation2 + $0xa8] sm:$0xff]
      %v436 = vld [vmem:[#allocation2 + $0xb0] sm:$0xff]
      %v437 = vld [vmem:[#allocation2 + $0xc0] sm:$0xff]
      %v438 = vld [vmem:[#allocation2 + $0xc8] sm:$0xff]
      %v439 = vld [vmem:[#allocation2 + $0xd8] sm:$0xff]
      %v440 = vld [vmem:[#allocation2 + $0xe0] sm:$0xff]
      %v441 = vld [vmem:[#allocation2 + $0xf0] sm:$0xff]
      %v442 = vld [vmem:[#allocation2 + $0xf8] sm:$0xff]
      %v443 = vld [vmem:[#allocation2 + $0x108] sm:$0xff]
      %v444 = vld [vmem:[#allocation2 + $0x110] sm:$0xff]
      %v445 = vld [vmem:[#allocation2 + $0x120] sm:$0xff]
      %v446 = vld [vmem:[#allocation2 + $0x128] sm:$0xff]
      %v447 = vld [vmem:[#allocation2 + $0x138] sm:$0xff]
      %v448 = vld [vmem:[#allocation2 + $0x140] sm:$0xff]
      %v449 = vld [vmem:[#allocation2 + $0x150] sm:$0xff]
      %v450 = vld [vmem:[#allocation2 + $0x158] sm:$0xff]
      %v451 = vld [vmem:[#allocation2 + $0x168] sm:$0xff]
      %v452 = vld [vmem:[#allocation2 + $0x170] sm:$0xff]
      %v453 = vld [vmem:[%s2] sm:$0xff]
      %v454 = vld [vmem:[#allocation2 + $0x1] sm:$0xff]
      %v455 = vld [vmem:[#allocation2 + $0x9] sm:$0xff]
      %v456 = vld [vmem:[#allocation2 + $0x19] sm:$0xff]
      %v457 = vld [vmem:[#allocation2 + $0x21] sm:$0xff]
      %v458 = vld [vmem:[#allocation2 + $0x31] sm:$0xff]
      %v459 = vld [vmem:[#allocation2 + $0x39] sm:$0xff]
      %v460 = vld [vmem:[#allocation2 + $0x49] sm:$0xff]
      %v461 = vld [vmem:[#allocation2 + $0x51] sm:$0xff]
      %v462 = vld [vmem:[#allocation2 + $0x61] sm:$0xff]
      %v463 = vld [vmem:[#allocation2 + $0x69] sm:$0xff]
      %v464 = vld [vmem:[#allocation2 + $0x79] sm:$0xff]
      %v465 = vld [vmem:[#allocation2 + $0x81] sm:$0xff]
      %v466 = vld [vmem:[#allocation2 + $0x91] sm:$0xff]
      %v467 = vld [vmem:[#allocation2 + $0x99] sm:$0xff]
      %v468 = vld [vmem:[#allocation2 + $0xa9] sm:$0xff]
      %v469 = vld [vmem:[#allocation2 + $0xb1] sm:$0xff]
      %v470 = vld [vmem:[#allocation2 + $0xc1] sm:$0xff]
      %v471 = vld [vmem:[#allocation2 + $0xc9] sm:$0xff]
      %v472 = vld [vmem:[#allocation2 + $0xd9] sm:$0xff]
      %v473 = vld [vmem:[#allocation2 + $0xe1] sm:$0xff]
      %v474 = vld [vmem:[#allocation2 + $0xf1] sm:$0xff]
      %v475 = vld [vmem:[#allocation2 + $0xf9] sm:$0xff]
      %v476 = vld [vmem:[#allocation2 + $0x109] sm:$0xff]
      %v477 = vld [vmem:[#allocation2 + $0x111] sm:$0xff]
      %v478 = vld [vmem:[#allocation2 + $0x121] sm:$0xff]
      %v479 = vld [vmem:[#allocation2 + $0x129] sm:$0xff]
      %v480 = vld [vmem:[#allocation2 + $0x139] sm:$0xff]
      %v481 = vld [vmem:[#allocation2 + $0x141] sm:$0xff]
      %v482 = vld [vmem:[#allocation2 + $0x151] sm:$0xff]
      %v483 = vld [vmem:[#allocation2 + $0x159] sm:$0xff]
      %v484 = vld [vmem:[#allocation2 + $0x169] sm:$0xff]
      %v485 = vld [vmem:[#allocation2 + $0x171] sm:$0xff]
      %s486 = scalar_lea.vmem %s2, 8
      %v487 = vld [vmem:[%s486] sm:$0xff]
      %v489 = vsel %vm236, %v454, 0
      %v492 = vsel %vm236, %v455, 0
      %v495 = vsel %vm236, %v456, 0
      %v498 = vsel %vm236, %v457, 0
      %v501 = vsel %vm236, %v458, 0
      %v504 = vsel %vm236, %v459, 0
      %v507 = vsel %vm236, %v460, 0
      %v510 = vsel %vm236, %v461, 0
      %v513 = vsel %vm236, %v462, 0
      %v516 = vsel %vm236, %v463, 0
      %v519 = vsel %vm236, %v464, 0
      %v522 = vsel %vm236, %v465, 0
      %v525 = vsel %vm236, %v466, 0
      %v528 = vsel %vm236, %v467, 0
      %v531 = vsel %vm236, %v468, 0
      %v534 = vsel %vm236, %v469, 0
      %v537 = vsel %vm236, %v470, 0
      %v540 = vsel %vm236, %v471, 0
      %v543 = vsel %vm236, %v472, 0
      %v546 = vsel %vm236, %v473, 0
      %v549 = vsel %vm236, %v474, 0
      %v552 = vsel %vm236, %v475, 0
      %v555 = vsel %vm236, %v476, 0
      %v558 = vsel %vm236, %v477, 0
      %v561 = vsel %vm236, %v478, 0
      %v564 = vsel %vm236, %v479, 0
      %v567 = vsel %vm236, %v480, 0
      %v570 = vsel %vm236, %v481, 0
      %v573 = vsel %vm236, %v482, 0
      %v576 = vsel %vm236, %v483, 0
      %v579 = vsel %vm236, %v484, 0
      %v582 = vsel %vm236, %v485, 0
      %584 = vmatprep.subr.mxu0 0.0
      %585 = vmatpush1.msra.mxu0 0.0
      %586 = vmatprep.subr.mxu0 0.0
      %587 = vmatpush1.msra.mxu0 0.0
      %588 = vmatprep.subr.mxu0 0.0
      %589 = vmatpush1.msra.mxu0 0.0
      %590 = vmatprep.subr.mxu0 0.0
      %591 = vmatpush1.msra.mxu0 0.0
      %592 = vmatprep.subr.mxu0 0.0
      %593 = vmatpush1.msra.mxu0 0.0
      %594 = vmatprep.subr.mxu0 0.0
      %595 = vmatpush1.msra.mxu0 0.0
      %596 = vmatprep.subr.mxu0 0.0
      %597 = vmatpush1.msra.mxu0 0.0
      %598 = vmatprep.subr.mxu0 0.0
      %599 = vmatpush1.msra.mxu0 0.0
      %600 = vmatprep.subr.mxu0 0.0
      %601 = vmatpush1.msra.mxu0 0.0
      %602 = vmatprep.subr.mxu0 0.0
      %603 = vmatpush1.msra.mxu0 0.0
      %604 = vmatprep.subr.mxu0 0.0
      %605 = vmatpush1.msra.mxu0 0.0
      %606 = vmatprep.subr.mxu0 0.0
      %607 = vmatpush1.msra.mxu0 0.0
      %608 = vmatprep.subr.mxu0 0.0
      %609 = vmatpush1.msra.mxu0 0.0
      %610 = vmatprep.subr.mxu0 0.0
      %611 = vmatpush1.msra.mxu0 0.0
      %612 = vmatprep.subr.mxu0 0.0
      %613 = vmatpush1.msra.mxu0 0.0
      %614 = vmatprep.subr.mxu0 0.0
      %615 = vmatpush1.msra.mxu0 %v487
      %616 = vmatprep.subr.mxu0 0.0
      %617 = vmatpush2.msra.mxu0 0.0
      %618 = vmatprep.subr.mxu0 0.0
      %619 = vmatpush2.msra.mxu0 0.0
      %620 = vmatprep.subr.mxu0 0.0
      %621 = vmatpush2.msra.mxu0 0.0
      %622 = vmatprep.subr.mxu0 0.0
      %623 = vmatpush2.msra.mxu0 0.0
      %624 = vmatprep.subr.mxu0 0.0
      %625 = vmatpush2.msra.mxu0 0.0
      %626 = vmatprep.subr.mxu0 0.0
      %627 = vmatpush2.msra.mxu0 0.0
      %628 = vmatprep.subr.mxu0 0.0
      %629 = vmatpush2.msra.mxu0 0.0
      %630 = vmatprep.subr.mxu0 0.0
      %631 = vmatpush2.msra.mxu0 0.0
      %632 = vmatprep.subr.mxu0 0.0
      %633 = vmatpush2.msra.mxu0 0.0
      %634 = vmatprep.subr.mxu0 0.0
      %635 = vmatpush2.msra.mxu0 0.0
      %636 = vmatprep.subr.mxu0 0.0
      %637 = vmatpush2.msra.mxu0 0.0
      %638 = vmatprep.subr.mxu0 0.0
      %639 = vmatpush2.msra.mxu0 0.0
      %640 = vmatprep.subr.mxu0 0.0
      %641 = vmatpush2.msra.mxu0 0.0
      %642 = vmatprep.subr.mxu0 0.0
      %643 = vmatpush2.msra.mxu0 0.0
      %644 = vmatprep.subr.mxu0 0.0
      %645 = vmatpush2.msra.mxu0 0.0
      %646 = vmatprep.subr.mxu0 0.0
      %647 = vmatpush2.msra.mxu0 0.0
      %648 = vmatprep.mubr.f32.mxu0 0.0
      %649 = vmatmul.mubr.f32.gmra.mxu0 %v489
      %v650 = vpop.f32.mrf.mxu0
      %v651 = vadd.f32 0.0, %v650
      %v652 = vpop.f32.mrf.mxu0
      %653 = vmatprep.mubr.f32.mxu0 0.0
      %654 = vmatmul.mubr.f32.gmra.mxu0 %v492
      %v655 = vpop.f32.mrf.mxu0
      %v656 = vadd.f32 0.0, %v655
      %v657 = vpop.f32.mrf.mxu0
      %658 = vmatprep.mubr.f32.mxu0 0.0
      %659 = vmatmul.mubr.f32.gmra.mxu0 %v495
      %v660 = vpop.f32.mrf.mxu0
      %v661 = vadd.f32 0.0, %v660
      %v662 = vpop.f32.mrf.mxu0
      %663 = vmatprep.mubr.f32.mxu0 0.0
      %664 = vmatmul.mubr.f32.gmra.mxu0 %v498
      %v665 = vpop.f32.mrf.mxu0
      %v666 = vadd.f32 0.0, %v665
      %v667 = vpop.f32.mrf.mxu0
      %668 = vmatprep.mubr.f32.mxu0 0.0
      %669 = vmatmul.mubr.f32.gmra.mxu0 %v501
      %v670 = vpop.f32.mrf.mxu0
      %v671 = vadd.f32 0.0, %v670
      %v672 = vpop.f32.mrf.mxu0
      %673 = vmatprep.mubr.f32.mxu0 0.0
      %674 = vmatmul.mubr.f32.gmra.mxu0 %v504
      %v675 = vpop.f32.mrf.mxu0
      %v676 = vadd.f32 0.0, %v675
      %v677 = vpop.f32.mrf.mxu0
      %678 = vmatprep.mubr.f32.mxu0 0.0
      %679 = vmatmul.mubr.f32.gmra.mxu0 %v507
      %v680 = vpop.f32.mrf.mxu0
      %v681 = vadd.f32 0.0, %v680
      %v682 = vpop.f32.mrf.mxu0
      %683 = vmatprep.mubr.f32.mxu0 0.0
      %684 = vmatmul.mubr.f32.gmra.mxu0 %v510
      %v685 = vpop.f32.mrf.mxu0
      %v686 = vadd.f32 0.0, %v685
      %v687 = vpop.f32.mrf.mxu0
      %688 = vmatprep.mubr.f32.mxu0 0.0
      %689 = vmatmul.mubr.f32.gmra.mxu0 %v513
      %v690 = vpop.f32.mrf.mxu0
      %v691 = vadd.f32 0.0, %v690
      %v692 = vpop.f32.mrf.mxu0
      %693 = vmatprep.mubr.f32.mxu0 0.0
      %694 = vmatmul.mubr.f32.gmra.mxu0 %v516
      %v695 = vpop.f32.mrf.mxu0
      %v696 = vadd.f32 0.0, %v695
      %v697 = vpop.f32.mrf.mxu0
      %698 = vmatprep.mubr.f32.mxu0 0.0
      %699 = vmatmul.mubr.f32.gmra.mxu0 %v519
      %v700 = vpop.f32.mrf.mxu0
      %v701 = vadd.f32 0.0, %v700
      %v702 = vpop.f32.mrf.mxu0
      %703 = vmatprep.mubr.f32.mxu0 0.0
      %704 = vmatmul.mubr.f32.gmra.mxu0 %v522
      %v705 = vpop.f32.mrf.mxu0
      %v706 = vadd.f32 0.0, %v705
      %v707 = vpop.f32.mrf.mxu0
      %708 = vmatprep.mubr.f32.mxu0 0.0
      %709 = vmatmul.mubr.f32.gmra.mxu0 %v525
      %v710 = vpop.f32.mrf.mxu0
      %v711 = vadd.f32 0.0, %v710
      %v712 = vpop.f32.mrf.mxu0
      %713 = vmatprep.mubr.f32.mxu0 0.0
      %714 = vmatmul.mubr.f32.gmra.mxu0 %v528
      %v715 = vpop.f32.mrf.mxu0
      %v716 = vadd.f32 0.0, %v715
      %v717 = vpop.f32.mrf.mxu0
      %718 = vmatprep.mubr.f32.mxu0 0.0
      %719 = vmatmul.mubr.f32.gmra.mxu0 %v531
      %v720 = vpop.f32.mrf.mxu0
      %v721 = vadd.f32 0.0, %v720
      %v722 = vpop.f32.mrf.mxu0
      %723 = vmatprep.mubr.f32.mxu0 0.0
      %724 = vmatmul.mubr.f32.gmra.mxu0 %v534
      %v725 = vpop.f32.mrf.mxu0
      %v726 = vadd.f32 0.0, %v725
      %v727 = vpop.f32.mrf.mxu0
      %728 = vmatprep.mubr.f32.mxu0 0.0
      %729 = vmatmul.mubr.f32.gmra.mxu0 %v537
      %v730 = vpop.f32.mrf.mxu0
      %v731 = vadd.f32 0.0, %v730
      %v732 = vpop.f32.mrf.mxu0
      %733 = vmatprep.mubr.f32.mxu0 0.0
      %734 = vmatmul.mubr.f32.gmra.mxu0 %v540
      %v735 = vpop.f32.mrf.mxu0
      %v736 = vadd.f32 0.0, %v735
      %v737 = vpop.f32.mrf.mxu0
      %738 = vmatprep.mubr.f32.mxu0 0.0
      %739 = vmatmul.mubr.f32.gmra.mxu0 %v543
      %v740 = vpop.f32.mrf.mxu0
      %v741 = vadd.f32 0.0, %v740
      %v742 = vpop.f32.mrf.mxu0
      %743 = vmatprep.mubr.f32.mxu0 0.0
      %744 = vmatmul.mubr.f32.gmra.mxu0 %v546
      %v745 = vpop.f32.mrf.mxu0
      %v746 = vadd.f32 0.0, %v745
      %v747 = vpop.f32.mrf.mxu0
      %748 = vmatprep.mubr.f32.mxu0 0.0
      %749 = vmatmul.mubr.f32.gmra.mxu0 %v549
      %v750 = vpop.f32.mrf.mxu0
      %v751 = vadd.f32 0.0, %v750
      %v752 = vpop.f32.mrf.mxu0
      %753 = vmatprep.mubr.f32.mxu0 0.0
      %754 = vmatmul.mubr.f32.gmra.mxu0 %v552
      %v755 = vpop.f32.mrf.mxu0
      %v756 = vadd.f32 0.0, %v755
      %v757 = vpop.f32.mrf.mxu0
      %758 = vmatprep.mubr.f32.mxu0 0.0
      %759 = vmatmul.mubr.f32.gmra.mxu0 %v555
      %v760 = vpop.f32.mrf.mxu0
      %v761 = vadd.f32 0.0, %v760
      %v762 = vpop.f32.mrf.mxu0
      %763 = vmatprep.mubr.f32.mxu0 0.0
      %764 = vmatmul.mubr.f32.gmra.mxu0 %v558
      %v765 = vpop.f32.mrf.mxu0
      %v766 = vadd.f32 0.0, %v765
      %v767 = vpop.f32.mrf.mxu0
      %768 = vmatprep.mubr.f32.mxu0 0.0
      %769 = vmatmul.mubr.f32.gmra.mxu0 %v561
      %v770 = vpop.f32.mrf.mxu0
      %v771 = vadd.f32 0.0, %v770
      %v772 = vpop.f32.mrf.mxu0
      %773 = vmatprep.mubr.f32.mxu0 0.0
      %774 = vmatmul.mubr.f32.gmra.mxu0 %v564
      %v775 = vpop.f32.mrf.mxu0
      %v776 = vadd.f32 0.0, %v775
      %v777 = vpop.f32.mrf.mxu0
      %778 = vmatprep.mubr.f32.mxu0 0.0
      %779 = vmatmul.mubr.f32.gmra.mxu0 %v567
      %v780 = vpop.f32.mrf.mxu0
      %v781 = vadd.f32 0.0, %v780
      %v782 = vpop.f32.mrf.mxu0
      %783 = vmatprep.mubr.f32.mxu0 0.0
      %784 = vmatmul.mubr.f32.gmra.mxu0 %v570
      %v785 = vpop.f32.mrf.mxu0
      %v786 = vadd.f32 0.0, %v785
      %v787 = vpop.f32.mrf.mxu0
      %788 = vmatprep.mubr.f32.mxu0 0.0
      %789 = vmatmul.mubr.f32.gmra.mxu0 %v573
      %v790 = vpop.f32.mrf.mxu0
      %v791 = vadd.f32 0.0, %v790
      %v792 = vpop.f32.mrf.mxu0
      %793 = vmatprep.mubr.f32.mxu0 0.0
      %794 = vmatmul.mubr.f32.gmra.mxu0 %v576
      %v795 = vpop.f32.mrf.mxu0
      %v796 = vadd.f32 0.0, %v795
      %v797 = vpop.f32.mrf.mxu0
      %798 = vmatprep.mubr.f32.mxu0 0.0
      %799 = vmatmul.mubr.f32.gmra.mxu0 %v579
      %v800 = vpop.f32.mrf.mxu0
      %v801 = vadd.f32 0.0, %v800
      %v802 = vpop.f32.mrf.mxu0
      %803 = vmatprep.mubr.f32.mxu0 0.0
      %804 = vmatmul.mubr.f32.gmra.mxu0 %v582
      %v805 = vpop.f32.mrf.mxu0
      %v806 = vadd.f32 0.0, %v805
      %v807 = vpop.f32.mrf.mxu0
      %808 = vdwg.mxu0
      %v810 = vsel %vm236, %v421, 0
      %v813 = vsel %vm236, %v422, 0
      %v816 = vsel %vm236, %v423, 0
      %v819 = vsel %vm236, %v424, 0
      %v822 = vsel %vm236, %v425, 0
      %v825 = vsel %vm236, %v426, 0
      %v828 = vsel %vm236, %v427, 0
      %v831 = vsel %vm236, %v428, 0
      %v834 = vsel %vm236, %v429, 0
      %v837 = vsel %vm236, %v430, 0
      %v840 = vsel %vm236, %v431, 0
      %v843 = vsel %vm236, %v432, 0
      %v846 = vsel %vm236, %v433, 0
      %v849 = vsel %vm236, %v434, 0
      %v852 = vsel %vm236, %v435, 0
      %v855 = vsel %vm236, %v436, 0
      %v858 = vsel %vm236, %v437, 0
      %v861 = vsel %vm236, %v438, 0
      %v864 = vsel %vm236, %v439, 0
      %v867 = vsel %vm236, %v440, 0
      %v870 = vsel %vm236, %v441, 0
      %v873 = vsel %vm236, %v442, 0
      %v876 = vsel %vm236, %v443, 0
      %v879 = vsel %vm236, %v444, 0
      %v882 = vsel %vm236, %v445, 0
      %v885 = vsel %vm236, %v446, 0
      %v888 = vsel %vm236, %v447, 0
      %v891 = vsel %vm236, %v448, 0
      %v894 = vsel %vm236, %v449, 0
      %v897 = vsel %vm236, %v450, 0
      %v900 = vsel %vm236, %v451, 0
      %v903 = vsel %vm236, %v452, 0
      %905 = vmatprep.subr.mxu0 0.0
      %906 = vmatpush1.msra.mxu0 0.0
      %907 = vmatprep.subr.mxu0 0.0
      %908 = vmatpush1.msra.mxu0 0.0
      %909 = vmatprep.subr.mxu0 0.0
      %910 = vmatpush1.msra.mxu0 0.0
      %911 = vmatprep.subr.mxu0 0.0
      %912 = vmatpush1.msra.mxu0 0.0
      %913 = vmatprep.subr.mxu0 0.0
      %914 = vmatpush1.msra.mxu0 0.0
      %915 = vmatprep.subr.mxu0 0.0
      %916 = vmatpush1.msra.mxu0 0.0
      %917 = vmatprep.subr.mxu0 0.0
      %918 = vmatpush1.msra.mxu0 0.0
      %919 = vmatprep.subr.mxu0 0.0
      %920 = vmatpush1.msra.mxu0 0.0
      %921 = vmatprep.subr.mxu0 0.0
      %922 = vmatpush1.msra.mxu0 0.0
      %923 = vmatprep.subr.mxu0 0.0
      %924 = vmatpush1.msra.mxu0 0.0
      %925 = vmatprep.subr.mxu0 0.0
      %926 = vmatpush1.msra.mxu0 0.0
      %927 = vmatprep.subr.mxu0 0.0
      %928 = vmatpush1.msra.mxu0 0.0
      %929 = vmatprep.subr.mxu0 0.0
      %930 = vmatpush1.msra.mxu0 0.0
      %931 = vmatprep.subr.mxu0 0.0
      %932 = vmatpush1.msra.mxu0 0.0
      %933 = vmatprep.subr.mxu0 0.0
      %934 = vmatpush1.msra.mxu0 0.0
      %935 = vmatprep.subr.mxu0 0.0
      %936 = vmatpush1.msra.mxu0 %v453
      %937 = vmatprep.subr.mxu0 0.0
      %938 = vmatpush2.msra.mxu0 0.0
      %939 = vmatprep.subr.mxu0 0.0
      %940 = vmatpush2.msra.mxu0 0.0
      %941 = vmatprep.subr.mxu0 0.0
      %942 = vmatpush2.msra.mxu0 0.0
      %943 = vmatprep.subr.mxu0 0.0
      %944 = vmatpush2.msra.mxu0 0.0
      %945 = vmatprep.subr.mxu0 0.0
      %946 = vmatpush2.msra.mxu0 0.0
      %947 = vmatprep.subr.mxu0 0.0
      %948 = vmatpush2.msra.mxu0 0.0
      %949 = vmatprep.subr.mxu0 0.0
      %950 = vmatpush2.msra.mxu0 0.0
      %951 = vmatprep.subr.mxu0 0.0
      %952 = vmatpush2.msra.mxu0 0.0
      %953 = vmatprep.subr.mxu0 0.0
      %954 = vmatpush2.msra.mxu0 0.0
      %955 = vmatprep.subr.mxu0 0.0
      %956 = vmatpush2.msra.mxu0 0.0
      %957 = vmatprep.subr.mxu0 0.0
      %958 = vmatpush2.msra.mxu0 0.0
      %959 = vmatprep.subr.mxu0 0.0
      %960 = vmatpush2.msra.mxu0 0.0
      %961 = vmatprep.subr.mxu0 0.0
      %962 = vmatpush2.msra.mxu0 0.0
      %963 = vmatprep.subr.mxu0 0.0
      %964 = vmatpush2.msra.mxu0 0.0
      %965 = vmatprep.subr.mxu0 0.0
      %966 = vmatpush2.msra.mxu0 0.0
      %967 = vmatprep.subr.mxu0 0.0
      %968 = vmatpush2.msra.mxu0 0.0
      %969 = vmatprep.mubr.f32.mxu0 0.0
      %970 = vmatmul.mubr.f32.gmra.mxu0 %v810
      %v971 = vpop.f32.mrf.mxu0
      %v972 = vadd.f32 %v651, %v971
      %v973 = vpop.f32.mrf.mxu0
      %974 = vmatprep.mubr.f32.mxu0 0.0
      %975 = vmatmul.mubr.f32.gmra.mxu0 %v813
      %v976 = vpop.f32.mrf.mxu0
      %v977 = vadd.f32 %v656, %v976
      %v978 = vpop.f32.mrf.mxu0
      %979 = vmatprep.mubr.f32.mxu0 0.0
      %980 = vmatmul.mubr.f32.gmra.mxu0 %v816
      %v981 = vpop.f32.mrf.mxu0
      %v982 = vadd.f32 %v661, %v981
      %v983 = vpop.f32.mrf.mxu0
      %984 = vmatprep.mubr.f32.mxu0 0.0
      %985 = vmatmul.mubr.f32.gmra.mxu0 %v819
      %v986 = vpop.f32.mrf.mxu0
      %v987 = vadd.f32 %v666, %v986
      %v988 = vpop.f32.mrf.mxu0
      %989 = vmatprep.mubr.f32.mxu0 0.0
      %990 = vmatmul.mubr.f32.gmra.mxu0 %v822
      %v991 = vpop.f32.mrf.mxu0
      %v992 = vadd.f32 %v671, %v991
      %v993 = vpop.f32.mrf.mxu0
      %994 = vmatprep.mubr.f32.mxu0 0.0
      %995 = vmatmul.mubr.f32.gmra.mxu0 %v825
      %v996 = vpop.f32.mrf.mxu0
      %v997 = vadd.f32 %v676, %v996
      %v998 = vpop.f32.mrf.mxu0
      %999 = vmatprep.mubr.f32.mxu0 0.0
      %1000 = vmatmul.mubr.f32.gmra.mxu0 %v828
      %v1001 = vpop.f32.mrf.mxu0
      %v1002 = vadd.f32 %v681, %v1001
      %v1003 = vpop.f32.mrf.mxu0
      %1004 = vmatprep.mubr.f32.mxu0 0.0
      %1005 = vmatmul.mubr.f32.gmra.mxu0 %v831
      %v1006 = vpop.f32.mrf.mxu0
      %v1007 = vadd.f32 %v686, %v1006
      %v1008 = vpop.f32.mrf.mxu0
      %1009 = vmatprep.mubr.f32.mxu0 0.0
      %1010 = vmatmul.mubr.f32.gmra.mxu0 %v834
      %v1011 = vpop.f32.mrf.mxu0
      %v1012 = vadd.f32 %v691, %v1011
      %v1013 = vpop.f32.mrf.mxu0
      %1014 = vmatprep.mubr.f32.mxu0 0.0
      %1015 = vmatmul.mubr.f32.gmra.mxu0 %v837
      %v1016 = vpop.f32.mrf.mxu0
      %v1017 = vadd.f32 %v696, %v1016
      %v1018 = vpop.f32.mrf.mxu0
      %1019 = vmatprep.mubr.f32.mxu0 0.0
      %1020 = vmatmul.mubr.f32.gmra.mxu0 %v840
      %v1021 = vpop.f32.mrf.mxu0
      %v1022 = vadd.f32 %v701, %v1021
      %v1023 = vpop.f32.mrf.mxu0
      %1024 = vmatprep.mubr.f32.mxu0 0.0
      %1025 = vmatmul.mubr.f32.gmra.mxu0 %v843
      %v1026 = vpop.f32.mrf.mxu0
      %v1027 = vadd.f32 %v706, %v1026
      %v1028 = vpop.f32.mrf.mxu0
      %1029 = vmatprep.mubr.f32.mxu0 0.0
      %1030 = vmatmul.mubr.f32.gmra.mxu0 %v846
      %v1031 = vpop.f32.mrf.mxu0
      %v1032 = vadd.f32 %v711, %v1031
      %v1033 = vpop.f32.mrf.mxu0
      %1034 = vmatprep.mubr.f32.mxu0 0.0
      %1035 = vmatmul.mubr.f32.gmra.mxu0 %v849
      %v1036 = vpop.f32.mrf.mxu0
      %v1037 = vadd.f32 %v716, %v1036
      %v1038 = vpop.f32.mrf.mxu0
      %1039 = vmatprep.mubr.f32.mxu0 0.0
      %1040 = vmatmul.mubr.f32.gmra.mxu0 %v852
      %v1041 = vpop.f32.mrf.mxu0
      %v1042 = vadd.f32 %v721, %v1041
      %v1043 = vpop.f32.mrf.mxu0
      %1044 = vmatprep.mubr.f32.mxu0 0.0
      %1045 = vmatmul.mubr.f32.gmra.mxu0 %v855
      %v1046 = vpop.f32.mrf.mxu0
      %v1047 = vadd.f32 %v726, %v1046
      %v1048 = vpop.f32.mrf.mxu0
      %1049 = vmatprep.mubr.f32.mxu0 0.0
      %1050 = vmatmul.mubr.f32.gmra.mxu0 %v858
      %v1051 = vpop.f32.mrf.mxu0
      %v1052 = vadd.f32 %v731, %v1051
      %v1053 = vpop.f32.mrf.mxu0
      %1054 = vmatprep.mubr.f32.mxu0 0.0
      %1055 = vmatmul.mubr.f32.gmra.mxu0 %v861
      %v1056 = vpop.f32.mrf.mxu0
      %v1057 = vadd.f32 %v736, %v1056
      %v1058 = vpop.f32.mrf.mxu0
      %1059 = vmatprep.mubr.f32.mxu0 0.0
      %1060 = vmatmul.mubr.f32.gmra.mxu0 %v864
      %v1061 = vpop.f32.mrf.mxu0
      %v1062 = vadd.f32 %v741, %v1061
      %v1063 = vpop.f32.mrf.mxu0
      %1064 = vmatprep.mubr.f32.mxu0 0.0
      %1065 = vmatmul.mubr.f32.gmra.mxu0 %v867
      %v1066 = vpop.f32.mrf.mxu0
      %v1067 = vadd.f32 %v746, %v1066
      %v1068 = vpop.f32.mrf.mxu0
      %1069 = vmatprep.mubr.f32.mxu0 0.0
      %1070 = vmatmul.mubr.f32.gmra.mxu0 %v870
      %v1071 = vpop.f32.mrf.mxu0
      %v1072 = vadd.f32 %v751, %v1071
      %v1073 = vpop.f32.mrf.mxu0
      %1074 = vmatprep.mubr.f32.mxu0 0.0
      %1075 = vmatmul.mubr.f32.gmra.mxu0 %v873
      %v1076 = vpop.f32.mrf.mxu0
      %v1077 = vadd.f32 %v756, %v1076
      %v1078 = vpop.f32.mrf.mxu0
      %1079 = vmatprep.mubr.f32.mxu0 0.0
      %1080 = vmatmul.mubr.f32.gmra.mxu0 %v876
      %v1081 = vpop.f32.mrf.mxu0
      %v1082 = vadd.f32 %v761, %v1081
      %v1083 = vpop.f32.mrf.mxu0
      %1084 = vmatprep.mubr.f32.mxu0 0.0
      %1085 = vmatmul.mubr.f32.gmra.mxu0 %v879
      %v1086 = vpop.f32.mrf.mxu0
      %v1087 = vadd.f32 %v766, %v1086
      %v1088 = vpop.f32.mrf.mxu0
      %1089 = vmatprep.mubr.f32.mxu0 0.0
      %1090 = vmatmul.mubr.f32.gmra.mxu0 %v882
      %v1091 = vpop.f32.mrf.mxu0
      %v1092 = vadd.f32 %v771, %v1091
      %v1093 = vpop.f32.mrf.mxu0
      %1094 = vmatprep.mubr.f32.mxu0 0.0
      %1095 = vmatmul.mubr.f32.gmra.mxu0 %v885
      %v1096 = vpop.f32.mrf.mxu0
      %v1097 = vadd.f32 %v776, %v1096
      %v1098 = vpop.f32.mrf.mxu0
      %1099 = vmatprep.mubr.f32.mxu0 0.0
      %1100 = vmatmul.mubr.f32.gmra.mxu0 %v888
      %v1101 = vpop.f32.mrf.mxu0
      %v1102 = vadd.f32 %v781, %v1101
      %v1103 = vpop.f32.mrf.mxu0
      %1104 = vmatprep.mubr.f32.mxu0 0.0
      %1105 = vmatmul.mubr.f32.gmra.mxu0 %v891
      %v1106 = vpop.f32.mrf.mxu0
      %v1107 = vadd.f32 %v786, %v1106
      %v1108 = vpop.f32.mrf.mxu0
      %1109 = vmatprep.mubr.f32.mxu0 0.0
      %1110 = vmatmul.mubr.f32.gmra.mxu0 %v894
      %v1111 = vpop.f32.mrf.mxu0
      %v1112 = vadd.f32 %v791, %v1111
      %v1113 = vpop.f32.mrf.mxu0
      %1114 = vmatprep.mubr.f32.mxu0 0.0
      %1115 = vmatmul.mubr.f32.gmra.mxu0 %v897
      %v1116 = vpop.f32.mrf.mxu0
      %v1117 = vadd.f32 %v796, %v1116
      %v1118 = vpop.f32.mrf.mxu0
      %1119 = vmatprep.mubr.f32.mxu0 0.0
      %1120 = vmatmul.mubr.f32.gmra.mxu0 %v900
      %v1121 = vpop.f32.mrf.mxu0
      %v1122 = vadd.f32 %v801, %v1121
      %v1123 = vpop.f32.mrf.mxu0
      %1124 = vmatprep.mubr.f32.mxu0 0.0
      %1125 = vmatmul.mubr.f32.gmra.mxu0 %v903
      %v1126 = vpop.f32.mrf.mxu0
      %v1127 = vadd.f32 %v806, %v1126
      %v1128 = vpop.f32.mrf.mxu0
      %1129 = vdwg.mxu0
      %v1130 = vld [vmem:[#allocation2 + $0x2] sm:$0xff]
      %v1131 = vld [vmem:[#allocation2 + $0xa] sm:$0xff]
      %v1132 = vld [vmem:[#allocation2 + $0x1a] sm:$0xff]
      %v1133 = vld [vmem:[#allocation2 + $0x22] sm:$0xff]
      %v1134 = vld [vmem:[#allocation2 + $0x32] sm:$0xff]
      %v1135 = vld [vmem:[#allocation2 + $0x3a] sm:$0xff]
      %v1136 = vld [vmem:[#allocation2 + $0x4a] sm:$0xff]
      %v1137 = vld [vmem:[#allocation2 + $0x52] sm:$0xff]
      %v1138 = vld [vmem:[#allocation2 + $0x62] sm:$0xff]
      %v1139 = vld [vmem:[#allocation2 + $0x6a] sm:$0xff]
      %v1140 = vld [vmem:[#allocation2 + $0x7a] sm:$0xff]
      %v1141 = vld [vmem:[#allocation2 + $0x82] sm:$0xff]
      %v1142 = vld [vmem:[#allocation2 + $0x92] sm:$0xff]
      %v1143 = vld [vmem:[#allocation2 + $0x9a] sm:$0xff]
      %v1144 = vld [vmem:[#allocation2 + $0xaa] sm:$0xff]
      %v1145 = vld [vmem:[#allocation2 + $0xb2] sm:$0xff]
      %v1146 = vld [vmem:[#allocation2 + $0xc2] sm:$0xff]
      %v1147 = vld [vmem:[#allocation2 + $0xca] sm:$0xff]
      %v1148 = vld [vmem:[#allocation2 + $0xda] sm:$0xff]
      %v1149 = vld [vmem:[#allocation2 + $0xe2] sm:$0xff]
      %v1150 = vld [vmem:[#allocation2 + $0xf2] sm:$0xff]
      %v1151 = vld [vmem:[#allocation2 + $0xfa] sm:$0xff]
      %v1152 = vld [vmem:[#allocation2 + $0x10a] sm:$0xff]
      %v1153 = vld [vmem:[#allocation2 + $0x112] sm:$0xff]
      %v1154 = vld [vmem:[#allocation2 + $0x122] sm:$0xff]
      %v1155 = vld [vmem:[#allocation2 + $0x12a] sm:$0xff]
      %v1156 = vld [vmem:[#allocation2 + $0x13a] sm:$0xff]
      %v1157 = vld [vmem:[#allocation2 + $0x142] sm:$0xff]
      %v1158 = vld [vmem:[#allocation2 + $0x152] sm:$0xff]
      %v1159 = vld [vmem:[#allocation2 + $0x15a] sm:$0xff]
      %v1160 = vld [vmem:[#allocation2 + $0x16a] sm:$0xff]
      %v1161 = vld [vmem:[#allocation2 + $0x172] sm:$0xff]
      %s1162 = scalar_lea.vmem %s2, 16
      %v1163 = vld [vmem:[%s1162] sm:$0xff]
      %v1165 = vsel %vm236, %v1130, 0
      %v1168 = vsel %vm236, %v1131, 0
      %v1171 = vsel %vm236, %v1132, 0
      %v1174 = vsel %vm236, %v1133, 0
      %v1177 = vsel %vm236, %v1134, 0
      %v1180 = vsel %vm236, %v1135, 0
      %v1183 = vsel %vm236, %v1136, 0
      %v1186 = vsel %vm236, %v1137, 0
      %v1189 = vsel %vm236, %v1138, 0
      %v1192 = vsel %vm236, %v1139, 0
      %v1195 = vsel %vm236, %v1140, 0
      %v1198 = vsel %vm236, %v1141, 0
      %v1201 = vsel %vm236, %v1142, 0
      %v1204 = vsel %vm236, %v1143, 0
      %v1207 = vsel %vm236, %v1144, 0
      %v1210 = vsel %vm236, %v1145, 0
      %v1213 = vsel %vm236, %v1146, 0
      %v1216 = vsel %vm236, %v1147, 0
      %v1219 = vsel %vm236, %v1148, 0
      %v1222 = vsel %vm236, %v1149, 0
      %v1225 = vsel %vm236, %v1150, 0
      %v1228 = vsel %vm236, %v1151, 0
      %v1231 = vsel %vm236, %v1152, 0
      %v1234 = vsel %vm236, %v1153, 0
      %v1237 = vsel %vm236, %v1154, 0
      %v1240 = vsel %vm236, %v1155, 0
      %v1243 = vsel %vm236, %v1156, 0
      %v1246 = vsel %vm236, %v1157, 0
      %v1249 = vsel %vm236, %v1158, 0
      %v1252 = vsel %vm236, %v1159, 0
      %v1255 = vsel %vm236, %v1160, 0
      %v1258 = vsel %vm236, %v1161, 0
      %1260 = vmatprep.subr.mxu0 0.0
      %1261 = vmatpush1.msra.mxu0 0.0
      %1262 = vmatprep.subr.mxu0 0.0
      %1263 = vmatpush1.msra.mxu0 0.0
      %1264 = vmatprep.subr.mxu0 0.0
      %1265 = vmatpush1.msra.mxu0 0.0
      %1266 = vmatprep.subr.mxu0 0.0
      %1267 = vmatpush1.msra.mxu0 0.0
      %1268 = vmatprep.subr.mxu0 0.0
      %1269 = vmatpush1.msra.mxu0 0.0
      %1270 = vmatprep.subr.mxu0 0.0
      %1271 = vmatpush1.msra.mxu0 0.0
      %1272 = vmatprep.subr.mxu0 0.0
      %1273 = vmatpush1.msra.mxu0 0.0
      %1274 = vmatprep.subr.mxu0 0.0
      %1275 = vmatpush1.msra.mxu0 0.0
      %1276 = vmatprep.subr.mxu0 0.0
      %1277 = vmatpush1.msra.mxu0 0.0
      %1278 = vmatprep.subr.mxu0 0.0
      %1279 = vmatpush1.msra.mxu0 0.0
      %1280 = vmatprep.subr.mxu0 0.0
      %1281 = vmatpush1.msra.mxu0 0.0
      %1282 = vmatprep.subr.mxu0 0.0
      %1283 = vmatpush1.msra.mxu0 0.0
      %1284 = vmatprep.subr.mxu0 0.0
      %1285 = vmatpush1.msra.mxu0 0.0
      %1286 = vmatprep.subr.mxu0 0.0
      %1287 = vmatpush1.msra.mxu0 0.0
      %1288 = vmatprep.subr.mxu0 0.0
      %1289 = vmatpush1.msra.mxu0 0.0
      %1290 = vmatprep.subr.mxu0 0.0
      %1291 = vmatpush1.msra.mxu0 %v1163
      %1292 = vmatprep.subr.mxu0 0.0
      %1293 = vmatpush2.msra.mxu0 0.0
      %1294 = vmatprep.subr.mxu0 0.0
      %1295 = vmatpush2.msra.mxu0 0.0
      %1296 = vmatprep.subr.mxu0 0.0
      %1297 = vmatpush2.msra.mxu0 0.0
      %1298 = vmatprep.subr.mxu0 0.0
      %1299 = vmatpush2.msra.mxu0 0.0
      %1300 = vmatprep.subr.mxu0 0.0
      %1301 = vmatpush2.msra.mxu0 0.0
      %1302 = vmatprep.subr.mxu0 0.0
      %1303 = vmatpush2.msra.mxu0 0.0
      %1304 = vmatprep.subr.mxu0 0.0
      %1305 = vmatpush2.msra.mxu0 0.0
      %1306 = vmatprep.subr.mxu0 0.0
      %1307 = vmatpush2.msra.mxu0 0.0
      %1308 = vmatprep.subr.mxu0 0.0
      %1309 = vmatpush2.msra.mxu0 0.0
      %1310 = vmatprep.subr.mxu0 0.0
      %1311 = vmatpush2.msra.mxu0 0.0
      %1312 = vmatprep.subr.mxu0 0.0
      %1313 = vmatpush2.msra.mxu0 0.0
      %1314 = vmatprep.subr.mxu0 0.0
      %1315 = vmatpush2.msra.mxu0 0.0
      %1316 = vmatprep.subr.mxu0 0.0
      %1317 = vmatpush2.msra.mxu0 0.0
      %1318 = vmatprep.subr.mxu0 0.0
      %1319 = vmatpush2.msra.mxu0 0.0
      %1320 = vmatprep.subr.mxu0 0.0
      %1321 = vmatpush2.msra.mxu0 0.0
      %1322 = vmatprep.subr.mxu0 0.0
      %1323 = vmatpush2.msra.mxu0 0.0
      %1324 = vmatprep.mubr.f32.mxu0 0.0
      %1325 = vmatmul.mubr.f32.gmra.mxu0 %v1165
      %v1326 = vpop.f32.mrf.mxu0
      %v1327 = vadd.f32 0.0, %v1326
      %v1328 = vpop.f32.mrf.mxu0
      %1329 = vmatprep.mubr.f32.mxu0 0.0
      %1330 = vmatmul.mubr.f32.gmra.mxu0 %v1168
      %v1331 = vpop.f32.mrf.mxu0
      %v1332 = vadd.f32 0.0, %v1331
      %v1333 = vpop.f32.mrf.mxu0
      %1334 = vmatprep.mubr.f32.mxu0 0.0
      %1335 = vmatmul.mubr.f32.gmra.mxu0 %v1171
      %v1336 = vpop.f32.mrf.mxu0
      %v1337 = vadd.f32 0.0, %v1336
      %v1338 = vpop.f32.mrf.mxu0
      %1339 = vmatprep.mubr.f32.mxu0 0.0
      %1340 = vmatmul.mubr.f32.gmra.mxu0 %v1174
      %v1341 = vpop.f32.mrf.mxu0
      %v1342 = vadd.f32 0.0, %v1341
      %v1343 = vpop.f32.mrf.mxu0
      %1344 = vmatprep.mubr.f32.mxu0 0.0
      %1345 = vmatmul.mubr.f32.gmra.mxu0 %v1177
      %v1346 = vpop.f32.mrf.mxu0
      %v1347 = vadd.f32 0.0, %v1346
      %v1348 = vpop.f32.mrf.mxu0
      %1349 = vmatprep.mubr.f32.mxu0 0.0
      %1350 = vmatmul.mubr.f32.gmra.mxu0 %v1180
      %v1351 = vpop.f32.mrf.mxu0
      %v1352 = vadd.f32 0.0, %v1351
      %v1353 = vpop.f32.mrf.mxu0
      %1354 = vmatprep.mubr.f32.mxu0 0.0
      %1355 = vmatmul.mubr.f32.gmra.mxu0 %v1183
      %v1356 = vpop.f32.mrf.mxu0
      %v1357 = vadd.f32 0.0, %v1356
      %v1358 = vpop.f32.mrf.mxu0
      %1359 = vmatprep.mubr.f32.mxu0 0.0
      %1360 = vmatmul.mubr.f32.gmra.mxu0 %v1186
      %v1361 = vpop.f32.mrf.mxu0
      %v1362 = vadd.f32 0.0, %v1361
      %v1363 = vpop.f32.mrf.mxu0
      %1364 = vmatprep.mubr.f32.mxu0 0.0
      %1365 = vmatmul.mubr.f32.gmra.mxu0 %v1189
      %v1366 = vpop.f32.mrf.mxu0
      %v1367 = vadd.f32 0.0, %v1366
      %v1368 = vpop.f32.mrf.mxu0
      %1369 = vmatprep.mubr.f32.mxu0 0.0
      %1370 = vmatmul.mubr.f32.gmra.mxu0 %v1192
      %v1371 = vpop.f32.mrf.mxu0
      %v1372 = vadd.f32 0.0, %v1371
      %v1373 = vpop.f32.mrf.mxu0
      %1374 = vmatprep.mubr.f32.mxu0 0.0
      %1375 = vmatmul.mubr.f32.gmra.mxu0 %v1195
      %v1376 = vpop.f32.mrf.mxu0
      %v1377 = vadd.f32 0.0, %v1376
      %v1378 = vpop.f32.mrf.mxu0
      %1379 = vmatprep.mubr.f32.mxu0 0.0
      %1380 = vmatmul.mubr.f32.gmra.mxu0 %v1198
      %v1381 = vpop.f32.mrf.mxu0
      %v1382 = vadd.f32 0.0, %v1381
      %v1383 = vpop.f32.mrf.mxu0
      %1384 = vmatprep.mubr.f32.mxu0 0.0
      %1385 = vmatmul.mubr.f32.gmra.mxu0 %v1201
      %v1386 = vpop.f32.mrf.mxu0
      %v1387 = vadd.f32 0.0, %v1386
      %v1388 = vpop.f32.mrf.mxu0
      %1389 = vmatprep.mubr.f32.mxu0 0.0
      %1390 = vmatmul.mubr.f32.gmra.mxu0 %v1204
      %v1391 = vpop.f32.mrf.mxu0
      %v1392 = vadd.f32 0.0, %v1391
      %v1393 = vpop.f32.mrf.mxu0
      %1394 = vmatprep.mubr.f32.mxu0 0.0
      %1395 = vmatmul.mubr.f32.gmra.mxu0 %v1207
      %v1396 = vpop.f32.mrf.mxu0
      %v1397 = vadd.f32 0.0, %v1396
      %v1398 = vpop.f32.mrf.mxu0
      %1399 = vmatprep.mubr.f32.mxu0 0.0
      %1400 = vmatmul.mubr.f32.gmra.mxu0 %v1210
      %v1401 = vpop.f32.mrf.mxu0
      %v1402 = vadd.f32 0.0, %v1401
      %v1403 = vpop.f32.mrf.mxu0
      %1404 = vmatprep.mubr.f32.mxu0 0.0
      %1405 = vmatmul.mubr.f32.gmra.mxu0 %v1213
      %v1406 = vpop.f32.mrf.mxu0
      %v1407 = vadd.f32 0.0, %v1406
      %v1408 = vpop.f32.mrf.mxu0
      %1409 = vmatprep.mubr.f32.mxu0 0.0
      %1410 = vmatmul.mubr.f32.gmra.mxu0 %v1216
      %v1411 = vpop.f32.mrf.mxu0
      %v1412 = vadd.f32 0.0, %v1411
      %v1413 = vpop.f32.mrf.mxu0
      %1414 = vmatprep.mubr.f32.mxu0 0.0
      %1415 = vmatmul.mubr.f32.gmra.mxu0 %v1219
      %v1416 = vpop.f32.mrf.mxu0
      %v1417 = vadd.f32 0.0, %v1416
      %v1418 = vpop.f32.mrf.mxu0
      %1419 = vmatprep.mubr.f32.mxu0 0.0
      %1420 = vmatmul.mubr.f32.gmra.mxu0 %v1222
      %v1421 = vpop.f32.mrf.mxu0
      %v1422 = vadd.f32 0.0, %v1421
      %v1423 = vpop.f32.mrf.mxu0
      %1424 = vmatprep.mubr.f32.mxu0 0.0
      %1425 = vmatmul.mubr.f32.gmra.mxu0 %v1225
      %v1426 = vpop.f32.mrf.mxu0
      %v1427 = vadd.f32 0.0, %v1426
      %v1428 = vpop.f32.mrf.mxu0
      %1429 = vmatprep.mubr.f32.mxu0 0.0
      %1430 = vmatmul.mubr.f32.gmra.mxu0 %v1228
      %v1431 = vpop.f32.mrf.mxu0
      %v1432 = vadd.f32 0.0, %v1431
      %v1433 = vpop.f32.mrf.mxu0
      %1434 = vmatprep.mubr.f32.mxu0 0.0
      %1435 = vmatmul.mubr.f32.gmra.mxu0 %v1231
      %v1436 = vpop.f32.mrf.mxu0
      %v1437 = vadd.f32 0.0, %v1436
      %v1438 = vpop.f32.mrf.mxu0
      %1439 = vmatprep.mubr.f32.mxu0 0.0
      %1440 = vmatmul.mubr.f32.gmra.mxu0 %v1234
      %v1441 = vpop.f32.mrf.mxu0
      %v1442 = vadd.f32 0.0, %v1441
      %v1443 = vpop.f32.mrf.mxu0
      %1444 = vmatprep.mubr.f32.mxu0 0.0
      %1445 = vmatmul.mubr.f32.gmra.mxu0 %v1237
      %v1446 = vpop.f32.mrf.mxu0
      %v1447 = vadd.f32 0.0, %v1446
      %v1448 = vpop.f32.mrf.mxu0
      %1449 = vmatprep.mubr.f32.mxu0 0.0
      %1450 = vmatmul.mubr.f32.gmra.mxu0 %v1240
      %v1451 = vpop.f32.mrf.mxu0
      %v1452 = vadd.f32 0.0, %v1451
      %v1453 = vpop.f32.mrf.mxu0
      %1454 = vmatprep.mubr.f32.mxu0 0.0
      %1455 = vmatmul.mubr.f32.gmra.mxu0 %v1243
      %v1456 = vpop.f32.mrf.mxu0
      %v1457 = vadd.f32 0.0, %v1456
      %v1458 = vpop.f32.mrf.mxu0
      %1459 = vmatprep.mubr.f32.mxu0 0.0
      %1460 = vmatmul.mubr.f32.gmra.mxu0 %v1246
      %v1461 = vpop.f32.mrf.mxu0
      %v1462 = vadd.f32 0.0, %v1461
      %v1463 = vpop.f32.mrf.mxu0
      %1464 = vmatprep.mubr.f32.mxu0 0.0
      %1465 = vmatmul.mubr.f32.gmra.mxu0 %v1249
      %v1466 = vpop.f32.mrf.mxu0
      %v1467 = vadd.f32 0.0, %v1466
      %v1468 = vpop.f32.mrf.mxu0
      %1469 = vmatprep.mubr.f32.mxu0 0.0
      %1470 = vmatmul.mubr.f32.gmra.mxu0 %v1252
      %v1471 = vpop.f32.mrf.mxu0
      %v1472 = vadd.f32 0.0, %v1471
      %v1473 = vpop.f32.mrf.mxu0
      %1474 = vmatprep.mubr.f32.mxu0 0.0
      %1475 = vmatmul.mubr.f32.gmra.mxu0 %v1255
      %v1476 = vpop.f32.mrf.mxu0
      %v1477 = vadd.f32 0.0, %v1476
      %v1478 = vpop.f32.mrf.mxu0
      %1479 = vmatprep.mubr.f32.mxu0 0.0
      %1480 = vmatmul.mubr.f32.gmra.mxu0 %v1258
      %v1481 = vpop.f32.mrf.mxu0
      %v1482 = vadd.f32 0.0, %v1481
      %v1483 = vpop.f32.mrf.mxu0
      %1484 = vdwg.mxu0
      %v1485 = vadd.f32 %v972, %v1327
      %v1486 = vadd.f32 %v977, %v1332
      %v1487 = vadd.f32 %v982, %v1337
      %v1488 = vadd.f32 %v987, %v1342
      %v1489 = vadd.f32 %v992, %v1347
      %v1490 = vadd.f32 %v997, %v1352
      %v1491 = vadd.f32 %v1002, %v1357
      %v1492 = vadd.f32 %v1007, %v1362
      %v1493 = vadd.f32 %v1012, %v1367
      %v1494 = vadd.f32 %v1017, %v1372
      %v1495 = vadd.f32 %v1022, %v1377
      %v1496 = vadd.f32 %v1027, %v1382
      %v1497 = vadd.f32 %v1032, %v1387
      %v1498 = vadd.f32 %v1037, %v1392
      %v1499 = vadd.f32 %v1042, %v1397
      %v1500 = vadd.f32 %v1047, %v1402
      %v1501 = vadd.f32 %v1052, %v1407
      %v1502 = vadd.f32 %v1057, %v1412
      %v1503 = vadd.f32 %v1062, %v1417
      %v1504 = vadd.f32 %v1067, %v1422
      %v1505 = vadd.f32 %v1072, %v1427
      %v1506 = vadd.f32 %v1077, %v1432
      %v1507 = vadd.f32 %v1082, %v1437
      %v1508 = vadd.f32 %v1087, %v1442
      %v1509 = vadd.f32 %v1092, %v1447
      %v1510 = vadd.f32 %v1097, %v1452
      %v1511 = vadd.f32 %v1102, %v1457
      %v1512 = vadd.f32 %v1107, %v1462
      %v1513 = vadd.f32 %v1112, %v1467
      %v1514 = vadd.f32 %v1117, %v1472
      %v1515 = vadd.f32 %v1122, %v1477
      %v1516 = vadd.f32 %v1127, %v1482
      %v1517 = vld [vmem:[%s388] sm:$0xff]
      %v1518 = vld [vmem:[%s388 + $0x8] sm:$0xff]
      %v1519 = vld [vmem:[%s388 + $0x18] sm:$0xff]
      %v1520 = vld [vmem:[%s388 + $0x20] sm:$0xff]
      %v1521 = vld [vmem:[%s388 + $0x30] sm:$0xff]
      %v1522 = vld [vmem:[%s388 + $0x38] sm:$0xff]
      %v1523 = vld [vmem:[%s388 + $0x48] sm:$0xff]
      %v1524 = vld [vmem:[%s388 + $0x50] sm:$0xff]
      %v1525 = vld [vmem:[%s388 + $0x60] sm:$0xff]
      %v1526 = vld [vmem:[%s388 + $0x68] sm:$0xff]
      %v1527 = vld [vmem:[%s388 + $0x78] sm:$0xff]
      %v1528 = vld [vmem:[%s388 + $0x80] sm:$0xff]
      %v1529 = vld [vmem:[%s388 + $0x90] sm:$0xff]
      %v1530 = vld [vmem:[%s388 + $0x98] sm:$0xff]
      %v1531 = vld [vmem:[%s388 + $0xa8] sm:$0xff]
      %v1532 = vld [vmem:[%s388 + $0xb0] sm:$0xff]
      %v1533 = vld [vmem:[%s388 + $0xc0] sm:$0xff]
      %v1534 = vld [vmem:[%s388 + $0xc8] sm:$0xff]
      %v1535 = vld [vmem:[%s388 + $0xd8] sm:$0xff]
      %v1536 = vld [vmem:[%s388 + $0xe0] sm:$0xff]
      %v1537 = vld [vmem:[%s388 + $0xf0] sm:$0xff]
      %v1538 = vld [vmem:[%s388 + $0xf8] sm:$0xff]
      %v1539 = vld [vmem:[%s388 + $0x108] sm:$0xff]
      %v1540 = vld [vmem:[%s388 + $0x110] sm:$0xff]
      %v1541 = vld [vmem:[%s388 + $0x120] sm:$0xff]
      %v1542 = vld [vmem:[%s388 + $0x128] sm:$0xff]
      %v1543 = vld [vmem:[%s388 + $0x138] sm:$0xff]
      %v1544 = vld [vmem:[%s388 + $0x140] sm:$0xff]
      %v1545 = vld [vmem:[%s388 + $0x150] sm:$0xff]
      %v1546 = vld [vmem:[%s388 + $0x158] sm:$0xff]
      %v1547 = vld [vmem:[%s388 + $0x168] sm:$0xff]
      %v1548 = vld [vmem:[%s388 + $0x170] sm:$0xff]
      %s1549 = scalar_lea.vmem %s2, 24
      %v1550 = vld [vmem:[%s1549] sm:$0xff]
      %v1552 = vsel %vm236, %v1517, 0
      %v1555 = vsel %vm236, %v1518, 0
      %v1558 = vsel %vm236, %v1519, 0
      %v1561 = vsel %vm236, %v1520, 0
      %v1564 = vsel %vm236, %v1521, 0
      %v1567 = vsel %vm236, %v1522, 0
      %v1570 = vsel %vm236, %v1523, 0
      %v1573 = vsel %vm236, %v1524, 0
      %v1576 = vsel %vm236, %v1525, 0
      %v1579 = vsel %vm236, %v1526, 0
      %v1582 = vsel %vm236, %v1527, 0
      %v1585 = vsel %vm236, %v1528, 0
      %v1588 = vsel %vm236, %v1529, 0
      %v1591 = vsel %vm236, %v1530, 0
      %v1594 = vsel %vm236, %v1531, 0
      %v1597 = vsel %vm236, %v1532, 0
      %v1600 = vsel %vm236, %v1533, 0
      %v1603 = vsel %vm236, %v1534, 0
      %v1606 = vsel %vm236, %v1535, 0
      %v1609 = vsel %vm236, %v1536, 0
      %v1612 = vsel %vm236, %v1537, 0
      %v1615 = vsel %vm236, %v1538, 0
      %v1618 = vsel %vm236, %v1539, 0
      %v1621 = vsel %vm236, %v1540, 0
      %v1624 = vsel %vm236, %v1541, 0
      %v1627 = vsel %vm236, %v1542, 0
      %v1630 = vsel %vm236, %v1543, 0
      %v1633 = vsel %vm236, %v1544, 0
      %v1636 = vsel %vm236, %v1545, 0
      %v1639 = vsel %vm236, %v1546, 0
      %v1642 = vsel %vm236, %v1547, 0
      %v1645 = vsel %vm236, %v1548, 0
      %1647 = vmatprep.subr.mxu0 0.0
      %1648 = vmatpush1.msra.mxu0 0.0
      %1649 = vmatprep.subr.mxu0 0.0
      %1650 = vmatpush1.msra.mxu0 0.0
      %1651 = vmatprep.subr.mxu0 0.0
      %1652 = vmatpush1.msra.mxu0 0.0
      %1653 = vmatprep.subr.mxu0 0.0
      %1654 = vmatpush1.msra.mxu0 0.0
      %1655 = vmatprep.subr.mxu0 0.0
      %1656 = vmatpush1.msra.mxu0 0.0
      %1657 = vmatprep.subr.mxu0 0.0
      %1658 = vmatpush1.msra.mxu0 0.0
      %1659 = vmatprep.subr.mxu0 0.0
      %1660 = vmatpush1.msra.mxu0 0.0
      %1661 = vmatprep.subr.mxu0 0.0
      %1662 = vmatpush1.msra.mxu0 0.0
      %1663 = vmatprep.subr.mxu0 0.0
      %1664 = vmatpush1.msra.mxu0 0.0
      %1665 = vmatprep.subr.mxu0 0.0
      %1666 = vmatpush1.msra.mxu0 0.0
      %1667 = vmatprep.subr.mxu0 0.0
      %1668 = vmatpush1.msra.mxu0 0.0
      %1669 = vmatprep.subr.mxu0 0.0
      %1670 = vmatpush1.msra.mxu0 0.0
      %1671 = vmatprep.subr.mxu0 0.0
      %1672 = vmatpush1.msra.mxu0 0.0
      %1673 = vmatprep.subr.mxu0 0.0
      %1674 = vmatpush1.msra.mxu0 0.0
      %1675 = vmatprep.subr.mxu0 0.0
      %1676 = vmatpush1.msra.mxu0 0.0
      %1677 = vmatprep.subr.mxu0 0.0
      %1678 = vmatpush1.msra.mxu0 %v1550
      %1679 = vmatprep.subr.mxu0 0.0
      %1680 = vmatpush2.msra.mxu0 0.0
      %1681 = vmatprep.subr.mxu0 0.0
      %1682 = vmatpush2.msra.mxu0 0.0
      %1683 = vmatprep.subr.mxu0 0.0
      %1684 = vmatpush2.msra.mxu0 0.0
      %1685 = vmatprep.subr.mxu0 0.0
      %1686 = vmatpush2.msra.mxu0 0.0
      %1687 = vmatprep.subr.mxu0 0.0
      %1688 = vmatpush2.msra.mxu0 0.0
      %1689 = vmatprep.subr.mxu0 0.0
      %1690 = vmatpush2.msra.mxu0 0.0
      %1691 = vmatprep.subr.mxu0 0.0
      %1692 = vmatpush2.msra.mxu0 0.0
      %1693 = vmatprep.subr.mxu0 0.0
      %1694 = vmatpush2.msra.mxu0 0.0
      %1695 = vmatprep.subr.mxu0 0.0
      %1696 = vmatpush2.msra.mxu0 0.0
      %1697 = vmatprep.subr.mxu0 0.0
      %1698 = vmatpush2.msra.mxu0 0.0
      %1699 = vmatprep.subr.mxu0 0.0
      %1700 = vmatpush2.msra.mxu0 0.0
      %1701 = vmatprep.subr.mxu0 0.0
      %1702 = vmatpush2.msra.mxu0 0.0
      %1703 = vmatprep.subr.mxu0 0.0
      %1704 = vmatpush2.msra.mxu0 0.0
      %1705 = vmatprep.subr.mxu0 0.0
      %1706 = vmatpush2.msra.mxu0 0.0
      %1707 = vmatprep.subr.mxu0 0.0
      %1708 = vmatpush2.msra.mxu0 0.0
      %1709 = vmatprep.subr.mxu0 0.0
      %1710 = vmatpush2.msra.mxu0 0.0
      %1711 = vmatprep.mubr.f32.mxu0 0.0
      %1712 = vmatmul.mubr.f32.gmra.mxu0 %v1552
      %v1713 = vpop.f32.mrf.mxu0
      %v1714 = vadd.f32 0.0, %v1713
      %v1715 = vpop.f32.mrf.mxu0
      %1716 = vmatprep.mubr.f32.mxu0 0.0
      %1717 = vmatmul.mubr.f32.gmra.mxu0 %v1555
      %v1718 = vpop.f32.mrf.mxu0
      %v1719 = vadd.f32 0.0, %v1718
      %v1720 = vpop.f32.mrf.mxu0
      %1721 = vmatprep.mubr.f32.mxu0 0.0
      %1722 = vmatmul.mubr.f32.gmra.mxu0 %v1558
      %v1723 = vpop.f32.mrf.mxu0
      %v1724 = vadd.f32 0.0, %v1723
      %v1725 = vpop.f32.mrf.mxu0
      %1726 = vmatprep.mubr.f32.mxu0 0.0
      %1727 = vmatmul.mubr.f32.gmra.mxu0 %v1561
      %v1728 = vpop.f32.mrf.mxu0
      %v1729 = vadd.f32 0.0, %v1728
      %v1730 = vpop.f32.mrf.mxu0
      %1731 = vmatprep.mubr.f32.mxu0 0.0
      %1732 = vmatmul.mubr.f32.gmra.mxu0 %v1564
      %v1733 = vpop.f32.mrf.mxu0
      %v1734 = vadd.f32 0.0, %v1733
      %v1735 = vpop.f32.mrf.mxu0
      %1736 = vmatprep.mubr.f32.mxu0 0.0
      %1737 = vmatmul.mubr.f32.gmra.mxu0 %v1567
      %v1738 = vpop.f32.mrf.mxu0
      %v1739 = vadd.f32 0.0, %v1738
      %v1740 = vpop.f32.mrf.mxu0
      %1741 = vmatprep.mubr.f32.mxu0 0.0
      %1742 = vmatmul.mubr.f32.gmra.mxu0 %v1570
      %v1743 = vpop.f32.mrf.mxu0
      %v1744 = vadd.f32 0.0, %v1743
      %v1745 = vpop.f32.mrf.mxu0
      %1746 = vmatprep.mubr.f32.mxu0 0.0
      %1747 = vmatmul.mubr.f32.gmra.mxu0 %v1573
      %v1748 = vpop.f32.mrf.mxu0
      %v1749 = vadd.f32 0.0, %v1748
      %v1750 = vpop.f32.mrf.mxu0
      %1751 = vmatprep.mubr.f32.mxu0 0.0
      %1752 = vmatmul.mubr.f32.gmra.mxu0 %v1576
      %v1753 = vpop.f32.mrf.mxu0
      %v1754 = vadd.f32 0.0, %v1753
      %v1755 = vpop.f32.mrf.mxu0
      %1756 = vmatprep.mubr.f32.mxu0 0.0
      %1757 = vmatmul.mubr.f32.gmra.mxu0 %v1579
      %v1758 = vpop.f32.mrf.mxu0
      %v1759 = vadd.f32 0.0, %v1758
      %v1760 = vpop.f32.mrf.mxu0
      %1761 = vmatprep.mubr.f32.mxu0 0.0
      %1762 = vmatmul.mubr.f32.gmra.mxu0 %v1582
      %v1763 = vpop.f32.mrf.mxu0
      %v1764 = vadd.f32 0.0, %v1763
      %v1765 = vpop.f32.mrf.mxu0
      %1766 = vmatprep.mubr.f32.mxu0 0.0
      %1767 = vmatmul.mubr.f32.gmra.mxu0 %v1585
      %v1768 = vpop.f32.mrf.mxu0
      %v1769 = vadd.f32 0.0, %v1768
      %v1770 = vpop.f32.mrf.mxu0
      %1771 = vmatprep.mubr.f32.mxu0 0.0
      %1772 = vmatmul.mubr.f32.gmra.mxu0 %v1588
      %v1773 = vpop.f32.mrf.mxu0
      %v1774 = vadd.f32 0.0, %v1773
      %v1775 = vpop.f32.mrf.mxu0
      %1776 = vmatprep.mubr.f32.mxu0 0.0
      %1777 = vmatmul.mubr.f32.gmra.mxu0 %v1591
      %v1778 = vpop.f32.mrf.mxu0
      %v1779 = vadd.f32 0.0, %v1778
      %v1780 = vpop.f32.mrf.mxu0
      %1781 = vmatprep.mubr.f32.mxu0 0.0
      %1782 = vmatmul.mubr.f32.gmra.mxu0 %v1594
      %v1783 = vpop.f32.mrf.mxu0
      %v1784 = vadd.f32 0.0, %v1783
      %v1785 = vpop.f32.mrf.mxu0
      %1786 = vmatprep.mubr.f32.mxu0 0.0
      %1787 = vmatmul.mubr.f32.gmra.mxu0 %v1597
      %v1788 = vpop.f32.mrf.mxu0
      %v1789 = vadd.f32 0.0, %v1788
      %v1790 = vpop.f32.mrf.mxu0
      %1791 = vmatprep.mubr.f32.mxu0 0.0
      %1792 = vmatmul.mubr.f32.gmra.mxu0 %v1600
      %v1793 = vpop.f32.mrf.mxu0
      %v1794 = vadd.f32 0.0, %v1793
      %v1795 = vpop.f32.mrf.mxu0
      %1796 = vmatprep.mubr.f32.mxu0 0.0
      %1797 = vmatmul.mubr.f32.gmra.mxu0 %v1603
      %v1798 = vpop.f32.mrf.mxu0
      %v1799 = vadd.f32 0.0, %v1798
      %v1800 = vpop.f32.mrf.mxu0
      %1801 = vmatprep.mubr.f32.mxu0 0.0
      %1802 = vmatmul.mubr.f32.gmra.mxu0 %v1606
      %v1803 = vpop.f32.mrf.mxu0
      %v1804 = vadd.f32 0.0, %v1803
      %v1805 = vpop.f32.mrf.mxu0
      %1806 = vmatprep.mubr.f32.mxu0 0.0
      %1807 = vmatmul.mubr.f32.gmra.mxu0 %v1609
      %v1808 = vpop.f32.mrf.mxu0
      %v1809 = vadd.f32 0.0, %v1808
      %v1810 = vpop.f32.mrf.mxu0
      %1811 = vmatprep.mubr.f32.mxu0 0.0
      %1812 = vmatmul.mubr.f32.gmra.mxu0 %v1612
      %v1813 = vpop.f32.mrf.mxu0
      %v1814 = vadd.f32 0.0, %v1813
      %v1815 = vpop.f32.mrf.mxu0
      %1816 = vmatprep.mubr.f32.mxu0 0.0
      %1817 = vmatmul.mubr.f32.gmra.mxu0 %v1615
      %v1818 = vpop.f32.mrf.mxu0
      %v1819 = vadd.f32 0.0, %v1818
      %v1820 = vpop.f32.mrf.mxu0
      %1821 = vmatprep.mubr.f32.mxu0 0.0
      %1822 = vmatmul.mubr.f32.gmra.mxu0 %v1618
      %v1823 = vpop.f32.mrf.mxu0
      %v1824 = vadd.f32 0.0, %v1823
      %v1825 = vpop.f32.mrf.mxu0
      %1826 = vmatprep.mubr.f32.mxu0 0.0
      %1827 = vmatmul.mubr.f32.gmra.mxu0 %v1621
      %v1828 = vpop.f32.mrf.mxu0
      %v1829 = vadd.f32 0.0, %v1828
      %v1830 = vpop.f32.mrf.mxu0
      %1831 = vmatprep.mubr.f32.mxu0 0.0
      %1832 = vmatmul.mubr.f32.gmra.mxu0 %v1624
      %v1833 = vpop.f32.mrf.mxu0
      %v1834 = vadd.f32 0.0, %v1833
      %v1835 = vpop.f32.mrf.mxu0
      %1836 = vmatprep.mubr.f32.mxu0 0.0
      %1837 = vmatmul.mubr.f32.gmra.mxu0 %v1627
      %v1838 = vpop.f32.mrf.mxu0
      %v1839 = vadd.f32 0.0, %v1838
      %v1840 = vpop.f32.mrf.mxu0
      %1841 = vmatprep.mubr.f32.mxu0 0.0
      %1842 = vmatmul.mubr.f32.gmra.mxu0 %v1630
      %v1843 = vpop.f32.mrf.mxu0
      %v1844 = vadd.f32 0.0, %v1843
      %v1845 = vpop.f32.mrf.mxu0
      %1846 = vmatprep.mubr.f32.mxu0 0.0
      %1847 = vmatmul.mubr.f32.gmra.mxu0 %v1633
      %v1848 = vpop.f32.mrf.mxu0
      %v1849 = vadd.f32 0.0, %v1848
      %v1850 = vpop.f32.mrf.mxu0
      %1851 = vmatprep.mubr.f32.mxu0 0.0
      %1852 = vmatmul.mubr.f32.gmra.mxu0 %v1636
      %v1853 = vpop.f32.mrf.mxu0
      %v1854 = vadd.f32 0.0, %v1853
      %v1855 = vpop.f32.mrf.mxu0
      %1856 = vmatprep.mubr.f32.mxu0 0.0
      %1857 = vmatmul.mubr.f32.gmra.mxu0 %v1639
      %v1858 = vpop.f32.mrf.mxu0
      %v1859 = vadd.f32 0.0, %v1858
      %v1860 = vpop.f32.mrf.mxu0
      %1861 = vmatprep.mubr.f32.mxu0 0.0
      %1862 = vmatmul.mubr.f32.gmra.mxu0 %v1642
      %v1863 = vpop.f32.mrf.mxu0
      %v1864 = vadd.f32 0.0, %v1863
      %v1865 = vpop.f32.mrf.mxu0
      %1866 = vmatprep.mubr.f32.mxu0 0.0
      %1867 = vmatmul.mubr.f32.gmra.mxu0 %v1645
      %v1868 = vpop.f32.mrf.mxu0
      %v1869 = vadd.f32 0.0, %v1868
      %v1870 = vpop.f32.mrf.mxu0
      %1871 = vdwg.mxu0
      %v1872 = vadd.f32 %v1485, %v1714
      %v1873 = vadd.f32 %v1486, %v1719
      %v1874 = vadd.f32 %v1487, %v1724
      %v1875 = vadd.f32 %v1488, %v1729
      %v1876 = vadd.f32 %v1489, %v1734
      %v1877 = vadd.f32 %v1490, %v1739
      %v1878 = vadd.f32 %v1491, %v1744
      %v1879 = vadd.f32 %v1492, %v1749
      %v1880 = vadd.f32 %v1493, %v1754
      %v1881 = vadd.f32 %v1494, %v1759
      %v1882 = vadd.f32 %v1495, %v1764
      %v1883 = vadd.f32 %v1496, %v1769
      %v1884 = vadd.f32 %v1497, %v1774
      %v1885 = vadd.f32 %v1498, %v1779
      %v1886 = vadd.f32 %v1499, %v1784
      %v1887 = vadd.f32 %v1500, %v1789
      %v1888 = vadd.f32 %v1501, %v1794
      %v1889 = vadd.f32 %v1502, %v1799
      %v1890 = vadd.f32 %v1503, %v1804
      %v1891 = vadd.f32 %v1504, %v1809
      %v1892 = vadd.f32 %v1505, %v1814
      %v1893 = vadd.f32 %v1506, %v1819
      %v1894 = vadd.f32 %v1507, %v1824
      %v1895 = vadd.f32 %v1508, %v1829
      %v1896 = vadd.f32 %v1509, %v1834
      %v1897 = vadd.f32 %v1510, %v1839
      %v1898 = vadd.f32 %v1511, %v1844
      %v1899 = vadd.f32 %v1512, %v1849
      %v1900 = vadd.f32 %v1513, %v1854
      %v1901 = vadd.f32 %v1514, %v1859
      %v1902 = vadd.f32 %v1515, %v1864
      %v1903 = vadd.f32 %v1516, %v1869
      %v1904 = vld [vmem:[%s388 + $0x1] sm:$0xff]
      %v1905 = vld [vmem:[%s388 + $0x9] sm:$0xff]
      %v1906 = vld [vmem:[%s388 + $0x19] sm:$0xff]
      %v1907 = vld [vmem:[%s388 + $0x21] sm:$0xff]
      %v1908 = vld [vmem:[%s388 + $0x31] sm:$0xff]
      %v1909 = vld [vmem:[%s388 + $0x39] sm:$0xff]
      %v1910 = vld [vmem:[%s388 + $0x49] sm:$0xff]
      %v1911 = vld [vmem:[%s388 + $0x51] sm:$0xff]
      %v1912 = vld [vmem:[%s388 + $0x61] sm:$0xff]
      %v1913 = vld [vmem:[%s388 + $0x69] sm:$0xff]
      %v1914 = vld [vmem:[%s388 + $0x79] sm:$0xff]
      %v1915 = vld [vmem:[%s388 + $0x81] sm:$0xff]
      %v1916 = vld [vmem:[%s388 + $0x91] sm:$0xff]
      %v1917 = vld [vmem:[%s388 + $0x99] sm:$0xff]
      %v1918 = vld [vmem:[%s388 + $0xa9] sm:$0xff]
      %v1919 = vld [vmem:[%s388 + $0xb1] sm:$0xff]
      %v1920 = vld [vmem:[%s388 + $0xc1] sm:$0xff]
      %v1921 = vld [vmem:[%s388 + $0xc9] sm:$0xff]
      %v1922 = vld [vmem:[%s388 + $0xd9] sm:$0xff]
      %v1923 = vld [vmem:[%s388 + $0xe1] sm:$0xff]
      %v1924 = vld [vmem:[%s388 + $0xf1] sm:$0xff]
      %v1925 = vld [vmem:[%s388 + $0xf9] sm:$0xff]
      %v1926 = vld [vmem:[%s388 + $0x109] sm:$0xff]
      %v1927 = vld [vmem:[%s388 + $0x111] sm:$0xff]
      %v1928 = vld [vmem:[%s388 + $0x121] sm:$0xff]
      %v1929 = vld [vmem:[%s388 + $0x129] sm:$0xff]
      %v1930 = vld [vmem:[%s388 + $0x139] sm:$0xff]
      %v1931 = vld [vmem:[%s388 + $0x141] sm:$0xff]
      %v1932 = vld [vmem:[%s388 + $0x151] sm:$0xff]
      %v1933 = vld [vmem:[%s388 + $0x159] sm:$0xff]
      %v1934 = vld [vmem:[%s388 + $0x169] sm:$0xff]
      %v1935 = vld [vmem:[%s388 + $0x171] sm:$0xff]
      %s1936 = scalar_lea.vmem %s2, 32
      %v1937 = vld [vmem:[%s1936] sm:$0xff]
      %v1939 = vsel %vm236, %v1904, 0
      %v1942 = vsel %vm236, %v1905, 0
      %v1945 = vsel %vm236, %v1906, 0
      %v1948 = vsel %vm236, %v1907, 0
      %v1951 = vsel %vm236, %v1908, 0
      %v1954 = vsel %vm236, %v1909, 0
      %v1957 = vsel %vm236, %v1910, 0
      %v1960 = vsel %vm236, %v1911, 0
      %v1963 = vsel %vm236, %v1912, 0
      %v1966 = vsel %vm236, %v1913, 0
      %v1969 = vsel %vm236, %v1914, 0
      %v1972 = vsel %vm236, %v1915, 0
      %v1975 = vsel %vm236, %v1916, 0
      %v1978 = vsel %vm236, %v1917, 0
      %v1981 = vsel %vm236, %v1918, 0
      %v1984 = vsel %vm236, %v1919, 0
      %v1987 = vsel %vm236, %v1920, 0
      %v1990 = vsel %vm236, %v1921, 0
      %v1993 = vsel %vm236, %v1922, 0
      %v1996 = vsel %vm236, %v1923, 0
      %v1999 = vsel %vm236, %v1924, 0
      %v2002 = vsel %vm236, %v1925, 0
      %v2005 = vsel %vm236, %v1926, 0
      %v2008 = vsel %vm236, %v1927, 0
      %v2011 = vsel %vm236, %v1928, 0
      %v2014 = vsel %vm236, %v1929, 0
      %v2017 = vsel %vm236, %v1930, 0
      %v2020 = vsel %vm236, %v1931, 0
      %v2023 = vsel %vm236, %v1932, 0
      %v2026 = vsel %vm236, %v1933, 0
      %v2029 = vsel %vm236, %v1934, 0
      %v2032 = vsel %vm236, %v1935, 0
      %2034 = vmatprep.subr.mxu0 0.0
      %2035 = vmatpush1.msra.mxu0 0.0
      %2036 = vmatprep.subr.mxu0 0.0
      %2037 = vmatpush1.msra.mxu0 0.0
      %2038 = vmatprep.subr.mxu0 0.0
      %2039 = vmatpush1.msra.mxu0 0.0
      %2040 = vmatprep.subr.mxu0 0.0
      %2041 = vmatpush1.msra.mxu0 0.0
      %2042 = vmatprep.subr.mxu0 0.0
      %2043 = vmatpush1.msra.mxu0 0.0
      %2044 = vmatprep.subr.mxu0 0.0
      %2045 = vmatpush1.msra.mxu0 0.0
      %2046 = vmatprep.subr.mxu0 0.0
      %2047 = vmatpush1.msra.mxu0 0.0
      %2048 = vmatprep.subr.mxu0 0.0
      %2049 = vmatpush1.msra.mxu0 0.0
      %2050 = vmatprep.subr.mxu0 0.0
      %2051 = vmatpush1.msra.mxu0 0.0
      %2052 = vmatprep.subr.mxu0 0.0
      %2053 = vmatpush1.msra.mxu0 0.0
      %2054 = vmatprep.subr.mxu0 0.0
      %2055 = vmatpush1.msra.mxu0 0.0
      %2056 = vmatprep.subr.mxu0 0.0
      %2057 = vmatpush1.msra.mxu0 0.0
      %2058 = vmatprep.subr.mxu0 0.0
      %2059 = vmatpush1.msra.mxu0 0.0
      %2060 = vmatprep.subr.mxu0 0.0
      %2061 = vmatpush1.msra.mxu0 0.0
      %2062 = vmatprep.subr.mxu0 0.0
      %2063 = vmatpush1.msra.mxu0 0.0
      %2064 = vmatprep.subr.mxu0 0.0
      %2065 = vmatpush1.msra.mxu0 %v1937
      %2066 = vmatprep.subr.mxu0 0.0
      %2067 = vmatpush2.msra.mxu0 0.0
      %2068 = vmatprep.subr.mxu0 0.0
      %2069 = vmatpush2.msra.mxu0 0.0
      %2070 = vmatprep.subr.mxu0 0.0
      %2071 = vmatpush2.msra.mxu0 0.0
      %2072 = vmatprep.subr.mxu0 0.0
      %2073 = vmatpush2.msra.mxu0 0.0
      %2074 = vmatprep.subr.mxu0 0.0
      %2075 = vmatpush2.msra.mxu0 0.0
      %2076 = vmatprep.subr.mxu0 0.0
      %2077 = vmatpush2.msra.mxu0 0.0
      %2078 = vmatprep.subr.mxu0 0.0
      %2079 = vmatpush2.msra.mxu0 0.0
      %2080 = vmatprep.subr.mxu0 0.0
      %2081 = vmatpush2.msra.mxu0 0.0
      %2082 = vmatprep.subr.mxu0 0.0
      %2083 = vmatpush2.msra.mxu0 0.0
      %2084 = vmatprep.subr.mxu0 0.0
      %2085 = vmatpush2.msra.mxu0 0.0
      %2086 = vmatprep.subr.mxu0 0.0
      %2087 = vmatpush2.msra.mxu0 0.0
      %2088 = vmatprep.subr.mxu0 0.0
      %2089 = vmatpush2.msra.mxu0 0.0
      %2090 = vmatprep.subr.mxu0 0.0
      %2091 = vmatpush2.msra.mxu0 0.0
      %2092 = vmatprep.subr.mxu0 0.0
      %2093 = vmatpush2.msra.mxu0 0.0
      %2094 = vmatprep.subr.mxu0 0.0
      %2095 = vmatpush2.msra.mxu0 0.0
      %2096 = vmatprep.subr.mxu0 0.0
      %2097 = vmatpush2.msra.mxu0 0.0
      %2098 = vmatprep.mubr.f32.mxu0 0.0
      %2099 = vmatmul.mubr.f32.gmra.mxu0 %v1939
      %v2100 = vpop.f32.mrf.mxu0
      %v2101 = vadd.f32 0.0, %v2100
      %v2102 = vpop.f32.mrf.mxu0
      %2103 = vmatprep.mubr.f32.mxu0 0.0
      %2104 = vmatmul.mubr.f32.gmra.mxu0 %v1942
      %v2105 = vpop.f32.mrf.mxu0
      %v2106 = vadd.f32 0.0, %v2105
      %v2107 = vpop.f32.mrf.mxu0
      %2108 = vmatprep.mubr.f32.mxu0 0.0
      %2109 = vmatmul.mubr.f32.gmra.mxu0 %v1945
      %v2110 = vpop.f32.mrf.mxu0
      %v2111 = vadd.f32 0.0, %v2110
      %v2112 = vpop.f32.mrf.mxu0
      %2113 = vmatprep.mubr.f32.mxu0 0.0
      %2114 = vmatmul.mubr.f32.gmra.mxu0 %v1948
      %v2115 = vpop.f32.mrf.mxu0
      %v2116 = vadd.f32 0.0, %v2115
      %v2117 = vpop.f32.mrf.mxu0
      %2118 = vmatprep.mubr.f32.mxu0 0.0
      %2119 = vmatmul.mubr.f32.gmra.mxu0 %v1951
      %v2120 = vpop.f32.mrf.mxu0
      %v2121 = vadd.f32 0.0, %v2120
      %v2122 = vpop.f32.mrf.mxu0
      %2123 = vmatprep.mubr.f32.mxu0 0.0
      %2124 = vmatmul.mubr.f32.gmra.mxu0 %v1954
      %v2125 = vpop.f32.mrf.mxu0
      %v2126 = vadd.f32 0.0, %v2125
      %v2127 = vpop.f32.mrf.mxu0
      %2128 = vmatprep.mubr.f32.mxu0 0.0
      %2129 = vmatmul.mubr.f32.gmra.mxu0 %v1957
      %v2130 = vpop.f32.mrf.mxu0
      %v2131 = vadd.f32 0.0, %v2130
      %v2132 = vpop.f32.mrf.mxu0
      %2133 = vmatprep.mubr.f32.mxu0 0.0
      %2134 = vmatmul.mubr.f32.gmra.mxu0 %v1960
      %v2135 = vpop.f32.mrf.mxu0
      %v2136 = vadd.f32 0.0, %v2135
      %v2137 = vpop.f32.mrf.mxu0
      %2138 = vmatprep.mubr.f32.mxu0 0.0
      %2139 = vmatmul.mubr.f32.gmra.mxu0 %v1963
      %v2140 = vpop.f32.mrf.mxu0
      %v2141 = vadd.f32 0.0, %v2140
      %v2142 = vpop.f32.mrf.mxu0
      %2143 = vmatprep.mubr.f32.mxu0 0.0
      %2144 = vmatmul.mubr.f32.gmra.mxu0 %v1966
      %v2145 = vpop.f32.mrf.mxu0
      %v2146 = vadd.f32 0.0, %v2145
      %v2147 = vpop.f32.mrf.mxu0
      %2148 = vmatprep.mubr.f32.mxu0 0.0
      %2149 = vmatmul.mubr.f32.gmra.mxu0 %v1969
      %v2150 = vpop.f32.mrf.mxu0
      %v2151 = vadd.f32 0.0, %v2150
      %v2152 = vpop.f32.mrf.mxu0
      %2153 = vmatprep.mubr.f32.mxu0 0.0
      %2154 = vmatmul.mubr.f32.gmra.mxu0 %v1972
      %v2155 = vpop.f32.mrf.mxu0
      %v2156 = vadd.f32 0.0, %v2155
      %v2157 = vpop.f32.mrf.mxu0
      %2158 = vmatprep.mubr.f32.mxu0 0.0
      %2159 = vmatmul.mubr.f32.gmra.mxu0 %v1975
      %v2160 = vpop.f32.mrf.mxu0
      %v2161 = vadd.f32 0.0, %v2160
      %v2162 = vpop.f32.mrf.mxu0
      %2163 = vmatprep.mubr.f32.mxu0 0.0
      %2164 = vmatmul.mubr.f32.gmra.mxu0 %v1978
      %v2165 = vpop.f32.mrf.mxu0
      %v2166 = vadd.f32 0.0, %v2165
      %v2167 = vpop.f32.mrf.mxu0
      %2168 = vmatprep.mubr.f32.mxu0 0.0
      %2169 = vmatmul.mubr.f32.gmra.mxu0 %v1981
      %v2170 = vpop.f32.mrf.mxu0
      %v2171 = vadd.f32 0.0, %v2170
      %v2172 = vpop.f32.mrf.mxu0
      %2173 = vmatprep.mubr.f32.mxu0 0.0
      %2174 = vmatmul.mubr.f32.gmra.mxu0 %v1984
      %v2175 = vpop.f32.mrf.mxu0
      %v2176 = vadd.f32 0.0, %v2175
      %v2177 = vpop.f32.mrf.mxu0
      %2178 = vmatprep.mubr.f32.mxu0 0.0
      %2179 = vmatmul.mubr.f32.gmra.mxu0 %v1987
      %v2180 = vpop.f32.mrf.mxu0
      %v2181 = vadd.f32 0.0, %v2180
      %v2182 = vpop.f32.mrf.mxu0
      %2183 = vmatprep.mubr.f32.mxu0 0.0
      %2184 = vmatmul.mubr.f32.gmra.mxu0 %v1990
      %v2185 = vpop.f32.mrf.mxu0
      %v2186 = vadd.f32 0.0, %v2185
      %v2187 = vpop.f32.mrf.mxu0
      %2188 = vmatprep.mubr.f32.mxu0 0.0
      %2189 = vmatmul.mubr.f32.gmra.mxu0 %v1993
      %v2190 = vpop.f32.mrf.mxu0
      %v2191 = vadd.f32 0.0, %v2190
      %v2192 = vpop.f32.mrf.mxu0
      %2193 = vmatprep.mubr.f32.mxu0 0.0
      %2194 = vmatmul.mubr.f32.gmra.mxu0 %v1996
      %v2195 = vpop.f32.mrf.mxu0
      %v2196 = vadd.f32 0.0, %v2195
      %v2197 = vpop.f32.mrf.mxu0
      %2198 = vmatprep.mubr.f32.mxu0 0.0
      %2199 = vmatmul.mubr.f32.gmra.mxu0 %v1999
      %v2200 = vpop.f32.mrf.mxu0
      %v2201 = vadd.f32 0.0, %v2200
      %v2202 = vpop.f32.mrf.mxu0
      %2203 = vmatprep.mubr.f32.mxu0 0.0
      %2204 = vmatmul.mubr.f32.gmra.mxu0 %v2002
      %v2205 = vpop.f32.mrf.mxu0
      %v2206 = vadd.f32 0.0, %v2205
      %v2207 = vpop.f32.mrf.mxu0
      %2208 = vmatprep.mubr.f32.mxu0 0.0
      %2209 = vmatmul.mubr.f32.gmra.mxu0 %v2005
      %v2210 = vpop.f32.mrf.mxu0
      %v2211 = vadd.f32 0.0, %v2210
      %v2212 = vpop.f32.mrf.mxu0
      %2213 = vmatprep.mubr.f32.mxu0 0.0
      %2214 = vmatmul.mubr.f32.gmra.mxu0 %v2008
      %v2215 = vpop.f32.mrf.mxu0
      %v2216 = vadd.f32 0.0, %v2215
      %v2217 = vpop.f32.mrf.mxu0
      %2218 = vmatprep.mubr.f32.mxu0 0.0
      %2219 = vmatmul.mubr.f32.gmra.mxu0 %v2011
      %v2220 = vpop.f32.mrf.mxu0
      %v2221 = vadd.f32 0.0, %v2220
      %v2222 = vpop.f32.mrf.mxu0
      %2223 = vmatprep.mubr.f32.mxu0 0.0
      %2224 = vmatmul.mubr.f32.gmra.mxu0 %v2014
      %v2225 = vpop.f32.mrf.mxu0
      %v2226 = vadd.f32 0.0, %v2225
      %v2227 = vpop.f32.mrf.mxu0
      %2228 = vmatprep.mubr.f32.mxu0 0.0
      %2229 = vmatmul.mubr.f32.gmra.mxu0 %v2017
      %v2230 = vpop.f32.mrf.mxu0
      %v2231 = vadd.f32 0.0, %v2230
      %v2232 = vpop.f32.mrf.mxu0
      %2233 = vmatprep.mubr.f32.mxu0 0.0
      %2234 = vmatmul.mubr.f32.gmra.mxu0 %v2020
      %v2235 = vpop.f32.mrf.mxu0
      %v2236 = vadd.f32 0.0, %v2235
      %v2237 = vpop.f32.mrf.mxu0
      %2238 = vmatprep.mubr.f32.mxu0 0.0
      %2239 = vmatmul.mubr.f32.gmra.mxu0 %v2023
      %v2240 = vpop.f32.mrf.mxu0
      %v2241 = vadd.f32 0.0, %v2240
      %v2242 = vpop.f32.mrf.mxu0
      %2243 = vmatprep.mubr.f32.mxu0 0.0
      %2244 = vmatmul.mubr.f32.gmra.mxu0 %v2026
      %v2245 = vpop.f32.mrf.mxu0
      %v2246 = vadd.f32 0.0, %v2245
      %v2247 = vpop.f32.mrf.mxu0
      %2248 = vmatprep.mubr.f32.mxu0 0.0
      %2249 = vmatmul.mubr.f32.gmra.mxu0 %v2029
      %v2250 = vpop.f32.mrf.mxu0
      %v2251 = vadd.f32 0.0, %v2250
      %v2252 = vpop.f32.mrf.mxu0
      %2253 = vmatprep.mubr.f32.mxu0 0.0
      %2254 = vmatmul.mubr.f32.gmra.mxu0 %v2032
      %v2255 = vpop.f32.mrf.mxu0
      %v2256 = vadd.f32 0.0, %v2255
      %v2257 = vpop.f32.mrf.mxu0
      %2258 = vdwg.mxu0
      %v2259 = vadd.f32 %v1872, %v2101
      %v2260 = vadd.f32 %v1873, %v2106
      %v2261 = vadd.f32 %v1874, %v2111
      %v2262 = vadd.f32 %v1875, %v2116
      %v2263 = vadd.f32 %v1876, %v2121
      %v2264 = vadd.f32 %v1877, %v2126
      %v2265 = vadd.f32 %v1878, %v2131
      %v2266 = vadd.f32 %v1879, %v2136
      %v2267 = vadd.f32 %v1880, %v2141
      %v2268 = vadd.f32 %v1881, %v2146
      %v2269 = vadd.f32 %v1882, %v2151
      %v2270 = vadd.f32 %v1883, %v2156
      %v2271 = vadd.f32 %v1884, %v2161
      %v2272 = vadd.f32 %v1885, %v2166
      %v2273 = vadd.f32 %v1886, %v2171
      %v2274 = vadd.f32 %v1887, %v2176
      %v2275 = vadd.f32 %v1888, %v2181
      %v2276 = vadd.f32 %v1889, %v2186
      %v2277 = vadd.f32 %v1890, %v2191
      %v2278 = vadd.f32 %v1891, %v2196
      %v2279 = vadd.f32 %v1892, %v2201
      %v2280 = vadd.f32 %v1893, %v2206
      %v2281 = vadd.f32 %v1894, %v2211
      %v2282 = vadd.f32 %v1895, %v2216
      %v2283 = vadd.f32 %v1896, %v2221
      %v2284 = vadd.f32 %v1897, %v2226
      %v2285 = vadd.f32 %v1898, %v2231
      %v2286 = vadd.f32 %v1899, %v2236
      %v2287 = vadd.f32 %v1900, %v2241
      %v2288 = vadd.f32 %v1901, %v2246
      %v2289 = vadd.f32 %v1902, %v2251
      %v2290 = vadd.f32 %v1903, %v2256
      %v2291 = vld [vmem:[%s388 + $0x2] sm:$0xff]
      %v2292 = vld [vmem:[%s388 + $0xa] sm:$0xff]
      %v2293 = vld [vmem:[%s388 + $0x1a] sm:$0xff]
      %v2294 = vld [vmem:[%s388 + $0x22] sm:$0xff]
      %v2295 = vld [vmem:[%s388 + $0x32] sm:$0xff]
      %v2296 = vld [vmem:[%s388 + $0x3a] sm:$0xff]
      %v2297 = vld [vmem:[%s388 + $0x4a] sm:$0xff]
      %v2298 = vld [vmem:[%s388 + $0x52] sm:$0xff]
      %v2299 = vld [vmem:[%s388 + $0x62] sm:$0xff]
      %v2300 = vld [vmem:[%s388 + $0x6a] sm:$0xff]
      %v2301 = vld [vmem:[%s388 + $0x7a] sm:$0xff]
      %v2302 = vld [vmem:[%s388 + $0x82] sm:$0xff]
      %v2303 = vld [vmem:[%s388 + $0x92] sm:$0xff]
      %v2304 = vld [vmem:[%s388 + $0x9a] sm:$0xff]
      %v2305 = vld [vmem:[%s388 + $0xaa] sm:$0xff]
      %v2306 = vld [vmem:[%s388 + $0xb2] sm:$0xff]
      %v2307 = vld [vmem:[%s388 + $0xc2] sm:$0xff]
      %v2308 = vld [vmem:[%s388 + $0xca] sm:$0xff]
      %v2309 = vld [vmem:[%s388 + $0xda] sm:$0xff]
      %v2310 = vld [vmem:[%s388 + $0xe2] sm:$0xff]
      %v2311 = vld [vmem:[%s388 + $0xf2] sm:$0xff]
      %v2312 = vld [vmem:[%s388 + $0xfa] sm:$0xff]
      %v2313 = vld [vmem:[%s388 + $0x10a] sm:$0xff]
      %v2314 = vld [vmem:[%s388 + $0x112] sm:$0xff]
      %v2315 = vld [vmem:[%s388 + $0x122] sm:$0xff]
      %v2316 = vld [vmem:[%s388 + $0x12a] sm:$0xff]
      %v2317 = vld [vmem:[%s388 + $0x13a] sm:$0xff]
      %v2318 = vld [vmem:[%s388 + $0x142] sm:$0xff]
      %v2319 = vld [vmem:[%s388 + $0x152] sm:$0xff]
      %v2320 = vld [vmem:[%s388 + $0x15a] sm:$0xff]
      %v2321 = vld [vmem:[%s388 + $0x16a] sm:$0xff]
      %v2322 = vld [vmem:[%s388 + $0x172] sm:$0xff]
      %s2323 = scalar_lea.vmem %s2, 40
      %v2324 = vld [vmem:[%s2323] sm:$0xff]
      %v2326 = vsel %vm236, %v2291, 0
      %v2329 = vsel %vm236, %v2292, 0
      %v2332 = vsel %vm236, %v2293, 0
      %v2335 = vsel %vm236, %v2294, 0
      %v2338 = vsel %vm236, %v2295, 0
      %v2341 = vsel %vm236, %v2296, 0
      %v2344 = vsel %vm236, %v2297, 0
      %v2347 = vsel %vm236, %v2298, 0
      %v2350 = vsel %vm236, %v2299, 0
      %v2353 = vsel %vm236, %v2300, 0
      %v2356 = vsel %vm236, %v2301, 0
      %v2359 = vsel %vm236, %v2302, 0
      %v2362 = vsel %vm236, %v2303, 0
      %v2365 = vsel %vm236, %v2304, 0
      %v2368 = vsel %vm236, %v2305, 0
      %v2371 = vsel %vm236, %v2306, 0
      %v2374 = vsel %vm236, %v2307, 0
      %v2377 = vsel %vm236, %v2308, 0
      %v2380 = vsel %vm236, %v2309, 0
      %v2383 = vsel %vm236, %v2310, 0
      %v2386 = vsel %vm236, %v2311, 0
      %v2389 = vsel %vm236, %v2312, 0
      %v2392 = vsel %vm236, %v2313, 0
      %v2395 = vsel %vm236, %v2314, 0
      %v2398 = vsel %vm236, %v2315, 0
      %v2401 = vsel %vm236, %v2316, 0
      %v2404 = vsel %vm236, %v2317, 0
      %v2407 = vsel %vm236, %v2318, 0
      %v2410 = vsel %vm236, %v2319, 0
      %v2413 = vsel %vm236, %v2320, 0
      %v2416 = vsel %vm236, %v2321, 0
      %v2419 = vsel %vm236, %v2322, 0
      %2421 = vmatprep.subr.mxu0 0.0
      %2422 = vmatpush1.msra.mxu0 0.0
      %2423 = vmatprep.subr.mxu0 0.0
      %2424 = vmatpush1.msra.mxu0 0.0
      %2425 = vmatprep.subr.mxu0 0.0
      %2426 = vmatpush1.msra.mxu0 0.0
      %2427 = vmatprep.subr.mxu0 0.0
      %2428 = vmatpush1.msra.mxu0 0.0
      %2429 = vmatprep.subr.mxu0 0.0
      %2430 = vmatpush1.msra.mxu0 0.0
      %2431 = vmatprep.subr.mxu0 0.0
      %2432 = vmatpush1.msra.mxu0 0.0
      %2433 = vmatprep.subr.mxu0 0.0
      %2434 = vmatpush1.msra.mxu0 0.0
      %2435 = vmatprep.subr.mxu0 0.0
      %2436 = vmatpush1.msra.mxu0 0.0
      %2437 = vmatprep.subr.mxu0 0.0
      %2438 = vmatpush1.msra.mxu0 0.0
      %2439 = vmatprep.subr.mxu0 0.0
      %2440 = vmatpush1.msra.mxu0 0.0
      %2441 = vmatprep.subr.mxu0 0.0
      %2442 = vmatpush1.msra.mxu0 0.0
      %2443 = vmatprep.subr.mxu0 0.0
      %2444 = vmatpush1.msra.mxu0 0.0
      %2445 = vmatprep.subr.mxu0 0.0
      %2446 = vmatpush1.msra.mxu0 0.0
      %2447 = vmatprep.subr.mxu0 0.0
      %2448 = vmatpush1.msra.mxu0 0.0
      %2449 = vmatprep.subr.mxu0 0.0
      %2450 = vmatpush1.msra.mxu0 0.0
      %2451 = vmatprep.subr.mxu0 0.0
      %2452 = vmatpush1.msra.mxu0 %v2324
      %2453 = vmatprep.subr.mxu0 0.0
      %2454 = vmatpush2.msra.mxu0 0.0
      %2455 = vmatprep.subr.mxu0 0.0
      %2456 = vmatpush2.msra.mxu0 0.0
      %2457 = vmatprep.subr.mxu0 0.0
      %2458 = vmatpush2.msra.mxu0 0.0
      %2459 = vmatprep.subr.mxu0 0.0
      %2460 = vmatpush2.msra.mxu0 0.0
      %2461 = vmatprep.subr.mxu0 0.0
      %2462 = vmatpush2.msra.mxu0 0.0
      %2463 = vmatprep.subr.mxu0 0.0
      %2464 = vmatpush2.msra.mxu0 0.0
      %2465 = vmatprep.subr.mxu0 0.0
      %2466 = vmatpush2.msra.mxu0 0.0
      %2467 = vmatprep.subr.mxu0 0.0
      %2468 = vmatpush2.msra.mxu0 0.0
      %2469 = vmatprep.subr.mxu0 0.0
      %2470 = vmatpush2.msra.mxu0 0.0
      %2471 = vmatprep.subr.mxu0 0.0
      %2472 = vmatpush2.msra.mxu0 0.0
      %2473 = vmatprep.subr.mxu0 0.0
      %2474 = vmatpush2.msra.mxu0 0.0
      %2475 = vmatprep.subr.mxu0 0.0
      %2476 = vmatpush2.msra.mxu0 0.0
      %2477 = vmatprep.subr.mxu0 0.0
      %2478 = vmatpush2.msra.mxu0 0.0
      %2479 = vmatprep.subr.mxu0 0.0
      %2480 = vmatpush2.msra.mxu0 0.0
      %2481 = vmatprep.subr.mxu0 0.0
      %2482 = vmatpush2.msra.mxu0 0.0
      %2483 = vmatprep.subr.mxu0 0.0
      %2484 = vmatpush2.msra.mxu0 0.0
      %2485 = vmatprep.mubr.f32.mxu0 0.0
      %2486 = vmatmul.mubr.f32.gmra.mxu0 %v2326
      %v2487 = vpop.f32.mrf.mxu0
      %v2488 = vadd.f32 0.0, %v2487
      %v2489 = vpop.f32.mrf.mxu0
      %2490 = vmatprep.mubr.f32.mxu0 0.0
      %2491 = vmatmul.mubr.f32.gmra.mxu0 %v2329
      %v2492 = vpop.f32.mrf.mxu0
      %v2493 = vadd.f32 0.0, %v2492
      %v2494 = vpop.f32.mrf.mxu0
      %2495 = vmatprep.mubr.f32.mxu0 0.0
      %2496 = vmatmul.mubr.f32.gmra.mxu0 %v2332
      %v2497 = vpop.f32.mrf.mxu0
      %v2498 = vadd.f32 0.0, %v2497
      %v2499 = vpop.f32.mrf.mxu0
      %2500 = vmatprep.mubr.f32.mxu0 0.0
      %2501 = vmatmul.mubr.f32.gmra.mxu0 %v2335
      %v2502 = vpop.f32.mrf.mxu0
      %v2503 = vadd.f32 0.0, %v2502
      %v2504 = vpop.f32.mrf.mxu0
      %2505 = vmatprep.mubr.f32.mxu0 0.0
      %2506 = vmatmul.mubr.f32.gmra.mxu0 %v2338
      %v2507 = vpop.f32.mrf.mxu0
      %v2508 = vadd.f32 0.0, %v2507
      %v2509 = vpop.f32.mrf.mxu0
      %2510 = vmatprep.mubr.f32.mxu0 0.0
      %2511 = vmatmul.mubr.f32.gmra.mxu0 %v2341
      %v2512 = vpop.f32.mrf.mxu0
      %v2513 = vadd.f32 0.0, %v2512
      %v2514 = vpop.f32.mrf.mxu0
      %2515 = vmatprep.mubr.f32.mxu0 0.0
      %2516 = vmatmul.mubr.f32.gmra.mxu0 %v2344
      %v2517 = vpop.f32.mrf.mxu0
      %v2518 = vadd.f32 0.0, %v2517
      %v2519 = vpop.f32.mrf.mxu0
      %2520 = vmatprep.mubr.f32.mxu0 0.0
      %2521 = vmatmul.mubr.f32.gmra.mxu0 %v2347
      %v2522 = vpop.f32.mrf.mxu0
      %v2523 = vadd.f32 0.0, %v2522
      %v2524 = vpop.f32.mrf.mxu0
      %2525 = vmatprep.mubr.f32.mxu0 0.0
      %2526 = vmatmul.mubr.f32.gmra.mxu0 %v2350
      %v2527 = vpop.f32.mrf.mxu0
      %v2528 = vadd.f32 0.0, %v2527
      %v2529 = vpop.f32.mrf.mxu0
      %2530 = vmatprep.mubr.f32.mxu0 0.0
      %2531 = vmatmul.mubr.f32.gmra.mxu0 %v2353
      %v2532 = vpop.f32.mrf.mxu0
      %v2533 = vadd.f32 0.0, %v2532
      %v2534 = vpop.f32.mrf.mxu0
      %2535 = vmatprep.mubr.f32.mxu0 0.0
      %2536 = vmatmul.mubr.f32.gmra.mxu0 %v2356
      %v2537 = vpop.f32.mrf.mxu0
      %v2538 = vadd.f32 0.0, %v2537
      %v2539 = vpop.f32.mrf.mxu0
      %2540 = vmatprep.mubr.f32.mxu0 0.0
      %2541 = vmatmul.mubr.f32.gmra.mxu0 %v2359
      %v2542 = vpop.f32.mrf.mxu0
      %v2543 = vadd.f32 0.0, %v2542
      %v2544 = vpop.f32.mrf.mxu0
      %2545 = vmatprep.mubr.f32.mxu0 0.0
      %2546 = vmatmul.mubr.f32.gmra.mxu0 %v2362
      %v2547 = vpop.f32.mrf.mxu0
      %v2548 = vadd.f32 0.0, %v2547
      %v2549 = vpop.f32.mrf.mxu0
      %2550 = vmatprep.mubr.f32.mxu0 0.0
      %2551 = vmatmul.mubr.f32.gmra.mxu0 %v2365
      %v2552 = vpop.f32.mrf.mxu0
      %v2553 = vadd.f32 0.0, %v2552
      %v2554 = vpop.f32.mrf.mxu0
      %2555 = vmatprep.mubr.f32.mxu0 0.0
      %2556 = vmatmul.mubr.f32.gmra.mxu0 %v2368
      %v2557 = vpop.f32.mrf.mxu0
      %v2558 = vadd.f32 0.0, %v2557
      %v2559 = vpop.f32.mrf.mxu0
      %2560 = vmatprep.mubr.f32.mxu0 0.0
      %2561 = vmatmul.mubr.f32.gmra.mxu0 %v2371
      %v2562 = vpop.f32.mrf.mxu0
      %v2563 = vadd.f32 0.0, %v2562
      %v2564 = vpop.f32.mrf.mxu0
      %2565 = vmatprep.mubr.f32.mxu0 0.0
      %2566 = vmatmul.mubr.f32.gmra.mxu0 %v2374
      %v2567 = vpop.f32.mrf.mxu0
      %v2568 = vadd.f32 0.0, %v2567
      %v2569 = vpop.f32.mrf.mxu0
      %2570 = vmatprep.mubr.f32.mxu0 0.0
      %2571 = vmatmul.mubr.f32.gmra.mxu0 %v2377
      %v2572 = vpop.f32.mrf.mxu0
      %v2573 = vadd.f32 0.0, %v2572
      %v2574 = vpop.f32.mrf.mxu0
      %2575 = vmatprep.mubr.f32.mxu0 0.0
      %2576 = vmatmul.mubr.f32.gmra.mxu0 %v2380
      %v2577 = vpop.f32.mrf.mxu0
      %v2578 = vadd.f32 0.0, %v2577
      %v2579 = vpop.f32.mrf.mxu0
      %2580 = vmatprep.mubr.f32.mxu0 0.0
      %2581 = vmatmul.mubr.f32.gmra.mxu0 %v2383
      %v2582 = vpop.f32.mrf.mxu0
      %v2583 = vadd.f32 0.0, %v2582
      %v2584 = vpop.f32.mrf.mxu0
      %2585 = vmatprep.mubr.f32.mxu0 0.0
      %2586 = vmatmul.mubr.f32.gmra.mxu0 %v2386
      %v2587 = vpop.f32.mrf.mxu0
      %v2588 = vadd.f32 0.0, %v2587
      %v2589 = vpop.f32.mrf.mxu0
      %2590 = vmatprep.mubr.f32.mxu0 0.0
      %2591 = vmatmul.mubr.f32.gmra.mxu0 %v2389
      %v2592 = vpop.f32.mrf.mxu0
      %v2593 = vadd.f32 0.0, %v2592
      %v2594 = vpop.f32.mrf.mxu0
      %2595 = vmatprep.mubr.f32.mxu0 0.0
      %2596 = vmatmul.mubr.f32.gmra.mxu0 %v2392
      %v2597 = vpop.f32.mrf.mxu0
      %v2598 = vadd.f32 0.0, %v2597
      %v2599 = vpop.f32.mrf.mxu0
      %2600 = vmatprep.mubr.f32.mxu0 0.0
      %2601 = vmatmul.mubr.f32.gmra.mxu0 %v2395
      %v2602 = vpop.f32.mrf.mxu0
      %v2603 = vadd.f32 0.0, %v2602
      %v2604 = vpop.f32.mrf.mxu0
      %2605 = vmatprep.mubr.f32.mxu0 0.0
      %2606 = vmatmul.mubr.f32.gmra.mxu0 %v2398
      %v2607 = vpop.f32.mrf.mxu0
      %v2608 = vadd.f32 0.0, %v2607
      %v2609 = vpop.f32.mrf.mxu0
      %2610 = vmatprep.mubr.f32.mxu0 0.0
      %2611 = vmatmul.mubr.f32.gmra.mxu0 %v2401
      %v2612 = vpop.f32.mrf.mxu0
      %v2613 = vadd.f32 0.0, %v2612
      %v2614 = vpop.f32.mrf.mxu0
      %2615 = vmatprep.mubr.f32.mxu0 0.0
      %2616 = vmatmul.mubr.f32.gmra.mxu0 %v2404
      %v2617 = vpop.f32.mrf.mxu0
      %v2618 = vadd.f32 0.0, %v2617
      %v2619 = vpop.f32.mrf.mxu0
      %2620 = vmatprep.mubr.f32.mxu0 0.0
      %2621 = vmatmul.mubr.f32.gmra.mxu0 %v2407
      %v2622 = vpop.f32.mrf.mxu0
      %v2623 = vadd.f32 0.0, %v2622
      %v2624 = vpop.f32.mrf.mxu0
      %2625 = vmatprep.mubr.f32.mxu0 0.0
      %2626 = vmatmul.mubr.f32.gmra.mxu0 %v2410
      %v2627 = vpop.f32.mrf.mxu0
      %v2628 = vadd.f32 0.0, %v2627
      %v2629 = vpop.f32.mrf.mxu0
      %2630 = vmatprep.mubr.f32.mxu0 0.0
      %2631 = vmatmul.mubr.f32.gmra.mxu0 %v2413
      %v2632 = vpop.f32.mrf.mxu0
      %v2633 = vadd.f32 0.0, %v2632
      %v2634 = vpop.f32.mrf.mxu0
      %2635 = vmatprep.mubr.f32.mxu0 0.0
      %2636 = vmatmul.mubr.f32.gmra.mxu0 %v2416
      %v2637 = vpop.f32.mrf.mxu0
      %v2638 = vadd.f32 0.0, %v2637
      %v2639 = vpop.f32.mrf.mxu0
      %2640 = vmatprep.mubr.f32.mxu0 0.0
      %2641 = vmatmul.mubr.f32.gmra.mxu0 %v2419
      %v2642 = vpop.f32.mrf.mxu0
      %v2643 = vadd.f32 0.0, %v2642
      %v2644 = vpop.f32.mrf.mxu0
      %2645 = vdwg.mxu0
      %v2646 = vadd.f32 %v2259, %v2488
      %v2647 = vadd.f32 %v2260, %v2493
      %v2648 = vadd.f32 %v2261, %v2498
      %v2649 = vadd.f32 %v2262, %v2503
      %v2650 = vadd.f32 %v2263, %v2508
      %v2651 = vadd.f32 %v2264, %v2513
      %v2652 = vadd.f32 %v2265, %v2518
      %v2653 = vadd.f32 %v2266, %v2523
      %v2654 = vadd.f32 %v2267, %v2528
      %v2655 = vadd.f32 %v2268, %v2533
      %v2656 = vadd.f32 %v2269, %v2538
      %v2657 = vadd.f32 %v2270, %v2543
      %v2658 = vadd.f32 %v2271, %v2548
      %v2659 = vadd.f32 %v2272, %v2553
      %v2660 = vadd.f32 %v2273, %v2558
      %v2661 = vadd.f32 %v2274, %v2563
      %v2662 = vadd.f32 %v2275, %v2568
      %v2663 = vadd.f32 %v2276, %v2573
      %v2664 = vadd.f32 %v2277, %v2578
      %v2665 = vadd.f32 %v2278, %v2583
      %v2666 = vadd.f32 %v2279, %v2588
      %v2667 = vadd.f32 %v2280, %v2593
      %v2668 = vadd.f32 %v2281, %v2598
      %v2669 = vadd.f32 %v2282, %v2603
      %v2670 = vadd.f32 %v2283, %v2608
      %v2671 = vadd.f32 %v2284, %v2613
      %v2672 = vadd.f32 %v2285, %v2618
      %v2673 = vadd.f32 %v2286, %v2623
      %v2674 = vadd.f32 %v2287, %v2628
      %v2675 = vadd.f32 %v2288, %v2633
      %v2676 = vadd.f32 %v2289, %v2638
      %v2677 = vadd.f32 %v2290, %v2643
      %s2678 = scalar_lea.vmem [#allocation2], 48
      %v2679 = vld [vmem:[%s2678] sm:$0xff]
      %v2680 = vld [vmem:[%s2678 + $0x8] sm:$0xff]
      %v2681 = vld [vmem:[%s2678 + $0x18] sm:$0xff]
      %v2682 = vld [vmem:[%s2678 + $0x20] sm:$0xff]
      %v2683 = vld [vmem:[%s2678 + $0x30] sm:$0xff]
      %v2684 = vld [vmem:[%s2678 + $0x38] sm:$0xff]
      %v2685 = vld [vmem:[%s2678 + $0x48] sm:$0xff]
      %v2686 = vld [vmem:[%s2678 + $0x50] sm:$0xff]
      %v2687 = vld [vmem:[%s2678 + $0x60] sm:$0xff]
      %v2688 = vld [vmem:[%s2678 + $0x68] sm:$0xff]
      %v2689 = vld [vmem:[%s2678 + $0x78] sm:$0xff]
      %v2690 = vld [vmem:[%s2678 + $0x80] sm:$0xff]
      %v2691 = vld [vmem:[%s2678 + $0x90] sm:$0xff]
      %v2692 = vld [vmem:[%s2678 + $0x98] sm:$0xff]
      %v2693 = vld [vmem:[%s2678 + $0xa8] sm:$0xff]
      %v2694 = vld [vmem:[%s2678 + $0xb0] sm:$0xff]
      %v2695 = vld [vmem:[%s2678 + $0xc0] sm:$0xff]
      %v2696 = vld [vmem:[%s2678 + $0xc8] sm:$0xff]
      %v2697 = vld [vmem:[%s2678 + $0xd8] sm:$0xff]
      %v2698 = vld [vmem:[%s2678 + $0xe0] sm:$0xff]
      %v2699 = vld [vmem:[%s2678 + $0xf0] sm:$0xff]
      %v2700 = vld [vmem:[%s2678 + $0xf8] sm:$0xff]
      %v2701 = vld [vmem:[%s2678 + $0x108] sm:$0xff]
      %v2702 = vld [vmem:[%s2678 + $0x110] sm:$0xff]
      %v2703 = vld [vmem:[%s2678 + $0x120] sm:$0xff]
      %v2704 = vld [vmem:[%s2678 + $0x128] sm:$0xff]
      %v2705 = vld [vmem:[%s2678 + $0x138] sm:$0xff]
      %v2706 = vld [vmem:[%s2678 + $0x140] sm:$0xff]
      %v2707 = vld [vmem:[%s2678 + $0x150] sm:$0xff]
      %v2708 = vld [vmem:[%s2678 + $0x158] sm:$0xff]
      %v2709 = vld [vmem:[%s2678 + $0x168] sm:$0xff]
      %v2710 = vld [vmem:[%s2678 + $0x170] sm:$0xff]
      %s2711 = scalar_lea.vmem %s2, 48
      %v2712 = vld [vmem:[%s2711] sm:$0xff]
      %v2714 = vsel %vm236, %v2679, 0
      %v2717 = vsel %vm236, %v2680, 0
      %v2720 = vsel %vm236, %v2681, 0
      %v2723 = vsel %vm236, %v2682, 0
      %v2726 = vsel %vm236, %v2683, 0
      %v2729 = vsel %vm236, %v2684, 0
      %v2732 = vsel %vm236, %v2685, 0
      %v2735 = vsel %vm236, %v2686, 0
      %v2738 = vsel %vm236, %v2687, 0
      %v2741 = vsel %vm236, %v2688, 0
      %v2744 = vsel %vm236, %v2689, 0
      %v2747 = vsel %vm236, %v2690, 0
      %v2750 = vsel %vm236, %v2691, 0
      %v2753 = vsel %vm236, %v2692, 0
      %v2756 = vsel %vm236, %v2693, 0
      %v2759 = vsel %vm236, %v2694, 0
      %v2762 = vsel %vm236, %v2695, 0
      %v2765 = vsel %vm236, %v2696, 0
      %v2768 = vsel %vm236, %v2697, 0
      %v2771 = vsel %vm236, %v2698, 0
      %v2774 = vsel %vm236, %v2699, 0
      %v2777 = vsel %vm236, %v2700, 0
      %v2780 = vsel %vm236, %v2701, 0
      %v2783 = vsel %vm236, %v2702, 0
      %v2786 = vsel %vm236, %v2703, 0
      %v2789 = vsel %vm236, %v2704, 0
      %v2792 = vsel %vm236, %v2705, 0
      %v2795 = vsel %vm236, %v2706, 0
      %v2798 = vsel %vm236, %v2707, 0
      %v2801 = vsel %vm236, %v2708, 0
      %v2804 = vsel %vm236, %v2709, 0
      %v2807 = vsel %vm236, %v2710, 0
      %2809 = vmatprep.subr.mxu0 0.0
      %2810 = vmatpush1.msra.mxu0 0.0
      %2811 = vmatprep.subr.mxu0 0.0
      %2812 = vmatpush1.msra.mxu0 0.0
      %2813 = vmatprep.subr.mxu0 0.0
      %2814 = vmatpush1.msra.mxu0 0.0
      %2815 = vmatprep.subr.mxu0 0.0
      %2816 = vmatpush1.msra.mxu0 0.0
      %2817 = vmatprep.subr.mxu0 0.0
      %2818 = vmatpush1.msra.mxu0 0.0
      %2819 = vmatprep.subr.mxu0 0.0
      %2820 = vmatpush1.msra.mxu0 0.0
      %2821 = vmatprep.subr.mxu0 0.0
      %2822 = vmatpush1.msra.mxu0 0.0
      %2823 = vmatprep.subr.mxu0 0.0
      %2824 = vmatpush1.msra.mxu0 0.0
      %2825 = vmatprep.subr.mxu0 0.0
      %2826 = vmatpush1.msra.mxu0 0.0
      %2827 = vmatprep.subr.mxu0 0.0
      %2828 = vmatpush1.msra.mxu0 0.0
      %2829 = vmatprep.subr.mxu0 0.0
      %2830 = vmatpush1.msra.mxu0 0.0
      %2831 = vmatprep.subr.mxu0 0.0
      %2832 = vmatpush1.msra.mxu0 0.0
      %2833 = vmatprep.subr.mxu0 0.0
      %2834 = vmatpush1.msra.mxu0 0.0
      %2835 = vmatprep.subr.mxu0 0.0
      %2836 = vmatpush1.msra.mxu0 0.0
      %2837 = vmatprep.subr.mxu0 0.0
      %2838 = vmatpush1.msra.mxu0 0.0
      %2839 = vmatprep.subr.mxu0 0.0
      %2840 = vmatpush1.msra.mxu0 %v2712
      %2841 = vmatprep.subr.mxu0 0.0
      %2842 = vmatpush2.msra.mxu0 0.0
      %2843 = vmatprep.subr.mxu0 0.0
      %2844 = vmatpush2.msra.mxu0 0.0
      %2845 = vmatprep.subr.mxu0 0.0
      %2846 = vmatpush2.msra.mxu0 0.0
      %2847 = vmatprep.subr.mxu0 0.0
      %2848 = vmatpush2.msra.mxu0 0.0
      %2849 = vmatprep.subr.mxu0 0.0
      %2850 = vmatpush2.msra.mxu0 0.0
      %2851 = vmatprep.subr.mxu0 0.0
      %2852 = vmatpush2.msra.mxu0 0.0
      %2853 = vmatprep.subr.mxu0 0.0
      %2854 = vmatpush2.msra.mxu0 0.0
      %2855 = vmatprep.subr.mxu0 0.0
      %2856 = vmatpush2.msra.mxu0 0.0
      %2857 = vmatprep.subr.mxu0 0.0
      %2858 = vmatpush2.msra.mxu0 0.0
      %2859 = vmatprep.subr.mxu0 0.0
      %2860 = vmatpush2.msra.mxu0 0.0
      %2861 = vmatprep.subr.mxu0 0.0
      %2862 = vmatpush2.msra.mxu0 0.0
      %2863 = vmatprep.subr.mxu0 0.0
      %2864 = vmatpush2.msra.mxu0 0.0
      %2865 = vmatprep.subr.mxu0 0.0
      %2866 = vmatpush2.msra.mxu0 0.0
      %2867 = vmatprep.subr.mxu0 0.0
      %2868 = vmatpush2.msra.mxu0 0.0
      %2869 = vmatprep.subr.mxu0 0.0
      %2870 = vmatpush2.msra.mxu0 0.0
      %2871 = vmatprep.subr.mxu0 0.0
      %2872 = vmatpush2.msra.mxu0 0.0
      %2873 = vmatprep.mubr.f32.mxu0 0.0
      %2874 = vmatmul.mubr.f32.gmra.mxu0 %v2714
      %v2875 = vpop.f32.mrf.mxu0
      %v2876 = vadd.f32 0.0, %v2875
      %v2877 = vpop.f32.mrf.mxu0
      %2878 = vmatprep.mubr.f32.mxu0 0.0
      %2879 = vmatmul.mubr.f32.gmra.mxu0 %v2717
      %v2880 = vpop.f32.mrf.mxu0
      %v2881 = vadd.f32 0.0, %v2880
      %v2882 = vpop.f32.mrf.mxu0
      %2883 = vmatprep.mubr.f32.mxu0 0.0
      %2884 = vmatmul.mubr.f32.gmra.mxu0 %v2720
      %v2885 = vpop.f32.mrf.mxu0
      %v2886 = vadd.f32 0.0, %v2885
      %v2887 = vpop.f32.mrf.mxu0
      %2888 = vmatprep.mubr.f32.mxu0 0.0
      %2889 = vmatmul.mubr.f32.gmra.mxu0 %v2723
      %v2890 = vpop.f32.mrf.mxu0
      %v2891 = vadd.f32 0.0, %v2890
      %v2892 = vpop.f32.mrf.mxu0
      %2893 = vmatprep.mubr.f32.mxu0 0.0
      %2894 = vmatmul.mubr.f32.gmra.mxu0 %v2726
      %v2895 = vpop.f32.mrf.mxu0
      %v2896 = vadd.f32 0.0, %v2895
      %v2897 = vpop.f32.mrf.mxu0
      %2898 = vmatprep.mubr.f32.mxu0 0.0
      %2899 = vmatmul.mubr.f32.gmra.mxu0 %v2729
      %v2900 = vpop.f32.mrf.mxu0
      %v2901 = vadd.f32 0.0, %v2900
      %v2902 = vpop.f32.mrf.mxu0
      %2903 = vmatprep.mubr.f32.mxu0 0.0
      %2904 = vmatmul.mubr.f32.gmra.mxu0 %v2732
      %v2905 = vpop.f32.mrf.mxu0
      %v2906 = vadd.f32 0.0, %v2905
      %v2907 = vpop.f32.mrf.mxu0
      %2908 = vmatprep.mubr.f32.mxu0 0.0
      %2909 = vmatmul.mubr.f32.gmra.mxu0 %v2735
      %v2910 = vpop.f32.mrf.mxu0
      %v2911 = vadd.f32 0.0, %v2910
      %v2912 = vpop.f32.mrf.mxu0
      %2913 = vmatprep.mubr.f32.mxu0 0.0
      %2914 = vmatmul.mubr.f32.gmra.mxu0 %v2738
      %v2915 = vpop.f32.mrf.mxu0
      %v2916 = vadd.f32 0.0, %v2915
      %v2917 = vpop.f32.mrf.mxu0
      %2918 = vmatprep.mubr.f32.mxu0 0.0
      %2919 = vmatmul.mubr.f32.gmra.mxu0 %v2741
      %v2920 = vpop.f32.mrf.mxu0
      %v2921 = vadd.f32 0.0, %v2920
      %v2922 = vpop.f32.mrf.mxu0
      %2923 = vmatprep.mubr.f32.mxu0 0.0
      %2924 = vmatmul.mubr.f32.gmra.mxu0 %v2744
      %v2925 = vpop.f32.mrf.mxu0
      %v2926 = vadd.f32 0.0, %v2925
      %v2927 = vpop.f32.mrf.mxu0
      %2928 = vmatprep.mubr.f32.mxu0 0.0
      %2929 = vmatmul.mubr.f32.gmra.mxu0 %v2747
      %v2930 = vpop.f32.mrf.mxu0
      %v2931 = vadd.f32 0.0, %v2930
      %v2932 = vpop.f32.mrf.mxu0
      %2933 = vmatprep.mubr.f32.mxu0 0.0
      %2934 = vmatmul.mubr.f32.gmra.mxu0 %v2750
      %v2935 = vpop.f32.mrf.mxu0
      %v2936 = vadd.f32 0.0, %v2935
      %v2937 = vpop.f32.mrf.mxu0
      %2938 = vmatprep.mubr.f32.mxu0 0.0
      %2939 = vmatmul.mubr.f32.gmra.mxu0 %v2753
      %v2940 = vpop.f32.mrf.mxu0
      %v2941 = vadd.f32 0.0, %v2940
      %v2942 = vpop.f32.mrf.mxu0
      %2943 = vmatprep.mubr.f32.mxu0 0.0
      %2944 = vmatmul.mubr.f32.gmra.mxu0 %v2756
      %v2945 = vpop.f32.mrf.mxu0
      %v2946 = vadd.f32 0.0, %v2945
      %v2947 = vpop.f32.mrf.mxu0
      %2948 = vmatprep.mubr.f32.mxu0 0.0
      %2949 = vmatmul.mubr.f32.gmra.mxu0 %v2759
      %v2950 = vpop.f32.mrf.mxu0
      %v2951 = vadd.f32 0.0, %v2950
      %v2952 = vpop.f32.mrf.mxu0
      %2953 = vmatprep.mubr.f32.mxu0 0.0
      %2954 = vmatmul.mubr.f32.gmra.mxu0 %v2762
      %v2955 = vpop.f32.mrf.mxu0
      %v2956 = vadd.f32 0.0, %v2955
      %v2957 = vpop.f32.mrf.mxu0
      %2958 = vmatprep.mubr.f32.mxu0 0.0
      %2959 = vmatmul.mubr.f32.gmra.mxu0 %v2765
      %v2960 = vpop.f32.mrf.mxu0
      %v2961 = vadd.f32 0.0, %v2960
      %v2962 = vpop.f32.mrf.mxu0
      %2963 = vmatprep.mubr.f32.mxu0 0.0
      %2964 = vmatmul.mubr.f32.gmra.mxu0 %v2768
      %v2965 = vpop.f32.mrf.mxu0
      %v2966 = vadd.f32 0.0, %v2965
      %v2967 = vpop.f32.mrf.mxu0
      %2968 = vmatprep.mubr.f32.mxu0 0.0
      %2969 = vmatmul.mubr.f32.gmra.mxu0 %v2771
      %v2970 = vpop.f32.mrf.mxu0
      %v2971 = vadd.f32 0.0, %v2970
      %v2972 = vpop.f32.mrf.mxu0
      %2973 = vmatprep.mubr.f32.mxu0 0.0
      %2974 = vmatmul.mubr.f32.gmra.mxu0 %v2774
      %v2975 = vpop.f32.mrf.mxu0
      %v2976 = vadd.f32 0.0, %v2975
      %v2977 = vpop.f32.mrf.mxu0
      %2978 = vmatprep.mubr.f32.mxu0 0.0
      %2979 = vmatmul.mubr.f32.gmra.mxu0 %v2777
      %v2980 = vpop.f32.mrf.mxu0
      %v2981 = vadd.f32 0.0, %v2980
      %v2982 = vpop.f32.mrf.mxu0
      %2983 = vmatprep.mubr.f32.mxu0 0.0
      %2984 = vmatmul.mubr.f32.gmra.mxu0 %v2780
      %v2985 = vpop.f32.mrf.mxu0
      %v2986 = vadd.f32 0.0, %v2985
      %v2987 = vpop.f32.mrf.mxu0
      %2988 = vmatprep.mubr.f32.mxu0 0.0
      %2989 = vmatmul.mubr.f32.gmra.mxu0 %v2783
      %v2990 = vpop.f32.mrf.mxu0
      %v2991 = vadd.f32 0.0, %v2990
      %v2992 = vpop.f32.mrf.mxu0
      %2993 = vmatprep.mubr.f32.mxu0 0.0
      %2994 = vmatmul.mubr.f32.gmra.mxu0 %v2786
      %v2995 = vpop.f32.mrf.mxu0
      %v2996 = vadd.f32 0.0, %v2995
      %v2997 = vpop.f32.mrf.mxu0
      %2998 = vmatprep.mubr.f32.mxu0 0.0
      %2999 = vmatmul.mubr.f32.gmra.mxu0 %v2789
      %v3000 = vpop.f32.mrf.mxu0
      %v3001 = vadd.f32 0.0, %v3000
      %v3002 = vpop.f32.mrf.mxu0
      %3003 = vmatprep.mubr.f32.mxu0 0.0
      %3004 = vmatmul.mubr.f32.gmra.mxu0 %v2792
      %v3005 = vpop.f32.mrf.mxu0
      %v3006 = vadd.f32 0.0, %v3005
      %v3007 = vpop.f32.mrf.mxu0
      %3008 = vmatprep.mubr.f32.mxu0 0.0
      %3009 = vmatmul.mubr.f32.gmra.mxu0 %v2795
      %v3010 = vpop.f32.mrf.mxu0
      %v3011 = vadd.f32 0.0, %v3010
      %v3012 = vpop.f32.mrf.mxu0
      %3013 = vmatprep.mubr.f32.mxu0 0.0
      %3014 = vmatmul.mubr.f32.gmra.mxu0 %v2798
      %v3015 = vpop.f32.mrf.mxu0
      %v3016 = vadd.f32 0.0, %v3015
      %v3017 = vpop.f32.mrf.mxu0
      %3018 = vmatprep.mubr.f32.mxu0 0.0
      %3019 = vmatmul.mubr.f32.gmra.mxu0 %v2801
      %v3020 = vpop.f32.mrf.mxu0
      %v3021 = vadd.f32 0.0, %v3020
      %v3022 = vpop.f32.mrf.mxu0
      %3023 = vmatprep.mubr.f32.mxu0 0.0
      %3024 = vmatmul.mubr.f32.gmra.mxu0 %v2804
      %v3025 = vpop.f32.mrf.mxu0
      %v3026 = vadd.f32 0.0, %v3025
      %v3027 = vpop.f32.mrf.mxu0
      %3028 = vmatprep.mubr.f32.mxu0 0.0
      %3029 = vmatmul.mubr.f32.gmra.mxu0 %v2807
      %v3030 = vpop.f32.mrf.mxu0
      %v3031 = vadd.f32 0.0, %v3030
      %v3032 = vpop.f32.mrf.mxu0
      %3033 = vdwg.mxu0
      %v3034 = vadd.f32 %v2646, %v2876
      %v3035 = vadd.f32 %v2647, %v2881
      %v3036 = vadd.f32 %v2648, %v2886
      %v3037 = vadd.f32 %v2649, %v2891
      %v3038 = vadd.f32 %v2650, %v2896
      %v3039 = vadd.f32 %v2651, %v2901
      %v3040 = vadd.f32 %v2652, %v2906
      %v3041 = vadd.f32 %v2653, %v2911
      %v3042 = vadd.f32 %v2654, %v2916
      %v3043 = vadd.f32 %v2655, %v2921
      %v3044 = vadd.f32 %v2656, %v2926
      %v3045 = vadd.f32 %v2657, %v2931
      %v3046 = vadd.f32 %v2658, %v2936
      %v3047 = vadd.f32 %v2659, %v2941
      %v3048 = vadd.f32 %v2660, %v2946
      %v3049 = vadd.f32 %v2661, %v2951
      %v3050 = vadd.f32 %v2662, %v2956
      %v3051 = vadd.f32 %v2663, %v2961
      %v3052 = vadd.f32 %v2664, %v2966
      %v3053 = vadd.f32 %v2665, %v2971
      %v3054 = vadd.f32 %v2666, %v2976
      %v3055 = vadd.f32 %v2667, %v2981
      %v3056 = vadd.f32 %v2668, %v2986
      %v3057 = vadd.f32 %v2669, %v2991
      %v3058 = vadd.f32 %v2670, %v2996
      %v3059 = vadd.f32 %v2671, %v3001
      %v3060 = vadd.f32 %v2672, %v3006
      %v3061 = vadd.f32 %v2673, %v3011
      %v3062 = vadd.f32 %v2674, %v3016
      %v3063 = vadd.f32 %v2675, %v3021
      %v3064 = vadd.f32 %v2676, %v3026
      %v3065 = vadd.f32 %v2677, %v3031
      %v3066 = vld [vmem:[%s2678 + $0x1] sm:$0xff]
      %v3067 = vld [vmem:[%s2678 + $0x9] sm:$0xff]
      %v3068 = vld [vmem:[%s2678 + $0x19] sm:$0xff]
      %v3069 = vld [vmem:[%s2678 + $0x21] sm:$0xff]
      %v3070 = vld [vmem:[%s2678 + $0x31] sm:$0xff]
      %v3071 = vld [vmem:[%s2678 + $0x39] sm:$0xff]
      %v3072 = vld [vmem:[%s2678 + $0x49] sm:$0xff]
      %v3073 = vld [vmem:[%s2678 + $0x51] sm:$0xff]
      %v3074 = vld [vmem:[%s2678 + $0x61] sm:$0xff]
      %v3075 = vld [vmem:[%s2678 + $0x69] sm:$0xff]
      %v3076 = vld [vmem:[%s2678 + $0x79] sm:$0xff]
      %v3077 = vld [vmem:[%s2678 + $0x81] sm:$0xff]
      %v3078 = vld [vmem:[%s2678 + $0x91] sm:$0xff]
      %v3079 = vld [vmem:[%s2678 + $0x99] sm:$0xff]
      %v3080 = vld [vmem:[%s2678 + $0xa9] sm:$0xff]
      %v3081 = vld [vmem:[%s2678 + $0xb1] sm:$0xff]
      %v3082 = vld [vmem:[%s2678 + $0xc1] sm:$0xff]
      %v3083 = vld [vmem:[%s2678 + $0xc9] sm:$0xff]
      %v3084 = vld [vmem:[%s2678 + $0xd9] sm:$0xff]
      %v3085 = vld [vmem:[%s2678 + $0xe1] sm:$0xff]
      %v3086 = vld [vmem:[%s2678 + $0xf1] sm:$0xff]
      %v3087 = vld [vmem:[%s2678 + $0xf9] sm:$0xff]
      %v3088 = vld [vmem:[%s2678 + $0x109] sm:$0xff]
      %v3089 = vld [vmem:[%s2678 + $0x111] sm:$0xff]
      %v3090 = vld [vmem:[%s2678 + $0x121] sm:$0xff]
      %v3091 = vld [vmem:[%s2678 + $0x129] sm:$0xff]
      %v3092 = vld [vmem:[%s2678 + $0x139] sm:$0xff]
      %v3093 = vld [vmem:[%s2678 + $0x141] sm:$0xff]
      %v3094 = vld [vmem:[%s2678 + $0x151] sm:$0xff]
      %v3095 = vld [vmem:[%s2678 + $0x159] sm:$0xff]
      %v3096 = vld [vmem:[%s2678 + $0x169] sm:$0xff]
      %v3097 = vld [vmem:[%s2678 + $0x171] sm:$0xff]
      %s3098 = scalar_lea.vmem %s2, 56
      %v3099 = vld [vmem:[%s3098] sm:$0xff]
      %v3101 = vsel %vm236, %v3066, 0
      %v3104 = vsel %vm236, %v3067, 0
      %v3107 = vsel %vm236, %v3068, 0
      %v3110 = vsel %vm236, %v3069, 0
      %v3113 = vsel %vm236, %v3070, 0
      %v3116 = vsel %vm236, %v3071, 0
      %v3119 = vsel %vm236, %v3072, 0
      %v3122 = vsel %vm236, %v3073, 0
      %v3125 = vsel %vm236, %v3074, 0
      %v3128 = vsel %vm236, %v3075, 0
      %v3131 = vsel %vm236, %v3076, 0
      %v3134 = vsel %vm236, %v3077, 0
      %v3137 = vsel %vm236, %v3078, 0
      %v3140 = vsel %vm236, %v3079, 0
      %v3143 = vsel %vm236, %v3080, 0
      %v3146 = vsel %vm236, %v3081, 0
      %v3149 = vsel %vm236, %v3082, 0
      %v3152 = vsel %vm236, %v3083, 0
      %v3155 = vsel %vm236, %v3084, 0
      %v3158 = vsel %vm236, %v3085, 0
      %v3161 = vsel %vm236, %v3086, 0
      %v3164 = vsel %vm236, %v3087, 0
      %v3167 = vsel %vm236, %v3088, 0
      %v3170 = vsel %vm236, %v3089, 0
      %v3173 = vsel %vm236, %v3090, 0
      %v3176 = vsel %vm236, %v3091, 0
      %v3179 = vsel %vm236, %v3092, 0
      %v3182 = vsel %vm236, %v3093, 0
      %v3185 = vsel %vm236, %v3094, 0
      %v3188 = vsel %vm236, %v3095, 0
      %v3191 = vsel %vm236, %v3096, 0
      %v3194 = vsel %vm236, %v3097, 0
      %3196 = vmatprep.subr.mxu0 0.0
      %3197 = vmatpush1.msra.mxu0 0.0
      %3198 = vmatprep.subr.mxu0 0.0
      %3199 = vmatpush1.msra.mxu0 0.0
      %3200 = vmatprep.subr.mxu0 0.0
      %3201 = vmatpush1.msra.mxu0 0.0
      %3202 = vmatprep.subr.mxu0 0.0
      %3203 = vmatpush1.msra.mxu0 0.0
      %3204 = vmatprep.subr.mxu0 0.0
      %3205 = vmatpush1.msra.mxu0 0.0
      %3206 = vmatprep.subr.mxu0 0.0
      %3207 = vmatpush1.msra.mxu0 0.0
      %3208 = vmatprep.subr.mxu0 0.0
      %3209 = vmatpush1.msra.mxu0 0.0
      %3210 = vmatprep.subr.mxu0 0.0
      %3211 = vmatpush1.msra.mxu0 0.0
      %3212 = vmatprep.subr.mxu0 0.0
      %3213 = vmatpush1.msra.mxu0 0.0
      %3214 = vmatprep.subr.mxu0 0.0
      %3215 = vmatpush1.msra.mxu0 0.0
      %3216 = vmatprep.subr.mxu0 0.0
      %3217 = vmatpush1.msra.mxu0 0.0
      %3218 = vmatprep.subr.mxu0 0.0
      %3219 = vmatpush1.msra.mxu0 0.0
      %3220 = vmatprep.subr.mxu0 0.0
      %3221 = vmatpush1.msra.mxu0 0.0
      %3222 = vmatprep.subr.mxu0 0.0
      %3223 = vmatpush1.msra.mxu0 0.0
      %3224 = vmatprep.subr.mxu0 0.0
      %3225 = vmatpush1.msra.mxu0 0.0
      %3226 = vmatprep.subr.mxu0 0.0
      %3227 = vmatpush1.msra.mxu0 %v3099
      %3228 = vmatprep.subr.mxu0 0.0
      %3229 = vmatpush2.msra.mxu0 0.0
      %3230 = vmatprep.subr.mxu0 0.0
      %3231 = vmatpush2.msra.mxu0 0.0
      %3232 = vmatprep.subr.mxu0 0.0
      %3233 = vmatpush2.msra.mxu0 0.0
      %3234 = vmatprep.subr.mxu0 0.0
      %3235 = vmatpush2.msra.mxu0 0.0
      %3236 = vmatprep.subr.mxu0 0.0
      %3237 = vmatpush2.msra.mxu0 0.0
      %3238 = vmatprep.subr.mxu0 0.0
      %3239 = vmatpush2.msra.mxu0 0.0
      %3240 = vmatprep.subr.mxu0 0.0
      %3241 = vmatpush2.msra.mxu0 0.0
      %3242 = vmatprep.subr.mxu0 0.0
      %3243 = vmatpush2.msra.mxu0 0.0
      %3244 = vmatprep.subr.mxu0 0.0
      %3245 = vmatpush2.msra.mxu0 0.0
      %3246 = vmatprep.subr.mxu0 0.0
      %3247 = vmatpush2.msra.mxu0 0.0
      %3248 = vmatprep.subr.mxu0 0.0
      %3249 = vmatpush2.msra.mxu0 0.0
      %3250 = vmatprep.subr.mxu0 0.0
      %3251 = vmatpush2.msra.mxu0 0.0
      %3252 = vmatprep.subr.mxu0 0.0
      %3253 = vmatpush2.msra.mxu0 0.0
      %3254 = vmatprep.subr.mxu0 0.0
      %3255 = vmatpush2.msra.mxu0 0.0
      %3256 = vmatprep.subr.mxu0 0.0
      %3257 = vmatpush2.msra.mxu0 0.0
      %3258 = vmatprep.subr.mxu0 0.0
      %3259 = vmatpush2.msra.mxu0 0.0
      %3260 = vmatprep.mubr.f32.mxu0 0.0
      %3261 = vmatmul.mubr.f32.gmra.mxu0 %v3101
      %v3262 = vpop.f32.mrf.mxu0
      %v3263 = vadd.f32 0.0, %v3262
      %v3264 = vpop.f32.mrf.mxu0
      %3265 = vmatprep.mubr.f32.mxu0 0.0
      %3266 = vmatmul.mubr.f32.gmra.mxu0 %v3104
      %v3267 = vpop.f32.mrf.mxu0
      %v3268 = vadd.f32 0.0, %v3267
      %v3269 = vpop.f32.mrf.mxu0
      %3270 = vmatprep.mubr.f32.mxu0 0.0
      %3271 = vmatmul.mubr.f32.gmra.mxu0 %v3107
      %v3272 = vpop.f32.mrf.mxu0
      %v3273 = vadd.f32 0.0, %v3272
      %v3274 = vpop.f32.mrf.mxu0
      %3275 = vmatprep.mubr.f32.mxu0 0.0
      %3276 = vmatmul.mubr.f32.gmra.mxu0 %v3110
      %v3277 = vpop.f32.mrf.mxu0
      %v3278 = vadd.f32 0.0, %v3277
      %v3279 = vpop.f32.mrf.mxu0
      %3280 = vmatprep.mubr.f32.mxu0 0.0
      %3281 = vmatmul.mubr.f32.gmra.mxu0 %v3113
      %v3282 = vpop.f32.mrf.mxu0
      %v3283 = vadd.f32 0.0, %v3282
      %v3284 = vpop.f32.mrf.mxu0
      %3285 = vmatprep.mubr.f32.mxu0 0.0
      %3286 = vmatmul.mubr.f32.gmra.mxu0 %v3116
      %v3287 = vpop.f32.mrf.mxu0
      %v3288 = vadd.f32 0.0, %v3287
      %v3289 = vpop.f32.mrf.mxu0
      %3290 = vmatprep.mubr.f32.mxu0 0.0
      %3291 = vmatmul.mubr.f32.gmra.mxu0 %v3119
      %v3292 = vpop.f32.mrf.mxu0
      %v3293 = vadd.f32 0.0, %v3292
      %v3294 = vpop.f32.mrf.mxu0
      %3295 = vmatprep.mubr.f32.mxu0 0.0
      %3296 = vmatmul.mubr.f32.gmra.mxu0 %v3122
      %v3297 = vpop.f32.mrf.mxu0
      %v3298 = vadd.f32 0.0, %v3297
      %v3299 = vpop.f32.mrf.mxu0
      %3300 = vmatprep.mubr.f32.mxu0 0.0
      %3301 = vmatmul.mubr.f32.gmra.mxu0 %v3125
      %v3302 = vpop.f32.mrf.mxu0
      %v3303 = vadd.f32 0.0, %v3302
      %v3304 = vpop.f32.mrf.mxu0
      %3305 = vmatprep.mubr.f32.mxu0 0.0
      %3306 = vmatmul.mubr.f32.gmra.mxu0 %v3128
      %v3307 = vpop.f32.mrf.mxu0
      %v3308 = vadd.f32 0.0, %v3307
      %v3309 = vpop.f32.mrf.mxu0
      %3310 = vmatprep.mubr.f32.mxu0 0.0
      %3311 = vmatmul.mubr.f32.gmra.mxu0 %v3131
      %v3312 = vpop.f32.mrf.mxu0
      %v3313 = vadd.f32 0.0, %v3312
      %v3314 = vpop.f32.mrf.mxu0
      %3315 = vmatprep.mubr.f32.mxu0 0.0
      %3316 = vmatmul.mubr.f32.gmra.mxu0 %v3134
      %v3317 = vpop.f32.mrf.mxu0
      %v3318 = vadd.f32 0.0, %v3317
      %v3319 = vpop.f32.mrf.mxu0
      %3320 = vmatprep.mubr.f32.mxu0 0.0
      %3321 = vmatmul.mubr.f32.gmra.mxu0 %v3137
      %v3322 = vpop.f32.mrf.mxu0
      %v3323 = vadd.f32 0.0, %v3322
      %v3324 = vpop.f32.mrf.mxu0
      %3325 = vmatprep.mubr.f32.mxu0 0.0
      %3326 = vmatmul.mubr.f32.gmra.mxu0 %v3140
      %v3327 = vpop.f32.mrf.mxu0
      %v3328 = vadd.f32 0.0, %v3327
      %v3329 = vpop.f32.mrf.mxu0
      %3330 = vmatprep.mubr.f32.mxu0 0.0
      %3331 = vmatmul.mubr.f32.gmra.mxu0 %v3143
      %v3332 = vpop.f32.mrf.mxu0
      %v3333 = vadd.f32 0.0, %v3332
      %v3334 = vpop.f32.mrf.mxu0
      %3335 = vmatprep.mubr.f32.mxu0 0.0
      %3336 = vmatmul.mubr.f32.gmra.mxu0 %v3146
      %v3337 = vpop.f32.mrf.mxu0
      %v3338 = vadd.f32 0.0, %v3337
      %v3339 = vpop.f32.mrf.mxu0
      %3340 = vmatprep.mubr.f32.mxu0 0.0
      %3341 = vmatmul.mubr.f32.gmra.mxu0 %v3149
      %v3342 = vpop.f32.mrf.mxu0
      %v3343 = vadd.f32 0.0, %v3342
      %v3344 = vpop.f32.mrf.mxu0
      %3345 = vmatprep.mubr.f32.mxu0 0.0
      %3346 = vmatmul.mubr.f32.gmra.mxu0 %v3152
      %v3347 = vpop.f32.mrf.mxu0
      %v3348 = vadd.f32 0.0, %v3347
      %v3349 = vpop.f32.mrf.mxu0
      %3350 = vmatprep.mubr.f32.mxu0 0.0
      %3351 = vmatmul.mubr.f32.gmra.mxu0 %v3155
      %v3352 = vpop.f32.mrf.mxu0
      %v3353 = vadd.f32 0.0, %v3352
      %v3354 = vpop.f32.mrf.mxu0
      %3355 = vmatprep.mubr.f32.mxu0 0.0
      %3356 = vmatmul.mubr.f32.gmra.mxu0 %v3158
      %v3357 = vpop.f32.mrf.mxu0
      %v3358 = vadd.f32 0.0, %v3357
      %v3359 = vpop.f32.mrf.mxu0
      %3360 = vmatprep.mubr.f32.mxu0 0.0
      %3361 = vmatmul.mubr.f32.gmra.mxu0 %v3161
      %v3362 = vpop.f32.mrf.mxu0
      %v3363 = vadd.f32 0.0, %v3362
      %v3364 = vpop.f32.mrf.mxu0
      %3365 = vmatprep.mubr.f32.mxu0 0.0
      %3366 = vmatmul.mubr.f32.gmra.mxu0 %v3164
      %v3367 = vpop.f32.mrf.mxu0
      %v3368 = vadd.f32 0.0, %v3367
      %v3369 = vpop.f32.mrf.mxu0
      %3370 = vmatprep.mubr.f32.mxu0 0.0
      %3371 = vmatmul.mubr.f32.gmra.mxu0 %v3167
      %v3372 = vpop.f32.mrf.mxu0
      %v3373 = vadd.f32 0.0, %v3372
      %v3374 = vpop.f32.mrf.mxu0
      %3375 = vmatprep.mubr.f32.mxu0 0.0
      %3376 = vmatmul.mubr.f32.gmra.mxu0 %v3170
      %v3377 = vpop.f32.mrf.mxu0
      %v3378 = vadd.f32 0.0, %v3377
      %v3379 = vpop.f32.mrf.mxu0
      %3380 = vmatprep.mubr.f32.mxu0 0.0
      %3381 = vmatmul.mubr.f32.gmra.mxu0 %v3173
      %v3382 = vpop.f32.mrf.mxu0
      %v3383 = vadd.f32 0.0, %v3382
      %v3384 = vpop.f32.mrf.mxu0
      %3385 = vmatprep.mubr.f32.mxu0 0.0
      %3386 = vmatmul.mubr.f32.gmra.mxu0 %v3176
      %v3387 = vpop.f32.mrf.mxu0
      %v3388 = vadd.f32 0.0, %v3387
      %v3389 = vpop.f32.mrf.mxu0
      %3390 = vmatprep.mubr.f32.mxu0 0.0
      %3391 = vmatmul.mubr.f32.gmra.mxu0 %v3179
      %v3392 = vpop.f32.mrf.mxu0
      %v3393 = vadd.f32 0.0, %v3392
      %v3394 = vpop.f32.mrf.mxu0
      %3395 = vmatprep.mubr.f32.mxu0 0.0
      %3396 = vmatmul.mubr.f32.gmra.mxu0 %v3182
      %v3397 = vpop.f32.mrf.mxu0
      %v3398 = vadd.f32 0.0, %v3397
      %v3399 = vpop.f32.mrf.mxu0
      %3400 = vmatprep.mubr.f32.mxu0 0.0
      %3401 = vmatmul.mubr.f32.gmra.mxu0 %v3185
      %v3402 = vpop.f32.mrf.mxu0
      %v3403 = vadd.f32 0.0, %v3402
      %v3404 = vpop.f32.mrf.mxu0
      %3405 = vmatprep.mubr.f32.mxu0 0.0
      %3406 = vmatmul.mubr.f32.gmra.mxu0 %v3188
      %v3407 = vpop.f32.mrf.mxu0
      %v3408 = vadd.f32 0.0, %v3407
      %v3409 = vpop.f32.mrf.mxu0
      %3410 = vmatprep.mubr.f32.mxu0 0.0
      %3411 = vmatmul.mubr.f32.gmra.mxu0 %v3191
      %v3412 = vpop.f32.mrf.mxu0
      %v3413 = vadd.f32 0.0, %v3412
      %v3414 = vpop.f32.mrf.mxu0
      %3415 = vmatprep.mubr.f32.mxu0 0.0
      %3416 = vmatmul.mubr.f32.gmra.mxu0 %v3194
      %v3417 = vpop.f32.mrf.mxu0
      %v3418 = vadd.f32 0.0, %v3417
      %v3419 = vpop.f32.mrf.mxu0
      %3420 = vdwg.mxu0
      %v3421 = vadd.f32 %v3034, %v3263
      %v3422 = vadd.f32 %v3035, %v3268
      %v3423 = vadd.f32 %v3036, %v3273
      %v3424 = vadd.f32 %v3037, %v3278
      %v3425 = vadd.f32 %v3038, %v3283
      %v3426 = vadd.f32 %v3039, %v3288
      %v3427 = vadd.f32 %v3040, %v3293
      %v3428 = vadd.f32 %v3041, %v3298
      %v3429 = vadd.f32 %v3042, %v3303
      %v3430 = vadd.f32 %v3043, %v3308
      %v3431 = vadd.f32 %v3044, %v3313
      %v3432 = vadd.f32 %v3045, %v3318
      %v3433 = vadd.f32 %v3046, %v3323
      %v3434 = vadd.f32 %v3047, %v3328
      %v3435 = vadd.f32 %v3048, %v3333
      %v3436 = vadd.f32 %v3049, %v3338
      %v3437 = vadd.f32 %v3050, %v3343
      %v3438 = vadd.f32 %v3051, %v3348
      %v3439 = vadd.f32 %v3052, %v3353
      %v3440 = vadd.f32 %v3053, %v3358
      %v3441 = vadd.f32 %v3054, %v3363
      %v3442 = vadd.f32 %v3055, %v3368
      %v3443 = vadd.f32 %v3056, %v3373
      %v3444 = vadd.f32 %v3057, %v3378
      %v3445 = vadd.f32 %v3058, %v3383
      %v3446 = vadd.f32 %v3059, %v3388
      %v3447 = vadd.f32 %v3060, %v3393
      %v3448 = vadd.f32 %v3061, %v3398
      %v3449 = vadd.f32 %v3062, %v3403
      %v3450 = vadd.f32 %v3063, %v3408
      %v3451 = vadd.f32 %v3064, %v3413
      %v3452 = vadd.f32 %v3065, %v3418
      %v3453 = vld [vmem:[%s2678 + $0x2] sm:$0xff]
      %v3454 = vld [vmem:[%s2678 + $0xa] sm:$0xff]
      %v3455 = vld [vmem:[%s2678 + $0x1a] sm:$0xff]
      %v3456 = vld [vmem:[%s2678 + $0x22] sm:$0xff]
      %v3457 = vld [vmem:[%s2678 + $0x32] sm:$0xff]
      %v3458 = vld [vmem:[%s2678 + $0x3a] sm:$0xff]
      %v3459 = vld [vmem:[%s2678 + $0x4a] sm:$0xff]
      %v3460 = vld [vmem:[%s2678 + $0x52] sm:$0xff]
      %v3461 = vld [vmem:[%s2678 + $0x62] sm:$0xff]
      %v3462 = vld [vmem:[%s2678 + $0x6a] sm:$0xff]
      %v3463 = vld [vmem:[%s2678 + $0x7a] sm:$0xff]
      %v3464 = vld [vmem:[%s2678 + $0x82] sm:$0xff]
      %v3465 = vld [vmem:[%s2678 + $0x92] sm:$0xff]
      %v3466 = vld [vmem:[%s2678 + $0x9a] sm:$0xff]
      %v3467 = vld [vmem:[%s2678 + $0xaa] sm:$0xff]
      %v3468 = vld [vmem:[%s2678 + $0xb2] sm:$0xff]
      %v3469 = vld [vmem:[%s2678 + $0xc2] sm:$0xff]
      %v3470 = vld [vmem:[%s2678 + $0xca] sm:$0xff]
      %v3471 = vld [vmem:[%s2678 + $0xda] sm:$0xff]
      %v3472 = vld [vmem:[%s2678 + $0xe2] sm:$0xff]
      %v3473 = vld [vmem:[%s2678 + $0xf2] sm:$0xff]
      %v3474 = vld [vmem:[%s2678 + $0xfa] sm:$0xff]
      %v3475 = vld [vmem:[%s2678 + $0x10a] sm:$0xff]
      %v3476 = vld [vmem:[%s2678 + $0x112] sm:$0xff]
      %v3477 = vld [vmem:[%s2678 + $0x122] sm:$0xff]
      %v3478 = vld [vmem:[%s2678 + $0x12a] sm:$0xff]
      %v3479 = vld [vmem:[%s2678 + $0x13a] sm:$0xff]
      %v3480 = vld [vmem:[%s2678 + $0x142] sm:$0xff]
      %v3481 = vld [vmem:[%s2678 + $0x152] sm:$0xff]
      %v3482 = vld [vmem:[%s2678 + $0x15a] sm:$0xff]
      %v3483 = vld [vmem:[%s2678 + $0x16a] sm:$0xff]
      %v3484 = vld [vmem:[%s2678 + $0x172] sm:$0xff]
      %s3485 = scalar_lea.vmem %s2, 64
      %v3486 = vld [vmem:[%s3485] sm:$0xff]
      %v3488 = vsel %vm236, %v3453, 0
      %v3491 = vsel %vm236, %v3454, 0
      %v3494 = vsel %vm236, %v3455, 0
      %v3497 = vsel %vm236, %v3456, 0
      %v3500 = vsel %vm236, %v3457, 0
      %v3503 = vsel %vm236, %v3458, 0
      %v3506 = vsel %vm236, %v3459, 0
      %v3509 = vsel %vm236, %v3460, 0
      %v3512 = vsel %vm236, %v3461, 0
      %v3515 = vsel %vm236, %v3462, 0
      %v3518 = vsel %vm236, %v3463, 0
      %v3521 = vsel %vm236, %v3464, 0
      %v3524 = vsel %vm236, %v3465, 0
      %v3527 = vsel %vm236, %v3466, 0
      %v3530 = vsel %vm236, %v3467, 0
      %v3533 = vsel %vm236, %v3468, 0
      %v3536 = vsel %vm236, %v3469, 0
      %v3539 = vsel %vm236, %v3470, 0
      %v3542 = vsel %vm236, %v3471, 0
      %v3545 = vsel %vm236, %v3472, 0
      %v3548 = vsel %vm236, %v3473, 0
      %v3551 = vsel %vm236, %v3474, 0
      %v3554 = vsel %vm236, %v3475, 0
      %v3557 = vsel %vm236, %v3476, 0
      %v3560 = vsel %vm236, %v3477, 0
      %v3563 = vsel %vm236, %v3478, 0
      %v3566 = vsel %vm236, %v3479, 0
      %v3569 = vsel %vm236, %v3480, 0
      %v3572 = vsel %vm236, %v3481, 0
      %v3575 = vsel %vm236, %v3482, 0
      %v3578 = vsel %vm236, %v3483, 0
      %v3581 = vsel %vm236, %v3484, 0
      %3583 = vmatprep.subr.mxu0 0.0
      %3584 = vmatpush1.msra.mxu0 0.0
      %3585 = vmatprep.subr.mxu0 0.0
      %3586 = vmatpush1.msra.mxu0 0.0
      %3587 = vmatprep.subr.mxu0 0.0
      %3588 = vmatpush1.msra.mxu0 0.0
      %3589 = vmatprep.subr.mxu0 0.0
      %3590 = vmatpush1.msra.mxu0 0.0
      %3591 = vmatprep.subr.mxu0 0.0
      %3592 = vmatpush1.msra.mxu0 0.0
      %3593 = vmatprep.subr.mxu0 0.0
      %3594 = vmatpush1.msra.mxu0 0.0
      %3595 = vmatprep.subr.mxu0 0.0
      %3596 = vmatpush1.msra.mxu0 0.0
      %3597 = vmatprep.subr.mxu0 0.0
      %3598 = vmatpush1.msra.mxu0 0.0
      %3599 = vmatprep.subr.mxu0 0.0
      %3600 = vmatpush1.msra.mxu0 0.0
      %3601 = vmatprep.subr.mxu0 0.0
      %3602 = vmatpush1.msra.mxu0 0.0
      %3603 = vmatprep.subr.mxu0 0.0
      %3604 = vmatpush1.msra.mxu0 0.0
      %3605 = vmatprep.subr.mxu0 0.0
      %3606 = vmatpush1.msra.mxu0 0.0
      %3607 = vmatprep.subr.mxu0 0.0
      %3608 = vmatpush1.msra.mxu0 0.0
      %3609 = vmatprep.subr.mxu0 0.0
      %3610 = vmatpush1.msra.mxu0 0.0
      %3611 = vmatprep.subr.mxu0 0.0
      %3612 = vmatpush1.msra.mxu0 0.0
      %3613 = vmatprep.subr.mxu0 0.0
      %3614 = vmatpush1.msra.mxu0 %v3486
      %3615 = vmatprep.subr.mxu0 0.0
      %3616 = vmatpush2.msra.mxu0 0.0
      %3617 = vmatprep.subr.mxu0 0.0
      %3618 = vmatpush2.msra.mxu0 0.0
      %3619 = vmatprep.subr.mxu0 0.0
      %3620 = vmatpush2.msra.mxu0 0.0
      %3621 = vmatprep.subr.mxu0 0.0
      %3622 = vmatpush2.msra.mxu0 0.0
      %3623 = vmatprep.subr.mxu0 0.0
      %3624 = vmatpush2.msra.mxu0 0.0
      %3625 = vmatprep.subr.mxu0 0.0
      %3626 = vmatpush2.msra.mxu0 0.0
      %3627 = vmatprep.subr.mxu0 0.0
      %3628 = vmatpush2.msra.mxu0 0.0
      %3629 = vmatprep.subr.mxu0 0.0
      %3630 = vmatpush2.msra.mxu0 0.0
      %3631 = vmatprep.subr.mxu0 0.0
      %3632 = vmatpush2.msra.mxu0 0.0
      %3633 = vmatprep.subr.mxu0 0.0
      %3634 = vmatpush2.msra.mxu0 0.0
      %3635 = vmatprep.subr.mxu0 0.0
      %3636 = vmatpush2.msra.mxu0 0.0
      %3637 = vmatprep.subr.mxu0 0.0
      %3638 = vmatpush2.msra.mxu0 0.0
      %3639 = vmatprep.subr.mxu0 0.0
      %3640 = vmatpush2.msra.mxu0 0.0
      %3641 = vmatprep.subr.mxu0 0.0
      %3642 = vmatpush2.msra.mxu0 0.0
      %3643 = vmatprep.subr.mxu0 0.0
      %3644 = vmatpush2.msra.mxu0 0.0
      %3645 = vmatprep.subr.mxu0 0.0
      %3646 = vmatpush2.msra.mxu0 0.0
      %3647 = vmatprep.mubr.f32.mxu0 0.0
      %3648 = vmatmul.mubr.f32.gmra.mxu0 %v3488
      %v3649 = vpop.f32.mrf.mxu0
      %v3650 = vadd.f32 0.0, %v3649
      %v3651 = vpop.f32.mrf.mxu0
      %3652 = vmatprep.mubr.f32.mxu0 0.0
      %3653 = vmatmul.mubr.f32.gmra.mxu0 %v3491
      %v3654 = vpop.f32.mrf.mxu0
      %v3655 = vadd.f32 0.0, %v3654
      %v3656 = vpop.f32.mrf.mxu0
      %3657 = vmatprep.mubr.f32.mxu0 0.0
      %3658 = vmatmul.mubr.f32.gmra.mxu0 %v3494
      %v3659 = vpop.f32.mrf.mxu0
      %v3660 = vadd.f32 0.0, %v3659
      %v3661 = vpop.f32.mrf.mxu0
      %3662 = vmatprep.mubr.f32.mxu0 0.0
      %3663 = vmatmul.mubr.f32.gmra.mxu0 %v3497
      %v3664 = vpop.f32.mrf.mxu0
      %v3665 = vadd.f32 0.0, %v3664
      %v3666 = vpop.f32.mrf.mxu0
      %3667 = vmatprep.mubr.f32.mxu0 0.0
      %3668 = vmatmul.mubr.f32.gmra.mxu0 %v3500
      %v3669 = vpop.f32.mrf.mxu0
      %v3670 = vadd.f32 0.0, %v3669
      %v3671 = vpop.f32.mrf.mxu0
      %3672 = vmatprep.mubr.f32.mxu0 0.0
      %3673 = vmatmul.mubr.f32.gmra.mxu0 %v3503
      %v3674 = vpop.f32.mrf.mxu0
      %v3675 = vadd.f32 0.0, %v3674
      %v3676 = vpop.f32.mrf.mxu0
      %3677 = vmatprep.mubr.f32.mxu0 0.0
      %3678 = vmatmul.mubr.f32.gmra.mxu0 %v3506
      %v3679 = vpop.f32.mrf.mxu0
      %v3680 = vadd.f32 0.0, %v3679
      %v3681 = vpop.f32.mrf.mxu0
      %3682 = vmatprep.mubr.f32.mxu0 0.0
      %3683 = vmatmul.mubr.f32.gmra.mxu0 %v3509
      %v3684 = vpop.f32.mrf.mxu0
      %v3685 = vadd.f32 0.0, %v3684
      %v3686 = vpop.f32.mrf.mxu0
      %3687 = vmatprep.mubr.f32.mxu0 0.0
      %3688 = vmatmul.mubr.f32.gmra.mxu0 %v3512
      %v3689 = vpop.f32.mrf.mxu0
      %v3690 = vadd.f32 0.0, %v3689
      %v3691 = vpop.f32.mrf.mxu0
      %3692 = vmatprep.mubr.f32.mxu0 0.0
      %3693 = vmatmul.mubr.f32.gmra.mxu0 %v3515
      %v3694 = vpop.f32.mrf.mxu0
      %v3695 = vadd.f32 0.0, %v3694
      %v3696 = vpop.f32.mrf.mxu0
      %3697 = vmatprep.mubr.f32.mxu0 0.0
      %3698 = vmatmul.mubr.f32.gmra.mxu0 %v3518
      %v3699 = vpop.f32.mrf.mxu0
      %v3700 = vadd.f32 0.0, %v3699
      %v3701 = vpop.f32.mrf.mxu0
      %3702 = vmatprep.mubr.f32.mxu0 0.0
      %3703 = vmatmul.mubr.f32.gmra.mxu0 %v3521
      %v3704 = vpop.f32.mrf.mxu0
      %v3705 = vadd.f32 0.0, %v3704
      %v3706 = vpop.f32.mrf.mxu0
      %3707 = vmatprep.mubr.f32.mxu0 0.0
      %3708 = vmatmul.mubr.f32.gmra.mxu0 %v3524
      %v3709 = vpop.f32.mrf.mxu0
      %v3710 = vadd.f32 0.0, %v3709
      %v3711 = vpop.f32.mrf.mxu0
      %3712 = vmatprep.mubr.f32.mxu0 0.0
      %3713 = vmatmul.mubr.f32.gmra.mxu0 %v3527
      %v3714 = vpop.f32.mrf.mxu0
      %v3715 = vadd.f32 0.0, %v3714
      %v3716 = vpop.f32.mrf.mxu0
      %3717 = vmatprep.mubr.f32.mxu0 0.0
      %3718 = vmatmul.mubr.f32.gmra.mxu0 %v3530
      %v3719 = vpop.f32.mrf.mxu0
      %v3720 = vadd.f32 0.0, %v3719
      %v3721 = vpop.f32.mrf.mxu0
      %3722 = vmatprep.mubr.f32.mxu0 0.0
      %3723 = vmatmul.mubr.f32.gmra.mxu0 %v3533
      %v3724 = vpop.f32.mrf.mxu0
      %v3725 = vadd.f32 0.0, %v3724
      %v3726 = vpop.f32.mrf.mxu0
      %3727 = vmatprep.mubr.f32.mxu0 0.0
      %3728 = vmatmul.mubr.f32.gmra.mxu0 %v3536
      %v3729 = vpop.f32.mrf.mxu0
      %v3730 = vadd.f32 0.0, %v3729
      %v3731 = vpop.f32.mrf.mxu0
      %3732 = vmatprep.mubr.f32.mxu0 0.0
      %3733 = vmatmul.mubr.f32.gmra.mxu0 %v3539
      %v3734 = vpop.f32.mrf.mxu0
      %v3735 = vadd.f32 0.0, %v3734
      %v3736 = vpop.f32.mrf.mxu0
      %3737 = vmatprep.mubr.f32.mxu0 0.0
      %3738 = vmatmul.mubr.f32.gmra.mxu0 %v3542
      %v3739 = vpop.f32.mrf.mxu0
      %v3740 = vadd.f32 0.0, %v3739
      %v3741 = vpop.f32.mrf.mxu0
      %3742 = vmatprep.mubr.f32.mxu0 0.0
      %3743 = vmatmul.mubr.f32.gmra.mxu0 %v3545
      %v3744 = vpop.f32.mrf.mxu0
      %v3745 = vadd.f32 0.0, %v3744
      %v3746 = vpop.f32.mrf.mxu0
      %3747 = vmatprep.mubr.f32.mxu0 0.0
      %3748 = vmatmul.mubr.f32.gmra.mxu0 %v3548
      %v3749 = vpop.f32.mrf.mxu0
      %v3750 = vadd.f32 0.0, %v3749
      %v3751 = vpop.f32.mrf.mxu0
      %3752 = vmatprep.mubr.f32.mxu0 0.0
      %3753 = vmatmul.mubr.f32.gmra.mxu0 %v3551
      %v3754 = vpop.f32.mrf.mxu0
      %v3755 = vadd.f32 0.0, %v3754
      %v3756 = vpop.f32.mrf.mxu0
      %3757 = vmatprep.mubr.f32.mxu0 0.0
      %3758 = vmatmul.mubr.f32.gmra.mxu0 %v3554
      %v3759 = vpop.f32.mrf.mxu0
      %v3760 = vadd.f32 0.0, %v3759
      %v3761 = vpop.f32.mrf.mxu0
      %3762 = vmatprep.mubr.f32.mxu0 0.0
      %3763 = vmatmul.mubr.f32.gmra.mxu0 %v3557
      %v3764 = vpop.f32.mrf.mxu0
      %v3765 = vadd.f32 0.0, %v3764
      %v3766 = vpop.f32.mrf.mxu0
      %3767 = vmatprep.mubr.f32.mxu0 0.0
      %3768 = vmatmul.mubr.f32.gmra.mxu0 %v3560
      %v3769 = vpop.f32.mrf.mxu0
      %v3770 = vadd.f32 0.0, %v3769
      %v3771 = vpop.f32.mrf.mxu0
      %3772 = vmatprep.mubr.f32.mxu0 0.0
      %3773 = vmatmul.mubr.f32.gmra.mxu0 %v3563
      %v3774 = vpop.f32.mrf.mxu0
      %v3775 = vadd.f32 0.0, %v3774
      %v3776 = vpop.f32.mrf.mxu0
      %3777 = vmatprep.mubr.f32.mxu0 0.0
      %3778 = vmatmul.mubr.f32.gmra.mxu0 %v3566
      %v3779 = vpop.f32.mrf.mxu0
      %v3780 = vadd.f32 0.0, %v3779
      %v3781 = vpop.f32.mrf.mxu0
      %3782 = vmatprep.mubr.f32.mxu0 0.0
      %3783 = vmatmul.mubr.f32.gmra.mxu0 %v3569
      %v3784 = vpop.f32.mrf.mxu0
      %v3785 = vadd.f32 0.0, %v3784
      %v3786 = vpop.f32.mrf.mxu0
      %3787 = vmatprep.mubr.f32.mxu0 0.0
      %3788 = vmatmul.mubr.f32.gmra.mxu0 %v3572
      %v3789 = vpop.f32.mrf.mxu0
      %v3790 = vadd.f32 0.0, %v3789
      %v3791 = vpop.f32.mrf.mxu0
      %3792 = vmatprep.mubr.f32.mxu0 0.0
      %3793 = vmatmul.mubr.f32.gmra.mxu0 %v3575
      %v3794 = vpop.f32.mrf.mxu0
      %v3795 = vadd.f32 0.0, %v3794
      %v3796 = vpop.f32.mrf.mxu0
      %3797 = vmatprep.mubr.f32.mxu0 0.0
      %3798 = vmatmul.mubr.f32.gmra.mxu0 %v3578
      %v3799 = vpop.f32.mrf.mxu0
      %v3800 = vadd.f32 0.0, %v3799
      %v3801 = vpop.f32.mrf.mxu0
      %3802 = vmatprep.mubr.f32.mxu0 0.0
      %3803 = vmatmul.mubr.f32.gmra.mxu0 %v3581
      %v3804 = vpop.f32.mrf.mxu0
      %v3805 = vadd.f32 0.0, %v3804
      %v3806 = vpop.f32.mrf.mxu0
      %3807 = vdwg.mxu0
      %v3808 = vadd.f32 %v3421, %v3650
      %v3809 = vadd.f32 %v3422, %v3655
      %v3810 = vadd.f32 %v3423, %v3660
      %v3811 = vadd.f32 %v3424, %v3665
      %v3812 = vadd.f32 %v3425, %v3670
      %v3813 = vadd.f32 %v3426, %v3675
      %v3814 = vadd.f32 %v3427, %v3680
      %v3815 = vadd.f32 %v3428, %v3685
      %v3816 = vadd.f32 %v3429, %v3690
      %v3817 = vadd.f32 %v3430, %v3695
      %v3818 = vadd.f32 %v3431, %v3700
      %v3819 = vadd.f32 %v3432, %v3705
      %v3820 = vadd.f32 %v3433, %v3710
      %v3821 = vadd.f32 %v3434, %v3715
      %v3822 = vadd.f32 %v3435, %v3720
      %v3823 = vadd.f32 %v3436, %v3725
      %v3824 = vadd.f32 %v3437, %v3730
      %v3825 = vadd.f32 %v3438, %v3735
      %v3826 = vadd.f32 %v3439, %v3740
      %v3827 = vadd.f32 %v3440, %v3745
      %v3828 = vadd.f32 %v3441, %v3750
      %v3829 = vadd.f32 %v3442, %v3755
      %v3830 = vadd.f32 %v3443, %v3760
      %v3831 = vadd.f32 %v3444, %v3765
      %v3832 = vadd.f32 %v3445, %v3770
      %v3833 = vadd.f32 %v3446, %v3775
      %v3834 = vadd.f32 %v3447, %v3780
      %v3835 = vadd.f32 %v3448, %v3785
      %v3836 = vadd.f32 %v3449, %v3790
      %v3837 = vadd.f32 %v3450, %v3795
      %v3838 = vadd.f32 %v3451, %v3800
      %v3839 = vadd.f32 %v3452, %v3805
      %v3840 = vld [vmem:[%s3] sm:$0x1]
      %v3842 = vlaneseq
      %v3843 = vshrl.u32 %v3842, 7
      %v3844 = vsub.s32 0, %v3843
      %v3845 = vrot.slane %v3840, %v3844
      %v3847 = vadd.f32 %v3808, %v3845
      %v3848 = vadd.f32 %v3809, %v3845
      %v3849 = vadd.f32 %v3810, %v3845
      %v3850 = vadd.f32 %v3811, %v3845
      %v3851 = vadd.f32 %v3812, %v3845
      %v3852 = vadd.f32 %v3813, %v3845
      %v3853 = vadd.f32 %v3814, %v3845
      %v3854 = vadd.f32 %v3815, %v3845
      %v3855 = vadd.f32 %v3816, %v3845
      %v3856 = vadd.f32 %v3817, %v3845
      %v3857 = vadd.f32 %v3818, %v3845
      %v3858 = vadd.f32 %v3819, %v3845
      %v3859 = vadd.f32 %v3820, %v3845
      %v3860 = vadd.f32 %v3821, %v3845
      %v3861 = vadd.f32 %v3822, %v3845
      %v3862 = vadd.f32 %v3823, %v3845
      %v3863 = vadd.f32 %v3824, %v3845
      %v3864 = vadd.f32 %v3825, %v3845
      %v3865 = vadd.f32 %v3826, %v3845
      %v3866 = vadd.f32 %v3827, %v3845
      %v3867 = vadd.f32 %v3828, %v3845
      %v3868 = vadd.f32 %v3829, %v3845
      %v3869 = vadd.f32 %v3830, %v3845
      %v3870 = vadd.f32 %v3831, %v3845
      %v3871 = vadd.f32 %v3832, %v3845
      %v3872 = vadd.f32 %v3833, %v3845
      %v3873 = vadd.f32 %v3834, %v3845
      %v3874 = vadd.f32 %v3835, %v3845
      %v3875 = vadd.f32 %v3836, %v3845
      %v3876 = vadd.f32 %v3837, %v3845
      %v3877 = vadd.f32 %v3838, %v3845
      %v3878 = vadd.f32 %v3839, %v3845
      %v3879 = vmax.f32 %v3847, 0.0
      %v3880 = vmax.f32 %v3848, 0.0
      %v3881 = vmax.f32 %v3849, 0.0
      %v3882 = vmax.f32 %v3850, 0.0
      %v3883 = vmax.f32 %v3851, 0.0
      %v3884 = vmax.f32 %v3852, 0.0
      %v3885 = vmax.f32 %v3853, 0.0
      %v3886 = vmax.f32 %v3854, 0.0
      %v3887 = vmax.f32 %v3855, 0.0
      %v3888 = vmax.f32 %v3856, 0.0
      %v3889 = vmax.f32 %v3857, 0.0
      %v3890 = vmax.f32 %v3858, 0.0
      %v3891 = vmax.f32 %v3859, 0.0
      %v3892 = vmax.f32 %v3860, 0.0
      %v3893 = vmax.f32 %v3861, 0.0
      %v3894 = vmax.f32 %v3862, 0.0
      %v3895 = vmax.f32 %v3863, 0.0
      %v3896 = vmax.f32 %v3864, 0.0
      %v3897 = vmax.f32 %v3865, 0.0
      %v3898 = vmax.f32 %v3866, 0.0
      %v3899 = vmax.f32 %v3867, 0.0
      %v3900 = vmax.f32 %v3868, 0.0
      %v3901 = vmax.f32 %v3869, 0.0
      %v3902 = vmax.f32 %v3870, 0.0
      %v3903 = vmax.f32 %v3871, 0.0
      %v3904 = vmax.f32 %v3872, 0.0
      %v3905 = vmax.f32 %v3873, 0.0
      %v3906 = vmax.f32 %v3874, 0.0
      %v3907 = vmax.f32 %v3875, 0.0
      %v3908 = vmax.f32 %v3876, 0.0
      %v3909 = vmax.f32 %v3877, 0.0
      %v3910 = vmax.f32 %v3878, 0.0
      %v3911 = vsel %vm236, %v3879, 0.0
      %v3912 = vsel %vm236, %v3880, 0.0
      %v3913 = vadd.f32 %v3911, %v3912
      %v3914 = vsel %vm236, %v3881, 0.0
      %v3915 = vadd.f32 %v3913, %v3914
      %v3916 = vsel %vm236, %v3882, 0.0
      %v3917 = vadd.f32 %v3915, %v3916
      %v3918 = vsel %vm236, %v3883, 0.0
      %v3919 = vadd.f32 %v3917, %v3918
      %v3920 = vsel %vm236, %v3884, 0.0
      %v3921 = vadd.f32 %v3919, %v3920
      %v3922 = vsel %vm236, %v3885, 0.0
      %v3923 = vadd.f32 %v3921, %v3922
      %v3924 = vsel %vm236, %v3886, 0.0
      %v3925 = vadd.f32 %v3923, %v3924
      %v3926 = vsel %vm236, %v3887, 0.0
      %v3927 = vadd.f32 %v3925, %v3926
      %v3928 = vsel %vm236, %v3888, 0.0
      %v3929 = vadd.f32 %v3927, %v3928
      %v3930 = vsel %vm236, %v3889, 0.0
      %v3931 = vadd.f32 %v3929, %v3930
      %v3932 = vsel %vm236, %v3890, 0.0
      %v3933 = vadd.f32 %v3931, %v3932
      %v3934 = vsel %vm236, %v3891, 0.0
      %v3935 = vadd.f32 %v3933, %v3934
      %v3936 = vsel %vm236, %v3892, 0.0
      %v3937 = vadd.f32 %v3935, %v3936
      %v3938 = vsel %vm236, %v3893, 0.0
      %v3939 = vadd.f32 %v3937, %v3938
      %v3940 = vsel %vm236, %v3894, 0.0
      %v3941 = vadd.f32 %v3939, %v3940
      %v3942 = vsel %vm236, %v3895, 0.0
      %v3943 = vadd.f32 %v3941, %v3942
      %v3944 = vsel %vm236, %v3896, 0.0
      %v3945 = vadd.f32 %v3943, %v3944
      %v3946 = vsel %vm236, %v3897, 0.0
      %v3947 = vadd.f32 %v3945, %v3946
      %v3948 = vsel %vm236, %v3898, 0.0
      %v3949 = vadd.f32 %v3947, %v3948
      %v3950 = vsel %vm236, %v3899, 0.0
      %v3951 = vadd.f32 %v3949, %v3950
      %v3952 = vsel %vm236, %v3900, 0.0
      %v3953 = vadd.f32 %v3951, %v3952
      %v3954 = vsel %vm236, %v3901, 0.0
      %v3955 = vadd.f32 %v3953, %v3954
      %v3956 = vsel %vm236, %v3902, 0.0
      %v3957 = vadd.f32 %v3955, %v3956
      %v3958 = vsel %vm236, %v3903, 0.0
      %v3959 = vadd.f32 %v3957, %v3958
      %v3960 = vsel %vm236, %v3904, 0.0
      %v3961 = vadd.f32 %v3959, %v3960
      %v3962 = vsel %vm236, %v3905, 0.0
      %v3963 = vadd.f32 %v3961, %v3962
      %v3964 = vsel %vm236, %v3906, 0.0
      %v3965 = vadd.f32 %v3963, %v3964
      %v3966 = vsel %vm236, %v3907, 0.0
      %v3967 = vadd.f32 %v3965, %v3966
      %v3968 = vsel %vm236, %v3908, 0.0
      %v3969 = vadd.f32 %v3967, %v3968
      %v3970 = vsel %vm236, %v3909, 0.0
      %v3971 = vadd.f32 %v3969, %v3970
      %v3972 = vsel %vm236, %v3910, 0.0
      %v3973 = vadd.f32 %v3971, %v3972
      %v3974 = vrot.slane %v3973, 4
      %v3975 = vadd.f32 %v3973, %v3974
      %v3976 = vrot.slane %v3975, 2
      %v3977 = vadd.f32 %v3975, %v3976
      %v3978 = vrot.slane %v3977, 1
      %v3979 = vadd.f32 %v3977, %v3978
      %v3980 = vmul.f32 %v3879, %v3879
      %v3981 = vmul.f32 %v3880, %v3880
      %v3982 = vmul.f32 %v3881, %v3881
      %v3983 = vmul.f32 %v3882, %v3882
      %v3984 = vmul.f32 %v3883, %v3883
      %v3985 = vmul.f32 %v3884, %v3884
      %v3986 = vmul.f32 %v3885, %v3885
      %v3987 = vmul.f32 %v3886, %v3886
      %v3988 = vmul.f32 %v3887, %v3887
      %v3989 = vmul.f32 %v3888, %v3888
      %v3990 = vmul.f32 %v3889, %v3889
      %v3991 = vmul.f32 %v3890, %v3890
      %v3992 = vmul.f32 %v3891, %v3891
      %v3993 = vmul.f32 %v3892, %v3892
      %v3994 = vmul.f32 %v3893, %v3893
      %v3995 = vmul.f32 %v3894, %v3894
      %v3996 = vmul.f32 %v3895, %v3895
      %v3997 = vmul.f32 %v3896, %v3896
      %v3998 = vmul.f32 %v3897, %v3897
      %v3999 = vmul.f32 %v3898, %v3898
      %v4000 = vmul.f32 %v3899, %v3899
      %v4001 = vmul.f32 %v3900, %v3900
      %v4002 = vmul.f32 %v3901, %v3901
      %v4003 = vmul.f32 %v3902, %v3902
      %v4004 = vmul.f32 %v3903, %v3903
      %v4005 = vmul.f32 %v3904, %v3904
      %v4006 = vmul.f32 %v3905, %v3905
      %v4007 = vmul.f32 %v3906, %v3906
      %v4008 = vmul.f32 %v3907, %v3907
      %v4009 = vmul.f32 %v3908, %v3908
      %v4010 = vmul.f32 %v3909, %v3909
      %v4011 = vmul.f32 %v3910, %v3910
      %v4012 = vsel %vm236, %v3980, 0.0
      %v4013 = vsel %vm236, %v3981, 0.0
      %v4014 = vadd.f32 %v4012, %v4013
      %v4015 = vsel %vm236, %v3982, 0.0
      %v4016 = vadd.f32 %v4014, %v4015
      %v4017 = vsel %vm236, %v3983, 0.0
      %v4018 = vadd.f32 %v4016, %v4017
      %v4019 = vsel %vm236, %v3984, 0.0
      %v4020 = vadd.f32 %v4018, %v4019
      %v4021 = vsel %vm236, %v3985, 0.0
      %v4022 = vadd.f32 %v4020, %v4021
      %v4023 = vsel %vm236, %v3986, 0.0
      %v4024 = vadd.f32 %v4022, %v4023
      %v4025 = vsel %vm236, %v3987, 0.0
      %v4026 = vadd.f32 %v4024, %v4025
      %v4027 = vsel %vm236, %v3988, 0.0
      %v4028 = vadd.f32 %v4026, %v4027
      %v4029 = vsel %vm236, %v3989, 0.0
      %v4030 = vadd.f32 %v4028, %v4029
      %v4031 = vsel %vm236, %v3990, 0.0
      %v4032 = vadd.f32 %v4030, %v4031
      %v4033 = vsel %vm236, %v3991, 0.0
      %v4034 = vadd.f32 %v4032, %v4033
      %v4035 = vsel %vm236, %v3992, 0.0
      %v4036 = vadd.f32 %v4034, %v4035
      %v4037 = vsel %vm236, %v3993, 0.0
      %v4038 = vadd.f32 %v4036, %v4037
      %v4039 = vsel %vm236, %v3994, 0.0
      %v4040 = vadd.f32 %v4038, %v4039
      %v4041 = vsel %vm236, %v3995, 0.0
      %v4042 = vadd.f32 %v4040, %v4041
      %v4043 = vsel %vm236, %v3996, 0.0
      %v4044 = vadd.f32 %v4042, %v4043
      %v4045 = vsel %vm236, %v3997, 0.0
      %v4046 = vadd.f32 %v4044, %v4045
      %v4047 = vsel %vm236, %v3998, 0.0
      %v4048 = vadd.f32 %v4046, %v4047
      %v4049 = vsel %vm236, %v3999, 0.0
      %v4050 = vadd.f32 %v4048, %v4049
      %v4051 = vsel %vm236, %v4000, 0.0
      %v4052 = vadd.f32 %v4050, %v4051
      %v4053 = vsel %vm236, %v4001, 0.0
      %v4054 = vadd.f32 %v4052, %v4053
      %v4055 = vsel %vm236, %v4002, 0.0
      %v4056 = vadd.f32 %v4054, %v4055
      %v4057 = vsel %vm236, %v4003, 0.0
      %v4058 = vadd.f32 %v4056, %v4057
      %v4059 = vsel %vm236, %v4004, 0.0
      %v4060 = vadd.f32 %v4058, %v4059
      %v4061 = vsel %vm236, %v4005, 0.0
      %v4062 = vadd.f32 %v4060, %v4061
      %v4063 = vsel %vm236, %v4006, 0.0
      %v4064 = vadd.f32 %v4062, %v4063
      %v4065 = vsel %vm236, %v4007, 0.0
      %v4066 = vadd.f32 %v4064, %v4065
      %v4067 = vsel %vm236, %v4008, 0.0
      %v4068 = vadd.f32 %v4066, %v4067
      %v4069 = vsel %vm236, %v4009, 0.0
      %v4070 = vadd.f32 %v4068, %v4069
      %v4071 = vsel %vm236, %v4010, 0.0
      %v4072 = vadd.f32 %v4070, %v4071
      %v4073 = vsel %vm236, %v4011, 0.0
      %v4074 = vadd.f32 %v4072, %v4073
      %v4075 = vrot.slane %v4074, 4
      %v4076 = vadd.f32 %v4074, %v4075
      %v4077 = vrot.slane %v4076, 2
      %v4078 = vadd.f32 %v4076, %v4077
      %v4079 = vrot.slane %v4078, 1
      %v4080 = vadd.f32 %v4078, %v4079
      %vm4081 = vcmask 1040384
      %v4082 = vsel %vm4081, %v3979, %v4080
      %4083 = vst.msk [vmem:[%s235] sm:$0x3] %vm239, %v4082
      %4084 = vst.msk [vmem:[%s231] sm:$0xff] %vm236, %v3879
      %4085 = vst.msk [vmem:[%s231 + $0x8] sm:$0xff] %vm236, %v3880
      %4086 = vst.msk [vmem:[%s231 + $0x10] sm:$0xff] %vm236, %v3881
      %4087 = vst.msk [vmem:[%s231 + $0x18] sm:$0xff] %vm236, %v3882
      %4088 = vst.msk [vmem:[%s231 + $0x20] sm:$0xff] %vm236, %v3883
      %4089 = vst.msk [vmem:[%s231 + $0x28] sm:$0xff] %vm236, %v3884
      %4090 = vst.msk [vmem:[%s231 + $0x30] sm:$0xff] %vm236, %v3885
      %4091 = vst.msk [vmem:[%s231 + $0x38] sm:$0xff] %vm236, %v3886
      %4092 = vst.msk [vmem:[%s231 + $0x40] sm:$0xff] %vm236, %v3887
      %4093 = vst.msk [vmem:[%s231 + $0x48] sm:$0xff] %vm236, %v3888
      %4094 = vst.msk [vmem:[%s231 + $0x50] sm:$0xff] %vm236, %v3889
      %4095 = vst.msk [vmem:[%s231 + $0x58] sm:$0xff] %vm236, %v3890
      %4096 = vst.msk [vmem:[%s231 + $0x60] sm:$0xff] %vm236, %v3891
      %4097 = vst.msk [vmem:[%s231 + $0x68] sm:$0xff] %vm236, %v3892
      %4098 = vst.msk [vmem:[%s231 + $0x70] sm:$0xff] %vm236, %v3893
      %4099 = vst.msk [vmem:[%s231 + $0x78] sm:$0xff] %vm236, %v3894
      %4100 = vst.msk [vmem:[%s231 + $0x80] sm:$0xff] %vm236, %v3895
      %4101 = vst.msk [vmem:[%s231 + $0x88] sm:$0xff] %vm236, %v3896
      %4102 = vst.msk [vmem:[%s231 + $0x90] sm:$0xff] %vm236, %v3897
      %4103 = vst.msk [vmem:[%s231 + $0x98] sm:$0xff] %vm236, %v3898
      %4104 = vst.msk [vmem:[%s231 + $0xa0] sm:$0xff] %vm236, %v3899
      %4105 = vst.msk [vmem:[%s231 + $0xa8] sm:$0xff] %vm236, %v3900
      %4106 = vst.msk [vmem:[%s231 + $0xb0] sm:$0xff] %vm236, %v3901
      %4107 = vst.msk [vmem:[%s231 + $0xb8] sm:$0xff] %vm236, %v3902
      %4108 = vst.msk [vmem:[%s231 + $0xc0] sm:$0xff] %vm236, %v3903
      %4109 = vst.msk [vmem:[%s231 + $0xc8] sm:$0xff] %vm236, %v3904
      %4110 = vst.msk [vmem:[%s231 + $0xd0] sm:$0xff] %vm236, %v3905
      %4111 = vst.msk [vmem:[%s231 + $0xd8] sm:$0xff] %vm236, %v3906
      %4112 = vst.msk [vmem:[%s231 + $0xe0] sm:$0xff] %vm236, %v3907
      %4113 = vst.msk [vmem:[%s231 + $0xe8] sm:$0xff] %vm236, %v3908
      %4114 = vst.msk [vmem:[%s231 + $0xf0] sm:$0xff] %vm236, %v3909
      %4115 = vst.msk [vmem:[%s231 + $0xf8] sm:$0xff] %vm236, %v3910
      %p4116 = scmp.lt.s32.totalorder %s17, 1
      %s4117 = scalar_select %p4116, %s17, 1
      %s4118 = smul.addr %s4117, 32
      %s4119 = smul.addr %s4118, 8
      %s4120 = scalar_lea.vmem %s4, %s4119
      %p4121 = scmp.lt.s32.totalorder %s17, 1
      %s4122 = scalar_select %p4121, %s17, 1
      %s4123 = smul.addr %s4122, 2
      %s4124 = scalar_lea.vmem %s5, %s4123
      // Predicated region
      $region37: #{up_layer_forward.4} parent=35 // pred_check
        %p4125 = pneg %p124
      $region38: #{up_layer_forward.4} parent=35 // pred_check_branch
        %4127 = sbr.rel (%p4125) target = $region40
      $region39: #{up_layer_forward.4} parent=35 // pred_region
        _
      $region40: #{up_layer_forward.4} parent=35 // pred_fallthru
        _
      // Predicated region
      $region41: #{up_layer_forward.4} parent=35 // pred_check
        %p4128 = pneg %p150
      $region42: #{up_layer_forward.4} parent=35 // pred_check_branch
        %4130 = sbr.rel (%p4128) target = $region44
      $region43: #{up_layer_forward.4} parent=35 // pred_region
        _
      $region44: #{up_layer_forward.4} parent=35 // pred_fallthru
        _
    $region36: #{up_layer_forward.4} parent=5 // pred_fallthru
      _
    %p4131 = scmp.le.s32.totalorder 2, %s12
    // Predicated region
    $region45: #{up_layer_forward.4} parent=5 // pred_check
      %p4132 = pneg %p4131
    $region46: #{up_layer_forward.4} parent=5 // pred_check_branch
      %4134 = sbr.rel (%p4132) target = $region48
    $region47: #{up_layer_forward.4} parent=5 // pred_region
      %s4135 = ssub.s32 %s12, 2
      // Predicated region
      $region49: #{up_layer_forward.4} parent=47 // pred_check
        %p4136 = pneg %p130
      $region50: #{up_layer_forward.4} parent=47 // pred_check_branch
        %4138 = sbr.rel (%p4136) target = $region52
      $region51: #{up_layer_forward.4} parent=47 // pred_region
        %p4139 = scmp.lt.s32.totalorder %s18, 1
        %s4140 = scalar_select %p4139, %s18, 1
        %s4141 = smul.addr %s4140, 32
        %s4142 = smul.addr %s4141, 8
        %s4143 = scalar_lea.vmem %s4, %s4142
      $region52: #{up_layer_forward.4} parent=47 // pred_fallthru
        _
      // Predicated region
      $region53: #{up_layer_forward.4} parent=47 // pred_check
        %p4144 = pneg %p156
      $region54: #{up_layer_forward.4} parent=47 // pred_check_branch
        %4146 = sbr.rel (%p4144) target = $region56
      $region55: #{up_layer_forward.4} parent=47 // pred_region
        %p4147 = scmp.lt.s32.totalorder %s18, 1
        %s4148 = scalar_select %p4147, %s18, 1
        %s4149 = smul.addr %s4148, 2
        %s4150 = scalar_lea.vmem %s5, %s4149
      $region56: #{up_layer_forward.4} parent=47 // pred_fallthru
        _
    $region48: #{up_layer_forward.4} parent=5 // pred_fallthru
      _
  $region6: #{up_layer_forward.4} parent=0 // loop_footer
    %s16 = sadd.s32 1, %s12
  $region7: #{up_layer_forward.4} parent=0 // loop_footer_branch
    %11 = sbr.rel target = $region3
  $region8: #{up_layer_forward.4} parent=0 // loop_exit
    _

// kernel: up_layer_forward.3
$region0: #{up_layer_forward.3}
  #allocation0 [shape = 'u32[]', space=smem, size = 0x4, offset = 0x4, fixed_abs, tag = 'smem constant byte address 0x4 - core index']
  #allocation1 [shape = 'u32[144,128]{1,0:T(1,128)}', space=vmem, size = 0x12000, scoped, tag = 'internal scratch']
  #allocation2 [shape = 'f32[18,18,4]{2,1,0:T(8,128)}', space=vmem, size = 0x36000, scoped, tag = 'scratch operand']
  %s0 = inlined_call_operand.vmem [shape: f32[2,16,16,4], index: 0, kind: input, shape index: {}]
  %s1 = inlined_call_operand.vmem [shape: f32[2,4], index: 1, kind: input, shape index: {}]
  %s2 = inlined_call_operand.vmem [shape: f32[3,3,4,8], index: 2, kind: input, shape index: {}]
  %s3 = inlined_call_operand.vmem [shape: f32[1,8], index: 3, kind: input, shape index: {}]
  %s4 = inlined_call_operand.vmem [shape: f32[2,16,16,8], index: 4, kind: output, shape index: {0}]
  %s5 = inlined_call_operand.vmem [shape: f32[2,2,8], index: 5, kind: output, shape index: {1}]
  %6 = xla_tuple %s4, %s5
  %s7 = sld [smem:[#allocation0]]
  $region57: #{up_layer_forward.3} parent=0
    _
  %s9 = ssub.s32 1, %s7
  %s10 = scalar_select 0, %s9, %s7
  loop: start=0, step=1, limit=4
  $region2: #{up_layer_forward.3} parent=0 // loop_pre_header
    _
  $region3: #{up_layer_forward.3} parent=0 // loop_header
    %s12 = sphi 0, %s16
    %p13 = scmp.ge.s32.totalorder %s12, 4
    %s22 = sphi 0, %s24
    %s25 = sphi 0, %s22
    %s26 = sphi 0, %s25
    %s42 = sphi 0, %s26
    %s46 = sphi 0, %s46
    %s48 = sphi 0, %s46
    %s49 = sphi 0, %s48
    %s63 = sphi 0, %s49
    %s67 = sphi 0, %s67
    %s69 = sphi 0, %s67
    %s70 = sphi 0, %s69
    %s84 = sphi 0, %s70
    %s88 = sphi 0, %s88
    %s90 = sphi 0, %s88
    %s91 = sphi 0, %s90
    %s105 = sphi 0, %s91
    %s111 = sphi 0, %s113
    %s114 = sphi 0, %s111
    %s115 = sphi 0, %s114
    %s131 = sphi 0, %s115
    %s137 = sphi 0, %s139
    %s140 = sphi 0, %s137
    %s141 = sphi 0, %s140
    %s157 = sphi 0, %s141
  $region4: #{up_layer_forward.3} parent=0 // loop_header_branch
    %15 = sbr.rel (%p13) target = $region8
  $region5: #{up_layer_forward.3} parent=0 // loop_body
    %s17 = ssub.s32 %s12, 1
    %s18 = ssub.s32 %s12, 2
    %s19 = sadd.s32 %s12, 1
    %s20 = ssub.s32 %s12, %s19
    %p21 = scmp.eq.s32.totalorder %s20, 0
    %s23 = sadd.s32 %s22, 1
    %s24 = scalar_select %p21, %s22, %s23
    %p27 = pneg %p21
    %p28 = scmp.eq.s32.totalorder %s12, 1
    %p29 = por %p27, %p28
    %p30 = scmp.ne.s32.totalorder %s22, %s25
    %p31 = scmp.eq.s32.totalorder %s12, 0
    %p32 = por %p30, %p31
    %p33 = scmp.ne.s32.totalorder %s22, %s25
    %p34 = scmp.eq.s32.totalorder %s17, 1
    %p35 = por %p33, %p34
    %p36 = scmp.ne.s32.totalorder %s25, %s26
    %p37 = scmp.eq.s32.totalorder %s17, 0
    %p38 = por %p36, %p37
    %p39 = scmp.ne.s32.totalorder %s25, %s26
    %p40 = scmp.eq.s32.totalorder %s18, 1
    %p41 = por %p39, %p40
    %p43 = scmp.ne.s32.totalorder %s26, %s42
    %p44 = scmp.eq.s32.totalorder %s18, 0
    %p45 = por %p43, %p44
    %s47 = sadd.s32 %s46, 1
    %p50 = scmp.eq.s32.totalorder %s12, 1
    %p51 = scmp.ne.s32.totalorder %s46, %s48
    %p52 = scmp.eq.s32.totalorder %s12, 0
    %p53 = por %p51, %p52
    %p54 = scmp.ne.s32.totalorder %s46, %s48
    %p55 = scmp.eq.s32.totalorder %s17, 1
    %p56 = por %p54, %p55
    %p57 = scmp.ne.s32.totalorder %s48, %s49
    %p58 = scmp.eq.s32.totalorder %s17, 0
    %p59 = por %p57, %p58
    %p60 = scmp.ne.s32.totalorder %s48, %s49
    %p61 = scmp.eq.s32.totalorder %s18, 1
    %p62 = por %p60, %p61
    %p64 = scmp.ne.s32.totalorder %s49, %s63
    %p65 = scmp.eq.s32.totalorder %s18, 0
    %p66 = por %p64, %p65
    %s68 = sadd.s32 %s67, 1
    %p71 = scmp.eq.s32.totalorder %s12, 1
    %p72 = scmp.ne.s32.totalorder %s67, %s69
    %p73 = scmp.eq.s32.totalorder %s12, 0
    %p74 = por %p72, %p73
    %p75 = scmp.ne.s32.totalorder %s67, %s69
    %p76 = scmp.eq.s32.totalorder %s17, 1
    %p77 = por %p75, %p76
    %p78 = scmp.ne.s32.totalorder %s69, %s70
    %p79 = scmp.eq.s32.totalorder %s17, 0
    %p80 = por %p78, %p79
    %p81 = scmp.ne.s32.totalorder %s69, %s70
    %p82 = scmp.eq.s32.totalorder %s18, 1
    %p83 = por %p81, %p82
    %p85 = scmp.ne.s32.totalorder %s70, %s84
    %p86 = scmp.eq.s32.totalorder %s18, 0
    %p87 = por %p85, %p86
    %s89 = sadd.s32 %s88, 1
    %p92 = scmp.eq.s32.totalorder %s12, 1
    %p93 = scmp.ne.s32.totalorder %s88, %s90
    %p94 = scmp.eq.s32.totalorder %s12, 0
    %p95 = por %p93, %p94
    %p96 = scmp.ne.s32.totalorder %s88, %s90
    %p97 = scmp.eq.s32.totalorder %s17, 1
    %p98 = por %p96, %p97
    %p99 = scmp.ne.s32.totalorder %s90, %s91
    %p100 = scmp.eq.s32.totalorder %s17, 0
    %p101 = por %p99, %p100
    %p102 = scmp.ne.s32.totalorder %s90, %s91
    %p103 = scmp.eq.s32.totalorder %s18, 1
    %p104 = por %p102, %p103
    %p106 = scmp.ne.s32.totalorder %s91, %s105
    %p107 = scmp.eq.s32.totalorder %s18, 0
    %p108 = por %p106, %p107
    %s109 = ssub.s32 %s12, %s19
    %p110 = scmp.eq.s32.totalorder %s109, 0
    %s112 = sadd.s32 %s111, 1
    %s113 = scalar_select %p110, %s111, %s112
    %p116 = pneg %p110
    %p117 = scmp.eq.s32.totalorder %s12, 1
    %p118 = por %p116, %p117
    %p119 = scmp.ne.s32.totalorder %s111, %s114
    %p120 = scmp.eq.s32.totalorder %s12, 0
    %p121 = por %p119, %p120
    %p122 = scmp.ne.s32.totalorder %s111, %s114
    %p123 = scmp.eq.s32.totalorder %s17, 1
    %p124 = por %p122, %p123
    %p125 = scmp.ne.s32.totalorder %s114, %s115
    %p126 = scmp.eq.s32.totalorder %s17, 0
    %p127 = por %p125, %p126
    %p128 = scmp.ne.s32.totalorder %s114, %s115
    %p129 = scmp.eq.s32.totalorder %s18, 1
    %p130 = por %p128, %p129
    %p132 = scmp.ne.s32.totalorder %s115, %s131
    %p133 = scmp.eq.s32.totalorder %s18, 0
    %p134 = por %p132, %p133
    %s135 = ssub.s32 %s12, %s19
    %p136 = scmp.eq.s32.totalorder %s135, 0
    %s138 = sadd.s32 %s137, 1
    %s139 = scalar_select %p136, %s137, %s138
    %p142 = pneg %p136
    %p143 = scmp.eq.s32.totalorder %s12, 1
    %p144 = por %p142, %p143
    %p145 = scmp.ne.s32.totalorder %s137, %s140
    %p146 = scmp.eq.s32.totalorder %s12, 0
    %p147 = por %p145, %p146
    %p148 = scmp.ne.s32.totalorder %s137, %s140
    %p149 = scmp.eq.s32.totalorder %s17, 1
    %p150 = por %p148, %p149
    %p151 = scmp.ne.s32.totalorder %s140, %s141
    %p152 = scmp.eq.s32.totalorder %s17, 0
    %p153 = por %p151, %p152
    %p154 = scmp.ne.s32.totalorder %s140, %s141
    %p155 = scmp.eq.s32.totalorder %s18, 1
    %p156 = por %p154, %p155
    %p158 = scmp.ne.s32.totalorder %s141, %s157
    %p159 = scmp.eq.s32.totalorder %s18, 0
    %p160 = por %p158, %p159
    %p161 = scmp.le.s32.totalorder 1, %s12
    %p162 = scmp.lt.s32.totalorder %s12, 3
    %p163 = pnand %p161, %p162
    %p164 = pneg %p163
    // Predicated region
    $region9: #{up_layer_forward.3} parent=5 // pred_check
      _
    $region10: #{up_layer_forward.3} parent=5 // pred_check_branch
      %166 = sbr.rel (%p163) target = $region12
    $region11: #{up_layer_forward.3} parent=5 // pred_region
      %s167 = ssub.s32 %s12, 1
      // Predicated region
      $region13: #{up_layer_forward.3} parent=11 // pred_check
        %p168 = pneg %p59
      $region14: #{up_layer_forward.3} parent=11 // pred_check_branch
        %170 = sbr.rel (%p168) target = $region16
      $region15: #{up_layer_forward.3} parent=11 // pred_region
        _
      $region16: #{up_layer_forward.3} parent=11 // pred_fallthru
        _
      // Predicated region
      $region17: #{up_layer_forward.3} parent=11 // pred_check
        %p171 = pneg %p80
      $region18: #{up_layer_forward.3} parent=11 // pred_check_branch
        %173 = sbr.rel (%p171) target = $region20
      $region19: #{up_layer_forward.3} parent=11 // pred_region
        _
      $region20: #{up_layer_forward.3} parent=11 // pred_fallthru
        _
      // Predicated region
      $region21: #{up_layer_forward.3} parent=11 // pred_check
        %p174 = pneg %p101
      $region22: #{up_layer_forward.3} parent=11 // pred_check_branch
        %176 = sbr.rel (%p174) target = $region24
      $region23: #{up_layer_forward.3} parent=11 // pred_region
        _
      $region24: #{up_layer_forward.3} parent=11 // pred_fallthru
        _
    $region12: #{up_layer_forward.3} parent=5 // pred_fallthru
      _
    %p177 = scmp.lt.s32.totalorder %s12, 2
    // Predicated region
    $region25: #{up_layer_forward.3} parent=5 // pred_check
      %p178 = pneg %p177
    $region26: #{up_layer_forward.3} parent=5 // pred_check_branch
      %180 = sbr.rel (%p178) target = $region28
    $region27: #{up_layer_forward.3} parent=5 // pred_region
      // Predicated region
      $region29: #{up_layer_forward.3} parent=27 // pred_check
        %p181 = pneg %p32
      $region30: #{up_layer_forward.3} parent=27 // pred_check_branch
        %183 = sbr.rel (%p181) target = $region32
      $region31: #{up_layer_forward.3} parent=27 // pred_region
        %p184 = scmp.lt.s32.totalorder %s12, 1
        %s185 = scalar_select %p184, %s12, 1
        %s186 = smul.addr %s185, 32
        %s187 = smul.addr %s186, 8
        %s188 = scalar_lea.vmem %s0, %s187
      $region32: #{up_layer_forward.3} parent=27 // pred_fallthru
        _
    $region28: #{up_layer_forward.3} parent=5 // pred_fallthru
      _
    %p189 = scmp.le.s32.totalorder 1, %s12
    %p190 = scmp.lt.s32.totalorder %s12, 3
    %p191 = pnand %p189, %p190
    %p192 = pneg %p191
    // Predicated region
    $region33: #{up_layer_forward.3} parent=5 // pred_check
      _
    $region34: #{up_layer_forward.3} parent=5 // pred_check_branch
      %194 = sbr.rel (%p191) target = $region36
    $region35: #{up_layer_forward.3} parent=5 // pred_region
      %s195 = ssub.s32 %s12, 1
      %p196 = scmp.lt.s32.totalorder %s17, 1
      %s197 = scalar_select %p196, %s17, 1
      %s198 = smul.addr %s197, 32
      %s199 = smul.addr %s198, 8
      %s200 = scalar_lea.vmem %s0, %s199
      %p201 = pneg %p38
      %p202 = pneg %p35
      %p203 = pneg %p59
      %p204 = pneg %p56
      %p205 = pneg %p80
      %p206 = pneg %p77
      %p207 = pneg %p101
      %p208 = pneg %p98
      %p209 = pneg %p127
      %p210 = pneg %p124
      %p211 = scmp.lt.s32.totalorder %s17, 1
      %s212 = scalar_select %p211, %s17, 1
      %s213 = smul.addr %s212, 32
      %s214 = smul.addr %s213, 8
      %s215 = scalar_lea.vmem %s4, %s214
      %p216 = pneg %p153
      %p217 = pneg %p150
      %p218 = scmp.lt.s32.totalorder %s17, 1
      %s219 = scalar_select %p218, %s17, 1
      %s220 = smul.addr %s219, 2
      %s221 = scalar_lea.vmem %s5, %s220
      %p222 = scmp.lt.s32.totalorder %s17, 1
      %s223 = scalar_select %p222, %s17, 1
      %s224 = smul.addr %s223, 32
      %s225 = smul.addr %s224, 8
      %s226 = scalar_lea.vmem %s0, %s225
      %p227 = scmp.lt.s32.totalorder %s17, 1
      %s228 = scalar_select %p227, %s17, 1
      %s229 = smul.addr %s228, 32
      %s230 = smul.addr %s229, 8
      %s231 = scalar_lea.vmem %s4, %s230
      %p232 = scmp.lt.s32.totalorder %s17, 1
      %s233 = scalar_select %p232, %s17, 1
      %s234 = smul.addr %s233, 2
      %s235 = scalar_lea.vmem %s5, %s234
      %vm236 = vcmask 31744
      %237 = vst.msk [vmem:[#allocation2] sm:$0xff] %vm236, 0.0
      %238 = vst.msk [vmem:[#allocation2 + $0x8] sm:$0xff] %vm236, 0.0
      %vm239 = vcmask 25600
      %240 = vst.msk [vmem:[#allocation2 + $0x10] sm:$0x3] %vm239, 0.0
      %s241 = scalar_lea.vmem [#allocation2], 408
      %242 = vst.msk [vmem:[%s241] sm:$0xff] %vm236, 0.0
      %243 = vst.msk [vmem:[%s241 + $0x8] sm:$0xff] %vm236, 0.0
      %244 = vst.msk [vmem:[%s241 + $0x10] sm:$0x3] %vm239, 0.0
      %vm245 = vcmask 24576
      %246 = vst.msk [vmem:[#allocation2] sm:$0x1] %vm245, 0.0
      %247 = vst.msk [vmem:[#allocation2 + $0x18] sm:$0x1] %vm245, 0.0
      %248 = vst.msk [vmem:[#allocation2 + $0x30] sm:$0x1] %vm245, 0.0
      %249 = vst.msk [vmem:[#allocation2 + $0x48] sm:$0x1] %vm245, 0.0
      %250 = vst.msk [vmem:[#allocation2 + $0x60] sm:$0x1] %vm245, 0.0
      %251 = vst.msk [vmem:[#allocation2 + $0x78] sm:$0x1] %vm245, 0.0
      %252 = vst.msk [vmem:[#allocation2 + $0x90] sm:$0x1] %vm245, 0.0
      %253 = vst.msk [vmem:[#allocation2 + $0xa8] sm:$0x1] %vm245, 0.0
      %254 = vst.msk [vmem:[#allocation2 + $0xc0] sm:$0x1] %vm245, 0.0
      %255 = vst.msk [vmem:[#allocation2 + $0xd8] sm:$0x1] %vm245, 0.0
      %256 = vst.msk [vmem:[#allocation2 + $0xf0] sm:$0x1] %vm245, 0.0
      %257 = vst.msk [vmem:[#allocation2 + $0x108] sm:$0x1] %vm245, 0.0
      %258 = vst.msk [vmem:[#allocation2 + $0x120] sm:$0x1] %vm245, 0.0
      %259 = vst.msk [vmem:[#allocation2 + $0x138] sm:$0x1] %vm245, 0.0
      %260 = vst.msk [vmem:[#allocation2 + $0x150] sm:$0x1] %vm245, 0.0
      %261 = vst.msk [vmem:[#allocation2 + $0x168] sm:$0x1] %vm245, 0.0
      %262 = vst.msk [vmem:[#allocation2 + $0x180] sm:$0x1] %vm245, 0.0
      %263 = vst.msk [vmem:[#allocation2 + $0x198] sm:$0x1] %vm245, 0.0
      %264 = vst.msk [vmem:[#allocation2 + $0x11] sm:$0x1] %vm245, 0.0
      %265 = vst.msk [vmem:[#allocation2 + $0x29] sm:$0x1] %vm245, 0.0
      %266 = vst.msk [vmem:[#allocation2 + $0x41] sm:$0x1] %vm245, 0.0
      %267 = vst.msk [vmem:[#allocation2 + $0x59] sm:$0x1] %vm245, 0.0
      %268 = vst.msk [vmem:[#allocation2 + $0x71] sm:$0x1] %vm245, 0.0
      %269 = vst.msk [vmem:[#allocation2 + $0x89] sm:$0x1] %vm245, 0.0
      %270 = vst.msk [vmem:[#allocation2 + $0xa1] sm:$0x1] %vm245, 0.0
      %271 = vst.msk [vmem:[#allocation2 + $0xb9] sm:$0x1] %vm245, 0.0
      %272 = vst.msk [vmem:[#allocation2 + $0xd1] sm:$0x1] %vm245, 0.0
      %273 = vst.msk [vmem:[#allocation2 + $0xe9] sm:$0x1] %vm245, 0.0
      %274 = vst.msk [vmem:[#allocation2 + $0x101] sm:$0x1] %vm245, 0.0
      %275 = vst.msk [vmem:[#allocation2 + $0x119] sm:$0x1] %vm245, 0.0
      %276 = vst.msk [vmem:[#allocation2 + $0x131] sm:$0x1] %vm245, 0.0
      %277 = vst.msk [vmem:[#allocation2 + $0x149] sm:$0x1] %vm245, 0.0
      %278 = vst.msk [vmem:[#allocation2 + $0x161] sm:$0x1] %vm245, 0.0
      %279 = vst.msk [vmem:[#allocation2 + $0x179] sm:$0x1] %vm245, 0.0
      %280 = vst.msk [vmem:[#allocation2 + $0x191] sm:$0x1] %vm245, 0.0
      %281 = vst.msk [vmem:[#allocation2 + $0x1a9] sm:$0x1] %vm245, 0.0
      %v282 = vld [vmem:[%s226] sm:$0xff]
      %v283 = vld [vmem:[%s226 + $0x8] sm:$0xff]
      %v284 = vld [vmem:[%s226 + $0x10] sm:$0xff]
      %v285 = vld [vmem:[%s226 + $0x18] sm:$0xff]
      %v286 = vld [vmem:[%s226 + $0x20] sm:$0xff]
      %v287 = vld [vmem:[%s226 + $0x28] sm:$0xff]
      %v288 = vld [vmem:[%s226 + $0x30] sm:$0xff]
      %v289 = vld [vmem:[%s226 + $0x38] sm:$0xff]
      %v290 = vld [vmem:[%s226 + $0x40] sm:$0xff]
      %v291 = vld [vmem:[%s226 + $0x48] sm:$0xff]
      %v292 = vld [vmem:[%s226 + $0x50] sm:$0xff]
      %v293 = vld [vmem:[%s226 + $0x58] sm:$0xff]
      %v294 = vld [vmem:[%s226 + $0x60] sm:$0xff]
      %v295 = vld [vmem:[%s226 + $0x68] sm:$0xff]
      %v296 = vld [vmem:[%s226 + $0x70] sm:$0xff]
      %v297 = vld [vmem:[%s226 + $0x78] sm:$0xff]
      %v298 = vld [vmem:[%s226 + $0x80] sm:$0xff]
      %v299 = vld [vmem:[%s226 + $0x88] sm:$0xff]
      %v300 = vld [vmem:[%s226 + $0x90] sm:$0xff]
      %v301 = vld [vmem:[%s226 + $0x98] sm:$0xff]
      %v302 = vld [vmem:[%s226 + $0xa0] sm:$0xff]
      %v303 = vld [vmem:[%s226 + $0xa8] sm:$0xff]
      %v304 = vld [vmem:[%s226 + $0xb0] sm:$0xff]
      %v305 = vld [vmem:[%s226 + $0xb8] sm:$0xff]
      %v306 = vld [vmem:[%s226 + $0xc0] sm:$0xff]
      %v307 = vld [vmem:[%s226 + $0xc8] sm:$0xff]
      %v308 = vld [vmem:[%s226 + $0xd0] sm:$0xff]
      %v309 = vld [vmem:[%s226 + $0xd8] sm:$0xff]
      %v310 = vld [vmem:[%s226 + $0xe0] sm:$0xff]
      %v311 = vld [vmem:[%s226 + $0xe8] sm:$0xff]
      %v312 = vld [vmem:[%s226 + $0xf0] sm:$0xff]
      %v313 = vld [vmem:[%s226 + $0xf8] sm:$0xff]
      %v314 = vld [vmem:[%s1] sm:$0x1]
      %v315 = vlaneseq
      %v316 = vshrl.u32 %v315, 7
      %v317 = vsub.s32 0, %v316
      %v318 = vrot.slane %v314, %v317
      %v319 = vmul.f32 %v282, %v318
      %v320 = vmul.f32 %v283, %v318
      %v321 = vmul.f32 %v284, %v318
      %v322 = vmul.f32 %v285, %v318
      %v323 = vmul.f32 %v286, %v318
      %v324 = vmul.f32 %v287, %v318
      %v325 = vmul.f32 %v288, %v318
      %v326 = vmul.f32 %v289, %v318
      %v327 = vmul.f32 %v290, %v318
      %v328 = vmul.f32 %v291, %v318
      %v329 = vmul.f32 %v292, %v318
      %v330 = vmul.f32 %v293, %v318
      %v331 = vmul.f32 %v294, %v318
      %v332 = vmul.f32 %v295, %v318
      %v333 = vmul.f32 %v296, %v318
      %v334 = vmul.f32 %v297, %v318
      %v335 = vmul.f32 %v298, %v318
      %v336 = vmul.f32 %v299, %v318
      %v337 = vmul.f32 %v300, %v318
      %v338 = vmul.f32 %v301, %v318
      %v339 = vmul.f32 %v302, %v318
      %v340 = vmul.f32 %v303, %v318
      %v341 = vmul.f32 %v304, %v318
      %v342 = vmul.f32 %v305, %v318
      %v343 = vmul.f32 %v306, %v318
      %v344 = vmul.f32 %v307, %v318
      %v345 = vmul.f32 %v308, %v318
      %v346 = vmul.f32 %v309, %v318
      %v347 = vmul.f32 %v310, %v318
      %v348 = vmul.f32 %v311, %v318
      %v349 = vmul.f32 %v312, %v318
      %v350 = vmul.f32 %v313, %v318
      %v351 = vld [vmem:[%s1 + $0x1] sm:$0x1]
      %v352 = vlaneseq
      %v353 = vshrl.u32 %v352, 7
      %v354 = vsub.s32 0, %v353
      %v355 = vrot.slane %v351, %v354
      %v356 = vadd.f32 %v319, %v355
      %v357 = vadd.f32 %v320, %v355
      %v358 = vadd.f32 %v321, %v355
      %v359 = vadd.f32 %v322, %v355
      %v360 = vadd.f32 %v323, %v355
      %v361 = vadd.f32 %v324, %v355
      %v362 = vadd.f32 %v325, %v355
      %v363 = vadd.f32 %v326, %v355
      %v364 = vadd.f32 %v327, %v355
      %v365 = vadd.f32 %v328, %v355
      %v366 = vadd.f32 %v329, %v355
      %v367 = vadd.f32 %v330, %v355
      %v368 = vadd.f32 %v331, %v355
      %v369 = vadd.f32 %v332, %v355
      %v370 = vadd.f32 %v333, %v355
      %v371 = vadd.f32 %v334, %v355
      %v372 = vadd.f32 %v335, %v355
      %v373 = vadd.f32 %v336, %v355
      %v374 = vadd.f32 %v337, %v355
      %v375 = vadd.f32 %v338, %v355
      %v376 = vadd.f32 %v339, %v355
      %v377 = vadd.f32 %v340, %v355
      %v378 = vadd.f32 %v341, %v355
      %v379 = vadd.f32 %v342, %v355
      %v380 = vadd.f32 %v343, %v355
      %v381 = vadd.f32 %v344, %v355
      %v382 = vadd.f32 %v345, %v355
      %v383 = vadd.f32 %v346, %v355
      %v384 = vadd.f32 %v347, %v355
      %v385 = vadd.f32 %v348, %v355
      %v386 = vadd.f32 %v349, %v355
      %v387 = vadd.f32 %v350, %v355
      %s388 = scalar_lea.vmem [#allocation2], 24
      %389 = vst.msk [vmem:[%s388 + $0x1] sm:$0xff] %vm236, %v356
      %390 = vst.msk [vmem:[%s388 + $0x9] sm:$0xff] %vm236, %v357
      %391 = vst.msk [vmem:[%s388 + $0x19] sm:$0xff] %vm236, %v358
      %392 = vst.msk [vmem:[%s388 + $0x21] sm:$0xff] %vm236, %v359
      %393 = vst.msk [vmem:[%s388 + $0x31] sm:$0xff] %vm236, %v360
      %394 = vst.msk [vmem:[%s388 + $0x39] sm:$0xff] %vm236, %v361
      %395 = vst.msk [vmem:[%s388 + $0x49] sm:$0xff] %vm236, %v362
      %396 = vst.msk [vmem:[%s388 + $0x51] sm:$0xff] %vm236, %v363
      %397 = vst.msk [vmem:[%s388 + $0x61] sm:$0xff] %vm236, %v364
      %398 = vst.msk [vmem:[%s388 + $0x69] sm:$0xff] %vm236, %v365
      %399 = vst.msk [vmem:[%s388 + $0x79] sm:$0xff] %vm236, %v366
      %400 = vst.msk [vmem:[%s388 + $0x81] sm:$0xff] %vm236, %v367
      %401 = vst.msk [vmem:[%s388 + $0x91] sm:$0xff] %vm236, %v368
      %402 = vst.msk [vmem:[%s388 + $0x99] sm:$0xff] %vm236, %v369
      %403 = vst.msk [vmem:[%s388 + $0xa9] sm:$0xff] %vm236, %v370
      %404 = vst.msk [vmem:[%s388 + $0xb1] sm:$0xff] %vm236, %v371
      %405 = vst.msk [vmem:[%s388 + $0xc1] sm:$0xff] %vm236, %v372
      %406 = vst.msk [vmem:[%s388 + $0xc9] sm:$0xff] %vm236, %v373
      %407 = vst.msk [vmem:[%s388 + $0xd9] sm:$0xff] %vm236, %v374
      %408 = vst.msk [vmem:[%s388 + $0xe1] sm:$0xff] %vm236, %v375
      %409 = vst.msk [vmem:[%s388 + $0xf1] sm:$0xff] %vm236, %v376
      %410 = vst.msk [vmem:[%s388 + $0xf9] sm:$0xff] %vm236, %v377
      %411 = vst.msk [vmem:[%s388 + $0x109] sm:$0xff] %vm236, %v378
      %412 = vst.msk [vmem:[%s388 + $0x111] sm:$0xff] %vm236, %v379
      %413 = vst.msk [vmem:[%s388 + $0x121] sm:$0xff] %vm236, %v380
      %414 = vst.msk [vmem:[%s388 + $0x129] sm:$0xff] %vm236, %v381
      %415 = vst.msk [vmem:[%s388 + $0x139] sm:$0xff] %vm236, %v382
      %416 = vst.msk [vmem:[%s388 + $0x141] sm:$0xff] %vm236, %v383
      %417 = vst.msk [vmem:[%s388 + $0x151] sm:$0xff] %vm236, %v384
      %418 = vst.msk [vmem:[%s388 + $0x159] sm:$0xff] %vm236, %v385
      %419 = vst.msk [vmem:[%s388 + $0x169] sm:$0xff] %vm236, %v386
      %420 = vst.msk [vmem:[%s388 + $0x171] sm:$0xff] %vm236, %v387
      %v421 = vld [vmem:[#allocation2] sm:$0xff]
      %v422 = vld [vmem:[#allocation2 + $0x8] sm:$0xff]
      %v423 = vld [vmem:[#allocation2 + $0x18] sm:$0xff]
      %v424 = vld [vmem:[#allocation2 + $0x20] sm:$0xff]
      %v425 = vld [vmem:[#allocation2 + $0x30] sm:$0xff]
      %v426 = vld [vmem:[#allocation2 + $0x38] sm:$0xff]
      %v427 = vld [vmem:[#allocation2 + $0x48] sm:$0xff]
      %v428 = vld [vmem:[#allocation2 + $0x50] sm:$0xff]
      %v429 = vld [vmem:[#allocation2 + $0x60] sm:$0xff]
      %v430 = vld [vmem:[#allocation2 + $0x68] sm:$0xff]
      %v431 = vld [vmem:[#allocation2 + $0x78] sm:$0xff]
      %v432 = vld [vmem:[#allocation2 + $0x80] sm:$0xff]
      %v433 = vld [vmem:[#allocation2 + $0x90] sm:$0xff]
      %v434 = vld [vmem:[#allocation2 + $0x98] sm:$0xff]
      %v435 = vld [vmem:[#allocation2 + $0xa8] sm:$0xff]
      %v436 = vld [vmem:[#allocation2 + $0xb0] sm:$0xff]
      %v437 = vld [vmem:[#allocation2 + $0xc0] sm:$0xff]
      %v438 = vld [vmem:[#allocation2 + $0xc8] sm:$0xff]
      %v439 = vld [vmem:[#allocation2 + $0xd8] sm:$0xff]
      %v440 = vld [vmem:[#allocation2 + $0xe0] sm:$0xff]
      %v441 = vld [vmem:[#allocation2 + $0xf0] sm:$0xff]
      %v442 = vld [vmem:[#allocation2 + $0xf8] sm:$0xff]
      %v443 = vld [vmem:[#allocation2 + $0x108] sm:$0xff]
      %v444 = vld [vmem:[#allocation2 + $0x110] sm:$0xff]
      %v445 = vld [vmem:[#allocation2 + $0x120] sm:$0xff]
      %v446 = vld [vmem:[#allocation2 + $0x128] sm:$0xff]
      %v447 = vld [vmem:[#allocation2 + $0x138] sm:$0xff]
      %v448 = vld [vmem:[#allocation2 + $0x140] sm:$0xff]
      %v449 = vld [vmem:[#allocation2 + $0x150] sm:$0xff]
      %v450 = vld [vmem:[#allocation2 + $0x158] sm:$0xff]
      %v451 = vld [vmem:[#allocation2 + $0x168] sm:$0xff]
      %v452 = vld [vmem:[#allocation2 + $0x170] sm:$0xff]
      %v453 = vld [vmem:[%s2] sm:$0xf]
      %v454 = vld [vmem:[#allocation2 + $0x1] sm:$0xff]
      %v455 = vld [vmem:[#allocation2 + $0x9] sm:$0xff]
      %v456 = vld [vmem:[#allocation2 + $0x19] sm:$0xff]
      %v457 = vld [vmem:[#allocation2 + $0x21] sm:$0xff]
      %v458 = vld [vmem:[#allocation2 + $0x31] sm:$0xff]
      %v459 = vld [vmem:[#allocation2 + $0x39] sm:$0xff]
      %v460 = vld [vmem:[#allocation2 + $0x49] sm:$0xff]
      %v461 = vld [vmem:[#allocation2 + $0x51] sm:$0xff]
      %v462 = vld [vmem:[#allocation2 + $0x61] sm:$0xff]
      %v463 = vld [vmem:[#allocation2 + $0x69] sm:$0xff]
      %v464 = vld [vmem:[#allocation2 + $0x79] sm:$0xff]
      %v465 = vld [vmem:[#allocation2 + $0x81] sm:$0xff]
      %v466 = vld [vmem:[#allocation2 + $0x91] sm:$0xff]
      %v467 = vld [vmem:[#allocation2 + $0x99] sm:$0xff]
      %v468 = vld [vmem:[#allocation2 + $0xa9] sm:$0xff]
      %v469 = vld [vmem:[#allocation2 + $0xb1] sm:$0xff]
      %v470 = vld [vmem:[#allocation2 + $0xc1] sm:$0xff]
      %v471 = vld [vmem:[#allocation2 + $0xc9] sm:$0xff]
      %v472 = vld [vmem:[#allocation2 + $0xd9] sm:$0xff]
      %v473 = vld [vmem:[#allocation2 + $0xe1] sm:$0xff]
      %v474 = vld [vmem:[#allocation2 + $0xf1] sm:$0xff]
      %v475 = vld [vmem:[#allocation2 + $0xf9] sm:$0xff]
      %v476 = vld [vmem:[#allocation2 + $0x109] sm:$0xff]
      %v477 = vld [vmem:[#allocation2 + $0x111] sm:$0xff]
      %v478 = vld [vmem:[#allocation2 + $0x121] sm:$0xff]
      %v479 = vld [vmem:[#allocation2 + $0x129] sm:$0xff]
      %v480 = vld [vmem:[#allocation2 + $0x139] sm:$0xff]
      %v481 = vld [vmem:[#allocation2 + $0x141] sm:$0xff]
      %v482 = vld [vmem:[#allocation2 + $0x151] sm:$0xff]
      %v483 = vld [vmem:[#allocation2 + $0x159] sm:$0xff]
      %v484 = vld [vmem:[#allocation2 + $0x169] sm:$0xff]
      %v485 = vld [vmem:[#allocation2 + $0x171] sm:$0xff]
      %s486 = scalar_lea.vmem %s2, 4
      %v487 = vld [vmem:[%s486] sm:$0xf]
      %v489 = vsel %vm236, %v454, 0
      %v492 = vsel %vm236, %v455, 0
      %v495 = vsel %vm236, %v456, 0
      %v498 = vsel %vm236, %v457, 0
      %v501 = vsel %vm236, %v458, 0
      %v504 = vsel %vm236, %v459, 0
      %v507 = vsel %vm236, %v460, 0
      %v510 = vsel %vm236, %v461, 0
      %v513 = vsel %vm236, %v462, 0
      %v516 = vsel %vm236, %v463, 0
      %v519 = vsel %vm236, %v464, 0
      %v522 = vsel %vm236, %v465, 0
      %v525 = vsel %vm236, %v466, 0
      %v528 = vsel %vm236, %v467, 0
      %v531 = vsel %vm236, %v468, 0
      %v534 = vsel %vm236, %v469, 0
      %v537 = vsel %vm236, %v470, 0
      %v540 = vsel %vm236, %v471, 0
      %v543 = vsel %vm236, %v472, 0
      %v546 = vsel %vm236, %v473, 0
      %v549 = vsel %vm236, %v474, 0
      %v552 = vsel %vm236, %v475, 0
      %v555 = vsel %vm236, %v476, 0
      %v558 = vsel %vm236, %v477, 0
      %v561 = vsel %vm236, %v478, 0
      %v564 = vsel %vm236, %v479, 0
      %v567 = vsel %vm236, %v480, 0
      %v570 = vsel %vm236, %v481, 0
      %v573 = vsel %vm236, %v482, 0
      %v576 = vsel %vm236, %v483, 0
      %v579 = vsel %vm236, %v484, 0
      %v582 = vsel %vm236, %v485, 0
      %vm584 = vcmask 1043456
      %v586 = vsel %vm584, %v487, 0
      %588 = vmatprep.subr.mxu0 0.0
      %589 = vmatpush1.msra.mxu0 0.0
      %590 = vmatprep.subr.mxu0 0.0
      %591 = vmatpush1.msra.mxu0 0.0
      %592 = vmatprep.subr.mxu0 0.0
      %593 = vmatpush1.msra.mxu0 0.0
      %594 = vmatprep.subr.mxu0 0.0
      %595 = vmatpush1.msra.mxu0 0.0
      %596 = vmatprep.subr.mxu0 0.0
      %597 = vmatpush1.msra.mxu0 0.0
      %598 = vmatprep.subr.mxu0 0.0
      %599 = vmatpush1.msra.mxu0 0.0
      %600 = vmatprep.subr.mxu0 0.0
      %601 = vmatpush1.msra.mxu0 0.0
      %602 = vmatprep.subr.mxu0 0.0
      %603 = vmatpush1.msra.mxu0 0.0
      %604 = vmatprep.subr.mxu0 0.0
      %605 = vmatpush1.msra.mxu0 0.0
      %606 = vmatprep.subr.mxu0 0.0
      %607 = vmatpush1.msra.mxu0 0.0
      %608 = vmatprep.subr.mxu0 0.0
      %609 = vmatpush1.msra.mxu0 0.0
      %610 = vmatprep.subr.mxu0 0.0
      %611 = vmatpush1.msra.mxu0 0.0
      %612 = vmatprep.subr.mxu0 0.0
      %613 = vmatpush1.msra.mxu0 0.0
      %614 = vmatprep.subr.mxu0 0.0
      %615 = vmatpush1.msra.mxu0 0.0
      %616 = vmatprep.subr.mxu0 0.0
      %617 = vmatpush1.msra.mxu0 0.0
      %618 = vmatprep.subr.mxu0 0.0
      %619 = vmatpush1.msra.mxu0 %v586
      %620 = vmatprep.subr.mxu0 0.0
      %621 = vmatpush2.msra.mxu0 0.0
      %622 = vmatprep.subr.mxu0 0.0
      %623 = vmatpush2.msra.mxu0 0.0
      %624 = vmatprep.subr.mxu0 0.0
      %625 = vmatpush2.msra.mxu0 0.0
      %626 = vmatprep.subr.mxu0 0.0
      %627 = vmatpush2.msra.mxu0 0.0
      %628 = vmatprep.subr.mxu0 0.0
      %629 = vmatpush2.msra.mxu0 0.0
      %630 = vmatprep.subr.mxu0 0.0
      %631 = vmatpush2.msra.mxu0 0.0
      %632 = vmatprep.subr.mxu0 0.0
      %633 = vmatpush2.msra.mxu0 0.0
      %634 = vmatprep.subr.mxu0 0.0
      %635 = vmatpush2.msra.mxu0 0.0
      %636 = vmatprep.subr.mxu0 0.0
      %637 = vmatpush2.msra.mxu0 0.0
      %638 = vmatprep.subr.mxu0 0.0
      %639 = vmatpush2.msra.mxu0 0.0
      %640 = vmatprep.subr.mxu0 0.0
      %641 = vmatpush2.msra.mxu0 0.0
      %642 = vmatprep.subr.mxu0 0.0
      %643 = vmatpush2.msra.mxu0 0.0
      %644 = vmatprep.subr.mxu0 0.0
      %645 = vmatpush2.msra.mxu0 0.0
      %646 = vmatprep.subr.mxu0 0.0
      %647 = vmatpush2.msra.mxu0 0.0
      %648 = vmatprep.subr.mxu0 0.0
      %649 = vmatpush2.msra.mxu0 0.0
      %650 = vmatprep.subr.mxu0 0.0
      %651 = vmatpush2.msra.mxu0 0.0
      %652 = vmatprep.mubr.f32.mxu0 0.0
      %653 = vmatmul.mubr.f32.gmra.mxu0 %v489
      %v654 = vpop.f32.mrf.mxu0
      %v655 = vadd.f32 0.0, %v654
      %v656 = vpop.f32.mrf.mxu0
      %657 = vmatprep.mubr.f32.mxu0 0.0
      %658 = vmatmul.mubr.f32.gmra.mxu0 %v492
      %v659 = vpop.f32.mrf.mxu0
      %v660 = vadd.f32 0.0, %v659
      %v661 = vpop.f32.mrf.mxu0
      %662 = vmatprep.mubr.f32.mxu0 0.0
      %663 = vmatmul.mubr.f32.gmra.mxu0 %v495
      %v664 = vpop.f32.mrf.mxu0
      %v665 = vadd.f32 0.0, %v664
      %v666 = vpop.f32.mrf.mxu0
      %667 = vmatprep.mubr.f32.mxu0 0.0
      %668 = vmatmul.mubr.f32.gmra.mxu0 %v498
      %v669 = vpop.f32.mrf.mxu0
      %v670 = vadd.f32 0.0, %v669
      %v671 = vpop.f32.mrf.mxu0
      %672 = vmatprep.mubr.f32.mxu0 0.0
      %673 = vmatmul.mubr.f32.gmra.mxu0 %v501
      %v674 = vpop.f32.mrf.mxu0
      %v675 = vadd.f32 0.0, %v674
      %v676 = vpop.f32.mrf.mxu0
      %677 = vmatprep.mubr.f32.mxu0 0.0
      %678 = vmatmul.mubr.f32.gmra.mxu0 %v504
      %v679 = vpop.f32.mrf.mxu0
      %v680 = vadd.f32 0.0, %v679
      %v681 = vpop.f32.mrf.mxu0
      %682 = vmatprep.mubr.f32.mxu0 0.0
      %683 = vmatmul.mubr.f32.gmra.mxu0 %v507
      %v684 = vpop.f32.mrf.mxu0
      %v685 = vadd.f32 0.0, %v684
      %v686 = vpop.f32.mrf.mxu0
      %687 = vmatprep.mubr.f32.mxu0 0.0
      %688 = vmatmul.mubr.f32.gmra.mxu0 %v510
      %v689 = vpop.f32.mrf.mxu0
      %v690 = vadd.f32 0.0, %v689
      %v691 = vpop.f32.mrf.mxu0
      %692 = vmatprep.mubr.f32.mxu0 0.0
      %693 = vmatmul.mubr.f32.gmra.mxu0 %v513
      %v694 = vpop.f32.mrf.mxu0
      %v695 = vadd.f32 0.0, %v694
      %v696 = vpop.f32.mrf.mxu0
      %697 = vmatprep.mubr.f32.mxu0 0.0
      %698 = vmatmul.mubr.f32.gmra.mxu0 %v516
      %v699 = vpop.f32.mrf.mxu0
      %v700 = vadd.f32 0.0, %v699
      %v701 = vpop.f32.mrf.mxu0
      %702 = vmatprep.mubr.f32.mxu0 0.0
      %703 = vmatmul.mubr.f32.gmra.mxu0 %v519
      %v704 = vpop.f32.mrf.mxu0
      %v705 = vadd.f32 0.0, %v704
      %v706 = vpop.f32.mrf.mxu0
      %707 = vmatprep.mubr.f32.mxu0 0.0
      %708 = vmatmul.mubr.f32.gmra.mxu0 %v522
      %v709 = vpop.f32.mrf.mxu0
      %v710 = vadd.f32 0.0, %v709
      %v711 = vpop.f32.mrf.mxu0
      %712 = vmatprep.mubr.f32.mxu0 0.0
      %713 = vmatmul.mubr.f32.gmra.mxu0 %v525
      %v714 = vpop.f32.mrf.mxu0
      %v715 = vadd.f32 0.0, %v714
      %v716 = vpop.f32.mrf.mxu0
      %717 = vmatprep.mubr.f32.mxu0 0.0
      %718 = vmatmul.mubr.f32.gmra.mxu0 %v528
      %v719 = vpop.f32.mrf.mxu0
      %v720 = vadd.f32 0.0, %v719
      %v721 = vpop.f32.mrf.mxu0
      %722 = vmatprep.mubr.f32.mxu0 0.0
      %723 = vmatmul.mubr.f32.gmra.mxu0 %v531
      %v724 = vpop.f32.mrf.mxu0
      %v725 = vadd.f32 0.0, %v724
      %v726 = vpop.f32.mrf.mxu0
      %727 = vmatprep.mubr.f32.mxu0 0.0
      %728 = vmatmul.mubr.f32.gmra.mxu0 %v534
      %v729 = vpop.f32.mrf.mxu0
      %v730 = vadd.f32 0.0, %v729
      %v731 = vpop.f32.mrf.mxu0
      %732 = vmatprep.mubr.f32.mxu0 0.0
      %733 = vmatmul.mubr.f32.gmra.mxu0 %v537
      %v734 = vpop.f32.mrf.mxu0
      %v735 = vadd.f32 0.0, %v734
      %v736 = vpop.f32.mrf.mxu0
      %737 = vmatprep.mubr.f32.mxu0 0.0
      %738 = vmatmul.mubr.f32.gmra.mxu0 %v540
      %v739 = vpop.f32.mrf.mxu0
      %v740 = vadd.f32 0.0, %v739
      %v741 = vpop.f32.mrf.mxu0
      %742 = vmatprep.mubr.f32.mxu0 0.0
      %743 = vmatmul.mubr.f32.gmra.mxu0 %v543
      %v744 = vpop.f32.mrf.mxu0
      %v745 = vadd.f32 0.0, %v744
      %v746 = vpop.f32.mrf.mxu0
      %747 = vmatprep.mubr.f32.mxu0 0.0
      %748 = vmatmul.mubr.f32.gmra.mxu0 %v546
      %v749 = vpop.f32.mrf.mxu0
      %v750 = vadd.f32 0.0, %v749
      %v751 = vpop.f32.mrf.mxu0
      %752 = vmatprep.mubr.f32.mxu0 0.0
      %753 = vmatmul.mubr.f32.gmra.mxu0 %v549
      %v754 = vpop.f32.mrf.mxu0
      %v755 = vadd.f32 0.0, %v754
      %v756 = vpop.f32.mrf.mxu0
      %757 = vmatprep.mubr.f32.mxu0 0.0
      %758 = vmatmul.mubr.f32.gmra.mxu0 %v552
      %v759 = vpop.f32.mrf.mxu0
      %v760 = vadd.f32 0.0, %v759
      %v761 = vpop.f32.mrf.mxu0
      %762 = vmatprep.mubr.f32.mxu0 0.0
      %763 = vmatmul.mubr.f32.gmra.mxu0 %v555
      %v764 = vpop.f32.mrf.mxu0
      %v765 = vadd.f32 0.0, %v764
      %v766 = vpop.f32.mrf.mxu0
      %767 = vmatprep.mubr.f32.mxu0 0.0
      %768 = vmatmul.mubr.f32.gmra.mxu0 %v558
      %v769 = vpop.f32.mrf.mxu0
      %v770 = vadd.f32 0.0, %v769
      %v771 = vpop.f32.mrf.mxu0
      %772 = vmatprep.mubr.f32.mxu0 0.0
      %773 = vmatmul.mubr.f32.gmra.mxu0 %v561
      %v774 = vpop.f32.mrf.mxu0
      %v775 = vadd.f32 0.0, %v774
      %v776 = vpop.f32.mrf.mxu0
      %777 = vmatprep.mubr.f32.mxu0 0.0
      %778 = vmatmul.mubr.f32.gmra.mxu0 %v564
      %v779 = vpop.f32.mrf.mxu0
      %v780 = vadd.f32 0.0, %v779
      %v781 = vpop.f32.mrf.mxu0
      %782 = vmatprep.mubr.f32.mxu0 0.0
      %783 = vmatmul.mubr.f32.gmra.mxu0 %v567
      %v784 = vpop.f32.mrf.mxu0
      %v785 = vadd.f32 0.0, %v784
      %v786 = vpop.f32.mrf.mxu0
      %787 = vmatprep.mubr.f32.mxu0 0.0
      %788 = vmatmul.mubr.f32.gmra.mxu0 %v570
      %v789 = vpop.f32.mrf.mxu0
      %v790 = vadd.f32 0.0, %v789
      %v791 = vpop.f32.mrf.mxu0
      %792 = vmatprep.mubr.f32.mxu0 0.0
      %793 = vmatmul.mubr.f32.gmra.mxu0 %v573
      %v794 = vpop.f32.mrf.mxu0
      %v795 = vadd.f32 0.0, %v794
      %v796 = vpop.f32.mrf.mxu0
      %797 = vmatprep.mubr.f32.mxu0 0.0
      %798 = vmatmul.mubr.f32.gmra.mxu0 %v576
      %v799 = vpop.f32.mrf.mxu0
      %v800 = vadd.f32 0.0, %v799
      %v801 = vpop.f32.mrf.mxu0
      %802 = vmatprep.mubr.f32.mxu0 0.0
      %803 = vmatmul.mubr.f32.gmra.mxu0 %v579
      %v804 = vpop.f32.mrf.mxu0
      %v805 = vadd.f32 0.0, %v804
      %v806 = vpop.f32.mrf.mxu0
      %807 = vmatprep.mubr.f32.mxu0 0.0
      %808 = vmatmul.mubr.f32.gmra.mxu0 %v582
      %v809 = vpop.f32.mrf.mxu0
      %v810 = vadd.f32 0.0, %v809
      %v811 = vpop.f32.mrf.mxu0
      %812 = vdwg.mxu0
      %v814 = vsel %vm236, %v421, 0
      %v817 = vsel %vm236, %v422, 0
      %v820 = vsel %vm236, %v423, 0
      %v823 = vsel %vm236, %v424, 0
      %v826 = vsel %vm236, %v425, 0
      %v829 = vsel %vm236, %v426, 0
      %v832 = vsel %vm236, %v427, 0
      %v835 = vsel %vm236, %v428, 0
      %v838 = vsel %vm236, %v429, 0
      %v841 = vsel %vm236, %v430, 0
      %v844 = vsel %vm236, %v431, 0
      %v847 = vsel %vm236, %v432, 0
      %v850 = vsel %vm236, %v433, 0
      %v853 = vsel %vm236, %v434, 0
      %v856 = vsel %vm236, %v435, 0
      %v859 = vsel %vm236, %v436, 0
      %v862 = vsel %vm236, %v437, 0
      %v865 = vsel %vm236, %v438, 0
      %v868 = vsel %vm236, %v439, 0
      %v871 = vsel %vm236, %v440, 0
      %v874 = vsel %vm236, %v441, 0
      %v877 = vsel %vm236, %v442, 0
      %v880 = vsel %vm236, %v443, 0
      %v883 = vsel %vm236, %v444, 0
      %v886 = vsel %vm236, %v445, 0
      %v889 = vsel %vm236, %v446, 0
      %v892 = vsel %vm236, %v447, 0
      %v895 = vsel %vm236, %v448, 0
      %v898 = vsel %vm236, %v449, 0
      %v901 = vsel %vm236, %v450, 0
      %v904 = vsel %vm236, %v451, 0
      %v907 = vsel %vm236, %v452, 0
      %v910 = vsel %vm584, %v453, 0
      %912 = vmatprep.subr.mxu0 0.0
      %913 = vmatpush1.msra.mxu0 0.0
      %914 = vmatprep.subr.mxu0 0.0
      %915 = vmatpush1.msra.mxu0 0.0
      %916 = vmatprep.subr.mxu0 0.0
      %917 = vmatpush1.msra.mxu0 0.0
      %918 = vmatprep.subr.mxu0 0.0
      %919 = vmatpush1.msra.mxu0 0.0
      %920 = vmatprep.subr.mxu0 0.0
      %921 = vmatpush1.msra.mxu0 0.0
      %922 = vmatprep.subr.mxu0 0.0
      %923 = vmatpush1.msra.mxu0 0.0
      %924 = vmatprep.subr.mxu0 0.0
      %925 = vmatpush1.msra.mxu0 0.0
      %926 = vmatprep.subr.mxu0 0.0
      %927 = vmatpush1.msra.mxu0 0.0
      %928 = vmatprep.subr.mxu0 0.0
      %929 = vmatpush1.msra.mxu0 0.0
      %930 = vmatprep.subr.mxu0 0.0
      %931 = vmatpush1.msra.mxu0 0.0
      %932 = vmatprep.subr.mxu0 0.0
      %933 = vmatpush1.msra.mxu0 0.0
      %934 = vmatprep.subr.mxu0 0.0
      %935 = vmatpush1.msra.mxu0 0.0
      %936 = vmatprep.subr.mxu0 0.0
      %937 = vmatpush1.msra.mxu0 0.0
      %938 = vmatprep.subr.mxu0 0.0
      %939 = vmatpush1.msra.mxu0 0.0
      %940 = vmatprep.subr.mxu0 0.0
      %941 = vmatpush1.msra.mxu0 0.0
      %942 = vmatprep.subr.mxu0 0.0
      %943 = vmatpush1.msra.mxu0 %v910
      %944 = vmatprep.subr.mxu0 0.0
      %945 = vmatpush2.msra.mxu0 0.0
      %946 = vmatprep.subr.mxu0 0.0
      %947 = vmatpush2.msra.mxu0 0.0
      %948 = vmatprep.subr.mxu0 0.0
      %949 = vmatpush2.msra.mxu0 0.0
      %950 = vmatprep.subr.mxu0 0.0
      %951 = vmatpush2.msra.mxu0 0.0
      %952 = vmatprep.subr.mxu0 0.0
      %953 = vmatpush2.msra.mxu0 0.0
      %954 = vmatprep.subr.mxu0 0.0
      %955 = vmatpush2.msra.mxu0 0.0
      %956 = vmatprep.subr.mxu0 0.0
      %957 = vmatpush2.msra.mxu0 0.0
      %958 = vmatprep.subr.mxu0 0.0
      %959 = vmatpush2.msra.mxu0 0.0
      %960 = vmatprep.subr.mxu0 0.0
      %961 = vmatpush2.msra.mxu0 0.0
      %962 = vmatprep.subr.mxu0 0.0
      %963 = vmatpush2.msra.mxu0 0.0
      %964 = vmatprep.subr.mxu0 0.0
      %965 = vmatpush2.msra.mxu0 0.0
      %966 = vmatprep.subr.mxu0 0.0
      %967 = vmatpush2.msra.mxu0 0.0
      %968 = vmatprep.subr.mxu0 0.0
      %969 = vmatpush2.msra.mxu0 0.0
      %970 = vmatprep.subr.mxu0 0.0
      %971 = vmatpush2.msra.mxu0 0.0
      %972 = vmatprep.subr.mxu0 0.0
      %973 = vmatpush2.msra.mxu0 0.0
      %974 = vmatprep.subr.mxu0 0.0
      %975 = vmatpush2.msra.mxu0 0.0
      %976 = vmatprep.mubr.f32.mxu0 0.0
      %977 = vmatmul.mubr.f32.gmra.mxu0 %v814
      %v978 = vpop.f32.mrf.mxu0
      %v979 = vadd.f32 %v655, %v978
      %v980 = vpop.f32.mrf.mxu0
      %981 = vmatprep.mubr.f32.mxu0 0.0
      %982 = vmatmul.mubr.f32.gmra.mxu0 %v817
      %v983 = vpop.f32.mrf.mxu0
      %v984 = vadd.f32 %v660, %v983
      %v985 = vpop.f32.mrf.mxu0
      %986 = vmatprep.mubr.f32.mxu0 0.0
      %987 = vmatmul.mubr.f32.gmra.mxu0 %v820
      %v988 = vpop.f32.mrf.mxu0
      %v989 = vadd.f32 %v665, %v988
      %v990 = vpop.f32.mrf.mxu0
      %991 = vmatprep.mubr.f32.mxu0 0.0
      %992 = vmatmul.mubr.f32.gmra.mxu0 %v823
      %v993 = vpop.f32.mrf.mxu0
      %v994 = vadd.f32 %v670, %v993
      %v995 = vpop.f32.mrf.mxu0
      %996 = vmatprep.mubr.f32.mxu0 0.0
      %997 = vmatmul.mubr.f32.gmra.mxu0 %v826
      %v998 = vpop.f32.mrf.mxu0
      %v999 = vadd.f32 %v675, %v998
      %v1000 = vpop.f32.mrf.mxu0
      %1001 = vmatprep.mubr.f32.mxu0 0.0
      %1002 = vmatmul.mubr.f32.gmra.mxu0 %v829
      %v1003 = vpop.f32.mrf.mxu0
      %v1004 = vadd.f32 %v680, %v1003
      %v1005 = vpop.f32.mrf.mxu0
      %1006 = vmatprep.mubr.f32.mxu0 0.0
      %1007 = vmatmul.mubr.f32.gmra.mxu0 %v832
      %v1008 = vpop.f32.mrf.mxu0
      %v1009 = vadd.f32 %v685, %v1008
      %v1010 = vpop.f32.mrf.mxu0
      %1011 = vmatprep.mubr.f32.mxu0 0.0
      %1012 = vmatmul.mubr.f32.gmra.mxu0 %v835
      %v1013 = vpop.f32.mrf.mxu0
      %v1014 = vadd.f32 %v690, %v1013
      %v1015 = vpop.f32.mrf.mxu0
      %1016 = vmatprep.mubr.f32.mxu0 0.0
      %1017 = vmatmul.mubr.f32.gmra.mxu0 %v838
      %v1018 = vpop.f32.mrf.mxu0
      %v1019 = vadd.f32 %v695, %v1018
      %v1020 = vpop.f32.mrf.mxu0
      %1021 = vmatprep.mubr.f32.mxu0 0.0
      %1022 = vmatmul.mubr.f32.gmra.mxu0 %v841
      %v1023 = vpop.f32.mrf.mxu0
      %v1024 = vadd.f32 %v700, %v1023
      %v1025 = vpop.f32.mrf.mxu0
      %1026 = vmatprep.mubr.f32.mxu0 0.0
      %1027 = vmatmul.mubr.f32.gmra.mxu0 %v844
      %v1028 = vpop.f32.mrf.mxu0
      %v1029 = vadd.f32 %v705, %v1028
      %v1030 = vpop.f32.mrf.mxu0
      %1031 = vmatprep.mubr.f32.mxu0 0.0
      %1032 = vmatmul.mubr.f32.gmra.mxu0 %v847
      %v1033 = vpop.f32.mrf.mxu0
      %v1034 = vadd.f32 %v710, %v1033
      %v1035 = vpop.f32.mrf.mxu0
      %1036 = vmatprep.mubr.f32.mxu0 0.0
      %1037 = vmatmul.mubr.f32.gmra.mxu0 %v850
      %v1038 = vpop.f32.mrf.mxu0
      %v1039 = vadd.f32 %v715, %v1038
      %v1040 = vpop.f32.mrf.mxu0
      %1041 = vmatprep.mubr.f32.mxu0 0.0
      %1042 = vmatmul.mubr.f32.gmra.mxu0 %v853
      %v1043 = vpop.f32.mrf.mxu0
      %v1044 = vadd.f32 %v720, %v1043
      %v1045 = vpop.f32.mrf.mxu0
      %1046 = vmatprep.mubr.f32.mxu0 0.0
      %1047 = vmatmul.mubr.f32.gmra.mxu0 %v856
      %v1048 = vpop.f32.mrf.mxu0
      %v1049 = vadd.f32 %v725, %v1048
      %v1050 = vpop.f32.mrf.mxu0
      %1051 = vmatprep.mubr.f32.mxu0 0.0
      %1052 = vmatmul.mubr.f32.gmra.mxu0 %v859
      %v1053 = vpop.f32.mrf.mxu0
      %v1054 = vadd.f32 %v730, %v1053
      %v1055 = vpop.f32.mrf.mxu0
      %1056 = vmatprep.mubr.f32.mxu0 0.0
      %1057 = vmatmul.mubr.f32.gmra.mxu0 %v862
      %v1058 = vpop.f32.mrf.mxu0
      %v1059 = vadd.f32 %v735, %v1058
      %v1060 = vpop.f32.mrf.mxu0
      %1061 = vmatprep.mubr.f32.mxu0 0.0
      %1062 = vmatmul.mubr.f32.gmra.mxu0 %v865
      %v1063 = vpop.f32.mrf.mxu0
      %v1064 = vadd.f32 %v740, %v1063
      %v1065 = vpop.f32.mrf.mxu0
      %1066 = vmatprep.mubr.f32.mxu0 0.0
      %1067 = vmatmul.mubr.f32.gmra.mxu0 %v868
      %v1068 = vpop.f32.mrf.mxu0
      %v1069 = vadd.f32 %v745, %v1068
      %v1070 = vpop.f32.mrf.mxu0
      %1071 = vmatprep.mubr.f32.mxu0 0.0
      %1072 = vmatmul.mubr.f32.gmra.mxu0 %v871
      %v1073 = vpop.f32.mrf.mxu0
      %v1074 = vadd.f32 %v750, %v1073
      %v1075 = vpop.f32.mrf.mxu0
      %1076 = vmatprep.mubr.f32.mxu0 0.0
      %1077 = vmatmul.mubr.f32.gmra.mxu0 %v874
      %v1078 = vpop.f32.mrf.mxu0
      %v1079 = vadd.f32 %v755, %v1078
      %v1080 = vpop.f32.mrf.mxu0
      %1081 = vmatprep.mubr.f32.mxu0 0.0
      %1082 = vmatmul.mubr.f32.gmra.mxu0 %v877
      %v1083 = vpop.f32.mrf.mxu0
      %v1084 = vadd.f32 %v760, %v1083
      %v1085 = vpop.f32.mrf.mxu0
      %1086 = vmatprep.mubr.f32.mxu0 0.0
      %1087 = vmatmul.mubr.f32.gmra.mxu0 %v880
      %v1088 = vpop.f32.mrf.mxu0
      %v1089 = vadd.f32 %v765, %v1088
      %v1090 = vpop.f32.mrf.mxu0
      %1091 = vmatprep.mubr.f32.mxu0 0.0
      %1092 = vmatmul.mubr.f32.gmra.mxu0 %v883
      %v1093 = vpop.f32.mrf.mxu0
      %v1094 = vadd.f32 %v770, %v1093
      %v1095 = vpop.f32.mrf.mxu0
      %1096 = vmatprep.mubr.f32.mxu0 0.0
      %1097 = vmatmul.mubr.f32.gmra.mxu0 %v886
      %v1098 = vpop.f32.mrf.mxu0
      %v1099 = vadd.f32 %v775, %v1098
      %v1100 = vpop.f32.mrf.mxu0
      %1101 = vmatprep.mubr.f32.mxu0 0.0
      %1102 = vmatmul.mubr.f32.gmra.mxu0 %v889
      %v1103 = vpop.f32.mrf.mxu0
      %v1104 = vadd.f32 %v780, %v1103
      %v1105 = vpop.f32.mrf.mxu0
      %1106 = vmatprep.mubr.f32.mxu0 0.0
      %1107 = vmatmul.mubr.f32.gmra.mxu0 %v892
      %v1108 = vpop.f32.mrf.mxu0
      %v1109 = vadd.f32 %v785, %v1108
      %v1110 = vpop.f32.mrf.mxu0
      %1111 = vmatprep.mubr.f32.mxu0 0.0
      %1112 = vmatmul.mubr.f32.gmra.mxu0 %v895
      %v1113 = vpop.f32.mrf.mxu0
      %v1114 = vadd.f32 %v790, %v1113
      %v1115 = vpop.f32.mrf.mxu0
      %1116 = vmatprep.mubr.f32.mxu0 0.0
      %1117 = vmatmul.mubr.f32.gmra.mxu0 %v898
      %v1118 = vpop.f32.mrf.mxu0
      %v1119 = vadd.f32 %v795, %v1118
      %v1120 = vpop.f32.mrf.mxu0
      %1121 = vmatprep.mubr.f32.mxu0 0.0
      %1122 = vmatmul.mubr.f32.gmra.mxu0 %v901
      %v1123 = vpop.f32.mrf.mxu0
      %v1124 = vadd.f32 %v800, %v1123
      %v1125 = vpop.f32.mrf.mxu0
      %1126 = vmatprep.mubr.f32.mxu0 0.0
      %1127 = vmatmul.mubr.f32.gmra.mxu0 %v904
      %v1128 = vpop.f32.mrf.mxu0
      %v1129 = vadd.f32 %v805, %v1128
      %v1130 = vpop.f32.mrf.mxu0
      %1131 = vmatprep.mubr.f32.mxu0 0.0
      %1132 = vmatmul.mubr.f32.gmra.mxu0 %v907
      %v1133 = vpop.f32.mrf.mxu0
      %v1134 = vadd.f32 %v810, %v1133
      %v1135 = vpop.f32.mrf.mxu0
      %1136 = vdwg.mxu0
      %v1137 = vld [vmem:[#allocation2 + $0x2] sm:$0xff]
      %v1138 = vld [vmem:[#allocation2 + $0xa] sm:$0xff]
      %v1139 = vld [vmem:[#allocation2 + $0x1a] sm:$0xff]
      %v1140 = vld [vmem:[#allocation2 + $0x22] sm:$0xff]
      %v1141 = vld [vmem:[#allocation2 + $0x32] sm:$0xff]
      %v1142 = vld [vmem:[#allocation2 + $0x3a] sm:$0xff]
      %v1143 = vld [vmem:[#allocation2 + $0x4a] sm:$0xff]
      %v1144 = vld [vmem:[#allocation2 + $0x52] sm:$0xff]
      %v1145 = vld [vmem:[#allocation2 + $0x62] sm:$0xff]
      %v1146 = vld [vmem:[#allocation2 + $0x6a] sm:$0xff]
      %v1147 = vld [vmem:[#allocation2 + $0x7a] sm:$0xff]
      %v1148 = vld [vmem:[#allocation2 + $0x82] sm:$0xff]
      %v1149 = vld [vmem:[#allocation2 + $0x92] sm:$0xff]
      %v1150 = vld [vmem:[#allocation2 + $0x9a] sm:$0xff]
      %v1151 = vld [vmem:[#allocation2 + $0xaa] sm:$0xff]
      %v1152 = vld [vmem:[#allocation2 + $0xb2] sm:$0xff]
      %v1153 = vld [vmem:[#allocation2 + $0xc2] sm:$0xff]
      %v1154 = vld [vmem:[#allocation2 + $0xca] sm:$0xff]
      %v1155 = vld [vmem:[#allocation2 + $0xda] sm:$0xff]
      %v1156 = vld [vmem:[#allocation2 + $0xe2] sm:$0xff]
      %v1157 = vld [vmem:[#allocation2 + $0xf2] sm:$0xff]
      %v1158 = vld [vmem:[#allocation2 + $0xfa] sm:$0xff]
      %v1159 = vld [vmem:[#allocation2 + $0x10a] sm:$0xff]
      %v1160 = vld [vmem:[#allocation2 + $0x112] sm:$0xff]
      %v1161 = vld [vmem:[#allocation2 + $0x122] sm:$0xff]
      %v1162 = vld [vmem:[#allocation2 + $0x12a] sm:$0xff]
      %v1163 = vld [vmem:[#allocation2 + $0x13a] sm:$0xff]
      %v1164 = vld [vmem:[#allocation2 + $0x142] sm:$0xff]
      %v1165 = vld [vmem:[#allocation2 + $0x152] sm:$0xff]
      %v1166 = vld [vmem:[#allocation2 + $0x15a] sm:$0xff]
      %v1167 = vld [vmem:[#allocation2 + $0x16a] sm:$0xff]
      %v1168 = vld [vmem:[#allocation2 + $0x172] sm:$0xff]
      %s1169 = scalar_lea.vmem %s2, 8
      %v1170 = vld [vmem:[%s1169] sm:$0xf]
      %v1172 = vsel %vm236, %v1137, 0
      %v1175 = vsel %vm236, %v1138, 0
      %v1178 = vsel %vm236, %v1139, 0
      %v1181 = vsel %vm236, %v1140, 0
      %v1184 = vsel %vm236, %v1141, 0
      %v1187 = vsel %vm236, %v1142, 0
      %v1190 = vsel %vm236, %v1143, 0
      %v1193 = vsel %vm236, %v1144, 0
      %v1196 = vsel %vm236, %v1145, 0
      %v1199 = vsel %vm236, %v1146, 0
      %v1202 = vsel %vm236, %v1147, 0
      %v1205 = vsel %vm236, %v1148, 0
      %v1208 = vsel %vm236, %v1149, 0
      %v1211 = vsel %vm236, %v1150, 0
      %v1214 = vsel %vm236, %v1151, 0
      %v1217 = vsel %vm236, %v1152, 0
      %v1220 = vsel %vm236, %v1153, 0
      %v1223 = vsel %vm236, %v1154, 0
      %v1226 = vsel %vm236, %v1155, 0
      %v1229 = vsel %vm236, %v1156, 0
      %v1232 = vsel %vm236, %v1157, 0
      %v1235 = vsel %vm236, %v1158, 0
      %v1238 = vsel %vm236, %v1159, 0
      %v1241 = vsel %vm236, %v1160, 0
      %v1244 = vsel %vm236, %v1161, 0
      %v1247 = vsel %vm236, %v1162, 0
      %v1250 = vsel %vm236, %v1163, 0
      %v1253 = vsel %vm236, %v1164, 0
      %v1256 = vsel %vm236, %v1165, 0
      %v1259 = vsel %vm236, %v1166, 0
      %v1262 = vsel %vm236, %v1167, 0
      %v1265 = vsel %vm236, %v1168, 0
      %v1268 = vsel %vm584, %v1170, 0
      %1270 = vmatprep.subr.mxu0 0.0
      %1271 = vmatpush1.msra.mxu0 0.0
      %1272 = vmatprep.subr.mxu0 0.0
      %1273 = vmatpush1.msra.mxu0 0.0
      %1274 = vmatprep.subr.mxu0 0.0
      %1275 = vmatpush1.msra.mxu0 0.0
      %1276 = vmatprep.subr.mxu0 0.0
      %1277 = vmatpush1.msra.mxu0 0.0
      %1278 = vmatprep.subr.mxu0 0.0
      %1279 = vmatpush1.msra.mxu0 0.0
      %1280 = vmatprep.subr.mxu0 0.0
      %1281 = vmatpush1.msra.mxu0 0.0
      %1282 = vmatprep.subr.mxu0 0.0
      %1283 = vmatpush1.msra.mxu0 0.0
      %1284 = vmatprep.subr.mxu0 0.0
      %1285 = vmatpush1.msra.mxu0 0.0
      %1286 = vmatprep.subr.mxu0 0.0
      %1287 = vmatpush1.msra.mxu0 0.0
      %1288 = vmatprep.subr.mxu0 0.0
      %1289 = vmatpush1.msra.mxu0 0.0
      %1290 = vmatprep.subr.mxu0 0.0
      %1291 = vmatpush1.msra.mxu0 0.0
      %1292 = vmatprep.subr.mxu0 0.0
      %1293 = vmatpush1.msra.mxu0 0.0
      %1294 = vmatprep.subr.mxu0 0.0
      %1295 = vmatpush1.msra.mxu0 0.0
      %1296 = vmatprep.subr.mxu0 0.0
      %1297 = vmatpush1.msra.mxu0 0.0
      %1298 = vmatprep.subr.mxu0 0.0
      %1299 = vmatpush1.msra.mxu0 0.0
      %1300 = vmatprep.subr.mxu0 0.0
      %1301 = vmatpush1.msra.mxu0 %v1268
      %1302 = vmatprep.subr.mxu0 0.0
      %1303 = vmatpush2.msra.mxu0 0.0
      %1304 = vmatprep.subr.mxu0 0.0
      %1305 = vmatpush2.msra.mxu0 0.0
      %1306 = vmatprep.subr.mxu0 0.0
      %1307 = vmatpush2.msra.mxu0 0.0
      %1308 = vmatprep.subr.mxu0 0.0
      %1309 = vmatpush2.msra.mxu0 0.0
      %1310 = vmatprep.subr.mxu0 0.0
      %1311 = vmatpush2.msra.mxu0 0.0
      %1312 = vmatprep.subr.mxu0 0.0
      %1313 = vmatpush2.msra.mxu0 0.0
      %1314 = vmatprep.subr.mxu0 0.0
      %1315 = vmatpush2.msra.mxu0 0.0
      %1316 = vmatprep.subr.mxu0 0.0
      %1317 = vmatpush2.msra.mxu0 0.0
      %1318 = vmatprep.subr.mxu0 0.0
      %1319 = vmatpush2.msra.mxu0 0.0
      %1320 = vmatprep.subr.mxu0 0.0
      %1321 = vmatpush2.msra.mxu0 0.0
      %1322 = vmatprep.subr.mxu0 0.0
      %1323 = vmatpush2.msra.mxu0 0.0
      %1324 = vmatprep.subr.mxu0 0.0
      %1325 = vmatpush2.msra.mxu0 0.0
      %1326 = vmatprep.subr.mxu0 0.0
      %1327 = vmatpush2.msra.mxu0 0.0
      %1328 = vmatprep.subr.mxu0 0.0
      %1329 = vmatpush2.msra.mxu0 0.0
      %1330 = vmatprep.subr.mxu0 0.0
      %1331 = vmatpush2.msra.mxu0 0.0
      %1332 = vmatprep.subr.mxu0 0.0
      %1333 = vmatpush2.msra.mxu0 0.0
      %1334 = vmatprep.mubr.f32.mxu0 0.0
      %1335 = vmatmul.mubr.f32.gmra.mxu0 %v1172
      %v1336 = vpop.f32.mrf.mxu0
      %v1337 = vadd.f32 0.0, %v1336
      %v1338 = vpop.f32.mrf.mxu0
      %1339 = vmatprep.mubr.f32.mxu0 0.0
      %1340 = vmatmul.mubr.f32.gmra.mxu0 %v1175
      %v1341 = vpop.f32.mrf.mxu0
      %v1342 = vadd.f32 0.0, %v1341
      %v1343 = vpop.f32.mrf.mxu0
      %1344 = vmatprep.mubr.f32.mxu0 0.0
      %1345 = vmatmul.mubr.f32.gmra.mxu0 %v1178
      %v1346 = vpop.f32.mrf.mxu0
      %v1347 = vadd.f32 0.0, %v1346
      %v1348 = vpop.f32.mrf.mxu0
      %1349 = vmatprep.mubr.f32.mxu0 0.0
      %1350 = vmatmul.mubr.f32.gmra.mxu0 %v1181
      %v1351 = vpop.f32.mrf.mxu0
      %v1352 = vadd.f32 0.0, %v1351
      %v1353 = vpop.f32.mrf.mxu0
      %1354 = vmatprep.mubr.f32.mxu0 0.0
      %1355 = vmatmul.mubr.f32.gmra.mxu0 %v1184
      %v1356 = vpop.f32.mrf.mxu0
      %v1357 = vadd.f32 0.0, %v1356
      %v1358 = vpop.f32.mrf.mxu0
      %1359 = vmatprep.mubr.f32.mxu0 0.0
      %1360 = vmatmul.mubr.f32.gmra.mxu0 %v1187
      %v1361 = vpop.f32.mrf.mxu0
      %v1362 = vadd.f32 0.0, %v1361
      %v1363 = vpop.f32.mrf.mxu0
      %1364 = vmatprep.mubr.f32.mxu0 0.0
      %1365 = vmatmul.mubr.f32.gmra.mxu0 %v1190
      %v1366 = vpop.f32.mrf.mxu0
      %v1367 = vadd.f32 0.0, %v1366
      %v1368 = vpop.f32.mrf.mxu0
      %1369 = vmatprep.mubr.f32.mxu0 0.0
      %1370 = vmatmul.mubr.f32.gmra.mxu0 %v1193
      %v1371 = vpop.f32.mrf.mxu0
      %v1372 = vadd.f32 0.0, %v1371
      %v1373 = vpop.f32.mrf.mxu0
      %1374 = vmatprep.mubr.f32.mxu0 0.0
      %1375 = vmatmul.mubr.f32.gmra.mxu0 %v1196
      %v1376 = vpop.f32.mrf.mxu0
      %v1377 = vadd.f32 0.0, %v1376
      %v1378 = vpop.f32.mrf.mxu0
      %1379 = vmatprep.mubr.f32.mxu0 0.0
      %1380 = vmatmul.mubr.f32.gmra.mxu0 %v1199
      %v1381 = vpop.f32.mrf.mxu0
      %v1382 = vadd.f32 0.0, %v1381
      %v1383 = vpop.f32.mrf.mxu0
      %1384 = vmatprep.mubr.f32.mxu0 0.0
      %1385 = vmatmul.mubr.f32.gmra.mxu0 %v1202
      %v1386 = vpop.f32.mrf.mxu0
      %v1387 = vadd.f32 0.0, %v1386
      %v1388 = vpop.f32.mrf.mxu0
      %1389 = vmatprep.mubr.f32.mxu0 0.0
      %1390 = vmatmul.mubr.f32.gmra.mxu0 %v1205
      %v1391 = vpop.f32.mrf.mxu0
      %v1392 = vadd.f32 0.0, %v1391
      %v1393 = vpop.f32.mrf.mxu0
      %1394 = vmatprep.mubr.f32.mxu0 0.0
      %1395 = vmatmul.mubr.f32.gmra.mxu0 %v1208
      %v1396 = vpop.f32.mrf.mxu0
      %v1397 = vadd.f32 0.0, %v1396
      %v1398 = vpop.f32.mrf.mxu0
      %1399 = vmatprep.mubr.f32.mxu0 0.0
      %1400 = vmatmul.mubr.f32.gmra.mxu0 %v1211
      %v1401 = vpop.f32.mrf.mxu0
      %v1402 = vadd.f32 0.0, %v1401
      %v1403 = vpop.f32.mrf.mxu0
      %1404 = vmatprep.mubr.f32.mxu0 0.0
      %1405 = vmatmul.mubr.f32.gmra.mxu0 %v1214
      %v1406 = vpop.f32.mrf.mxu0
      %v1407 = vadd.f32 0.0, %v1406
      %v1408 = vpop.f32.mrf.mxu0
      %1409 = vmatprep.mubr.f32.mxu0 0.0
      %1410 = vmatmul.mubr.f32.gmra.mxu0 %v1217
      %v1411 = vpop.f32.mrf.mxu0
      %v1412 = vadd.f32 0.0, %v1411
      %v1413 = vpop.f32.mrf.mxu0
      %1414 = vmatprep.mubr.f32.mxu0 0.0
      %1415 = vmatmul.mubr.f32.gmra.mxu0 %v1220
      %v1416 = vpop.f32.mrf.mxu0
      %v1417 = vadd.f32 0.0, %v1416
      %v1418 = vpop.f32.mrf.mxu0
      %1419 = vmatprep.mubr.f32.mxu0 0.0
      %1420 = vmatmul.mubr.f32.gmra.mxu0 %v1223
      %v1421 = vpop.f32.mrf.mxu0
      %v1422 = vadd.f32 0.0, %v1421
      %v1423 = vpop.f32.mrf.mxu0
      %1424 = vmatprep.mubr.f32.mxu0 0.0
      %1425 = vmatmul.mubr.f32.gmra.mxu0 %v1226
      %v1426 = vpop.f32.mrf.mxu0
      %v1427 = vadd.f32 0.0, %v1426
      %v1428 = vpop.f32.mrf.mxu0
      %1429 = vmatprep.mubr.f32.mxu0 0.0
      %1430 = vmatmul.mubr.f32.gmra.mxu0 %v1229
      %v1431 = vpop.f32.mrf.mxu0
      %v1432 = vadd.f32 0.0, %v1431
      %v1433 = vpop.f32.mrf.mxu0
      %1434 = vmatprep.mubr.f32.mxu0 0.0
      %1435 = vmatmul.mubr.f32.gmra.mxu0 %v1232
      %v1436 = vpop.f32.mrf.mxu0
      %v1437 = vadd.f32 0.0, %v1436
      %v1438 = vpop.f32.mrf.mxu0
      %1439 = vmatprep.mubr.f32.mxu0 0.0
      %1440 = vmatmul.mubr.f32.gmra.mxu0 %v1235
      %v1441 = vpop.f32.mrf.mxu0
      %v1442 = vadd.f32 0.0, %v1441
      %v1443 = vpop.f32.mrf.mxu0
      %1444 = vmatprep.mubr.f32.mxu0 0.0
      %1445 = vmatmul.mubr.f32.gmra.mxu0 %v1238
      %v1446 = vpop.f32.mrf.mxu0
      %v1447 = vadd.f32 0.0, %v1446
      %v1448 = vpop.f32.mrf.mxu0
      %1449 = vmatprep.mubr.f32.mxu0 0.0
      %1450 = vmatmul.mubr.f32.gmra.mxu0 %v1241
      %v1451 = vpop.f32.mrf.mxu0
      %v1452 = vadd.f32 0.0, %v1451
      %v1453 = vpop.f32.mrf.mxu0
      %1454 = vmatprep.mubr.f32.mxu0 0.0
      %1455 = vmatmul.mubr.f32.gmra.mxu0 %v1244
      %v1456 = vpop.f32.mrf.mxu0
      %v1457 = vadd.f32 0.0, %v1456
      %v1458 = vpop.f32.mrf.mxu0
      %1459 = vmatprep.mubr.f32.mxu0 0.0
      %1460 = vmatmul.mubr.f32.gmra.mxu0 %v1247
      %v1461 = vpop.f32.mrf.mxu0
      %v1462 = vadd.f32 0.0, %v1461
      %v1463 = vpop.f32.mrf.mxu0
      %1464 = vmatprep.mubr.f32.mxu0 0.0
      %1465 = vmatmul.mubr.f32.gmra.mxu0 %v1250
      %v1466 = vpop.f32.mrf.mxu0
      %v1467 = vadd.f32 0.0, %v1466
      %v1468 = vpop.f32.mrf.mxu0
      %1469 = vmatprep.mubr.f32.mxu0 0.0
      %1470 = vmatmul.mubr.f32.gmra.mxu0 %v1253
      %v1471 = vpop.f32.mrf.mxu0
      %v1472 = vadd.f32 0.0, %v1471
      %v1473 = vpop.f32.mrf.mxu0
      %1474 = vmatprep.mubr.f32.mxu0 0.0
      %1475 = vmatmul.mubr.f32.gmra.mxu0 %v1256
      %v1476 = vpop.f32.mrf.mxu0
      %v1477 = vadd.f32 0.0, %v1476
      %v1478 = vpop.f32.mrf.mxu0
      %1479 = vmatprep.mubr.f32.mxu0 0.0
      %1480 = vmatmul.mubr.f32.gmra.mxu0 %v1259
      %v1481 = vpop.f32.mrf.mxu0
      %v1482 = vadd.f32 0.0, %v1481
      %v1483 = vpop.f32.mrf.mxu0
      %1484 = vmatprep.mubr.f32.mxu0 0.0
      %1485 = vmatmul.mubr.f32.gmra.mxu0 %v1262
      %v1486 = vpop.f32.mrf.mxu0
      %v1487 = vadd.f32 0.0, %v1486
      %v1488 = vpop.f32.mrf.mxu0
      %1489 = vmatprep.mubr.f32.mxu0 0.0
      %1490 = vmatmul.mubr.f32.gmra.mxu0 %v1265
      %v1491 = vpop.f32.mrf.mxu0
      %v1492 = vadd.f32 0.0, %v1491
      %v1493 = vpop.f32.mrf.mxu0
      %1494 = vdwg.mxu0
      %v1495 = vadd.f32 %v979, %v1337
      %v1496 = vadd.f32 %v984, %v1342
      %v1497 = vadd.f32 %v989, %v1347
      %v1498 = vadd.f32 %v994, %v1352
      %v1499 = vadd.f32 %v999, %v1357
      %v1500 = vadd.f32 %v1004, %v1362
      %v1501 = vadd.f32 %v1009, %v1367
      %v1502 = vadd.f32 %v1014, %v1372
      %v1503 = vadd.f32 %v1019, %v1377
      %v1504 = vadd.f32 %v1024, %v1382
      %v1505 = vadd.f32 %v1029, %v1387
      %v1506 = vadd.f32 %v1034, %v1392
      %v1507 = vadd.f32 %v1039, %v1397
      %v1508 = vadd.f32 %v1044, %v1402
      %v1509 = vadd.f32 %v1049, %v1407
      %v1510 = vadd.f32 %v1054, %v1412
      %v1511 = vadd.f32 %v1059, %v1417
      %v1512 = vadd.f32 %v1064, %v1422
      %v1513 = vadd.f32 %v1069, %v1427
      %v1514 = vadd.f32 %v1074, %v1432
      %v1515 = vadd.f32 %v1079, %v1437
      %v1516 = vadd.f32 %v1084, %v1442
      %v1517 = vadd.f32 %v1089, %v1447
      %v1518 = vadd.f32 %v1094, %v1452
      %v1519 = vadd.f32 %v1099, %v1457
      %v1520 = vadd.f32 %v1104, %v1462
      %v1521 = vadd.f32 %v1109, %v1467
      %v1522 = vadd.f32 %v1114, %v1472
      %v1523 = vadd.f32 %v1119, %v1477
      %v1524 = vadd.f32 %v1124, %v1482
      %v1525 = vadd.f32 %v1129, %v1487
      %v1526 = vadd.f32 %v1134, %v1492
      %v1527 = vld [vmem:[%s388] sm:$0xff]
      %v1528 = vld [vmem:[%s388 + $0x8] sm:$0xff]
      %v1529 = vld [vmem:[%s388 + $0x18] sm:$0xff]
      %v1530 = vld [vmem:[%s388 + $0x20] sm:$0xff]
      %v1531 = vld [vmem:[%s388 + $0x30] sm:$0xff]
      %v1532 = vld [vmem:[%s388 + $0x38] sm:$0xff]
      %v1533 = vld [vmem:[%s388 + $0x48] sm:$0xff]
      %v1534 = vld [vmem:[%s388 + $0x50] sm:$0xff]
      %v1535 = vld [vmem:[%s388 + $0x60] sm:$0xff]
      %v1536 = vld [vmem:[%s388 + $0x68] sm:$0xff]
      %v1537 = vld [vmem:[%s388 + $0x78] sm:$0xff]
      %v1538 = vld [vmem:[%s388 + $0x80] sm:$0xff]
      %v1539 = vld [vmem:[%s388 + $0x90] sm:$0xff]
      %v1540 = vld [vmem:[%s388 + $0x98] sm:$0xff]
      %v1541 = vld [vmem:[%s388 + $0xa8] sm:$0xff]
      %v1542 = vld [vmem:[%s388 + $0xb0] sm:$0xff]
      %v1543 = vld [vmem:[%s388 + $0xc0] sm:$0xff]
      %v1544 = vld [vmem:[%s388 + $0xc8] sm:$0xff]
      %v1545 = vld [vmem:[%s388 + $0xd8] sm:$0xff]
      %v1546 = vld [vmem:[%s388 + $0xe0] sm:$0xff]
      %v1547 = vld [vmem:[%s388 + $0xf0] sm:$0xff]
      %v1548 = vld [vmem:[%s388 + $0xf8] sm:$0xff]
      %v1549 = vld [vmem:[%s388 + $0x108] sm:$0xff]
      %v1550 = vld [vmem:[%s388 + $0x110] sm:$0xff]
      %v1551 = vld [vmem:[%s388 + $0x120] sm:$0xff]
      %v1552 = vld [vmem:[%s388 + $0x128] sm:$0xff]
      %v1553 = vld [vmem:[%s388 + $0x138] sm:$0xff]
      %v1554 = vld [vmem:[%s388 + $0x140] sm:$0xff]
      %v1555 = vld [vmem:[%s388 + $0x150] sm:$0xff]
      %v1556 = vld [vmem:[%s388 + $0x158] sm:$0xff]
      %v1557 = vld [vmem:[%s388 + $0x168] sm:$0xff]
      %v1558 = vld [vmem:[%s388 + $0x170] sm:$0xff]
      %s1559 = scalar_lea.vmem %s2, 12
      %v1560 = vld [vmem:[%s1559] sm:$0xf]
      %v1562 = vsel %vm236, %v1527, 0
      %v1565 = vsel %vm236, %v1528, 0
      %v1568 = vsel %vm236, %v1529, 0
      %v1571 = vsel %vm236, %v1530, 0
      %v1574 = vsel %vm236, %v1531, 0
      %v1577 = vsel %vm236, %v1532, 0
      %v1580 = vsel %vm236, %v1533, 0
      %v1583 = vsel %vm236, %v1534, 0
      %v1586 = vsel %vm236, %v1535, 0
      %v1589 = vsel %vm236, %v1536, 0
      %v1592 = vsel %vm236, %v1537, 0
      %v1595 = vsel %vm236, %v1538, 0
      %v1598 = vsel %vm236, %v1539, 0
      %v1601 = vsel %vm236, %v1540, 0
      %v1604 = vsel %vm236, %v1541, 0
      %v1607 = vsel %vm236, %v1542, 0
      %v1610 = vsel %vm236, %v1543, 0
      %v1613 = vsel %vm236, %v1544, 0
      %v1616 = vsel %vm236, %v1545, 0
      %v1619 = vsel %vm236, %v1546, 0
      %v1622 = vsel %vm236, %v1547, 0
      %v1625 = vsel %vm236, %v1548, 0
      %v1628 = vsel %vm236, %v1549, 0
      %v1631 = vsel %vm236, %v1550, 0
      %v1634 = vsel %vm236, %v1551, 0
      %v1637 = vsel %vm236, %v1552, 0
      %v1640 = vsel %vm236, %v1553, 0
      %v1643 = vsel %vm236, %v1554, 0
      %v1646 = vsel %vm236, %v1555, 0
      %v1649 = vsel %vm236, %v1556, 0
      %v1652 = vsel %vm236, %v1557, 0
      %v1655 = vsel %vm236, %v1558, 0
      %v1658 = vsel %vm584, %v1560, 0
      %1660 = vmatprep.subr.mxu0 0.0
      %1661 = vmatpush1.msra.mxu0 0.0
      %1662 = vmatprep.subr.mxu0 0.0
      %1663 = vmatpush1.msra.mxu0 0.0
      %1664 = vmatprep.subr.mxu0 0.0
      %1665 = vmatpush1.msra.mxu0 0.0
      %1666 = vmatprep.subr.mxu0 0.0
      %1667 = vmatpush1.msra.mxu0 0.0
      %1668 = vmatprep.subr.mxu0 0.0
      %1669 = vmatpush1.msra.mxu0 0.0
      %1670 = vmatprep.subr.mxu0 0.0
      %1671 = vmatpush1.msra.mxu0 0.0
      %1672 = vmatprep.subr.mxu0 0.0
      %1673 = vmatpush1.msra.mxu0 0.0
      %1674 = vmatprep.subr.mxu0 0.0
      %1675 = vmatpush1.msra.mxu0 0.0
      %1676 = vmatprep.subr.mxu0 0.0
      %1677 = vmatpush1.msra.mxu0 0.0
      %1678 = vmatprep.subr.mxu0 0.0
      %1679 = vmatpush1.msra.mxu0 0.0
      %1680 = vmatprep.subr.mxu0 0.0
      %1681 = vmatpush1.msra.mxu0 0.0
      %1682 = vmatprep.subr.mxu0 0.0
      %1683 = vmatpush1.msra.mxu0 0.0
      %1684 = vmatprep.subr.mxu0 0.0
      %1685 = vmatpush1.msra.mxu0 0.0
      %1686 = vmatprep.subr.mxu0 0.0
      %1687 = vmatpush1.msra.mxu0 0.0
      %1688 = vmatprep.subr.mxu0 0.0
      %1689 = vmatpush1.msra.mxu0 0.0
      %1690 = vmatprep.subr.mxu0 0.0
      %1691 = vmatpush1.msra.mxu0 %v1658
      %1692 = vmatprep.subr.mxu0 0.0
      %1693 = vmatpush2.msra.mxu0 0.0
      %1694 = vmatprep.subr.mxu0 0.0
      %1695 = vmatpush2.msra.mxu0 0.0
      %1696 = vmatprep.subr.mxu0 0.0
      %1697 = vmatpush2.msra.mxu0 0.0
      %1698 = vmatprep.subr.mxu0 0.0
      %1699 = vmatpush2.msra.mxu0 0.0
      %1700 = vmatprep.subr.mxu0 0.0
      %1701 = vmatpush2.msra.mxu0 0.0
      %1702 = vmatprep.subr.mxu0 0.0
      %1703 = vmatpush2.msra.mxu0 0.0
      %1704 = vmatprep.subr.mxu0 0.0
      %1705 = vmatpush2.msra.mxu0 0.0
      %1706 = vmatprep.subr.mxu0 0.0
      %1707 = vmatpush2.msra.mxu0 0.0
      %1708 = vmatprep.subr.mxu0 0.0
      %1709 = vmatpush2.msra.mxu0 0.0
      %1710 = vmatprep.subr.mxu0 0.0
      %1711 = vmatpush2.msra.mxu0 0.0
      %1712 = vmatprep.subr.mxu0 0.0
      %1713 = vmatpush2.msra.mxu0 0.0
      %1714 = vmatprep.subr.mxu0 0.0
      %1715 = vmatpush2.msra.mxu0 0.0
      %1716 = vmatprep.subr.mxu0 0.0
      %1717 = vmatpush2.msra.mxu0 0.0
      %1718 = vmatprep.subr.mxu0 0.0
      %1719 = vmatpush2.msra.mxu0 0.0
      %1720 = vmatprep.subr.mxu0 0.0
      %1721 = vmatpush2.msra.mxu0 0.0
      %1722 = vmatprep.subr.mxu0 0.0
      %1723 = vmatpush2.msra.mxu0 0.0
      %1724 = vmatprep.mubr.f32.mxu0 0.0
      %1725 = vmatmul.mubr.f32.gmra.mxu0 %v1562
      %v1726 = vpop.f32.mrf.mxu0
      %v1727 = vadd.f32 0.0, %v1726
      %v1728 = vpop.f32.mrf.mxu0
      %1729 = vmatprep.mubr.f32.mxu0 0.0
      %1730 = vmatmul.mubr.f32.gmra.mxu0 %v1565
      %v1731 = vpop.f32.mrf.mxu0
      %v1732 = vadd.f32 0.0, %v1731
      %v1733 = vpop.f32.mrf.mxu0
      %1734 = vmatprep.mubr.f32.mxu0 0.0
      %1735 = vmatmul.mubr.f32.gmra.mxu0 %v1568
      %v1736 = vpop.f32.mrf.mxu0
      %v1737 = vadd.f32 0.0, %v1736
      %v1738 = vpop.f32.mrf.mxu0
      %1739 = vmatprep.mubr.f32.mxu0 0.0
      %1740 = vmatmul.mubr.f32.gmra.mxu0 %v1571
      %v1741 = vpop.f32.mrf.mxu0
      %v1742 = vadd.f32 0.0, %v1741
      %v1743 = vpop.f32.mrf.mxu0
      %1744 = vmatprep.mubr.f32.mxu0 0.0
      %1745 = vmatmul.mubr.f32.gmra.mxu0 %v1574
      %v1746 = vpop.f32.mrf.mxu0
      %v1747 = vadd.f32 0.0, %v1746
      %v1748 = vpop.f32.mrf.mxu0
      %1749 = vmatprep.mubr.f32.mxu0 0.0
      %1750 = vmatmul.mubr.f32.gmra.mxu0 %v1577
      %v1751 = vpop.f32.mrf.mxu0
      %v1752 = vadd.f32 0.0, %v1751
      %v1753 = vpop.f32.mrf.mxu0
      %1754 = vmatprep.mubr.f32.mxu0 0.0
      %1755 = vmatmul.mubr.f32.gmra.mxu0 %v1580
      %v1756 = vpop.f32.mrf.mxu0
      %v1757 = vadd.f32 0.0, %v1756
      %v1758 = vpop.f32.mrf.mxu0
      %1759 = vmatprep.mubr.f32.mxu0 0.0
      %1760 = vmatmul.mubr.f32.gmra.mxu0 %v1583
      %v1761 = vpop.f32.mrf.mxu0
      %v1762 = vadd.f32 0.0, %v1761
      %v1763 = vpop.f32.mrf.mxu0
      %1764 = vmatprep.mubr.f32.mxu0 0.0
      %1765 = vmatmul.mubr.f32.gmra.mxu0 %v1586
      %v1766 = vpop.f32.mrf.mxu0
      %v1767 = vadd.f32 0.0, %v1766
      %v1768 = vpop.f32.mrf.mxu0
      %1769 = vmatprep.mubr.f32.mxu0 0.0
      %1770 = vmatmul.mubr.f32.gmra.mxu0 %v1589
      %v1771 = vpop.f32.mrf.mxu0
      %v1772 = vadd.f32 0.0, %v1771
      %v1773 = vpop.f32.mrf.mxu0
      %1774 = vmatprep.mubr.f32.mxu0 0.0
      %1775 = vmatmul.mubr.f32.gmra.mxu0 %v1592
      %v1776 = vpop.f32.mrf.mxu0
      %v1777 = vadd.f32 0.0, %v1776
      %v1778 = vpop.f32.mrf.mxu0
      %1779 = vmatprep.mubr.f32.mxu0 0.0
      %1780 = vmatmul.mubr.f32.gmra.mxu0 %v1595
      %v1781 = vpop.f32.mrf.mxu0
      %v1782 = vadd.f32 0.0, %v1781
      %v1783 = vpop.f32.mrf.mxu0
      %1784 = vmatprep.mubr.f32.mxu0 0.0
      %1785 = vmatmul.mubr.f32.gmra.mxu0 %v1598
      %v1786 = vpop.f32.mrf.mxu0
      %v1787 = vadd.f32 0.0, %v1786
      %v1788 = vpop.f32.mrf.mxu0
      %1789 = vmatprep.mubr.f32.mxu0 0.0
      %1790 = vmatmul.mubr.f32.gmra.mxu0 %v1601
      %v1791 = vpop.f32.mrf.mxu0
      %v1792 = vadd.f32 0.0, %v1791
      %v1793 = vpop.f32.mrf.mxu0
      %1794 = vmatprep.mubr.f32.mxu0 0.0
      %1795 = vmatmul.mubr.f32.gmra.mxu0 %v1604
      %v1796 = vpop.f32.mrf.mxu0
      %v1797 = vadd.f32 0.0, %v1796
      %v1798 = vpop.f32.mrf.mxu0
      %1799 = vmatprep.mubr.f32.mxu0 0.0
      %1800 = vmatmul.mubr.f32.gmra.mxu0 %v1607
      %v1801 = vpop.f32.mrf.mxu0
      %v1802 = vadd.f32 0.0, %v1801
      %v1803 = vpop.f32.mrf.mxu0
      %1804 = vmatprep.mubr.f32.mxu0 0.0
      %1805 = vmatmul.mubr.f32.gmra.mxu0 %v1610
      %v1806 = vpop.f32.mrf.mxu0
      %v1807 = vadd.f32 0.0, %v1806
      %v1808 = vpop.f32.mrf.mxu0
      %1809 = vmatprep.mubr.f32.mxu0 0.0
      %1810 = vmatmul.mubr.f32.gmra.mxu0 %v1613
      %v1811 = vpop.f32.mrf.mxu0
      %v1812 = vadd.f32 0.0, %v1811
      %v1813 = vpop.f32.mrf.mxu0
      %1814 = vmatprep.mubr.f32.mxu0 0.0
      %1815 = vmatmul.mubr.f32.gmra.mxu0 %v1616
      %v1816 = vpop.f32.mrf.mxu0
      %v1817 = vadd.f32 0.0, %v1816
      %v1818 = vpop.f32.mrf.mxu0
      %1819 = vmatprep.mubr.f32.mxu0 0.0
      %1820 = vmatmul.mubr.f32.gmra.mxu0 %v1619
      %v1821 = vpop.f32.mrf.mxu0
      %v1822 = vadd.f32 0.0, %v1821
      %v1823 = vpop.f32.mrf.mxu0
      %1824 = vmatprep.mubr.f32.mxu0 0.0
      %1825 = vmatmul.mubr.f32.gmra.mxu0 %v1622
      %v1826 = vpop.f32.mrf.mxu0
      %v1827 = vadd.f32 0.0, %v1826
      %v1828 = vpop.f32.mrf.mxu0
      %1829 = vmatprep.mubr.f32.mxu0 0.0
      %1830 = vmatmul.mubr.f32.gmra.mxu0 %v1625
      %v1831 = vpop.f32.mrf.mxu0
      %v1832 = vadd.f32 0.0, %v1831
      %v1833 = vpop.f32.mrf.mxu0
      %1834 = vmatprep.mubr.f32.mxu0 0.0
      %1835 = vmatmul.mubr.f32.gmra.mxu0 %v1628
      %v1836 = vpop.f32.mrf.mxu0
      %v1837 = vadd.f32 0.0, %v1836
      %v1838 = vpop.f32.mrf.mxu0
      %1839 = vmatprep.mubr.f32.mxu0 0.0
      %1840 = vmatmul.mubr.f32.gmra.mxu0 %v1631
      %v1841 = vpop.f32.mrf.mxu0
      %v1842 = vadd.f32 0.0, %v1841
      %v1843 = vpop.f32.mrf.mxu0
      %1844 = vmatprep.mubr.f32.mxu0 0.0
      %1845 = vmatmul.mubr.f32.gmra.mxu0 %v1634
      %v1846 = vpop.f32.mrf.mxu0
      %v1847 = vadd.f32 0.0, %v1846
      %v1848 = vpop.f32.mrf.mxu0
      %1849 = vmatprep.mubr.f32.mxu0 0.0
      %1850 = vmatmul.mubr.f32.gmra.mxu0 %v1637
      %v1851 = vpop.f32.mrf.mxu0
      %v1852 = vadd.f32 0.0, %v1851
      %v1853 = vpop.f32.mrf.mxu0
      %1854 = vmatprep.mubr.f32.mxu0 0.0
      %1855 = vmatmul.mubr.f32.gmra.mxu0 %v1640
      %v1856 = vpop.f32.mrf.mxu0
      %v1857 = vadd.f32 0.0, %v1856
      %v1858 = vpop.f32.mrf.mxu0
      %1859 = vmatprep.mubr.f32.mxu0 0.0
      %1860 = vmatmul.mubr.f32.gmra.mxu0 %v1643
      %v1861 = vpop.f32.mrf.mxu0
      %v1862 = vadd.f32 0.0, %v1861
      %v1863 = vpop.f32.mrf.mxu0
      %1864 = vmatprep.mubr.f32.mxu0 0.0
      %1865 = vmatmul.mubr.f32.gmra.mxu0 %v1646
      %v1866 = vpop.f32.mrf.mxu0
      %v1867 = vadd.f32 0.0, %v1866
      %v1868 = vpop.f32.mrf.mxu0
      %1869 = vmatprep.mubr.f32.mxu0 0.0
      %1870 = vmatmul.mubr.f32.gmra.mxu0 %v1649
      %v1871 = vpop.f32.mrf.mxu0
      %v1872 = vadd.f32 0.0, %v1871
      %v1873 = vpop.f32.mrf.mxu0
      %1874 = vmatprep.mubr.f32.mxu0 0.0
      %1875 = vmatmul.mubr.f32.gmra.mxu0 %v1652
      %v1876 = vpop.f32.mrf.mxu0
      %v1877 = vadd.f32 0.0, %v1876
      %v1878 = vpop.f32.mrf.mxu0
      %1879 = vmatprep.mubr.f32.mxu0 0.0
      %1880 = vmatmul.mubr.f32.gmra.mxu0 %v1655
      %v1881 = vpop.f32.mrf.mxu0
      %v1882 = vadd.f32 0.0, %v1881
      %v1883 = vpop.f32.mrf.mxu0
      %1884 = vdwg.mxu0
      %v1885 = vadd.f32 %v1495, %v1727
      %v1886 = vadd.f32 %v1496, %v1732
      %v1887 = vadd.f32 %v1497, %v1737
      %v1888 = vadd.f32 %v1498, %v1742
      %v1889 = vadd.f32 %v1499, %v1747
      %v1890 = vadd.f32 %v1500, %v1752
      %v1891 = vadd.f32 %v1501, %v1757
      %v1892 = vadd.f32 %v1502, %v1762
      %v1893 = vadd.f32 %v1503, %v1767
      %v1894 = vadd.f32 %v1504, %v1772
      %v1895 = vadd.f32 %v1505, %v1777
      %v1896 = vadd.f32 %v1506, %v1782
      %v1897 = vadd.f32 %v1507, %v1787
      %v1898 = vadd.f32 %v1508, %v1792
      %v1899 = vadd.f32 %v1509, %v1797
      %v1900 = vadd.f32 %v1510, %v1802
      %v1901 = vadd.f32 %v1511, %v1807
      %v1902 = vadd.f32 %v1512, %v1812
      %v1903 = vadd.f32 %v1513, %v1817
      %v1904 = vadd.f32 %v1514, %v1822
      %v1905 = vadd.f32 %v1515, %v1827
      %v1906 = vadd.f32 %v1516, %v1832
      %v1907 = vadd.f32 %v1517, %v1837
      %v1908 = vadd.f32 %v1518, %v1842
      %v1909 = vadd.f32 %v1519, %v1847
      %v1910 = vadd.f32 %v1520, %v1852
      %v1911 = vadd.f32 %v1521, %v1857
      %v1912 = vadd.f32 %v1522, %v1862
      %v1913 = vadd.f32 %v1523, %v1867
      %v1914 = vadd.f32 %v1524, %v1872
      %v1915 = vadd.f32 %v1525, %v1877
      %v1916 = vadd.f32 %v1526, %v1882
      %v1917 = vld [vmem:[%s388 + $0x1] sm:$0xff]
      %v1918 = vld [vmem:[%s388 + $0x9] sm:$0xff]
      %v1919 = vld [vmem:[%s388 + $0x19] sm:$0xff]
      %v1920 = vld [vmem:[%s388 + $0x21] sm:$0xff]
      %v1921 = vld [vmem:[%s388 + $0x31] sm:$0xff]
      %v1922 = vld [vmem:[%s388 + $0x39] sm:$0xff]
      %v1923 = vld [vmem:[%s388 + $0x49] sm:$0xff]
      %v1924 = vld [vmem:[%s388 + $0x51] sm:$0xff]
      %v1925 = vld [vmem:[%s388 + $0x61] sm:$0xff]
      %v1926 = vld [vmem:[%s388 + $0x69] sm:$0xff]
      %v1927 = vld [vmem:[%s388 + $0x79] sm:$0xff]
      %v1928 = vld [vmem:[%s388 + $0x81] sm:$0xff]
      %v1929 = vld [vmem:[%s388 + $0x91] sm:$0xff]
      %v1930 = vld [vmem:[%s388 + $0x99] sm:$0xff]
      %v1931 = vld [vmem:[%s388 + $0xa9] sm:$0xff]
      %v1932 = vld [vmem:[%s388 + $0xb1] sm:$0xff]
      %v1933 = vld [vmem:[%s388 + $0xc1] sm:$0xff]
      %v1934 = vld [vmem:[%s388 + $0xc9] sm:$0xff]
      %v1935 = vld [vmem:[%s388 + $0xd9] sm:$0xff]
      %v1936 = vld [vmem:[%s388 + $0xe1] sm:$0xff]
      %v1937 = vld [vmem:[%s388 + $0xf1] sm:$0xff]
      %v1938 = vld [vmem:[%s388 + $0xf9] sm:$0xff]
      %v1939 = vld [vmem:[%s388 + $0x109] sm:$0xff]
      %v1940 = vld [vmem:[%s388 + $0x111] sm:$0xff]
      %v1941 = vld [vmem:[%s388 + $0x121] sm:$0xff]
      %v1942 = vld [vmem:[%s388 + $0x129] sm:$0xff]
      %v1943 = vld [vmem:[%s388 + $0x139] sm:$0xff]
      %v1944 = vld [vmem:[%s388 + $0x141] sm:$0xff]
      %v1945 = vld [vmem:[%s388 + $0x151] sm:$0xff]
      %v1946 = vld [vmem:[%s388 + $0x159] sm:$0xff]
      %v1947 = vld [vmem:[%s388 + $0x169] sm:$0xff]
      %v1948 = vld [vmem:[%s388 + $0x171] sm:$0xff]
      %s1949 = scalar_lea.vmem %s2, 16
      %v1950 = vld [vmem:[%s1949] sm:$0xf]
      %v1952 = vsel %vm236, %v1917, 0
      %v1955 = vsel %vm236, %v1918, 0
      %v1958 = vsel %vm236, %v1919, 0
      %v1961 = vsel %vm236, %v1920, 0
      %v1964 = vsel %vm236, %v1921, 0
      %v1967 = vsel %vm236, %v1922, 0
      %v1970 = vsel %vm236, %v1923, 0
      %v1973 = vsel %vm236, %v1924, 0
      %v1976 = vsel %vm236, %v1925, 0
      %v1979 = vsel %vm236, %v1926, 0
      %v1982 = vsel %vm236, %v1927, 0
      %v1985 = vsel %vm236, %v1928, 0
      %v1988 = vsel %vm236, %v1929, 0
      %v1991 = vsel %vm236, %v1930, 0
      %v1994 = vsel %vm236, %v1931, 0
      %v1997 = vsel %vm236, %v1932, 0
      %v2000 = vsel %vm236, %v1933, 0
      %v2003 = vsel %vm236, %v1934, 0
      %v2006 = vsel %vm236, %v1935, 0
      %v2009 = vsel %vm236, %v1936, 0
      %v2012 = vsel %vm236, %v1937, 0
      %v2015 = vsel %vm236, %v1938, 0
      %v2018 = vsel %vm236, %v1939, 0
      %v2021 = vsel %vm236, %v1940, 0
      %v2024 = vsel %vm236, %v1941, 0
      %v2027 = vsel %vm236, %v1942, 0
      %v2030 = vsel %vm236, %v1943, 0
      %v2033 = vsel %vm236, %v1944, 0
      %v2036 = vsel %vm236, %v1945, 0
      %v2039 = vsel %vm236, %v1946, 0
      %v2042 = vsel %vm236, %v1947, 0
      %v2045 = vsel %vm236, %v1948, 0
      %v2048 = vsel %vm584, %v1950, 0
      %2050 = vmatprep.subr.mxu0 0.0
      %2051 = vmatpush1.msra.mxu0 0.0
      %2052 = vmatprep.subr.mxu0 0.0
      %2053 = vmatpush1.msra.mxu0 0.0
      %2054 = vmatprep.subr.mxu0 0.0
      %2055 = vmatpush1.msra.mxu0 0.0
      %2056 = vmatprep.subr.mxu0 0.0
      %2057 = vmatpush1.msra.mxu0 0.0
      %2058 = vmatprep.subr.mxu0 0.0
      %2059 = vmatpush1.msra.mxu0 0.0
      %2060 = vmatprep.subr.mxu0 0.0
      %2061 = vmatpush1.msra.mxu0 0.0
      %2062 = vmatprep.subr.mxu0 0.0
      %2063 = vmatpush1.msra.mxu0 0.0
      %2064 = vmatprep.subr.mxu0 0.0
      %2065 = vmatpush1.msra.mxu0 0.0
      %2066 = vmatprep.subr.mxu0 0.0
      %2067 = vmatpush1.msra.mxu0 0.0
      %2068 = vmatprep.subr.mxu0 0.0
      %2069 = vmatpush1.msra.mxu0 0.0
      %2070 = vmatprep.subr.mxu0 0.0
      %2071 = vmatpush1.msra.mxu0 0.0
      %2072 = vmatprep.subr.mxu0 0.0
      %2073 = vmatpush1.msra.mxu0 0.0
      %2074 = vmatprep.subr.mxu0 0.0
      %2075 = vmatpush1.msra.mxu0 0.0
      %2076 = vmatprep.subr.mxu0 0.0
      %2077 = vmatpush1.msra.mxu0 0.0
      %2078 = vmatprep.subr.mxu0 0.0
      %2079 = vmatpush1.msra.mxu0 0.0
      %2080 = vmatprep.subr.mxu0 0.0
      %2081 = vmatpush1.msra.mxu0 %v2048
      %2082 = vmatprep.subr.mxu0 0.0
      %2083 = vmatpush2.msra.mxu0 0.0
      %2084 = vmatprep.subr.mxu0 0.0
      %2085 = vmatpush2.msra.mxu0 0.0
      %2086 = vmatprep.subr.mxu0 0.0
      %2087 = vmatpush2.msra.mxu0 0.0
      %2088 = vmatprep.subr.mxu0 0.0
      %2089 = vmatpush2.msra.mxu0 0.0
      %2090 = vmatprep.subr.mxu0 0.0
      %2091 = vmatpush2.msra.mxu0 0.0
      %2092 = vmatprep.subr.mxu0 0.0
      %2093 = vmatpush2.msra.mxu0 0.0
      %2094 = vmatprep.subr.mxu0 0.0
      %2095 = vmatpush2.msra.mxu0 0.0
      %2096 = vmatprep.subr.mxu0 0.0
      %2097 = vmatpush2.msra.mxu0 0.0
      %2098 = vmatprep.subr.mxu0 0.0
      %2099 = vmatpush2.msra.mxu0 0.0
      %2100 = vmatprep.subr.mxu0 0.0
      %2101 = vmatpush2.msra.mxu0 0.0
      %2102 = vmatprep.subr.mxu0 0.0
      %2103 = vmatpush2.msra.mxu0 0.0
      %2104 = vmatprep.subr.mxu0 0.0
      %2105 = vmatpush2.msra.mxu0 0.0
      %2106 = vmatprep.subr.mxu0 0.0
      %2107 = vmatpush2.msra.mxu0 0.0
      %2108 = vmatprep.subr.mxu0 0.0
      %2109 = vmatpush2.msra.mxu0 0.0
      %2110 = vmatprep.subr.mxu0 0.0
      %2111 = vmatpush2.msra.mxu0 0.0
      %2112 = vmatprep.subr.mxu0 0.0
      %2113 = vmatpush2.msra.mxu0 0.0
      %2114 = vmatprep.mubr.f32.mxu0 0.0
      %2115 = vmatmul.mubr.f32.gmra.mxu0 %v1952
      %v2116 = vpop.f32.mrf.mxu0
      %v2117 = vadd.f32 0.0, %v2116
      %v2118 = vpop.f32.mrf.mxu0
      %2119 = vmatprep.mubr.f32.mxu0 0.0
      %2120 = vmatmul.mubr.f32.gmra.mxu0 %v1955
      %v2121 = vpop.f32.mrf.mxu0
      %v2122 = vadd.f32 0.0, %v2121
      %v2123 = vpop.f32.mrf.mxu0
      %2124 = vmatprep.mubr.f32.mxu0 0.0
      %2125 = vmatmul.mubr.f32.gmra.mxu0 %v1958
      %v2126 = vpop.f32.mrf.mxu0
      %v2127 = vadd.f32 0.0, %v2126
      %v2128 = vpop.f32.mrf.mxu0
      %2129 = vmatprep.mubr.f32.mxu0 0.0
      %2130 = vmatmul.mubr.f32.gmra.mxu0 %v1961
      %v2131 = vpop.f32.mrf.mxu0
      %v2132 = vadd.f32 0.0, %v2131
      %v2133 = vpop.f32.mrf.mxu0
      %2134 = vmatprep.mubr.f32.mxu0 0.0
      %2135 = vmatmul.mubr.f32.gmra.mxu0 %v1964
      %v2136 = vpop.f32.mrf.mxu0
      %v2137 = vadd.f32 0.0, %v2136
      %v2138 = vpop.f32.mrf.mxu0
      %2139 = vmatprep.mubr.f32.mxu0 0.0
      %2140 = vmatmul.mubr.f32.gmra.mxu0 %v1967
      %v2141 = vpop.f32.mrf.mxu0
      %v2142 = vadd.f32 0.0, %v2141
      %v2143 = vpop.f32.mrf.mxu0
      %2144 = vmatprep.mubr.f32.mxu0 0.0
      %2145 = vmatmul.mubr.f32.gmra.mxu0 %v1970
      %v2146 = vpop.f32.mrf.mxu0
      %v2147 = vadd.f32 0.0, %v2146
      %v2148 = vpop.f32.mrf.mxu0
      %2149 = vmatprep.mubr.f32.mxu0 0.0
      %2150 = vmatmul.mubr.f32.gmra.mxu0 %v1973
      %v2151 = vpop.f32.mrf.mxu0
      %v2152 = vadd.f32 0.0, %v2151
      %v2153 = vpop.f32.mrf.mxu0
      %2154 = vmatprep.mubr.f32.mxu0 0.0
      %2155 = vmatmul.mubr.f32.gmra.mxu0 %v1976
      %v2156 = vpop.f32.mrf.mxu0
      %v2157 = vadd.f32 0.0, %v2156
      %v2158 = vpop.f32.mrf.mxu0
      %2159 = vmatprep.mubr.f32.mxu0 0.0
      %2160 = vmatmul.mubr.f32.gmra.mxu0 %v1979
      %v2161 = vpop.f32.mrf.mxu0
      %v2162 = vadd.f32 0.0, %v2161
      %v2163 = vpop.f32.mrf.mxu0
      %2164 = vmatprep.mubr.f32.mxu0 0.0
      %2165 = vmatmul.mubr.f32.gmra.mxu0 %v1982
      %v2166 = vpop.f32.mrf.mxu0
      %v2167 = vadd.f32 0.0, %v2166
      %v2168 = vpop.f32.mrf.mxu0
      %2169 = vmatprep.mubr.f32.mxu0 0.0
      %2170 = vmatmul.mubr.f32.gmra.mxu0 %v1985
      %v2171 = vpop.f32.mrf.mxu0
      %v2172 = vadd.f32 0.0, %v2171
      %v2173 = vpop.f32.mrf.mxu0
      %2174 = vmatprep.mubr.f32.mxu0 0.0
      %2175 = vmatmul.mubr.f32.gmra.mxu0 %v1988
      %v2176 = vpop.f32.mrf.mxu0
      %v2177 = vadd.f32 0.0, %v2176
      %v2178 = vpop.f32.mrf.mxu0
      %2179 = vmatprep.mubr.f32.mxu0 0.0
      %2180 = vmatmul.mubr.f32.gmra.mxu0 %v1991
      %v2181 = vpop.f32.mrf.mxu0
      %v2182 = vadd.f32 0.0, %v2181
      %v2183 = vpop.f32.mrf.mxu0
      %2184 = vmatprep.mubr.f32.mxu0 0.0
      %2185 = vmatmul.mubr.f32.gmra.mxu0 %v1994
      %v2186 = vpop.f32.mrf.mxu0
      %v2187 = vadd.f32 0.0, %v2186
      %v2188 = vpop.f32.mrf.mxu0
      %2189 = vmatprep.mubr.f32.mxu0 0.0
      %2190 = vmatmul.mubr.f32.gmra.mxu0 %v1997
      %v2191 = vpop.f32.mrf.mxu0
      %v2192 = vadd.f32 0.0, %v2191
      %v2193 = vpop.f32.mrf.mxu0
      %2194 = vmatprep.mubr.f32.mxu0 0.0
      %2195 = vmatmul.mubr.f32.gmra.mxu0 %v2000
      %v2196 = vpop.f32.mrf.mxu0
      %v2197 = vadd.f32 0.0, %v2196
      %v2198 = vpop.f32.mrf.mxu0
      %2199 = vmatprep.mubr.f32.mxu0 0.0
      %2200 = vmatmul.mubr.f32.gmra.mxu0 %v2003
      %v2201 = vpop.f32.mrf.mxu0
      %v2202 = vadd.f32 0.0, %v2201
      %v2203 = vpop.f32.mrf.mxu0
      %2204 = vmatprep.mubr.f32.mxu0 0.0
      %2205 = vmatmul.mubr.f32.gmra.mxu0 %v2006
      %v2206 = vpop.f32.mrf.mxu0
      %v2207 = vadd.f32 0.0, %v2206
      %v2208 = vpop.f32.mrf.mxu0
      %2209 = vmatprep.mubr.f32.mxu0 0.0
      %2210 = vmatmul.mubr.f32.gmra.mxu0 %v2009
      %v2211 = vpop.f32.mrf.mxu0
      %v2212 = vadd.f32 0.0, %v2211
      %v2213 = vpop.f32.mrf.mxu0
      %2214 = vmatprep.mubr.f32.mxu0 0.0
      %2215 = vmatmul.mubr.f32.gmra.mxu0 %v2012
      %v2216 = vpop.f32.mrf.mxu0
      %v2217 = vadd.f32 0.0, %v2216
      %v2218 = vpop.f32.mrf.mxu0
      %2219 = vmatprep.mubr.f32.mxu0 0.0
      %2220 = vmatmul.mubr.f32.gmra.mxu0 %v2015
      %v2221 = vpop.f32.mrf.mxu0
      %v2222 = vadd.f32 0.0, %v2221
      %v2223 = vpop.f32.mrf.mxu0
      %2224 = vmatprep.mubr.f32.mxu0 0.0
      %2225 = vmatmul.mubr.f32.gmra.mxu0 %v2018
      %v2226 = vpop.f32.mrf.mxu0
      %v2227 = vadd.f32 0.0, %v2226
      %v2228 = vpop.f32.mrf.mxu0
      %2229 = vmatprep.mubr.f32.mxu0 0.0
      %2230 = vmatmul.mubr.f32.gmra.mxu0 %v2021
      %v2231 = vpop.f32.mrf.mxu0
      %v2232 = vadd.f32 0.0, %v2231
      %v2233 = vpop.f32.mrf.mxu0
      %2234 = vmatprep.mubr.f32.mxu0 0.0
      %2235 = vmatmul.mubr.f32.gmra.mxu0 %v2024
      %v2236 = vpop.f32.mrf.mxu0
      %v2237 = vadd.f32 0.0, %v2236
      %v2238 = vpop.f32.mrf.mxu0
      %2239 = vmatprep.mubr.f32.mxu0 0.0
      %2240 = vmatmul.mubr.f32.gmra.mxu0 %v2027
      %v2241 = vpop.f32.mrf.mxu0
      %v2242 = vadd.f32 0.0, %v2241
      %v2243 = vpop.f32.mrf.mxu0
      %2244 = vmatprep.mubr.f32.mxu0 0.0
      %2245 = vmatmul.mubr.f32.gmra.mxu0 %v2030
      %v2246 = vpop.f32.mrf.mxu0
      %v2247 = vadd.f32 0.0, %v2246
      %v2248 = vpop.f32.mrf.mxu0
      %2249 = vmatprep.mubr.f32.mxu0 0.0
      %2250 = vmatmul.mubr.f32.gmra.mxu0 %v2033
      %v2251 = vpop.f32.mrf.mxu0
      %v2252 = vadd.f32 0.0, %v2251
      %v2253 = vpop.f32.mrf.mxu0
      %2254 = vmatprep.mubr.f32.mxu0 0.0
      %2255 = vmatmul.mubr.f32.gmra.mxu0 %v2036
      %v2256 = vpop.f32.mrf.mxu0
      %v2257 = vadd.f32 0.0, %v2256
      %v2258 = vpop.f32.mrf.mxu0
      %2259 = vmatprep.mubr.f32.mxu0 0.0
      %2260 = vmatmul.mubr.f32.gmra.mxu0 %v2039
      %v2261 = vpop.f32.mrf.mxu0
      %v2262 = vadd.f32 0.0, %v2261
      %v2263 = vpop.f32.mrf.mxu0
      %2264 = vmatprep.mubr.f32.mxu0 0.0
      %2265 = vmatmul.mubr.f32.gmra.mxu0 %v2042
      %v2266 = vpop.f32.mrf.mxu0
      %v2267 = vadd.f32 0.0, %v2266
      %v2268 = vpop.f32.mrf.mxu0
      %2269 = vmatprep.mubr.f32.mxu0 0.0
      %2270 = vmatmul.mubr.f32.gmra.mxu0 %v2045
      %v2271 = vpop.f32.mrf.mxu0
      %v2272 = vadd.f32 0.0, %v2271
      %v2273 = vpop.f32.mrf.mxu0
      %2274 = vdwg.mxu0
      %v2275 = vadd.f32 %v1885, %v2117
      %v2276 = vadd.f32 %v1886, %v2122
      %v2277 = vadd.f32 %v1887, %v2127
      %v2278 = vadd.f32 %v1888, %v2132
      %v2279 = vadd.f32 %v1889, %v2137
      %v2280 = vadd.f32 %v1890, %v2142
      %v2281 = vadd.f32 %v1891, %v2147
      %v2282 = vadd.f32 %v1892, %v2152
      %v2283 = vadd.f32 %v1893, %v2157
      %v2284 = vadd.f32 %v1894, %v2162
      %v2285 = vadd.f32 %v1895, %v2167
      %v2286 = vadd.f32 %v1896, %v2172
      %v2287 = vadd.f32 %v1897, %v2177
      %v2288 = vadd.f32 %v1898, %v2182
      %v2289 = vadd.f32 %v1899, %v2187
      %v2290 = vadd.f32 %v1900, %v2192
      %v2291 = vadd.f32 %v1901, %v2197
      %v2292 = vadd.f32 %v1902, %v2202
      %v2293 = vadd.f32 %v1903, %v2207
      %v2294 = vadd.f32 %v1904, %v2212
      %v2295 = vadd.f32 %v1905, %v2217
      %v2296 = vadd.f32 %v1906, %v2222
      %v2297 = vadd.f32 %v1907, %v2227
      %v2298 = vadd.f32 %v1908, %v2232
      %v2299 = vadd.f32 %v1909, %v2237
      %v2300 = vadd.f32 %v1910, %v2242
      %v2301 = vadd.f32 %v1911, %v2247
      %v2302 = vadd.f32 %v1912, %v2252
      %v2303 = vadd.f32 %v1913, %v2257
      %v2304 = vadd.f32 %v1914, %v2262
      %v2305 = vadd.f32 %v1915, %v2267
      %v2306 = vadd.f32 %v1916, %v2272
      %v2307 = vld [vmem:[%s388 + $0x2] sm:$0xff]
      %v2308 = vld [vmem:[%s388 + $0xa] sm:$0xff]
      %v2309 = vld [vmem:[%s388 + $0x1a] sm:$0xff]
      %v2310 = vld [vmem:[%s388 + $0x22] sm:$0xff]
      %v2311 = vld [vmem:[%s388 + $0x32] sm:$0xff]
      %v2312 = vld [vmem:[%s388 + $0x3a] sm:$0xff]
      %v2313 = vld [vmem:[%s388 + $0x4a] sm:$0xff]
      %v2314 = vld [vmem:[%s388 + $0x52] sm:$0xff]
      %v2315 = vld [vmem:[%s388 + $0x62] sm:$0xff]
      %v2316 = vld [vmem:[%s388 + $0x6a] sm:$0xff]
      %v2317 = vld [vmem:[%s388 + $0x7a] sm:$0xff]
      %v2318 = vld [vmem:[%s388 + $0x82] sm:$0xff]
      %v2319 = vld [vmem:[%s388 + $0x92] sm:$0xff]
      %v2320 = vld [vmem:[%s388 + $0x9a] sm:$0xff]
      %v2321 = vld [vmem:[%s388 + $0xaa] sm:$0xff]
      %v2322 = vld [vmem:[%s388 + $0xb2] sm:$0xff]
      %v2323 = vld [vmem:[%s388 + $0xc2] sm:$0xff]
      %v2324 = vld [vmem:[%s388 + $0xca] sm:$0xff]
      %v2325 = vld [vmem:[%s388 + $0xda] sm:$0xff]
      %v2326 = vld [vmem:[%s388 + $0xe2] sm:$0xff]
      %v2327 = vld [vmem:[%s388 + $0xf2] sm:$0xff]
      %v2328 = vld [vmem:[%s388 + $0xfa] sm:$0xff]
      %v2329 = vld [vmem:[%s388 + $0x10a] sm:$0xff]
      %v2330 = vld [vmem:[%s388 + $0x112] sm:$0xff]
      %v2331 = vld [vmem:[%s388 + $0x122] sm:$0xff]
      %v2332 = vld [vmem:[%s388 + $0x12a] sm:$0xff]
      %v2333 = vld [vmem:[%s388 + $0x13a] sm:$0xff]
      %v2334 = vld [vmem:[%s388 + $0x142] sm:$0xff]
      %v2335 = vld [vmem:[%s388 + $0x152] sm:$0xff]
      %v2336 = vld [vmem:[%s388 + $0x15a] sm:$0xff]
      %v2337 = vld [vmem:[%s388 + $0x16a] sm:$0xff]
      %v2338 = vld [vmem:[%s388 + $0x172] sm:$0xff]
      %s2339 = scalar_lea.vmem %s2, 20
      %v2340 = vld [vmem:[%s2339] sm:$0xf]
      %v2342 = vsel %vm236, %v2307, 0
      %v2345 = vsel %vm236, %v2308, 0
      %v2348 = vsel %vm236, %v2309, 0
      %v2351 = vsel %vm236, %v2310, 0
      %v2354 = vsel %vm236, %v2311, 0
      %v2357 = vsel %vm236, %v2312, 0
      %v2360 = vsel %vm236, %v2313, 0
      %v2363 = vsel %vm236, %v2314, 0
      %v2366 = vsel %vm236, %v2315, 0
      %v2369 = vsel %vm236, %v2316, 0
      %v2372 = vsel %vm236, %v2317, 0
      %v2375 = vsel %vm236, %v2318, 0
      %v2378 = vsel %vm236, %v2319, 0
      %v2381 = vsel %vm236, %v2320, 0
      %v2384 = vsel %vm236, %v2321, 0
      %v2387 = vsel %vm236, %v2322, 0
      %v2390 = vsel %vm236, %v2323, 0
      %v2393 = vsel %vm236, %v2324, 0
      %v2396 = vsel %vm236, %v2325, 0
      %v2399 = vsel %vm236, %v2326, 0
      %v2402 = vsel %vm236, %v2327, 0
      %v2405 = vsel %vm236, %v2328, 0
      %v2408 = vsel %vm236, %v2329, 0
      %v2411 = vsel %vm236, %v2330, 0
      %v2414 = vsel %vm236, %v2331, 0
      %v2417 = vsel %vm236, %v2332, 0
      %v2420 = vsel %vm236, %v2333, 0
      %v2423 = vsel %vm236, %v2334, 0
      %v2426 = vsel %vm236, %v2335, 0
      %v2429 = vsel %vm236, %v2336, 0
      %v2432 = vsel %vm236, %v2337, 0
      %v2435 = vsel %vm236, %v2338, 0
      %v2438 = vsel %vm584, %v2340, 0
      %2440 = vmatprep.subr.mxu0 0.0
      %2441 = vmatpush1.msra.mxu0 0.0
      %2442 = vmatprep.subr.mxu0 0.0
      %2443 = vmatpush1.msra.mxu0 0.0
      %2444 = vmatprep.subr.mxu0 0.0
      %2445 = vmatpush1.msra.mxu0 0.0
      %2446 = vmatprep.subr.mxu0 0.0
      %2447 = vmatpush1.msra.mxu0 0.0
      %2448 = vmatprep.subr.mxu0 0.0
      %2449 = vmatpush1.msra.mxu0 0.0
      %2450 = vmatprep.subr.mxu0 0.0
      %2451 = vmatpush1.msra.mxu0 0.0
      %2452 = vmatprep.subr.mxu0 0.0
      %2453 = vmatpush1.msra.mxu0 0.0
      %2454 = vmatprep.subr.mxu0 0.0
      %2455 = vmatpush1.msra.mxu0 0.0
      %2456 = vmatprep.subr.mxu0 0.0
      %2457 = vmatpush1.msra.mxu0 0.0
      %2458 = vmatprep.subr.mxu0 0.0
      %2459 = vmatpush1.msra.mxu0 0.0
      %2460 = vmatprep.subr.mxu0 0.0
      %2461 = vmatpush1.msra.mxu0 0.0
      %2462 = vmatprep.subr.mxu0 0.0
      %2463 = vmatpush1.msra.mxu0 0.0
      %2464 = vmatprep.subr.mxu0 0.0
      %2465 = vmatpush1.msra.mxu0 0.0
      %2466 = vmatprep.subr.mxu0 0.0
      %2467 = vmatpush1.msra.mxu0 0.0
      %2468 = vmatprep.subr.mxu0 0.0
      %2469 = vmatpush1.msra.mxu0 0.0
      %2470 = vmatprep.subr.mxu0 0.0
      %2471 = vmatpush1.msra.mxu0 %v2438
      %2472 = vmatprep.subr.mxu0 0.0
      %2473 = vmatpush2.msra.mxu0 0.0
      %2474 = vmatprep.subr.mxu0 0.0
      %2475 = vmatpush2.msra.mxu0 0.0
      %2476 = vmatprep.subr.mxu0 0.0
      %2477 = vmatpush2.msra.mxu0 0.0
      %2478 = vmatprep.subr.mxu0 0.0
      %2479 = vmatpush2.msra.mxu0 0.0
      %2480 = vmatprep.subr.mxu0 0.0
      %2481 = vmatpush2.msra.mxu0 0.0
      %2482 = vmatprep.subr.mxu0 0.0
      %2483 = vmatpush2.msra.mxu0 0.0
      %2484 = vmatprep.subr.mxu0 0.0
      %2485 = vmatpush2.msra.mxu0 0.0
      %2486 = vmatprep.subr.mxu0 0.0
      %2487 = vmatpush2.msra.mxu0 0.0
      %2488 = vmatprep.subr.mxu0 0.0
      %2489 = vmatpush2.msra.mxu0 0.0
      %2490 = vmatprep.subr.mxu0 0.0
      %2491 = vmatpush2.msra.mxu0 0.0
      %2492 = vmatprep.subr.mxu0 0.0
      %2493 = vmatpush2.msra.mxu0 0.0
      %2494 = vmatprep.subr.mxu0 0.0
      %2495 = vmatpush2.msra.mxu0 0.0
      %2496 = vmatprep.subr.mxu0 0.0
      %2497 = vmatpush2.msra.mxu0 0.0
      %2498 = vmatprep.subr.mxu0 0.0
      %2499 = vmatpush2.msra.mxu0 0.0
      %2500 = vmatprep.subr.mxu0 0.0
      %2501 = vmatpush2.msra.mxu0 0.0
      %2502 = vmatprep.subr.mxu0 0.0
      %2503 = vmatpush2.msra.mxu0 0.0
      %2504 = vmatprep.mubr.f32.mxu0 0.0
      %2505 = vmatmul.mubr.f32.gmra.mxu0 %v2342
      %v2506 = vpop.f32.mrf.mxu0
      %v2507 = vadd.f32 0.0, %v2506
      %v2508 = vpop.f32.mrf.mxu0
      %2509 = vmatprep.mubr.f32.mxu0 0.0
      %2510 = vmatmul.mubr.f32.gmra.mxu0 %v2345
      %v2511 = vpop.f32.mrf.mxu0
      %v2512 = vadd.f32 0.0, %v2511
      %v2513 = vpop.f32.mrf.mxu0
      %2514 = vmatprep.mubr.f32.mxu0 0.0
      %2515 = vmatmul.mubr.f32.gmra.mxu0 %v2348
      %v2516 = vpop.f32.mrf.mxu0
      %v2517 = vadd.f32 0.0, %v2516
      %v2518 = vpop.f32.mrf.mxu0
      %2519 = vmatprep.mubr.f32.mxu0 0.0
      %2520 = vmatmul.mubr.f32.gmra.mxu0 %v2351
      %v2521 = vpop.f32.mrf.mxu0
      %v2522 = vadd.f32 0.0, %v2521
      %v2523 = vpop.f32.mrf.mxu0
      %2524 = vmatprep.mubr.f32.mxu0 0.0
      %2525 = vmatmul.mubr.f32.gmra.mxu0 %v2354
      %v2526 = vpop.f32.mrf.mxu0
      %v2527 = vadd.f32 0.0, %v2526
      %v2528 = vpop.f32.mrf.mxu0
      %2529 = vmatprep.mubr.f32.mxu0 0.0
      %2530 = vmatmul.mubr.f32.gmra.mxu0 %v2357
      %v2531 = vpop.f32.mrf.mxu0
      %v2532 = vadd.f32 0.0, %v2531
      %v2533 = vpop.f32.mrf.mxu0
      %2534 = vmatprep.mubr.f32.mxu0 0.0
      %2535 = vmatmul.mubr.f32.gmra.mxu0 %v2360
      %v2536 = vpop.f32.mrf.mxu0
      %v2537 = vadd.f32 0.0, %v2536
      %v2538 = vpop.f32.mrf.mxu0
      %2539 = vmatprep.mubr.f32.mxu0 0.0
      %2540 = vmatmul.mubr.f32.gmra.mxu0 %v2363
      %v2541 = vpop.f32.mrf.mxu0
      %v2542 = vadd.f32 0.0, %v2541
      %v2543 = vpop.f32.mrf.mxu0
      %2544 = vmatprep.mubr.f32.mxu0 0.0
      %2545 = vmatmul.mubr.f32.gmra.mxu0 %v2366
      %v2546 = vpop.f32.mrf.mxu0
      %v2547 = vadd.f32 0.0, %v2546
      %v2548 = vpop.f32.mrf.mxu0
      %2549 = vmatprep.mubr.f32.mxu0 0.0
      %2550 = vmatmul.mubr.f32.gmra.mxu0 %v2369
      %v2551 = vpop.f32.mrf.mxu0
      %v2552 = vadd.f32 0.0, %v2551
      %v2553 = vpop.f32.mrf.mxu0
      %2554 = vmatprep.mubr.f32.mxu0 0.0
      %2555 = vmatmul.mubr.f32.gmra.mxu0 %v2372
      %v2556 = vpop.f32.mrf.mxu0
      %v2557 = vadd.f32 0.0, %v2556
      %v2558 = vpop.f32.mrf.mxu0
      %2559 = vmatprep.mubr.f32.mxu0 0.0
      %2560 = vmatmul.mubr.f32.gmra.mxu0 %v2375
      %v2561 = vpop.f32.mrf.mxu0
      %v2562 = vadd.f32 0.0, %v2561
      %v2563 = vpop.f32.mrf.mxu0
      %2564 = vmatprep.mubr.f32.mxu0 0.0
      %2565 = vmatmul.mubr.f32.gmra.mxu0 %v2378
      %v2566 = vpop.f32.mrf.mxu0
      %v2567 = vadd.f32 0.0, %v2566
      %v2568 = vpop.f32.mrf.mxu0
      %2569 = vmatprep.mubr.f32.mxu0 0.0
      %2570 = vmatmul.mubr.f32.gmra.mxu0 %v2381
      %v2571 = vpop.f32.mrf.mxu0
      %v2572 = vadd.f32 0.0, %v2571
      %v2573 = vpop.f32.mrf.mxu0
      %2574 = vmatprep.mubr.f32.mxu0 0.0
      %2575 = vmatmul.mubr.f32.gmra.mxu0 %v2384
      %v2576 = vpop.f32.mrf.mxu0
      %v2577 = vadd.f32 0.0, %v2576
      %v2578 = vpop.f32.mrf.mxu0
      %2579 = vmatprep.mubr.f32.mxu0 0.0
      %2580 = vmatmul.mubr.f32.gmra.mxu0 %v2387
      %v2581 = vpop.f32.mrf.mxu0
      %v2582 = vadd.f32 0.0, %v2581
      %v2583 = vpop.f32.mrf.mxu0
      %2584 = vmatprep.mubr.f32.mxu0 0.0
      %2585 = vmatmul.mubr.f32.gmra.mxu0 %v2390
      %v2586 = vpop.f32.mrf.mxu0
      %v2587 = vadd.f32 0.0, %v2586
      %v2588 = vpop.f32.mrf.mxu0
      %2589 = vmatprep.mubr.f32.mxu0 0.0
      %2590 = vmatmul.mubr.f32.gmra.mxu0 %v2393
      %v2591 = vpop.f32.mrf.mxu0
      %v2592 = vadd.f32 0.0, %v2591
      %v2593 = vpop.f32.mrf.mxu0
      %2594 = vmatprep.mubr.f32.mxu0 0.0
      %2595 = vmatmul.mubr.f32.gmra.mxu0 %v2396
      %v2596 = vpop.f32.mrf.mxu0
      %v2597 = vadd.f32 0.0, %v2596
      %v2598 = vpop.f32.mrf.mxu0
      %2599 = vmatprep.mubr.f32.mxu0 0.0
      %2600 = vmatmul.mubr.f32.gmra.mxu0 %v2399
      %v2601 = vpop.f32.mrf.mxu0
      %v2602 = vadd.f32 0.0, %v2601
      %v2603 = vpop.f32.mrf.mxu0
      %2604 = vmatprep.mubr.f32.mxu0 0.0
      %2605 = vmatmul.mubr.f32.gmra.mxu0 %v2402
      %v2606 = vpop.f32.mrf.mxu0
      %v2607 = vadd.f32 0.0, %v2606
      %v2608 = vpop.f32.mrf.mxu0
      %2609 = vmatprep.mubr.f32.mxu0 0.0
      %2610 = vmatmul.mubr.f32.gmra.mxu0 %v2405
      %v2611 = vpop.f32.mrf.mxu0
      %v2612 = vadd.f32 0.0, %v2611
      %v2613 = vpop.f32.mrf.mxu0
      %2614 = vmatprep.mubr.f32.mxu0 0.0
      %2615 = vmatmul.mubr.f32.gmra.mxu0 %v2408
      %v2616 = vpop.f32.mrf.mxu0
      %v2617 = vadd.f32 0.0, %v2616
      %v2618 = vpop.f32.mrf.mxu0
      %2619 = vmatprep.mubr.f32.mxu0 0.0
      %2620 = vmatmul.mubr.f32.gmra.mxu0 %v2411
      %v2621 = vpop.f32.mrf.mxu0
      %v2622 = vadd.f32 0.0, %v2621
      %v2623 = vpop.f32.mrf.mxu0
      %2624 = vmatprep.mubr.f32.mxu0 0.0
      %2625 = vmatmul.mubr.f32.gmra.mxu0 %v2414
      %v2626 = vpop.f32.mrf.mxu0
      %v2627 = vadd.f32 0.0, %v2626
      %v2628 = vpop.f32.mrf.mxu0
      %2629 = vmatprep.mubr.f32.mxu0 0.0
      %2630 = vmatmul.mubr.f32.gmra.mxu0 %v2417
      %v2631 = vpop.f32.mrf.mxu0
      %v2632 = vadd.f32 0.0, %v2631
      %v2633 = vpop.f32.mrf.mxu0
      %2634 = vmatprep.mubr.f32.mxu0 0.0
      %2635 = vmatmul.mubr.f32.gmra.mxu0 %v2420
      %v2636 = vpop.f32.mrf.mxu0
      %v2637 = vadd.f32 0.0, %v2636
      %v2638 = vpop.f32.mrf.mxu0
      %2639 = vmatprep.mubr.f32.mxu0 0.0
      %2640 = vmatmul.mubr.f32.gmra.mxu0 %v2423
      %v2641 = vpop.f32.mrf.mxu0
      %v2642 = vadd.f32 0.0, %v2641
      %v2643 = vpop.f32.mrf.mxu0
      %2644 = vmatprep.mubr.f32.mxu0 0.0
      %2645 = vmatmul.mubr.f32.gmra.mxu0 %v2426
      %v2646 = vpop.f32.mrf.mxu0
      %v2647 = vadd.f32 0.0, %v2646
      %v2648 = vpop.f32.mrf.mxu0
      %2649 = vmatprep.mubr.f32.mxu0 0.0
      %2650 = vmatmul.mubr.f32.gmra.mxu0 %v2429
      %v2651 = vpop.f32.mrf.mxu0
      %v2652 = vadd.f32 0.0, %v2651
      %v2653 = vpop.f32.mrf.mxu0
      %2654 = vmatprep.mubr.f32.mxu0 0.0
      %2655 = vmatmul.mubr.f32.gmra.mxu0 %v2432
      %v2656 = vpop.f32.mrf.mxu0
      %v2657 = vadd.f32 0.0, %v2656
      %v2658 = vpop.f32.mrf.mxu0
      %2659 = vmatprep.mubr.f32.mxu0 0.0
      %2660 = vmatmul.mubr.f32.gmra.mxu0 %v2435
      %v2661 = vpop.f32.mrf.mxu0
      %v2662 = vadd.f32 0.0, %v2661
      %v2663 = vpop.f32.mrf.mxu0
      %2664 = vdwg.mxu0
      %v2665 = vadd.f32 %v2275, %v2507
      %v2666 = vadd.f32 %v2276, %v2512
      %v2667 = vadd.f32 %v2277, %v2517
      %v2668 = vadd.f32 %v2278, %v2522
      %v2669 = vadd.f32 %v2279, %v2527
      %v2670 = vadd.f32 %v2280, %v2532
      %v2671 = vadd.f32 %v2281, %v2537
      %v2672 = vadd.f32 %v2282, %v2542
      %v2673 = vadd.f32 %v2283, %v2547
      %v2674 = vadd.f32 %v2284, %v2552
      %v2675 = vadd.f32 %v2285, %v2557
      %v2676 = vadd.f32 %v2286, %v2562
      %v2677 = vadd.f32 %v2287, %v2567
      %v2678 = vadd.f32 %v2288, %v2572
      %v2679 = vadd.f32 %v2289, %v2577
      %v2680 = vadd.f32 %v2290, %v2582
      %v2681 = vadd.f32 %v2291, %v2587
      %v2682 = vadd.f32 %v2292, %v2592
      %v2683 = vadd.f32 %v2293, %v2597
      %v2684 = vadd.f32 %v2294, %v2602
      %v2685 = vadd.f32 %v2295, %v2607
      %v2686 = vadd.f32 %v2296, %v2612
      %v2687 = vadd.f32 %v2297, %v2617
      %v2688 = vadd.f32 %v2298, %v2622
      %v2689 = vadd.f32 %v2299, %v2627
      %v2690 = vadd.f32 %v2300, %v2632
      %v2691 = vadd.f32 %v2301, %v2637
      %v2692 = vadd.f32 %v2302, %v2642
      %v2693 = vadd.f32 %v2303, %v2647
      %v2694 = vadd.f32 %v2304, %v2652
      %v2695 = vadd.f32 %v2305, %v2657
      %v2696 = vadd.f32 %v2306, %v2662
      %s2697 = scalar_lea.vmem [#allocation2], 48
      %v2698 = vld [vmem:[%s2697] sm:$0xff]
      %v2699 = vld [vmem:[%s2697 + $0x8] sm:$0xff]
      %v2700 = vld [vmem:[%s2697 + $0x18] sm:$0xff]
      %v2701 = vld [vmem:[%s2697 + $0x20] sm:$0xff]
      %v2702 = vld [vmem:[%s2697 + $0x30] sm:$0xff]
      %v2703 = vld [vmem:[%s2697 + $0x38] sm:$0xff]
      %v2704 = vld [vmem:[%s2697 + $0x48] sm:$0xff]
      %v2705 = vld [vmem:[%s2697 + $0x50] sm:$0xff]
      %v2706 = vld [vmem:[%s2697 + $0x60] sm:$0xff]
      %v2707 = vld [vmem:[%s2697 + $0x68] sm:$0xff]
      %v2708 = vld [vmem:[%s2697 + $0x78] sm:$0xff]
      %v2709 = vld [vmem:[%s2697 + $0x80] sm:$0xff]
      %v2710 = vld [vmem:[%s2697 + $0x90] sm:$0xff]
      %v2711 = vld [vmem:[%s2697 + $0x98] sm:$0xff]
      %v2712 = vld [vmem:[%s2697 + $0xa8] sm:$0xff]
      %v2713 = vld [vmem:[%s2697 + $0xb0] sm:$0xff]
      %v2714 = vld [vmem:[%s2697 + $0xc0] sm:$0xff]
      %v2715 = vld [vmem:[%s2697 + $0xc8] sm:$0xff]
      %v2716 = vld [vmem:[%s2697 + $0xd8] sm:$0xff]
      %v2717 = vld [vmem:[%s2697 + $0xe0] sm:$0xff]
      %v2718 = vld [vmem:[%s2697 + $0xf0] sm:$0xff]
      %v2719 = vld [vmem:[%s2697 + $0xf8] sm:$0xff]
      %v2720 = vld [vmem:[%s2697 + $0x108] sm:$0xff]
      %v2721 = vld [vmem:[%s2697 + $0x110] sm:$0xff]
      %v2722 = vld [vmem:[%s2697 + $0x120] sm:$0xff]
      %v2723 = vld [vmem:[%s2697 + $0x128] sm:$0xff]
      %v2724 = vld [vmem:[%s2697 + $0x138] sm:$0xff]
      %v2725 = vld [vmem:[%s2697 + $0x140] sm:$0xff]
      %v2726 = vld [vmem:[%s2697 + $0x150] sm:$0xff]
      %v2727 = vld [vmem:[%s2697 + $0x158] sm:$0xff]
      %v2728 = vld [vmem:[%s2697 + $0x168] sm:$0xff]
      %v2729 = vld [vmem:[%s2697 + $0x170] sm:$0xff]
      %s2730 = scalar_lea.vmem %s2, 24
      %v2731 = vld [vmem:[%s2730] sm:$0xf]
      %v2733 = vsel %vm236, %v2698, 0
      %v2736 = vsel %vm236, %v2699, 0
      %v2739 = vsel %vm236, %v2700, 0
      %v2742 = vsel %vm236, %v2701, 0
      %v2745 = vsel %vm236, %v2702, 0
      %v2748 = vsel %vm236, %v2703, 0
      %v2751 = vsel %vm236, %v2704, 0
      %v2754 = vsel %vm236, %v2705, 0
      %v2757 = vsel %vm236, %v2706, 0
      %v2760 = vsel %vm236, %v2707, 0
      %v2763 = vsel %vm236, %v2708, 0
      %v2766 = vsel %vm236, %v2709, 0
      %v2769 = vsel %vm236, %v2710, 0
      %v2772 = vsel %vm236, %v2711, 0
      %v2775 = vsel %vm236, %v2712, 0
      %v2778 = vsel %vm236, %v2713, 0
      %v2781 = vsel %vm236, %v2714, 0
      %v2784 = vsel %vm236, %v2715, 0
      %v2787 = vsel %vm236, %v2716, 0
      %v2790 = vsel %vm236, %v2717, 0
      %v2793 = vsel %vm236, %v2718, 0
      %v2796 = vsel %vm236, %v2719, 0
      %v2799 = vsel %vm236, %v2720, 0
      %v2802 = vsel %vm236, %v2721, 0
      %v2805 = vsel %vm236, %v2722, 0
      %v2808 = vsel %vm236, %v2723, 0
      %v2811 = vsel %vm236, %v2724, 0
      %v2814 = vsel %vm236, %v2725, 0
      %v2817 = vsel %vm236, %v2726, 0
      %v2820 = vsel %vm236, %v2727, 0
      %v2823 = vsel %vm236, %v2728, 0
      %v2826 = vsel %vm236, %v2729, 0
      %v2829 = vsel %vm584, %v2731, 0
      %2831 = vmatprep.subr.mxu0 0.0
      %2832 = vmatpush1.msra.mxu0 0.0
      %2833 = vmatprep.subr.mxu0 0.0
      %2834 = vmatpush1.msra.mxu0 0.0
      %2835 = vmatprep.subr.mxu0 0.0
      %2836 = vmatpush1.msra.mxu0 0.0
      %2837 = vmatprep.subr.mxu0 0.0
      %2838 = vmatpush1.msra.mxu0 0.0
      %2839 = vmatprep.subr.mxu0 0.0
      %2840 = vmatpush1.msra.mxu0 0.0
      %2841 = vmatprep.subr.mxu0 0.0
      %2842 = vmatpush1.msra.mxu0 0.0
      %2843 = vmatprep.subr.mxu0 0.0
      %2844 = vmatpush1.msra.mxu0 0.0
      %2845 = vmatprep.subr.mxu0 0.0
      %2846 = vmatpush1.msra.mxu0 0.0
      %2847 = vmatprep.subr.mxu0 0.0
      %2848 = vmatpush1.msra.mxu0 0.0
      %2849 = vmatprep.subr.mxu0 0.0
      %2850 = vmatpush1.msra.mxu0 0.0
      %2851 = vmatprep.subr.mxu0 0.0
      %2852 = vmatpush1.msra.mxu0 0.0
      %2853 = vmatprep.subr.mxu0 0.0
      %2854 = vmatpush1.msra.mxu0 0.0
      %2855 = vmatprep.subr.mxu0 0.0
      %2856 = vmatpush1.msra.mxu0 0.0
      %2857 = vmatprep.subr.mxu0 0.0
      %2858 = vmatpush1.msra.mxu0 0.0
      %2859 = vmatprep.subr.mxu0 0.0
      %2860 = vmatpush1.msra.mxu0 0.0
      %2861 = vmatprep.subr.mxu0 0.0
      %2862 = vmatpush1.msra.mxu0 %v2829
      %2863 = vmatprep.subr.mxu0 0.0
      %2864 = vmatpush2.msra.mxu0 0.0
      %2865 = vmatprep.subr.mxu0 0.0
      %2866 = vmatpush2.msra.mxu0 0.0
      %2867 = vmatprep.subr.mxu0 0.0
      %2868 = vmatpush2.msra.mxu0 0.0
      %2869 = vmatprep.subr.mxu0 0.0
      %2870 = vmatpush2.msra.mxu0 0.0
      %2871 = vmatprep.subr.mxu0 0.0
      %2872 = vmatpush2.msra.mxu0 0.0
      %2873 = vmatprep.subr.mxu0 0.0
      %2874 = vmatpush2.msra.mxu0 0.0
      %2875 = vmatprep.subr.mxu0 0.0
      %2876 = vmatpush2.msra.mxu0 0.0
      %2877 = vmatprep.subr.mxu0 0.0
      %2878 = vmatpush2.msra.mxu0 0.0
      %2879 = vmatprep.subr.mxu0 0.0
      %2880 = vmatpush2.msra.mxu0 0.0
      %2881 = vmatprep.subr.mxu0 0.0
      %2882 = vmatpush2.msra.mxu0 0.0
      %2883 = vmatprep.subr.mxu0 0.0
      %2884 = vmatpush2.msra.mxu0 0.0
      %2885 = vmatprep.subr.mxu0 0.0
      %2886 = vmatpush2.msra.mxu0 0.0
      %2887 = vmatprep.subr.mxu0 0.0
      %2888 = vmatpush2.msra.mxu0 0.0
      %2889 = vmatprep.subr.mxu0 0.0
      %2890 = vmatpush2.msra.mxu0 0.0
      %2891 = vmatprep.subr.mxu0 0.0
      %2892 = vmatpush2.msra.mxu0 0.0
      %2893 = vmatprep.subr.mxu0 0.0
      %2894 = vmatpush2.msra.mxu0 0.0
      %2895 = vmatprep.mubr.f32.mxu0 0.0
      %2896 = vmatmul.mubr.f32.gmra.mxu0 %v2733
      %v2897 = vpop.f32.mrf.mxu0
      %v2898 = vadd.f32 0.0, %v2897
      %v2899 = vpop.f32.mrf.mxu0
      %2900 = vmatprep.mubr.f32.mxu0 0.0
      %2901 = vmatmul.mubr.f32.gmra.mxu0 %v2736
      %v2902 = vpop.f32.mrf.mxu0
      %v2903 = vadd.f32 0.0, %v2902
      %v2904 = vpop.f32.mrf.mxu0
      %2905 = vmatprep.mubr.f32.mxu0 0.0
      %2906 = vmatmul.mubr.f32.gmra.mxu0 %v2739
      %v2907 = vpop.f32.mrf.mxu0
      %v2908 = vadd.f32 0.0, %v2907
      %v2909 = vpop.f32.mrf.mxu0
      %2910 = vmatprep.mubr.f32.mxu0 0.0
      %2911 = vmatmul.mubr.f32.gmra.mxu0 %v2742
      %v2912 = vpop.f32.mrf.mxu0
      %v2913 = vadd.f32 0.0, %v2912
      %v2914 = vpop.f32.mrf.mxu0
      %2915 = vmatprep.mubr.f32.mxu0 0.0
      %2916 = vmatmul.mubr.f32.gmra.mxu0 %v2745
      %v2917 = vpop.f32.mrf.mxu0
      %v2918 = vadd.f32 0.0, %v2917
      %v2919 = vpop.f32.mrf.mxu0
      %2920 = vmatprep.mubr.f32.mxu0 0.0
      %2921 = vmatmul.mubr.f32.gmra.mxu0 %v2748
      %v2922 = vpop.f32.mrf.mxu0
      %v2923 = vadd.f32 0.0, %v2922
      %v2924 = vpop.f32.mrf.mxu0
      %2925 = vmatprep.mubr.f32.mxu0 0.0
      %2926 = vmatmul.mubr.f32.gmra.mxu0 %v2751
      %v2927 = vpop.f32.mrf.mxu0
      %v2928 = vadd.f32 0.0, %v2927
      %v2929 = vpop.f32.mrf.mxu0
      %2930 = vmatprep.mubr.f32.mxu0 0.0
      %2931 = vmatmul.mubr.f32.gmra.mxu0 %v2754
      %v2932 = vpop.f32.mrf.mxu0
      %v2933 = vadd.f32 0.0, %v2932
      %v2934 = vpop.f32.mrf.mxu0
      %2935 = vmatprep.mubr.f32.mxu0 0.0
      %2936 = vmatmul.mubr.f32.gmra.mxu0 %v2757
      %v2937 = vpop.f32.mrf.mxu0
      %v2938 = vadd.f32 0.0, %v2937
      %v2939 = vpop.f32.mrf.mxu0
      %2940 = vmatprep.mubr.f32.mxu0 0.0
      %2941 = vmatmul.mubr.f32.gmra.mxu0 %v2760
      %v2942 = vpop.f32.mrf.mxu0
      %v2943 = vadd.f32 0.0, %v2942
      %v2944 = vpop.f32.mrf.mxu0
      %2945 = vmatprep.mubr.f32.mxu0 0.0
      %2946 = vmatmul.mubr.f32.gmra.mxu0 %v2763
      %v2947 = vpop.f32.mrf.mxu0
      %v2948 = vadd.f32 0.0, %v2947
      %v2949 = vpop.f32.mrf.mxu0
      %2950 = vmatprep.mubr.f32.mxu0 0.0
      %2951 = vmatmul.mubr.f32.gmra.mxu0 %v2766
      %v2952 = vpop.f32.mrf.mxu0
      %v2953 = vadd.f32 0.0, %v2952
      %v2954 = vpop.f32.mrf.mxu0
      %2955 = vmatprep.mubr.f32.mxu0 0.0
      %2956 = vmatmul.mubr.f32.gmra.mxu0 %v2769
      %v2957 = vpop.f32.mrf.mxu0
      %v2958 = vadd.f32 0.0, %v2957
      %v2959 = vpop.f32.mrf.mxu0
      %2960 = vmatprep.mubr.f32.mxu0 0.0
      %2961 = vmatmul.mubr.f32.gmra.mxu0 %v2772
      %v2962 = vpop.f32.mrf.mxu0
      %v2963 = vadd.f32 0.0, %v2962
      %v2964 = vpop.f32.mrf.mxu0
      %2965 = vmatprep.mubr.f32.mxu0 0.0
      %2966 = vmatmul.mubr.f32.gmra.mxu0 %v2775
      %v2967 = vpop.f32.mrf.mxu0
      %v2968 = vadd.f32 0.0, %v2967
      %v2969 = vpop.f32.mrf.mxu0
      %2970 = vmatprep.mubr.f32.mxu0 0.0
      %2971 = vmatmul.mubr.f32.gmra.mxu0 %v2778
      %v2972 = vpop.f32.mrf.mxu0
      %v2973 = vadd.f32 0.0, %v2972
      %v2974 = vpop.f32.mrf.mxu0
      %2975 = vmatprep.mubr.f32.mxu0 0.0
      %2976 = vmatmul.mubr.f32.gmra.mxu0 %v2781
      %v2977 = vpop.f32.mrf.mxu0
      %v2978 = vadd.f32 0.0, %v2977
      %v2979 = vpop.f32.mrf.mxu0
      %2980 = vmatprep.mubr.f32.mxu0 0.0
      %2981 = vmatmul.mubr.f32.gmra.mxu0 %v2784
      %v2982 = vpop.f32.mrf.mxu0
      %v2983 = vadd.f32 0.0, %v2982
      %v2984 = vpop.f32.mrf.mxu0
      %2985 = vmatprep.mubr.f32.mxu0 0.0
      %2986 = vmatmul.mubr.f32.gmra.mxu0 %v2787
      %v2987 = vpop.f32.mrf.mxu0
      %v2988 = vadd.f32 0.0, %v2987
      %v2989 = vpop.f32.mrf.mxu0
      %2990 = vmatprep.mubr.f32.mxu0 0.0
      %2991 = vmatmul.mubr.f32.gmra.mxu0 %v2790
      %v2992 = vpop.f32.mrf.mxu0
      %v2993 = vadd.f32 0.0, %v2992
      %v2994 = vpop.f32.mrf.mxu0
      %2995 = vmatprep.mubr.f32.mxu0 0.0
      %2996 = vmatmul.mubr.f32.gmra.mxu0 %v2793
      %v2997 = vpop.f32.mrf.mxu0
      %v2998 = vadd.f32 0.0, %v2997
      %v2999 = vpop.f32.mrf.mxu0
      %3000 = vmatprep.mubr.f32.mxu0 0.0
      %3001 = vmatmul.mubr.f32.gmra.mxu0 %v2796
      %v3002 = vpop.f32.mrf.mxu0
      %v3003 = vadd.f32 0.0, %v3002
      %v3004 = vpop.f32.mrf.mxu0
      %3005 = vmatprep.mubr.f32.mxu0 0.0
      %3006 = vmatmul.mubr.f32.gmra.mxu0 %v2799
      %v3007 = vpop.f32.mrf.mxu0
      %v3008 = vadd.f32 0.0, %v3007
      %v3009 = vpop.f32.mrf.mxu0
      %3010 = vmatprep.mubr.f32.mxu0 0.0
      %3011 = vmatmul.mubr.f32.gmra.mxu0 %v2802
      %v3012 = vpop.f32.mrf.mxu0
      %v3013 = vadd.f32 0.0, %v3012
      %v3014 = vpop.f32.mrf.mxu0
      %3015 = vmatprep.mubr.f32.mxu0 0.0
      %3016 = vmatmul.mubr.f32.gmra.mxu0 %v2805
      %v3017 = vpop.f32.mrf.mxu0
      %v3018 = vadd.f32 0.0, %v3017
      %v3019 = vpop.f32.mrf.mxu0
      %3020 = vmatprep.mubr.f32.mxu0 0.0
      %3021 = vmatmul.mubr.f32.gmra.mxu0 %v2808
      %v3022 = vpop.f32.mrf.mxu0
      %v3023 = vadd.f32 0.0, %v3022
      %v3024 = vpop.f32.mrf.mxu0
      %3025 = vmatprep.mubr.f32.mxu0 0.0
      %3026 = vmatmul.mubr.f32.gmra.mxu0 %v2811
      %v3027 = vpop.f32.mrf.mxu0
      %v3028 = vadd.f32 0.0, %v3027
      %v3029 = vpop.f32.mrf.mxu0
      %3030 = vmatprep.mubr.f32.mxu0 0.0
      %3031 = vmatmul.mubr.f32.gmra.mxu0 %v2814
      %v3032 = vpop.f32.mrf.mxu0
      %v3033 = vadd.f32 0.0, %v3032
      %v3034 = vpop.f32.mrf.mxu0
      %3035 = vmatprep.mubr.f32.mxu0 0.0
      %3036 = vmatmul.mubr.f32.gmra.mxu0 %v2817
      %v3037 = vpop.f32.mrf.mxu0
      %v3038 = vadd.f32 0.0, %v3037
      %v3039 = vpop.f32.mrf.mxu0
      %3040 = vmatprep.mubr.f32.mxu0 0.0
      %3041 = vmatmul.mubr.f32.gmra.mxu0 %v2820
      %v3042 = vpop.f32.mrf.mxu0
      %v3043 = vadd.f32 0.0, %v3042
      %v3044 = vpop.f32.mrf.mxu0
      %3045 = vmatprep.mubr.f32.mxu0 0.0
      %3046 = vmatmul.mubr.f32.gmra.mxu0 %v2823
      %v3047 = vpop.f32.mrf.mxu0
      %v3048 = vadd.f32 0.0, %v3047
      %v3049 = vpop.f32.mrf.mxu0
      %3050 = vmatprep.mubr.f32.mxu0 0.0
      %3051 = vmatmul.mubr.f32.gmra.mxu0 %v2826
      %v3052 = vpop.f32.mrf.mxu0
      %v3053 = vadd.f32 0.0, %v3052
      %v3054 = vpop.f32.mrf.mxu0
      %3055 = vdwg.mxu0
      %v3056 = vadd.f32 %v2665, %v2898
      %v3057 = vadd.f32 %v2666, %v2903
      %v3058 = vadd.f32 %v2667, %v2908
      %v3059 = vadd.f32 %v2668, %v2913
      %v3060 = vadd.f32 %v2669, %v2918
      %v3061 = vadd.f32 %v2670, %v2923
      %v3062 = vadd.f32 %v2671, %v2928
      %v3063 = vadd.f32 %v2672, %v2933
      %v3064 = vadd.f32 %v2673, %v2938
      %v3065 = vadd.f32 %v2674, %v2943
      %v3066 = vadd.f32 %v2675, %v2948
      %v3067 = vadd.f32 %v2676, %v2953
      %v3068 = vadd.f32 %v2677, %v2958
      %v3069 = vadd.f32 %v2678, %v2963
      %v3070 = vadd.f32 %v2679, %v2968
      %v3071 = vadd.f32 %v2680, %v2973
      %v3072 = vadd.f32 %v2681, %v2978
      %v3073 = vadd.f32 %v2682, %v2983
      %v3074 = vadd.f32 %v2683, %v2988
      %v3075 = vadd.f32 %v2684, %v2993
      %v3076 = vadd.f32 %v2685, %v2998
      %v3077 = vadd.f32 %v2686, %v3003
      %v3078 = vadd.f32 %v2687, %v3008
      %v3079 = vadd.f32 %v2688, %v3013
      %v3080 = vadd.f32 %v2689, %v3018
      %v3081 = vadd.f32 %v2690, %v3023
      %v3082 = vadd.f32 %v2691, %v3028
      %v3083 = vadd.f32 %v2692, %v3033
      %v3084 = vadd.f32 %v2693, %v3038
      %v3085 = vadd.f32 %v2694, %v3043
      %v3086 = vadd.f32 %v2695, %v3048
      %v3087 = vadd.f32 %v2696, %v3053
      %v3088 = vld [vmem:[%s2697 + $0x1] sm:$0xff]
      %v3089 = vld [vmem:[%s2697 + $0x9] sm:$0xff]
      %v3090 = vld [vmem:[%s2697 + $0x19] sm:$0xff]
      %v3091 = vld [vmem:[%s2697 + $0x21] sm:$0xff]
      %v3092 = vld [vmem:[%s2697 + $0x31] sm:$0xff]
      %v3093 = vld [vmem:[%s2697 + $0x39] sm:$0xff]
      %v3094 = vld [vmem:[%s2697 + $0x49] sm:$0xff]
      %v3095 = vld [vmem:[%s2697 + $0x51] sm:$0xff]
      %v3096 = vld [vmem:[%s2697 + $0x61] sm:$0xff]
      %v3097 = vld [vmem:[%s2697 + $0x69] sm:$0xff]
      %v3098 = vld [vmem:[%s2697 + $0x79] sm:$0xff]
      %v3099 = vld [vmem:[%s2697 + $0x81] sm:$0xff]
      %v3100 = vld [vmem:[%s2697 + $0x91] sm:$0xff]
      %v3101 = vld [vmem:[%s2697 + $0x99] sm:$0xff]
      %v3102 = vld [vmem:[%s2697 + $0xa9] sm:$0xff]
      %v3103 = vld [vmem:[%s2697 + $0xb1] sm:$0xff]
      %v3104 = vld [vmem:[%s2697 + $0xc1] sm:$0xff]
      %v3105 = vld [vmem:[%s2697 + $0xc9] sm:$0xff]
      %v3106 = vld [vmem:[%s2697 + $0xd9] sm:$0xff]
      %v3107 = vld [vmem:[%s2697 + $0xe1] sm:$0xff]
      %v3108 = vld [vmem:[%s2697 + $0xf1] sm:$0xff]
      %v3109 = vld [vmem:[%s2697 + $0xf9] sm:$0xff]
      %v3110 = vld [vmem:[%s2697 + $0x109] sm:$0xff]
      %v3111 = vld [vmem:[%s2697 + $0x111] sm:$0xff]
      %v3112 = vld [vmem:[%s2697 + $0x121] sm:$0xff]
      %v3113 = vld [vmem:[%s2697 + $0x129] sm:$0xff]
      %v3114 = vld [vmem:[%s2697 + $0x139] sm:$0xff]
      %v3115 = vld [vmem:[%s2697 + $0x141] sm:$0xff]
      %v3116 = vld [vmem:[%s2697 + $0x151] sm:$0xff]
      %v3117 = vld [vmem:[%s2697 + $0x159] sm:$0xff]
      %v3118 = vld [vmem:[%s2697 + $0x169] sm:$0xff]
      %v3119 = vld [vmem:[%s2697 + $0x171] sm:$0xff]
      %s3120 = scalar_lea.vmem %s2, 28
      %v3121 = vld [vmem:[%s3120] sm:$0xf]
      %v3123 = vsel %vm236, %v3088, 0
      %v3126 = vsel %vm236, %v3089, 0
      %v3129 = vsel %vm236, %v3090, 0
      %v3132 = vsel %vm236, %v3091, 0
      %v3135 = vsel %vm236, %v3092, 0
      %v3138 = vsel %vm236, %v3093, 0
      %v3141 = vsel %vm236, %v3094, 0
      %v3144 = vsel %vm236, %v3095, 0
      %v3147 = vsel %vm236, %v3096, 0
      %v3150 = vsel %vm236, %v3097, 0
      %v3153 = vsel %vm236, %v3098, 0
      %v3156 = vsel %vm236, %v3099, 0
      %v3159 = vsel %vm236, %v3100, 0
      %v3162 = vsel %vm236, %v3101, 0
      %v3165 = vsel %vm236, %v3102, 0
      %v3168 = vsel %vm236, %v3103, 0
      %v3171 = vsel %vm236, %v3104, 0
      %v3174 = vsel %vm236, %v3105, 0
      %v3177 = vsel %vm236, %v3106, 0
      %v3180 = vsel %vm236, %v3107, 0
      %v3183 = vsel %vm236, %v3108, 0
      %v3186 = vsel %vm236, %v3109, 0
      %v3189 = vsel %vm236, %v3110, 0
      %v3192 = vsel %vm236, %v3111, 0
      %v3195 = vsel %vm236, %v3112, 0
      %v3198 = vsel %vm236, %v3113, 0
      %v3201 = vsel %vm236, %v3114, 0
      %v3204 = vsel %vm236, %v3115, 0
      %v3207 = vsel %vm236, %v3116, 0
      %v3210 = vsel %vm236, %v3117, 0
      %v3213 = vsel %vm236, %v3118, 0
      %v3216 = vsel %vm236, %v3119, 0
      %v3219 = vsel %vm584, %v3121, 0
      %3221 = vmatprep.subr.mxu0 0.0
      %3222 = vmatpush1.msra.mxu0 0.0
      %3223 = vmatprep.subr.mxu0 0.0
      %3224 = vmatpush1.msra.mxu0 0.0
      %3225 = vmatprep.subr.mxu0 0.0
      %3226 = vmatpush1.msra.mxu0 0.0
      %3227 = vmatprep.subr.mxu0 0.0
      %3228 = vmatpush1.msra.mxu0 0.0
      %3229 = vmatprep.subr.mxu0 0.0
      %3230 = vmatpush1.msra.mxu0 0.0
      %3231 = vmatprep.subr.mxu0 0.0
      %3232 = vmatpush1.msra.mxu0 0.0
      %3233 = vmatprep.subr.mxu0 0.0
      %3234 = vmatpush1.msra.mxu0 0.0
      %3235 = vmatprep.subr.mxu0 0.0
      %3236 = vmatpush1.msra.mxu0 0.0
      %3237 = vmatprep.subr.mxu0 0.0
      %3238 = vmatpush1.msra.mxu0 0.0
      %3239 = vmatprep.subr.mxu0 0.0
      %3240 = vmatpush1.msra.mxu0 0.0
      %3241 = vmatprep.subr.mxu0 0.0
      %3242 = vmatpush1.msra.mxu0 0.0
      %3243 = vmatprep.subr.mxu0 0.0
      %3244 = vmatpush1.msra.mxu0 0.0
      %3245 = vmatprep.subr.mxu0 0.0
      %3246 = vmatpush1.msra.mxu0 0.0
      %3247 = vmatprep.subr.mxu0 0.0
      %3248 = vmatpush1.msra.mxu0 0.0
      %3249 = vmatprep.subr.mxu0 0.0
      %3250 = vmatpush1.msra.mxu0 0.0
      %3251 = vmatprep.subr.mxu0 0.0
      %3252 = vmatpush1.msra.mxu0 %v3219
      %3253 = vmatprep.subr.mxu0 0.0
      %3254 = vmatpush2.msra.mxu0 0.0
      %3255 = vmatprep.subr.mxu0 0.0
      %3256 = vmatpush2.msra.mxu0 0.0
      %3257 = vmatprep.subr.mxu0 0.0
      %3258 = vmatpush2.msra.mxu0 0.0
      %3259 = vmatprep.subr.mxu0 0.0
      %3260 = vmatpush2.msra.mxu0 0.0
      %3261 = vmatprep.subr.mxu0 0.0
      %3262 = vmatpush2.msra.mxu0 0.0
      %3263 = vmatprep.subr.mxu0 0.0
      %3264 = vmatpush2.msra.mxu0 0.0
      %3265 = vmatprep.subr.mxu0 0.0
      %3266 = vmatpush2.msra.mxu0 0.0
      %3267 = vmatprep.subr.mxu0 0.0
      %3268 = vmatpush2.msra.mxu0 0.0
      %3269 = vmatprep.subr.mxu0 0.0
      %3270 = vmatpush2.msra.mxu0 0.0
      %3271 = vmatprep.subr.mxu0 0.0
      %3272 = vmatpush2.msra.mxu0 0.0
      %3273 = vmatprep.subr.mxu0 0.0
      %3274 = vmatpush2.msra.mxu0 0.0
      %3275 = vmatprep.subr.mxu0 0.0
      %3276 = vmatpush2.msra.mxu0 0.0
      %3277 = vmatprep.subr.mxu0 0.0
      %3278 = vmatpush2.msra.mxu0 0.0
      %3279 = vmatprep.subr.mxu0 0.0
      %3280 = vmatpush2.msra.mxu0 0.0
      %3281 = vmatprep.subr.mxu0 0.0
      %3282 = vmatpush2.msra.mxu0 0.0
      %3283 = vmatprep.subr.mxu0 0.0
      %3284 = vmatpush2.msra.mxu0 0.0
      %3285 = vmatprep.mubr.f32.mxu0 0.0
      %3286 = vmatmul.mubr.f32.gmra.mxu0 %v3123
      %v3287 = vpop.f32.mrf.mxu0
      %v3288 = vadd.f32 0.0, %v3287
      %v3289 = vpop.f32.mrf.mxu0
      %3290 = vmatprep.mubr.f32.mxu0 0.0
      %3291 = vmatmul.mubr.f32.gmra.mxu0 %v3126
      %v3292 = vpop.f32.mrf.mxu0
      %v3293 = vadd.f32 0.0, %v3292
      %v3294 = vpop.f32.mrf.mxu0
      %3295 = vmatprep.mubr.f32.mxu0 0.0
      %3296 = vmatmul.mubr.f32.gmra.mxu0 %v3129
      %v3297 = vpop.f32.mrf.mxu0
      %v3298 = vadd.f32 0.0, %v3297
      %v3299 = vpop.f32.mrf.mxu0
      %3300 = vmatprep.mubr.f32.mxu0 0.0
      %3301 = vmatmul.mubr.f32.gmra.mxu0 %v3132
      %v3302 = vpop.f32.mrf.mxu0
      %v3303 = vadd.f32 0.0, %v3302
      %v3304 = vpop.f32.mrf.mxu0
      %3305 = vmatprep.mubr.f32.mxu0 0.0
      %3306 = vmatmul.mubr.f32.gmra.mxu0 %v3135
      %v3307 = vpop.f32.mrf.mxu0
      %v3308 = vadd.f32 0.0, %v3307
      %v3309 = vpop.f32.mrf.mxu0
      %3310 = vmatprep.mubr.f32.mxu0 0.0
      %3311 = vmatmul.mubr.f32.gmra.mxu0 %v3138
      %v3312 = vpop.f32.mrf.mxu0
      %v3313 = vadd.f32 0.0, %v3312
      %v3314 = vpop.f32.mrf.mxu0
      %3315 = vmatprep.mubr.f32.mxu0 0.0
      %3316 = vmatmul.mubr.f32.gmra.mxu0 %v3141
      %v3317 = vpop.f32.mrf.mxu0
      %v3318 = vadd.f32 0.0, %v3317
      %v3319 = vpop.f32.mrf.mxu0
      %3320 = vmatprep.mubr.f32.mxu0 0.0
      %3321 = vmatmul.mubr.f32.gmra.mxu0 %v3144
      %v3322 = vpop.f32.mrf.mxu0
      %v3323 = vadd.f32 0.0, %v3322
      %v3324 = vpop.f32.mrf.mxu0
      %3325 = vmatprep.mubr.f32.mxu0 0.0
      %3326 = vmatmul.mubr.f32.gmra.mxu0 %v3147
      %v3327 = vpop.f32.mrf.mxu0
      %v3328 = vadd.f32 0.0, %v3327
      %v3329 = vpop.f32.mrf.mxu0
      %3330 = vmatprep.mubr.f32.mxu0 0.0
      %3331 = vmatmul.mubr.f32.gmra.mxu0 %v3150
      %v3332 = vpop.f32.mrf.mxu0
      %v3333 = vadd.f32 0.0, %v3332
      %v3334 = vpop.f32.mrf.mxu0
      %3335 = vmatprep.mubr.f32.mxu0 0.0
      %3336 = vmatmul.mubr.f32.gmra.mxu0 %v3153
      %v3337 = vpop.f32.mrf.mxu0
      %v3338 = vadd.f32 0.0, %v3337
      %v3339 = vpop.f32.mrf.mxu0
      %3340 = vmatprep.mubr.f32.mxu0 0.0
      %3341 = vmatmul.mubr.f32.gmra.mxu0 %v3156
      %v3342 = vpop.f32.mrf.mxu0
      %v3343 = vadd.f32 0.0, %v3342
      %v3344 = vpop.f32.mrf.mxu0
      %3345 = vmatprep.mubr.f32.mxu0 0.0
      %3346 = vmatmul.mubr.f32.gmra.mxu0 %v3159
      %v3347 = vpop.f32.mrf.mxu0
      %v3348 = vadd.f32 0.0, %v3347
      %v3349 = vpop.f32.mrf.mxu0
      %3350 = vmatprep.mubr.f32.mxu0 0.0
      %3351 = vmatmul.mubr.f32.gmra.mxu0 %v3162
      %v3352 = vpop.f32.mrf.mxu0
      %v3353 = vadd.f32 0.0, %v3352
      %v3354 = vpop.f32.mrf.mxu0
      %3355 = vmatprep.mubr.f32.mxu0 0.0
      %3356 = vmatmul.mubr.f32.gmra.mxu0 %v3165
      %v3357 = vpop.f32.mrf.mxu0
      %v3358 = vadd.f32 0.0, %v3357
      %v3359 = vpop.f32.mrf.mxu0
      %3360 = vmatprep.mubr.f32.mxu0 0.0
      %3361 = vmatmul.mubr.f32.gmra.mxu0 %v3168
      %v3362 = vpop.f32.mrf.mxu0
      %v3363 = vadd.f32 0.0, %v3362
      %v3364 = vpop.f32.mrf.mxu0
      %3365 = vmatprep.mubr.f32.mxu0 0.0
      %3366 = vmatmul.mubr.f32.gmra.mxu0 %v3171
      %v3367 = vpop.f32.mrf.mxu0
      %v3368 = vadd.f32 0.0, %v3367
      %v3369 = vpop.f32.mrf.mxu0
      %3370 = vmatprep.mubr.f32.mxu0 0.0
      %3371 = vmatmul.mubr.f32.gmra.mxu0 %v3174
      %v3372 = vpop.f32.mrf.mxu0
      %v3373 = vadd.f32 0.0, %v3372
      %v3374 = vpop.f32.mrf.mxu0
      %3375 = vmatprep.mubr.f32.mxu0 0.0
      %3376 = vmatmul.mubr.f32.gmra.mxu0 %v3177
      %v3377 = vpop.f32.mrf.mxu0
      %v3378 = vadd.f32 0.0, %v3377
      %v3379 = vpop.f32.mrf.mxu0
      %3380 = vmatprep.mubr.f32.mxu0 0.0
      %3381 = vmatmul.mubr.f32.gmra.mxu0 %v3180
      %v3382 = vpop.f32.mrf.mxu0
      %v3383 = vadd.f32 0.0, %v3382
      %v3384 = vpop.f32.mrf.mxu0
      %3385 = vmatprep.mubr.f32.mxu0 0.0
      %3386 = vmatmul.mubr.f32.gmra.mxu0 %v3183
      %v3387 = vpop.f32.mrf.mxu0
      %v3388 = vadd.f32 0.0, %v3387
      %v3389 = vpop.f32.mrf.mxu0
      %3390 = vmatprep.mubr.f32.mxu0 0.0
      %3391 = vmatmul.mubr.f32.gmra.mxu0 %v3186
      %v3392 = vpop.f32.mrf.mxu0
      %v3393 = vadd.f32 0.0, %v3392
      %v3394 = vpop.f32.mrf.mxu0
      %3395 = vmatprep.mubr.f32.mxu0 0.0
      %3396 = vmatmul.mubr.f32.gmra.mxu0 %v3189
      %v3397 = vpop.f32.mrf.mxu0
      %v3398 = vadd.f32 0.0, %v3397
      %v3399 = vpop.f32.mrf.mxu0
      %3400 = vmatprep.mubr.f32.mxu0 0.0
      %3401 = vmatmul.mubr.f32.gmra.mxu0 %v3192
      %v3402 = vpop.f32.mrf.mxu0
      %v3403 = vadd.f32 0.0, %v3402
      %v3404 = vpop.f32.mrf.mxu0
      %3405 = vmatprep.mubr.f32.mxu0 0.0
      %3406 = vmatmul.mubr.f32.gmra.mxu0 %v3195
      %v3407 = vpop.f32.mrf.mxu0
      %v3408 = vadd.f32 0.0, %v3407
      %v3409 = vpop.f32.mrf.mxu0
      %3410 = vmatprep.mubr.f32.mxu0 0.0
      %3411 = vmatmul.mubr.f32.gmra.mxu0 %v3198
      %v3412 = vpop.f32.mrf.mxu0
      %v3413 = vadd.f32 0.0, %v3412
      %v3414 = vpop.f32.mrf.mxu0
      %3415 = vmatprep.mubr.f32.mxu0 0.0
      %3416 = vmatmul.mubr.f32.gmra.mxu0 %v3201
      %v3417 = vpop.f32.mrf.mxu0
      %v3418 = vadd.f32 0.0, %v3417
      %v3419 = vpop.f32.mrf.mxu0
      %3420 = vmatprep.mubr.f32.mxu0 0.0
      %3421 = vmatmul.mubr.f32.gmra.mxu0 %v3204
      %v3422 = vpop.f32.mrf.mxu0
      %v3423 = vadd.f32 0.0, %v3422
      %v3424 = vpop.f32.mrf.mxu0
      %3425 = vmatprep.mubr.f32.mxu0 0.0
      %3426 = vmatmul.mubr.f32.gmra.mxu0 %v3207
      %v3427 = vpop.f32.mrf.mxu0
      %v3428 = vadd.f32 0.0, %v3427
      %v3429 = vpop.f32.mrf.mxu0
      %3430 = vmatprep.mubr.f32.mxu0 0.0
      %3431 = vmatmul.mubr.f32.gmra.mxu0 %v3210
      %v3432 = vpop.f32.mrf.mxu0
      %v3433 = vadd.f32 0.0, %v3432
      %v3434 = vpop.f32.mrf.mxu0
      %3435 = vmatprep.mubr.f32.mxu0 0.0
      %3436 = vmatmul.mubr.f32.gmra.mxu0 %v3213
      %v3437 = vpop.f32.mrf.mxu0
      %v3438 = vadd.f32 0.0, %v3437
      %v3439 = vpop.f32.mrf.mxu0
      %3440 = vmatprep.mubr.f32.mxu0 0.0
      %3441 = vmatmul.mubr.f32.gmra.mxu0 %v3216
      %v3442 = vpop.f32.mrf.mxu0
      %v3443 = vadd.f32 0.0, %v3442
      %v3444 = vpop.f32.mrf.mxu0
      %3445 = vdwg.mxu0
      %v3446 = vadd.f32 %v3056, %v3288
      %v3447 = vadd.f32 %v3057, %v3293
      %v3448 = vadd.f32 %v3058, %v3298
      %v3449 = vadd.f32 %v3059, %v3303
      %v3450 = vadd.f32 %v3060, %v3308
      %v3451 = vadd.f32 %v3061, %v3313
      %v3452 = vadd.f32 %v3062, %v3318
      %v3453 = vadd.f32 %v3063, %v3323
      %v3454 = vadd.f32 %v3064, %v3328
      %v3455 = vadd.f32 %v3065, %v3333
      %v3456 = vadd.f32 %v3066, %v3338
      %v3457 = vadd.f32 %v3067, %v3343
      %v3458 = vadd.f32 %v3068, %v3348
      %v3459 = vadd.f32 %v3069, %v3353
      %v3460 = vadd.f32 %v3070, %v3358
      %v3461 = vadd.f32 %v3071, %v3363
      %v3462 = vadd.f32 %v3072, %v3368
      %v3463 = vadd.f32 %v3073, %v3373
      %v3464 = vadd.f32 %v3074, %v3378
      %v3465 = vadd.f32 %v3075, %v3383
      %v3466 = vadd.f32 %v3076, %v3388
      %v3467 = vadd.f32 %v3077, %v3393
      %v3468 = vadd.f32 %v3078, %v3398
      %v3469 = vadd.f32 %v3079, %v3403
      %v3470 = vadd.f32 %v3080, %v3408
      %v3471 = vadd.f32 %v3081, %v3413
      %v3472 = vadd.f32 %v3082, %v3418
      %v3473 = vadd.f32 %v3083, %v3423
      %v3474 = vadd.f32 %v3084, %v3428
      %v3475 = vadd.f32 %v3085, %v3433
      %v3476 = vadd.f32 %v3086, %v3438
      %v3477 = vadd.f32 %v3087, %v3443
      %v3478 = vld [vmem:[%s2697 + $0x2] sm:$0xff]
      %v3479 = vld [vmem:[%s2697 + $0xa] sm:$0xff]
      %v3480 = vld [vmem:[%s2697 + $0x1a] sm:$0xff]
      %v3481 = vld [vmem:[%s2697 + $0x22] sm:$0xff]
      %v3482 = vld [vmem:[%s2697 + $0x32] sm:$0xff]
      %v3483 = vld [vmem:[%s2697 + $0x3a] sm:$0xff]
      %v3484 = vld [vmem:[%s2697 + $0x4a] sm:$0xff]
      %v3485 = vld [vmem:[%s2697 + $0x52] sm:$0xff]
      %v3486 = vld [vmem:[%s2697 + $0x62] sm:$0xff]
      %v3487 = vld [vmem:[%s2697 + $0x6a] sm:$0xff]
      %v3488 = vld [vmem:[%s2697 + $0x7a] sm:$0xff]
      %v3489 = vld [vmem:[%s2697 + $0x82] sm:$0xff]
      %v3490 = vld [vmem:[%s2697 + $0x92] sm:$0xff]
      %v3491 = vld [vmem:[%s2697 + $0x9a] sm:$0xff]
      %v3492 = vld [vmem:[%s2697 + $0xaa] sm:$0xff]
      %v3493 = vld [vmem:[%s2697 + $0xb2] sm:$0xff]
      %v3494 = vld [vmem:[%s2697 + $0xc2] sm:$0xff]
      %v3495 = vld [vmem:[%s2697 + $0xca] sm:$0xff]
      %v3496 = vld [vmem:[%s2697 + $0xda] sm:$0xff]
      %v3497 = vld [vmem:[%s2697 + $0xe2] sm:$0xff]
      %v3498 = vld [vmem:[%s2697 + $0xf2] sm:$0xff]
      %v3499 = vld [vmem:[%s2697 + $0xfa] sm:$0xff]
      %v3500 = vld [vmem:[%s2697 + $0x10a] sm:$0xff]
      %v3501 = vld [vmem:[%s2697 + $0x112] sm:$0xff]
      %v3502 = vld [vmem:[%s2697 + $0x122] sm:$0xff]
      %v3503 = vld [vmem:[%s2697 + $0x12a] sm:$0xff]
      %v3504 = vld [vmem:[%s2697 + $0x13a] sm:$0xff]
      %v3505 = vld [vmem:[%s2697 + $0x142] sm:$0xff]
      %v3506 = vld [vmem:[%s2697 + $0x152] sm:$0xff]
      %v3507 = vld [vmem:[%s2697 + $0x15a] sm:$0xff]
      %v3508 = vld [vmem:[%s2697 + $0x16a] sm:$0xff]
      %v3509 = vld [vmem:[%s2697 + $0x172] sm:$0xff]
      %s3510 = scalar_lea.vmem %s2, 32
      %v3511 = vld [vmem:[%s3510] sm:$0xf]
      %v3513 = vsel %vm236, %v3478, 0
      %v3516 = vsel %vm236, %v3479, 0
      %v3519 = vsel %vm236, %v3480, 0
      %v3522 = vsel %vm236, %v3481, 0
      %v3525 = vsel %vm236, %v3482, 0
      %v3528 = vsel %vm236, %v3483, 0
      %v3531 = vsel %vm236, %v3484, 0
      %v3534 = vsel %vm236, %v3485, 0
      %v3537 = vsel %vm236, %v3486, 0
      %v3540 = vsel %vm236, %v3487, 0
      %v3543 = vsel %vm236, %v3488, 0
      %v3546 = vsel %vm236, %v3489, 0
      %v3549 = vsel %vm236, %v3490, 0
      %v3552 = vsel %vm236, %v3491, 0
      %v3555 = vsel %vm236, %v3492, 0
      %v3558 = vsel %vm236, %v3493, 0
      %v3561 = vsel %vm236, %v3494, 0
      %v3564 = vsel %vm236, %v3495, 0
      %v3567 = vsel %vm236, %v3496, 0
      %v3570 = vsel %vm236, %v3497, 0
      %v3573 = vsel %vm236, %v3498, 0
      %v3576 = vsel %vm236, %v3499, 0
      %v3579 = vsel %vm236, %v3500, 0
      %v3582 = vsel %vm236, %v3501, 0
      %v3585 = vsel %vm236, %v3502, 0
      %v3588 = vsel %vm236, %v3503, 0
      %v3591 = vsel %vm236, %v3504, 0
      %v3594 = vsel %vm236, %v3505, 0
      %v3597 = vsel %vm236, %v3506, 0
      %v3600 = vsel %vm236, %v3507, 0
      %v3603 = vsel %vm236, %v3508, 0
      %v3606 = vsel %vm236, %v3509, 0
      %v3609 = vsel %vm584, %v3511, 0
      %3611 = vmatprep.subr.mxu0 0.0
      %3612 = vmatpush1.msra.mxu0 0.0
      %3613 = vmatprep.subr.mxu0 0.0
      %3614 = vmatpush1.msra.mxu0 0.0
      %3615 = vmatprep.subr.mxu0 0.0
      %3616 = vmatpush1.msra.mxu0 0.0
      %3617 = vmatprep.subr.mxu0 0.0
      %3618 = vmatpush1.msra.mxu0 0.0
      %3619 = vmatprep.subr.mxu0 0.0
      %3620 = vmatpush1.msra.mxu0 0.0
      %3621 = vmatprep.subr.mxu0 0.0
      %3622 = vmatpush1.msra.mxu0 0.0
      %3623 = vmatprep.subr.mxu0 0.0
      %3624 = vmatpush1.msra.mxu0 0.0
      %3625 = vmatprep.subr.mxu0 0.0
      %3626 = vmatpush1.msra.mxu0 0.0
      %3627 = vmatprep.subr.mxu0 0.0
      %3628 = vmatpush1.msra.mxu0 0.0
      %3629 = vmatprep.subr.mxu0 0.0
      %3630 = vmatpush1.msra.mxu0 0.0
      %3631 = vmatprep.subr.mxu0 0.0
      %3632 = vmatpush1.msra.mxu0 0.0
      %3633 = vmatprep.subr.mxu0 0.0
      %3634 = vmatpush1.msra.mxu0 0.0
      %3635 = vmatprep.subr.mxu0 0.0
      %3636 = vmatpush1.msra.mxu0 0.0
      %3637 = vmatprep.subr.mxu0 0.0
      %3638 = vmatpush1.msra.mxu0 0.0
      %3639 = vmatprep.subr.mxu0 0.0
      %3640 = vmatpush1.msra.mxu0 0.0
      %3641 = vmatprep.subr.mxu0 0.0
      %3642 = vmatpush1.msra.mxu0 %v3609
      %3643 = vmatprep.subr.mxu0 0.0
      %3644 = vmatpush2.msra.mxu0 0.0
      %3645 = vmatprep.subr.mxu0 0.0
      %3646 = vmatpush2.msra.mxu0 0.0
      %3647 = vmatprep.subr.mxu0 0.0
      %3648 = vmatpush2.msra.mxu0 0.0
      %3649 = vmatprep.subr.mxu0 0.0
      %3650 = vmatpush2.msra.mxu0 0.0
      %3651 = vmatprep.subr.mxu0 0.0
      %3652 = vmatpush2.msra.mxu0 0.0
      %3653 = vmatprep.subr.mxu0 0.0
      %3654 = vmatpush2.msra.mxu0 0.0
      %3655 = vmatprep.subr.mxu0 0.0
      %3656 = vmatpush2.msra.mxu0 0.0
      %3657 = vmatprep.subr.mxu0 0.0
      %3658 = vmatpush2.msra.mxu0 0.0
      %3659 = vmatprep.subr.mxu0 0.0
      %3660 = vmatpush2.msra.mxu0 0.0
      %3661 = vmatprep.subr.mxu0 0.0
      %3662 = vmatpush2.msra.mxu0 0.0
      %3663 = vmatprep.subr.mxu0 0.0
      %3664 = vmatpush2.msra.mxu0 0.0
      %3665 = vmatprep.subr.mxu0 0.0
      %3666 = vmatpush2.msra.mxu0 0.0
      %3667 = vmatprep.subr.mxu0 0.0
      %3668 = vmatpush2.msra.mxu0 0.0
      %3669 = vmatprep.subr.mxu0 0.0
      %3670 = vmatpush2.msra.mxu0 0.0
      %3671 = vmatprep.subr.mxu0 0.0
      %3672 = vmatpush2.msra.mxu0 0.0
      %3673 = vmatprep.subr.mxu0 0.0
      %3674 = vmatpush2.msra.mxu0 0.0
      %3675 = vmatprep.mubr.f32.mxu0 0.0
      %3676 = vmatmul.mubr.f32.gmra.mxu0 %v3513
      %v3677 = vpop.f32.mrf.mxu0
      %v3678 = vadd.f32 0.0, %v3677
      %v3679 = vpop.f32.mrf.mxu0
      %3680 = vmatprep.mubr.f32.mxu0 0.0
      %3681 = vmatmul.mubr.f32.gmra.mxu0 %v3516
      %v3682 = vpop.f32.mrf.mxu0
      %v3683 = vadd.f32 0.0, %v3682
      %v3684 = vpop.f32.mrf.mxu0
      %3685 = vmatprep.mubr.f32.mxu0 0.0
      %3686 = vmatmul.mubr.f32.gmra.mxu0 %v3519
      %v3687 = vpop.f32.mrf.mxu0
      %v3688 = vadd.f32 0.0, %v3687
      %v3689 = vpop.f32.mrf.mxu0
      %3690 = vmatprep.mubr.f32.mxu0 0.0
      %3691 = vmatmul.mubr.f32.gmra.mxu0 %v3522
      %v3692 = vpop.f32.mrf.mxu0
      %v3693 = vadd.f32 0.0, %v3692
      %v3694 = vpop.f32.mrf.mxu0
      %3695 = vmatprep.mubr.f32.mxu0 0.0
      %3696 = vmatmul.mubr.f32.gmra.mxu0 %v3525
      %v3697 = vpop.f32.mrf.mxu0
      %v3698 = vadd.f32 0.0, %v3697
      %v3699 = vpop.f32.mrf.mxu0
      %3700 = vmatprep.mubr.f32.mxu0 0.0
      %3701 = vmatmul.mubr.f32.gmra.mxu0 %v3528
      %v3702 = vpop.f32.mrf.mxu0
      %v3703 = vadd.f32 0.0, %v3702
      %v3704 = vpop.f32.mrf.mxu0
      %3705 = vmatprep.mubr.f32.mxu0 0.0
      %3706 = vmatmul.mubr.f32.gmra.mxu0 %v3531
      %v3707 = vpop.f32.mrf.mxu0
      %v3708 = vadd.f32 0.0, %v3707
      %v3709 = vpop.f32.mrf.mxu0
      %3710 = vmatprep.mubr.f32.mxu0 0.0
      %3711 = vmatmul.mubr.f32.gmra.mxu0 %v3534
      %v3712 = vpop.f32.mrf.mxu0
      %v3713 = vadd.f32 0.0, %v3712
      %v3714 = vpop.f32.mrf.mxu0
      %3715 = vmatprep.mubr.f32.mxu0 0.0
      %3716 = vmatmul.mubr.f32.gmra.mxu0 %v3537
      %v3717 = vpop.f32.mrf.mxu0
      %v3718 = vadd.f32 0.0, %v3717
      %v3719 = vpop.f32.mrf.mxu0
      %3720 = vmatprep.mubr.f32.mxu0 0.0
      %3721 = vmatmul.mubr.f32.gmra.mxu0 %v3540
      %v3722 = vpop.f32.mrf.mxu0
      %v3723 = vadd.f32 0.0, %v3722
      %v3724 = vpop.f32.mrf.mxu0
      %3725 = vmatprep.mubr.f32.mxu0 0.0
      %3726 = vmatmul.mubr.f32.gmra.mxu0 %v3543
      %v3727 = vpop.f32.mrf.mxu0
      %v3728 = vadd.f32 0.0, %v3727
      %v3729 = vpop.f32.mrf.mxu0
      %3730 = vmatprep.mubr.f32.mxu0 0.0
      %3731 = vmatmul.mubr.f32.gmra.mxu0 %v3546
      %v3732 = vpop.f32.mrf.mxu0
      %v3733 = vadd.f32 0.0, %v3732
      %v3734 = vpop.f32.mrf.mxu0
      %3735 = vmatprep.mubr.f32.mxu0 0.0
      %3736 = vmatmul.mubr.f32.gmra.mxu0 %v3549
      %v3737 = vpop.f32.mrf.mxu0
      %v3738 = vadd.f32 0.0, %v3737
      %v3739 = vpop.f32.mrf.mxu0
      %3740 = vmatprep.mubr.f32.mxu0 0.0
      %3741 = vmatmul.mubr.f32.gmra.mxu0 %v3552
      %v3742 = vpop.f32.mrf.mxu0
      %v3743 = vadd.f32 0.0, %v3742
      %v3744 = vpop.f32.mrf.mxu0
      %3745 = vmatprep.mubr.f32.mxu0 0.0
      %3746 = vmatmul.mubr.f32.gmra.mxu0 %v3555
      %v3747 = vpop.f32.mrf.mxu0
      %v3748 = vadd.f32 0.0, %v3747
      %v3749 = vpop.f32.mrf.mxu0
      %3750 = vmatprep.mubr.f32.mxu0 0.0
      %3751 = vmatmul.mubr.f32.gmra.mxu0 %v3558
      %v3752 = vpop.f32.mrf.mxu0
      %v3753 = vadd.f32 0.0, %v3752
      %v3754 = vpop.f32.mrf.mxu0
      %3755 = vmatprep.mubr.f32.mxu0 0.0
      %3756 = vmatmul.mubr.f32.gmra.mxu0 %v3561
      %v3757 = vpop.f32.mrf.mxu0
      %v3758 = vadd.f32 0.0, %v3757
      %v3759 = vpop.f32.mrf.mxu0
      %3760 = vmatprep.mubr.f32.mxu0 0.0
      %3761 = vmatmul.mubr.f32.gmra.mxu0 %v3564
      %v3762 = vpop.f32.mrf.mxu0
      %v3763 = vadd.f32 0.0, %v3762
      %v3764 = vpop.f32.mrf.mxu0
      %3765 = vmatprep.mubr.f32.mxu0 0.0
      %3766 = vmatmul.mubr.f32.gmra.mxu0 %v3567
      %v3767 = vpop.f32.mrf.mxu0
      %v3768 = vadd.f32 0.0, %v3767
      %v3769 = vpop.f32.mrf.mxu0
      %3770 = vmatprep.mubr.f32.mxu0 0.0
      %3771 = vmatmul.mubr.f32.gmra.mxu0 %v3570
      %v3772 = vpop.f32.mrf.mxu0
      %v3773 = vadd.f32 0.0, %v3772
      %v3774 = vpop.f32.mrf.mxu0
      %3775 = vmatprep.mubr.f32.mxu0 0.0
      %3776 = vmatmul.mubr.f32.gmra.mxu0 %v3573
      %v3777 = vpop.f32.mrf.mxu0
      %v3778 = vadd.f32 0.0, %v3777
      %v3779 = vpop.f32.mrf.mxu0
      %3780 = vmatprep.mubr.f32.mxu0 0.0
      %3781 = vmatmul.mubr.f32.gmra.mxu0 %v3576
      %v3782 = vpop.f32.mrf.mxu0
      %v3783 = vadd.f32 0.0, %v3782
      %v3784 = vpop.f32.mrf.mxu0
      %3785 = vmatprep.mubr.f32.mxu0 0.0
      %3786 = vmatmul.mubr.f32.gmra.mxu0 %v3579
      %v3787 = vpop.f32.mrf.mxu0
      %v3788 = vadd.f32 0.0, %v3787
      %v3789 = vpop.f32.mrf.mxu0
      %3790 = vmatprep.mubr.f32.mxu0 0.0
      %3791 = vmatmul.mubr.f32.gmra.mxu0 %v3582
      %v3792 = vpop.f32.mrf.mxu0
      %v3793 = vadd.f32 0.0, %v3792
      %v3794 = vpop.f32.mrf.mxu0
      %3795 = vmatprep.mubr.f32.mxu0 0.0
      %3796 = vmatmul.mubr.f32.gmra.mxu0 %v3585
      %v3797 = vpop.f32.mrf.mxu0
      %v3798 = vadd.f32 0.0, %v3797
      %v3799 = vpop.f32.mrf.mxu0
      %3800 = vmatprep.mubr.f32.mxu0 0.0
      %3801 = vmatmul.mubr.f32.gmra.mxu0 %v3588
      %v3802 = vpop.f32.mrf.mxu0
      %v3803 = vadd.f32 0.0, %v3802
      %v3804 = vpop.f32.mrf.mxu0
      %3805 = vmatprep.mubr.f32.mxu0 0.0
      %3806 = vmatmul.mubr.f32.gmra.mxu0 %v3591
      %v3807 = vpop.f32.mrf.mxu0
      %v3808 = vadd.f32 0.0, %v3807
      %v3809 = vpop.f32.mrf.mxu0
      %3810 = vmatprep.mubr.f32.mxu0 0.0
      %3811 = vmatmul.mubr.f32.gmra.mxu0 %v3594
      %v3812 = vpop.f32.mrf.mxu0
      %v3813 = vadd.f32 0.0, %v3812
      %v3814 = vpop.f32.mrf.mxu0
      %3815 = vmatprep.mubr.f32.mxu0 0.0
      %3816 = vmatmul.mubr.f32.gmra.mxu0 %v3597
      %v3817 = vpop.f32.mrf.mxu0
      %v3818 = vadd.f32 0.0, %v3817
      %v3819 = vpop.f32.mrf.mxu0
      %3820 = vmatprep.mubr.f32.mxu0 0.0
      %3821 = vmatmul.mubr.f32.gmra.mxu0 %v3600
      %v3822 = vpop.f32.mrf.mxu0
      %v3823 = vadd.f32 0.0, %v3822
      %v3824 = vpop.f32.mrf.mxu0
      %3825 = vmatprep.mubr.f32.mxu0 0.0
      %3826 = vmatmul.mubr.f32.gmra.mxu0 %v3603
      %v3827 = vpop.f32.mrf.mxu0
      %v3828 = vadd.f32 0.0, %v3827
      %v3829 = vpop.f32.mrf.mxu0
      %3830 = vmatprep.mubr.f32.mxu0 0.0
      %3831 = vmatmul.mubr.f32.gmra.mxu0 %v3606
      %v3832 = vpop.f32.mrf.mxu0
      %v3833 = vadd.f32 0.0, %v3832
      %v3834 = vpop.f32.mrf.mxu0
      %3835 = vdwg.mxu0
      %v3836 = vadd.f32 %v3446, %v3678
      %v3837 = vadd.f32 %v3447, %v3683
      %v3838 = vadd.f32 %v3448, %v3688
      %v3839 = vadd.f32 %v3449, %v3693
      %v3840 = vadd.f32 %v3450, %v3698
      %v3841 = vadd.f32 %v3451, %v3703
      %v3842 = vadd.f32 %v3452, %v3708
      %v3843 = vadd.f32 %v3453, %v3713
      %v3844 = vadd.f32 %v3454, %v3718
      %v3845 = vadd.f32 %v3455, %v3723
      %v3846 = vadd.f32 %v3456, %v3728
      %v3847 = vadd.f32 %v3457, %v3733
      %v3848 = vadd.f32 %v3458, %v3738
      %v3849 = vadd.f32 %v3459, %v3743
      %v3850 = vadd.f32 %v3460, %v3748
      %v3851 = vadd.f32 %v3461, %v3753
      %v3852 = vadd.f32 %v3462, %v3758
      %v3853 = vadd.f32 %v3463, %v3763
      %v3854 = vadd.f32 %v3464, %v3768
      %v3855 = vadd.f32 %v3465, %v3773
      %v3856 = vadd.f32 %v3466, %v3778
      %v3857 = vadd.f32 %v3467, %v3783
      %v3858 = vadd.f32 %v3468, %v3788
      %v3859 = vadd.f32 %v3469, %v3793
      %v3860 = vadd.f32 %v3470, %v3798
      %v3861 = vadd.f32 %v3471, %v3803
      %v3862 = vadd.f32 %v3472, %v3808
      %v3863 = vadd.f32 %v3473, %v3813
      %v3864 = vadd.f32 %v3474, %v3818
      %v3865 = vadd.f32 %v3475, %v3823
      %v3866 = vadd.f32 %v3476, %v3828
      %v3867 = vadd.f32 %v3477, %v3833
      %v3868 = vld [vmem:[%s3] sm:$0x1]
      %v3870 = vlaneseq
      %v3871 = vshrl.u32 %v3870, 7
      %v3872 = vsub.s32 0, %v3871
      %v3873 = vrot.slane %v3868, %v3872
      %v3875 = vadd.f32 %v3836, %v3873
      %v3876 = vadd.f32 %v3837, %v3873
      %v3877 = vadd.f32 %v3838, %v3873
      %v3878 = vadd.f32 %v3839, %v3873
      %v3879 = vadd.f32 %v3840, %v3873
      %v3880 = vadd.f32 %v3841, %v3873
      %v3881 = vadd.f32 %v3842, %v3873
      %v3882 = vadd.f32 %v3843, %v3873
      %v3883 = vadd.f32 %v3844, %v3873
      %v3884 = vadd.f32 %v3845, %v3873
      %v3885 = vadd.f32 %v3846, %v3873
      %v3886 = vadd.f32 %v3847, %v3873
      %v3887 = vadd.f32 %v3848, %v3873
      %v3888 = vadd.f32 %v3849, %v3873
      %v3889 = vadd.f32 %v3850, %v3873
      %v3890 = vadd.f32 %v3851, %v3873
      %v3891 = vadd.f32 %v3852, %v3873
      %v3892 = vadd.f32 %v3853, %v3873
      %v3893 = vadd.f32 %v3854, %v3873
      %v3894 = vadd.f32 %v3855, %v3873
      %v3895 = vadd.f32 %v3856, %v3873
      %v3896 = vadd.f32 %v3857, %v3873
      %v3897 = vadd.f32 %v3858, %v3873
      %v3898 = vadd.f32 %v3859, %v3873
      %v3899 = vadd.f32 %v3860, %v3873
      %v3900 = vadd.f32 %v3861, %v3873
      %v3901 = vadd.f32 %v3862, %v3873
      %v3902 = vadd.f32 %v3863, %v3873
      %v3903 = vadd.f32 %v3864, %v3873
      %v3904 = vadd.f32 %v3865, %v3873
      %v3905 = vadd.f32 %v3866, %v3873
      %v3906 = vadd.f32 %v3867, %v3873
      %v3907 = vmax.f32 %v3875, 0.0
      %v3908 = vmax.f32 %v3876, 0.0
      %v3909 = vmax.f32 %v3877, 0.0
      %v3910 = vmax.f32 %v3878, 0.0
      %v3911 = vmax.f32 %v3879, 0.0
      %v3912 = vmax.f32 %v3880, 0.0
      %v3913 = vmax.f32 %v3881, 0.0
      %v3914 = vmax.f32 %v3882, 0.0
      %v3915 = vmax.f32 %v3883, 0.0
      %v3916 = vmax.f32 %v3884, 0.0
      %v3917 = vmax.f32 %v3885, 0.0
      %v3918 = vmax.f32 %v3886, 0.0
      %v3919 = vmax.f32 %v3887, 0.0
      %v3920 = vmax.f32 %v3888, 0.0
      %v3921 = vmax.f32 %v3889, 0.0
      %v3922 = vmax.f32 %v3890, 0.0
      %v3923 = vmax.f32 %v3891, 0.0
      %v3924 = vmax.f32 %v3892, 0.0
      %v3925 = vmax.f32 %v3893, 0.0
      %v3926 = vmax.f32 %v3894, 0.0
      %v3927 = vmax.f32 %v3895, 0.0
      %v3928 = vmax.f32 %v3896, 0.0
      %v3929 = vmax.f32 %v3897, 0.0
      %v3930 = vmax.f32 %v3898, 0.0
      %v3931 = vmax.f32 %v3899, 0.0
      %v3932 = vmax.f32 %v3900, 0.0
      %v3933 = vmax.f32 %v3901, 0.0
      %v3934 = vmax.f32 %v3902, 0.0
      %v3935 = vmax.f32 %v3903, 0.0
      %v3936 = vmax.f32 %v3904, 0.0
      %v3937 = vmax.f32 %v3905, 0.0
      %v3938 = vmax.f32 %v3906, 0.0
      %vm3939 = vcmask 64512
      %v3940 = vsel %vm3939, %v3907, 0.0
      %v3941 = vsel %vm3939, %v3908, 0.0
      %v3942 = vadd.f32 %v3940, %v3941
      %v3943 = vsel %vm3939, %v3909, 0.0
      %v3944 = vadd.f32 %v3942, %v3943
      %v3945 = vsel %vm3939, %v3910, 0.0
      %v3946 = vadd.f32 %v3944, %v3945
      %v3947 = vsel %vm3939, %v3911, 0.0
      %v3948 = vadd.f32 %v3946, %v3947
      %v3949 = vsel %vm3939, %v3912, 0.0
      %v3950 = vadd.f32 %v3948, %v3949
      %v3951 = vsel %vm3939, %v3913, 0.0
      %v3952 = vadd.f32 %v3950, %v3951
      %v3953 = vsel %vm3939, %v3914, 0.0
      %v3954 = vadd.f32 %v3952, %v3953
      %v3955 = vsel %vm3939, %v3915, 0.0
      %v3956 = vadd.f32 %v3954, %v3955
      %v3957 = vsel %vm3939, %v3916, 0.0
      %v3958 = vadd.f32 %v3956, %v3957
      %v3959 = vsel %vm3939, %v3917, 0.0
      %v3960 = vadd.f32 %v3958, %v3959
      %v3961 = vsel %vm3939, %v3918, 0.0
      %v3962 = vadd.f32 %v3960, %v3961
      %v3963 = vsel %vm3939, %v3919, 0.0
      %v3964 = vadd.f32 %v3962, %v3963
      %v3965 = vsel %vm3939, %v3920, 0.0
      %v3966 = vadd.f32 %v3964, %v3965
      %v3967 = vsel %vm3939, %v3921, 0.0
      %v3968 = vadd.f32 %v3966, %v3967
      %v3969 = vsel %vm3939, %v3922, 0.0
      %v3970 = vadd.f32 %v3968, %v3969
      %v3971 = vsel %vm3939, %v3923, 0.0
      %v3972 = vadd.f32 %v3970, %v3971
      %v3973 = vsel %vm3939, %v3924, 0.0
      %v3974 = vadd.f32 %v3972, %v3973
      %v3975 = vsel %vm3939, %v3925, 0.0
      %v3976 = vadd.f32 %v3974, %v3975
      %v3977 = vsel %vm3939, %v3926, 0.0
      %v3978 = vadd.f32 %v3976, %v3977
      %v3979 = vsel %vm3939, %v3927, 0.0
      %v3980 = vadd.f32 %v3978, %v3979
      %v3981 = vsel %vm3939, %v3928, 0.0
      %v3982 = vadd.f32 %v3980, %v3981
      %v3983 = vsel %vm3939, %v3929, 0.0
      %v3984 = vadd.f32 %v3982, %v3983
      %v3985 = vsel %vm3939, %v3930, 0.0
      %v3986 = vadd.f32 %v3984, %v3985
      %v3987 = vsel %vm3939, %v3931, 0.0
      %v3988 = vadd.f32 %v3986, %v3987
      %v3989 = vsel %vm3939, %v3932, 0.0
      %v3990 = vadd.f32 %v3988, %v3989
      %v3991 = vsel %vm3939, %v3933, 0.0
      %v3992 = vadd.f32 %v3990, %v3991
      %v3993 = vsel %vm3939, %v3934, 0.0
      %v3994 = vadd.f32 %v3992, %v3993
      %v3995 = vsel %vm3939, %v3935, 0.0
      %v3996 = vadd.f32 %v3994, %v3995
      %v3997 = vsel %vm3939, %v3936, 0.0
      %v3998 = vadd.f32 %v3996, %v3997
      %v3999 = vsel %vm3939, %v3937, 0.0
      %v4000 = vadd.f32 %v3998, %v3999
      %v4001 = vsel %vm3939, %v3938, 0.0
      %v4002 = vadd.f32 %v4000, %v4001
      %v4003 = vrot.slane %v4002, 4
      %v4004 = vadd.f32 %v4002, %v4003
      %v4005 = vrot.slane %v4004, 2
      %v4006 = vadd.f32 %v4004, %v4005
      %v4007 = vrot.slane %v4006, 1
      %v4008 = vadd.f32 %v4006, %v4007
      %v4009 = vmul.f32 %v3907, %v3907
      %v4010 = vmul.f32 %v3908, %v3908
      %v4011 = vmul.f32 %v3909, %v3909
      %v4012 = vmul.f32 %v3910, %v3910
      %v4013 = vmul.f32 %v3911, %v3911
      %v4014 = vmul.f32 %v3912, %v3912
      %v4015 = vmul.f32 %v3913, %v3913
      %v4016 = vmul.f32 %v3914, %v3914
      %v4017 = vmul.f32 %v3915, %v3915
      %v4018 = vmul.f32 %v3916, %v3916
      %v4019 = vmul.f32 %v3917, %v3917
      %v4020 = vmul.f32 %v3918, %v3918
      %v4021 = vmul.f32 %v3919, %v3919
      %v4022 = vmul.f32 %v3920, %v3920
      %v4023 = vmul.f32 %v3921, %v3921
      %v4024 = vmul.f32 %v3922, %v3922
      %v4025 = vmul.f32 %v3923, %v3923
      %v4026 = vmul.f32 %v3924, %v3924
      %v4027 = vmul.f32 %v3925, %v3925
      %v4028 = vmul.f32 %v3926, %v3926
      %v4029 = vmul.f32 %v3927, %v3927
      %v4030 = vmul.f32 %v3928, %v3928
      %v4031 = vmul.f32 %v3929, %v3929
      %v4032 = vmul.f32 %v3930, %v3930
      %v4033 = vmul.f32 %v3931, %v3931
      %v4034 = vmul.f32 %v3932, %v3932
      %v4035 = vmul.f32 %v3933, %v3933
      %v4036 = vmul.f32 %v3934, %v3934
      %v4037 = vmul.f32 %v3935, %v3935
      %v4038 = vmul.f32 %v3936, %v3936
      %v4039 = vmul.f32 %v3937, %v3937
      %v4040 = vmul.f32 %v3938, %v3938
      %v4041 = vsel %vm3939, %v4009, 0.0
      %v4042 = vsel %vm3939, %v4010, 0.0
      %v4043 = vadd.f32 %v4041, %v4042
      %v4044 = vsel %vm3939, %v4011, 0.0
      %v4045 = vadd.f32 %v4043, %v4044
      %v4046 = vsel %vm3939, %v4012, 0.0
      %v4047 = vadd.f32 %v4045, %v4046
      %v4048 = vsel %vm3939, %v4013, 0.0
      %v4049 = vadd.f32 %v4047, %v4048
      %v4050 = vsel %vm3939, %v4014, 0.0
      %v4051 = vadd.f32 %v4049, %v4050
      %v4052 = vsel %vm3939, %v4015, 0.0
      %v4053 = vadd.f32 %v4051, %v4052
      %v4054 = vsel %vm3939, %v4016, 0.0
      %v4055 = vadd.f32 %v4053, %v4054
      %v4056 = vsel %vm3939, %v4017, 0.0
      %v4057 = vadd.f32 %v4055, %v4056
      %v4058 = vsel %vm3939, %v4018, 0.0
      %v4059 = vadd.f32 %v4057, %v4058
      %v4060 = vsel %vm3939, %v4019, 0.0
      %v4061 = vadd.f32 %v4059, %v4060
      %v4062 = vsel %vm3939, %v4020, 0.0
      %v4063 = vadd.f32 %v4061, %v4062
      %v4064 = vsel %vm3939, %v4021, 0.0
      %v4065 = vadd.f32 %v4063, %v4064
      %v4066 = vsel %vm3939, %v4022, 0.0
      %v4067 = vadd.f32 %v4065, %v4066
      %v4068 = vsel %vm3939, %v4023, 0.0
      %v4069 = vadd.f32 %v4067, %v4068
      %v4070 = vsel %vm3939, %v4024, 0.0
      %v4071 = vadd.f32 %v4069, %v4070
      %v4072 = vsel %vm3939, %v4025, 0.0
      %v4073 = vadd.f32 %v4071, %v4072
      %v4074 = vsel %vm3939, %v4026, 0.0
      %v4075 = vadd.f32 %v4073, %v4074
      %v4076 = vsel %vm3939, %v4027, 0.0
      %v4077 = vadd.f32 %v4075, %v4076
      %v4078 = vsel %vm3939, %v4028, 0.0
      %v4079 = vadd.f32 %v4077, %v4078
      %v4080 = vsel %vm3939, %v4029, 0.0
      %v4081 = vadd.f32 %v4079, %v4080
      %v4082 = vsel %vm3939, %v4030, 0.0
      %v4083 = vadd.f32 %v4081, %v4082
      %v4084 = vsel %vm3939, %v4031, 0.0
      %v4085 = vadd.f32 %v4083, %v4084
      %v4086 = vsel %vm3939, %v4032, 0.0
      %v4087 = vadd.f32 %v4085, %v4086
      %v4088 = vsel %vm3939, %v4033, 0.0
      %v4089 = vadd.f32 %v4087, %v4088
      %v4090 = vsel %vm3939, %v4034, 0.0
      %v4091 = vadd.f32 %v4089, %v4090
      %v4092 = vsel %vm3939, %v4035, 0.0
      %v4093 = vadd.f32 %v4091, %v4092
      %v4094 = vsel %vm3939, %v4036, 0.0
      %v4095 = vadd.f32 %v4093, %v4094
      %v4096 = vsel %vm3939, %v4037, 0.0
      %v4097 = vadd.f32 %v4095, %v4096
      %v4098 = vsel %vm3939, %v4038, 0.0
      %v4099 = vadd.f32 %v4097, %v4098
      %v4100 = vsel %vm3939, %v4039, 0.0
      %v4101 = vadd.f32 %v4099, %v4100
      %v4102 = vsel %vm3939, %v4040, 0.0
      %v4103 = vadd.f32 %v4101, %v4102
      %v4104 = vrot.slane %v4103, 4
      %v4105 = vadd.f32 %v4103, %v4104
      %v4106 = vrot.slane %v4105, 2
      %v4107 = vadd.f32 %v4105, %v4106
      %v4108 = vrot.slane %v4107, 1
      %v4109 = vadd.f32 %v4107, %v4108
      %vm4110 = vcmask 1040384
      %v4111 = vsel %vm4110, %v4008, %v4109
      %vm4112 = vcmask 58368
      %4113 = vst.msk [vmem:[%s235] sm:$0x3] %vm4112, %v4111
      %4114 = vst.msk [vmem:[%s231] sm:$0xff] %vm3939, %v3907
      %4115 = vst.msk [vmem:[%s231 + $0x8] sm:$0xff] %vm3939, %v3908
      %4116 = vst.msk [vmem:[%s231 + $0x10] sm:$0xff] %vm3939, %v3909
      %4117 = vst.msk [vmem:[%s231 + $0x18] sm:$0xff] %vm3939, %v3910
      %4118 = vst.msk [vmem:[%s231 + $0x20] sm:$0xff] %vm3939, %v3911
      %4119 = vst.msk [vmem:[%s231 + $0x28] sm:$0xff] %vm3939, %v3912
      %4120 = vst.msk [vmem:[%s231 + $0x30] sm:$0xff] %vm3939, %v3913
      %4121 = vst.msk [vmem:[%s231 + $0x38] sm:$0xff] %vm3939, %v3914
      %4122 = vst.msk [vmem:[%s231 + $0x40] sm:$0xff] %vm3939, %v3915
      %4123 = vst.msk [vmem:[%s231 + $0x48] sm:$0xff] %vm3939, %v3916
      %4124 = vst.msk [vmem:[%s231 + $0x50] sm:$0xff] %vm3939, %v3917
      %4125 = vst.msk [vmem:[%s231 + $0x58] sm:$0xff] %vm3939, %v3918
      %4126 = vst.msk [vmem:[%s231 + $0x60] sm:$0xff] %vm3939, %v3919
      %4127 = vst.msk [vmem:[%s231 + $0x68] sm:$0xff] %vm3939, %v3920
      %4128 = vst.msk [vmem:[%s231 + $0x70] sm:$0xff] %vm3939, %v3921
      %4129 = vst.msk [vmem:[%s231 + $0x78] sm:$0xff] %vm3939, %v3922
      %4130 = vst.msk [vmem:[%s231 + $0x80] sm:$0xff] %vm3939, %v3923
      %4131 = vst.msk [vmem:[%s231 + $0x88] sm:$0xff] %vm3939, %v3924
      %4132 = vst.msk [vmem:[%s231 + $0x90] sm:$0xff] %vm3939, %v3925
      %4133 = vst.msk [vmem:[%s231 + $0x98] sm:$0xff] %vm3939, %v3926
      %4134 = vst.msk [vmem:[%s231 + $0xa0] sm:$0xff] %vm3939, %v3927
      %4135 = vst.msk [vmem:[%s231 + $0xa8] sm:$0xff] %vm3939, %v3928
      %4136 = vst.msk [vmem:[%s231 + $0xb0] sm:$0xff] %vm3939, %v3929
      %4137 = vst.msk [vmem:[%s231 + $0xb8] sm:$0xff] %vm3939, %v3930
      %4138 = vst.msk [vmem:[%s231 + $0xc0] sm:$0xff] %vm3939, %v3931
      %4139 = vst.msk [vmem:[%s231 + $0xc8] sm:$0xff] %vm3939, %v3932
      %4140 = vst.msk [vmem:[%s231 + $0xd0] sm:$0xff] %vm3939, %v3933
      %4141 = vst.msk [vmem:[%s231 + $0xd8] sm:$0xff] %vm3939, %v3934
      %4142 = vst.msk [vmem:[%s231 + $0xe0] sm:$0xff] %vm3939, %v3935
      %4143 = vst.msk [vmem:[%s231 + $0xe8] sm:$0xff] %vm3939, %v3936
      %4144 = vst.msk [vmem:[%s231 + $0xf0] sm:$0xff] %vm3939, %v3937
      %4145 = vst.msk [vmem:[%s231 + $0xf8] sm:$0xff] %vm3939, %v3938
      %p4146 = scmp.lt.s32.totalorder %s17, 1
      %s4147 = scalar_select %p4146, %s17, 1
      %s4148 = smul.addr %s4147, 32
      %s4149 = smul.addr %s4148, 8
      %s4150 = scalar_lea.vmem %s4, %s4149
      %p4151 = scmp.lt.s32.totalorder %s17, 1
      %s4152 = scalar_select %p4151, %s17, 1
      %s4153 = smul.addr %s4152, 2
      %s4154 = scalar_lea.vmem %s5, %s4153
      // Predicated region
      $region37: #{up_layer_forward.3} parent=35 // pred_check
        %p4155 = pneg %p124
      $region38: #{up_layer_forward.3} parent=35 // pred_check_branch
        %4157 = sbr.rel (%p4155) target = $region40
      $region39: #{up_layer_forward.3} parent=35 // pred_region
        _
      $region40: #{up_layer_forward.3} parent=35 // pred_fallthru
        _
      // Predicated region
      $region41: #{up_layer_forward.3} parent=35 // pred_check
        %p4158 = pneg %p150
      $region42: #{up_layer_forward.3} parent=35 // pred_check_branch
        %4160 = sbr.rel (%p4158) target = $region44
      $region43: #{up_layer_forward.3} parent=35 // pred_region
        _
      $region44: #{up_layer_forward.3} parent=35 // pred_fallthru
        _
    $region36: #{up_layer_forward.3} parent=5 // pred_fallthru
      _
    %p4161 = scmp.le.s32.totalorder 2, %s12
    // Predicated region
    $region45: #{up_layer_forward.3} parent=5 // pred_check
      %p4162 = pneg %p4161
    $region46: #{up_layer_forward.3} parent=5 // pred_check_branch
      %4164 = sbr.rel (%p4162) target = $region48
    $region47: #{up_layer_forward.3} parent=5 // pred_region
      %s4165 = ssub.s32 %s12, 2
      // Predicated region
      $region49: #{up_layer_forward.3} parent=47 // pred_check
        %p4166 = pneg %p130
      $region50: #{up_layer_forward.3} parent=47 // pred_check_branch
        %4168 = sbr.rel (%p4166) target = $region52
      $region51: #{up_layer_forward.3} parent=47 // pred_region
        %p4169 = scmp.lt.s32.totalorder %s18, 1
        %s4170 = scalar_select %p4169, %s18, 1
        %s4171 = smul.addr %s4170, 32
        %s4172 = smul.addr %s4171, 8
        %s4173 = scalar_lea.vmem %s4, %s4172
      $region52: #{up_layer_forward.3} parent=47 // pred_fallthru
        _
      // Predicated region
      $region53: #{up_layer_forward.3} parent=47 // pred_check
        %p4174 = pneg %p156
      $region54: #{up_layer_forward.3} parent=47 // pred_check_branch
        %4176 = sbr.rel (%p4174) target = $region56
      $region55: #{up_layer_forward.3} parent=47 // pred_region
        %p4177 = scmp.lt.s32.totalorder %s18, 1
        %s4178 = scalar_select %p4177, %s18, 1
        %s4179 = smul.addr %s4178, 2
        %s4180 = scalar_lea.vmem %s5, %s4179
      $region56: #{up_layer_forward.3} parent=47 // pred_fallthru
        _
    $region48: #{up_layer_forward.3} parent=5 // pred_fallthru
      _
  $region6: #{up_layer_forward.3} parent=0 // loop_footer
    %s16 = sadd.s32 1, %s12
  $region7: #{up_layer_forward.3} parent=0 // loop_footer_branch
    %11 = sbr.rel target = $region3
  $region8: #{up_layer_forward.3} parent=0 // loop_exit
    _

</llo_original>
